<compile_context>
chip_gen: v6e
topology: v6e:2x2x1
jax: 0.10.0
libtpu: 0.0.40
codegen_flags: <defaults>
</compile_context>

<pallas_src>
import functools

import jax
import jax.numpy as jnp
import numpy as np
from jax.experimental import pallas as pl
from jax.experimental.pallas import tpu as pltpu


def _round_up(x, m):
    return (x + m - 1) // m * m


def _default_vmem_limit():
    # v5e/v6e: 128 MiB VMEM per TensorCore, v7x: 64 MiB.  Keep headroom for
    # double-buffered blocks; fall back to a conservative 48 MiB if the query fails.
    try:
        cap = int(pltpu.get_tpu_info().vmem_capacity_bytes)
    except Exception:
        cap = 64 * 1024 * 1024
    return min((cap * 3) // 4, 96 * 1024 * 1024)


_VMEM_LIMIT = _default_vmem_limit()
_TK = 512          # K tile when K is large (FC GEMM at real image sizes)
_TK_SINGLE = 2048  # up to this K, use a single K step (no K padding needed)


# ----------------------------------------------------------------------------
# Pallas kernel: K-tiled GEMM, bf16 operands, f32 accumulator, fused bias+ReLU
# ----------------------------------------------------------------------------
def _gemm_bias_kernel(x_ref, w_ref, b_ref, o_ref, acc_ref, *, relu):
    k = pl.program_id(2)

    @pl.when(k == 0)
    def _():
        acc_ref[...] = jnp.broadcast_to(b_ref[...].astype(jnp.float32), acc_ref.shape)

    acc_ref[...] += jnp.dot(x_ref[...], w_ref[...], preferred_element_type=jnp.float32)

    @pl.when(k == pl.num_programs(2) - 1)
    def _():
        out = acc_ref[...]
        if relu:
            out = jnp.maximum(out, 0.0)
        o_ref[...] = out.astype(o_ref.dtype)


def pallas_gemm(x, w_pad, b_pad, n_out, *, relu, out_dtype):
    """x: (M, K) float; w_pad: (Kp, Np) bf16 pre-padded; b_pad: (1, Np) f32.

    Returns (M, n_out) in out_dtype.  bf16 MXU matmul, f32 accumulation, fused
    bias and optional ReLU.
    """
    M, K = x.shape
    Kp, Np = w_pad.shape

    if M >= 256:
        tm = 256          # feed the 256-wide MXU on v6e/v7x
    elif M >= 128:
        tm = 128
    else:
        tm = _round_up(M, 16)
    Mp = _round_up(M, tm)
    tn = 128
    tk = Kp if Kp <= _TK_SINGLE else _TK
    kt = Kp // tk

    xb = x.astype(jnp.bfloat16)
    if Mp != M or Kp != K:
        xb = jnp.pad(xb, ((0, Mp - M), (0, Kp - K)))  # zero pad: accumulator unaffected

    out = pl.pallas_call(
        functools.partial(_gemm_bias_kernel, relu=relu),
        out_shape=jax.ShapeDtypeStruct((Mp, Np), out_dtype),
        grid=(Np // tn, Mp // tm, kt),  # (j, i, k): k innermost, weight resident over i
        in_specs=[
            pl.BlockSpec((tm, tk), lambda j, i, k: (i, k)),
            pl.BlockSpec((tk, tn), lambda j, i, k: (k, j)),
            pl.BlockSpec((1, tn), lambda j, i, k: (0, j)),
        ],
        out_specs=pl.BlockSpec((tm, tn), lambda j, i, k: (i, j)),
        scratch_shapes=[pltpu.VMEM((tm, tn), jnp.float32)],
        compiler_params=pltpu.CompilerParams(
            dimension_semantics=("parallel", "parallel", "arbitrary"),
            vmem_limit_bytes=_VMEM_LIMIT,
        ),
    )(xb, w_pad, b_pad)
    return out[:M, :n_out]


# ----------------------------------------------------------------------------
# Pallas kernel: MaxPool2d(kernel=3, stride=2) as an elementwise 9-way VPU max
# ----------------------------------------------------------------------------
def _max9_kernel(*refs):
    srcs, o_ref = refs[:-1], refs[-1]
    m = srcs[0][...]
    for r in srcs[1:]:
        m = jnp.maximum(m, r[...])
    o_ref[...] = m


def maxpool3x3s2_nhwc(x):
    """x: (N, H, W, C) -> (N, Ho, Wo, C); PyTorch MaxPool2d(3, 2), ceil_mode=False."""
    N, H, W, C = x.shape
    Ho = (H - 3) // 2 + 1
    Wo = (W - 3) // 2 + 1
    views = []
    for i in range(3):
        for j in range(3):
            v = x[:, i: i + 2 * (Ho - 1) + 1: 2, j: j + 2 * (Wo - 1) + 1: 2, :]
            views.append(v.reshape(N * Ho, Wo * C))  # lane-dense 2-D view
    R, L = N * Ho, Wo * C

    # Tile the lane axis so Pallas can double-buffer HBM<->VMEM on large images;
    # at small sizes a single whole-array block is used.
    tl = L
    for cand in (4096, 2048, 1024):
        if L > cand and L % cand == 0:
            tl = cand
            break

    out = pl.pallas_call(
        _max9_kernel,
        out_shape=jax.ShapeDtypeStruct((R, L), x.dtype),
        grid=(L // tl,),
        in_specs=[pl.BlockSpec((R, tl), lambda c: (0, c)) for _ in range(9)],
        out_specs=pl.BlockSpec((R, tl), lambda c: (0, c)),
        compiler_params=pltpu.CompilerParams(
            dimension_semantics=("parallel",),
            vmem_limit_bytes=_VMEM_LIMIT,
        ),
    )(*views)
    return out.reshape(N, Ho, Wo, C)


# ----------------------------------------------------------------------------
# Conv2d (+ReLU) via im2col (NHWC, no activation transpose) + Pallas GEMM
# ----------------------------------------------------------------------------
def _im2col_nhwc(x, kh, kw, stride, padding):
    """x: (N, H, W, C) -> cols (N*Ho*Wo, kh*kw*C); K-order (kh, kw, C)."""
    N, H, W, C = x.shape
    xp = jnp.pad(x, ((0, 0), (padding, padding), (padding, padding), (0, 0)))
    Ho = (H + 2 * padding - kh) // stride + 1
    Wo = (W + 2 * padding - kw) // stride + 1
    views = []
    for i in range(kh):
        for j in range(kw):
            views.append(
                xp[:, i: i + stride * (Ho - 1) + 1: stride,
                      j: j + stride * (Wo - 1) + 1: stride, :]
            )
    col = jnp.stack(views, axis=3)  # (N, Ho, Wo, kh*kw, C): already in output order
    return col.reshape(N * Ho * Wo, kh * kw * C), Ho, Wo


def conv2d_relu_nhwc(x, layer, *, stride, padding):
    N = x.shape[0]
    kh, kw, cout = layer["kh"], layer["kw"], layer["cout"]
    cols, Ho, Wo = _im2col_nhwc(x, kh, kw, stride, padding)
    y = pallas_gemm(cols, layer["w"], layer["b"], cout, relu=True, out_dtype=jnp.bfloat16)
    return y.reshape(N, Ho, Wo, cout)  # GEMM output is already NHWC


# ----------------------------------------------------------------------------
# One-time weight preparation (precompute / cache all weight-side constants)
# ----------------------------------------------------------------------------
def _adaptive_pool_matrix(Hin, Win, Hout, Wout):
    """(Hin*Win, Hout*Wout) matrix implementing torch AdaptiveAvgPool2d exactly."""
    A = np.zeros((Hin * Win, Hout * Wout), dtype=np.float32)
    for oh in range(Hout):
        h0 = (oh * Hin) // Hout
        h1 = -((-(oh + 1) * Hin) // Hout)  # ceil
        for ow in range(Wout):
            w0 = (ow * Win) // Wout
            w1 = -((-(ow + 1) * Win) // Wout)
            cnt = (h1 - h0) * (w1 - w0)
            for h in range(h0, h1):
                for w in range(w0, w1):
                    A[h * Win + w, oh * Wout + ow] = 1.0 / cnt
    return jnp.asarray(A)


def _pad_gemm_weight(wmat, bias):
    """Cast weight to bf16, zero-pad N to a multiple of 128 and K to a K-tile multiple."""
    K, Nc = wmat.shape
    Np = _round_up(Nc, 128)
    Kp = K if K <= _TK_SINGLE else _round_up(K, _TK)
    w_pad = jnp.pad(wmat.astype(jnp.bfloat16), ((0, Kp - K), (0, Np - Nc)))
    b_pad = jnp.pad(bias.astype(jnp.float32).reshape(1, -1), ((0, 0), (0, Np - Nc)))
    return w_pad, b_pad


def _conv_out(h, k, s, p):
    return (h + 2 * p - k) // s + 1


def prepare_params(params, input_hw, pool_size=6):
    """Hoist all per-forward weight transposes / pads / pool-matrix builds to init time."""
    H, W = input_hw

    def conv_layer(w, b):
        cout, cin, kh, kw = w.shape
        # K-order (kh, kw, cin) matches the im2col stacked-view layout: the permutation
        # lives on the tiny static weight, not on the big activation.
        wmat = jnp.transpose(w, (2, 3, 1, 0)).reshape(kh * kw * cin, cout)
        w_pad, b_pad = _pad_gemm_weight(wmat, b)
        return {"w": w_pad, "b": b_pad, "kh": kh, "kw": kw, "cout": cout}

    c1 = conv_layer(params["w1"], params["b1"])
    c2 = conv_layer(params["w2"], params["b2"])
    c3 = conv_layer(params["w3"], params["b3"])

    # Static feature-map geometry of the feature extractor.
    h1, w1 = _conv_out(H, 11, 4, 2), _conv_out(W, 11, 4, 2)
    h1p, w1p = (h1 - 3) // 2 + 1, (w1 - 3) // 2 + 1
    h2, w2 = _conv_out(h1p, 5, 1, 2), _conv_out(w1p, 5, 1, 2)
    h2p, w2p = (h2 - 3) // 2 + 1, (w2 - 3) // 2 + 1
    h3, w3 = _conv_out(h2p, 3, 1, 1), _conv_out(w2p, 3, 1, 1)

    # Fuse AdaptiveAvgPool2d + flatten + Linear into a single GEMM:
    #   logits[n, o] = sum_{h,w,c} x[n,h,w,c] * W_comb[(h*Wf + w)*C + c, o] + bfc[o]
    #   W_comb[q*C + c, o] = sum_p A[q, p] * wfc[o, c*P*P + p]
    num_classes, kfc = params["wfc"].shape
    C = kfc // (pool_size * pool_size)
    A = _adaptive_pool_matrix(h3, w3, pool_size, pool_size)                   # (h3*w3, P*P)
    wfc_r = params["wfc"].T.astype(jnp.float32).reshape(C, pool_size * pool_size, num_classes)
    w_comb = jnp.einsum("qp,cpn->qcn", A, wfc_r).reshape(h3 * w3 * C, num_classes)
    fc_w, fc_b = _pad_gemm_weight(w_comb, params["bfc"])

    return {"c1": c1, "c2": c2, "c3": c3,
            "fc_w": fc_w, "fc_b": fc_b, "num_classes": num_classes}


# ----------------------------------------------------------------------------
# Full AlexNetThree forward
# ----------------------------------------------------------------------------
def alexnet_three_forward(x_nchw, prep):
    # NCHW (PyTorch input convention) -> NHWC bf16 working layout (one tiny transpose).
    x = jnp.transpose(x_nchw, (0, 2, 3, 1)).astype(jnp.bfloat16)
    x = conv2d_relu_nhwc(x, prep["c1"], stride=4, padding=2)
    x = maxpool3x3s2_nhwc(x)
    x = conv2d_relu_nhwc(x, prep["c2"], stride=1, padding=2)
    x = maxpool3x3s2_nhwc(x)
    x = conv2d_relu_nhwc(x, prep["c3"], stride=1, padding=1)
    # AdaptiveAvgPool2d + flatten + Dropout(identity at eval) + Linear as one GEMM.
    N, Hf, Wf, C = x.shape
    logits = pallas_gemm(x.reshape(N, Hf * Wf * C), prep["fc_w"], prep["fc_b"],
                         prep["num_classes"], relu=False, out_dtype=jnp.float32)
    return logits


def init_params(key, num_classes=10, pool_size=6, dtype=jnp.float32):
    ks = jax.random.split(key, 8)
    s = 0.02
    return {
        "w1": jax.random.normal(ks[0], (64, 3, 11, 11), dtype) * s,
        "b1": jax.random.normal(ks[1], (64,), dtype) * s,
        "w2": jax.random.normal(ks[2], (192, 64, 5, 5), dtype) * s,
        "b2": jax.random.normal(ks[3], (192,), dtype) * s,
        "w3": jax.random.normal(ks[4], (384, 192, 3, 3), dtype) * s,
        "b3": jax.random.normal(ks[5], (384,), dtype) * s,
        "wfc": jax.random.normal(ks[6], (num_classes, 384 * pool_size * pool_size), dtype) * s,
        "bfc": jax.random.normal(ks[7], (num_classes,), dtype) * s,
    }


if __name__ == "__main__":
    key = jax.random.PRNGKey(0)
    kp, kx = jax.random.split(key)
    num_classes = 10
    pool_size = 6
    params = init_params(kp, num_classes=num_classes, pool_size=pool_size)

    # Small NCHW input consistent with the module (3 input channels).
    x = jax.random.normal(kx, (2, 3, 64, 64), jnp.float32)

    prep = prepare_params(params, input_hw=(x.shape[2], x.shape[3]), pool_size=pool_size)
    fwd = jax.jit(lambda inp: alexnet_three_forward(inp, prep))

    out = jax.block_until_ready(fwd(x))
    assert out.shape == (2, num_classes), out.shape
    assert bool(jnp.all(jnp.isfinite(out)))
    print("KERNEL_OK")
</pallas_src>

<mosaic_0001>
module attributes {stable_mosaic.version = 11 : i64} {
  func.func @_gemm_bias_kernel(%arg0: i32, %arg1: i32, %arg2: i32, %arg3: memref<256x363xbf16, #tpu.memory_space<vmem>>, %arg4: memref<363x128xbf16, #tpu.memory_space<vmem>>, %arg5: memref<1x128xf32, #tpu.memory_space<vmem>>, %arg6: memref<256x128xbf16, #tpu.memory_space<vmem>>, %arg7: memref<256x128xf32, #tpu.memory_space<vmem>>) attributes {dimension_semantics = [#tpu.dimension_semantics<parallel>, #tpu.dimension_semantics<parallel>, #tpu.dimension_semantics<arbitrary>], iteration_bounds = array<i64: 1, 2, 1>, scalar_prefetch = 0 : i64, scratch_operands = 1 : i64, tpu.core_type = #tpu.core_type<tc>, window_params = [{transform_indices = @transform_0, window_bounds = array<i64: 256, 363>}, {transform_indices = @transform_1, window_bounds = array<i64: 363, 128>}, {transform_indices = @transform_2, window_bounds = array<i64: 1, 128>}, {transform_indices = @transform_3, window_bounds = array<i64: 256, 128>}]} {
    %c0_i32 = arith.constant 0 : i32
    %0 = arith.cmpi eq, %arg2, %c0_i32 : i32
    %1 = arith.extui %0 : i1 to i32
    %c0_i32_0 = arith.constant 0 : i32
    %2 = arith.cmpi ne, %1, %c0_i32_0 : i32
    scf.if %2 {
      %c0_10 = arith.constant 0 : index
      %c0_11 = arith.constant 0 : index
      %12 = vector.load %arg5[%c0_10, %c0_11] : memref<1x128xf32, #tpu.memory_space<vmem>>, vector<1x128xf32>
      %13 = vector.shape_cast %12 : vector<1x128xf32> to vector<1x128xf32>
      %14 = vector.broadcast %13 : vector<1x128xf32> to vector<256x128xf32>
      %c0_12 = arith.constant 0 : index
      %c0_13 = arith.constant 0 : index
      %15 = vector.load %arg7[%c0_12, %c0_13] : memref<256x128xf32, #tpu.memory_space<vmem>>, vector<256x128xf32>
      tpu.vector_store %arg7[%c0_12, %c0_13], %14 {strides = array<i32>} : memref<256x128xf32, #tpu.memory_space<vmem>>, vector<256x128xf32>,
    } else {
    }
    %c0 = arith.constant 0 : index
    %c0_1 = arith.constant 0 : index
    %3 = vector.load %arg7[%c0, %c0_1] : memref<256x128xf32, #tpu.memory_space<vmem>>, vector<256x128xf32>
    %c0_2 = arith.constant 0 : index
    %c0_3 = arith.constant 0 : index
    %4 = vector.load %arg3[%c0_2, %c0_3] : memref<256x363xbf16, #tpu.memory_space<vmem>>, vector<256x363xbf16>
    %c0_4 = arith.constant 0 : index
    %c0_5 = arith.constant 0 : index
    %5 = vector.load %arg4[%c0_4, %c0_5] : memref<363x128xbf16, #tpu.memory_space<vmem>>, vector<363x128xbf16>
    %cst = arith.constant dense<0.000000e+00> : vector<256x128xf32>
    %6 = tpu.matmul %4, %5, %cst {dimension_numbers = #tpu.dot_dimension_numbers<[1], [0], [0], [1], [0, 0, 1, 1], [], []>} : vector<256x363xbf16>, vector<363x128xbf16>, vector<256x128xf32> -> vector<256x128xf32>
    %7 = arith.addf %3, %6 : vector<256x128xf32>
    %c0_6 = arith.constant 0 : index
    %c0_7 = arith.constant 0 : index
    %8 = vector.load %arg7[%c0_6, %c0_7] : memref<256x128xf32, #tpu.memory_space<vmem>>, vector<256x128xf32>
    tpu.vector_store %arg7[%c0_6, %c0_7], %7 {strides = array<i32>} : memref<256x128xf32, #tpu.memory_space<vmem>>, vector<256x128xf32>,
    %c0_i32_8 = arith.constant 0 : i32
    %9 = arith.cmpi eq, %arg2, %c0_i32_8 : i32
    %10 = arith.extui %9 : i1 to i32
    %c0_i32_9 = arith.constant 0 : i32
    %11 = arith.cmpi ne, %10, %c0_i32_9 : i32
    scf.if %11 {
      %c0_10 = arith.constant 0 : index
      %c0_11 = arith.constant 0 : index
      %12 = vector.load %arg7[%c0_10, %c0_11] : memref<256x128xf32, #tpu.memory_space<vmem>>, vector<256x128xf32>
      %cst_12 = arith.constant 0.000000e+00 : f32
      %13 = vector.broadcast %cst_12 : f32 to vector<256x128xf32>
      %14 = arith.maximumf %12, %13 : vector<256x128xf32>
      %15 = arith.truncf %14 : vector<256x128xf32> to vector<256x128xbf16>
      %c0_13 = arith.constant 0 : index
      %c0_14 = arith.constant 0 : index
      %16 = vector.load %arg6[%c0_13, %c0_14] : memref<256x128xbf16, #tpu.memory_space<vmem>>, vector<256x128xbf16>
      tpu.vector_store %arg6[%c0_13, %c0_14], %15 {strides = array<i32>} : memref<256x128xbf16, #tpu.memory_space<vmem>>, vector<256x128xbf16>,
    } else {
    }
    return
  }
  func.func @transform_0(%arg0: i32, %arg1: i32, %arg2: i32) -> (i32, i32) {
    %c0_i32 = arith.constant 0 : i32
    return %arg1, %arg2 : i32, i32
  }
  func.func @transform_1(%arg0: i32, %arg1: i32, %arg2: i32) -> (i32, i32) {
    %c0_i32 = arith.constant 0 : i32
    return %arg2, %arg0 : i32, i32
  }
  func.func @transform_2(%arg0: i32, %arg1: i32, %arg2: i32) -> (i32, i32) {
    %c0_i32 = arith.constant 0 : i32
    %c0_i32_0 = arith.constant 0 : i32
    return %c0_i32, %arg0 : i32, i32
  }
  func.func @transform_3(%arg0: i32, %arg1: i32, %arg2: i32) -> (i32, i32) {
    %c0_i32 = arith.constant 0 : i32
    return %arg1, %arg0 : i32, i32
  }
}

module attributes {stable_mosaic.version = 11 : i64} {
  func.func @_max9_kernel(%arg0: i32, %arg1: memref<14x448xbf16, #tpu.memory_space<vmem>>, %arg2: memref<14x448xbf16, #tpu.memory_space<vmem>>, %arg3: memref<14x448xbf16, #tpu.memory_space<vmem>>, %arg4: memref<14x448xbf16, #tpu.memory_space<vmem>>, %arg5: memref<14x448xbf16, #tpu.memory_space<vmem>>, %arg6: memref<14x448xbf16, #tpu.memory_space<vmem>>, %arg7: memref<14x448xbf16, #tpu.memory_space<vmem>>, %arg8: memref<14x448xbf16, #tpu.memory_space<vmem>>, %arg9: memref<14x448xbf16, #tpu.memory_space<vmem>>, %arg10: memref<14x448xbf16, #tpu.memory_space<vmem>>) attributes {dimension_semantics = [#tpu.dimension_semantics<parallel>], iteration_bounds = array<i64: 1>, scalar_prefetch = 0 : i64, scratch_operands = 0 : i64, tpu.core_type = #tpu.core_type<tc>, window_params = [{transform_indices = @transform_0, window_bounds = array<i64: 14, 448>}, {transform_indices = @transform_1, window_bounds = array<i64: 14, 448>}, {transform_indices = @transform_2, window_bounds = array<i64: 14, 448>}, {transform_indices = @transform_3, window_bounds = array<i64: 14, 448>}, {transform_indices = @transform_4, window_bounds = array<i64: 14, 448>}, {transform_indices = @transform_5, window_bounds = array<i64: 14, 448>}, {transform_indices = @transform_6, window_bounds = array<i64: 14, 448>}, {transform_indices = @transform_7, window_bounds = array<i64: 14, 448>}, {transform_indices = @transform_8, window_bounds = array<i64: 14, 448>}, {transform_indices = @transform_9, window_bounds = array<i64: 14, 448>}]} {
    %c0 = arith.constant 0 : index
    %c0_0 = arith.constant 0 : index
    %0 = vector.load %arg1[%c0, %c0_0] : memref<14x448xbf16, #tpu.memory_space<vmem>>, vector<14x448xbf16>
    %c0_1 = arith.constant 0 : index
    %c0_2 = arith.constant 0 : index
    %1 = vector.load %arg2[%c0_1, %c0_2] : memref<14x448xbf16, #tpu.memory_space<vmem>>, vector<14x448xbf16>
    %2 = arith.maximumf %0, %1 : vector<14x448xbf16>
    %c0_3 = arith.constant 0 : index
    %c0_4 = arith.constant 0 : index
    %3 = vector.load %arg3[%c0_3, %c0_4] : memref<14x448xbf16, #tpu.memory_space<vmem>>, vector<14x448xbf16>
    %4 = arith.maximumf %2, %3 : vector<14x448xbf16>
    %c0_5 = arith.constant 0 : index
    %c0_6 = arith.constant 0 : index
    %5 = vector.load %arg4[%c0_5, %c0_6] : memref<14x448xbf16, #tpu.memory_space<vmem>>, vector<14x448xbf16>
    %6 = arith.maximumf %4, %5 : vector<14x448xbf16>
    %c0_7 = arith.constant 0 : index
    %c0_8 = arith.constant 0 : index
    %7 = vector.load %arg5[%c0_7, %c0_8] : memref<14x448xbf16, #tpu.memory_space<vmem>>, vector<14x448xbf16>
    %8 = arith.maximumf %6, %7 : vector<14x448xbf16>
    %c0_9 = arith.constant 0 : index
    %c0_10 = arith.constant 0 : index
    %9 = vector.load %arg6[%c0_9, %c0_10] : memref<14x448xbf16, #tpu.memory_space<vmem>>, vector<14x448xbf16>
    %10 = arith.maximumf %8, %9 : vector<14x448xbf16>
    %c0_11 = arith.constant 0 : index
    %c0_12 = arith.constant 0 : index
    %11 = vector.load %arg7[%c0_11, %c0_12] : memref<14x448xbf16, #tpu.memory_space<vmem>>, vector<14x448xbf16>
    %12 = arith.maximumf %10, %11 : vector<14x448xbf16>
    %c0_13 = arith.constant 0 : index
    %c0_14 = arith.constant 0 : index
    %13 = vector.load %arg8[%c0_13, %c0_14] : memref<14x448xbf16, #tpu.memory_space<vmem>>, vector<14x448xbf16>
    %14 = arith.maximumf %12, %13 : vector<14x448xbf16>
    %c0_15 = arith.constant 0 : index
    %c0_16 = arith.constant 0 : index
    %15 = vector.load %arg9[%c0_15, %c0_16] : memref<14x448xbf16, #tpu.memory_space<vmem>>, vector<14x448xbf16>
    %16 = arith.maximumf %14, %15 : vector<14x448xbf16>
    %c0_17 = arith.constant 0 : index
    %c0_18 = arith.constant 0 : index
    %17 = vector.load %arg10[%c0_17, %c0_18] : memref<14x448xbf16, #tpu.memory_space<vmem>>, vector<14x448xbf16>
    tpu.vector_store %arg10[%c0_17, %c0_18], %16 {strides = array<i32>} : memref<14x448xbf16, #tpu.memory_space<vmem>>, vector<14x448xbf16>,
    return
  }
  func.func @transform_0(%arg0: i32) -> (i32, i32) {
    %c0_i32 = arith.constant 0 : i32
    %c0_i32_0 = arith.constant 0 : i32
    return %c0_i32, %arg0 : i32, i32
  }
  func.func @transform_1(%arg0: i32) -> (i32, i32) {
    %c0_i32 = arith.constant 0 : i32
    %c0_i32_0 = arith.constant 0 : i32
    return %c0_i32, %arg0 : i32, i32
  }
  func.func @transform_2(%arg0: i32) -> (i32, i32) {
    %c0_i32 = arith.constant 0 : i32
    %c0_i32_0 = arith.constant 0 : i32
    return %c0_i32, %arg0 : i32, i32
  }
  func.func @transform_3(%arg0: i32) -> (i32, i32) {
    %c0_i32 = arith.constant 0 : i32
    %c0_i32_0 = arith.constant 0 : i32
    return %c0_i32, %arg0 : i32, i32
  }
  func.func @transform_4(%arg0: i32) -> (i32, i32) {
    %c0_i32 = arith.constant 0 : i32
    %c0_i32_0 = arith.constant 0 : i32
    return %c0_i32, %arg0 : i32, i32
  }
  func.func @transform_5(%arg0: i32) -> (i32, i32) {
    %c0_i32 = arith.constant 0 : i32
    %c0_i32_0 = arith.constant 0 : i32
    return %c0_i32, %arg0 : i32, i32
  }
  func.func @transform_6(%arg0: i32) -> (i32, i32) {
    %c0_i32 = arith.constant 0 : i32
    %c0_i32_0 = arith.constant 0 : i32
    return %c0_i32, %arg0 : i32, i32
  }
  func.func @transform_7(%arg0: i32) -> (i32, i32) {
    %c0_i32 = arith.constant 0 : i32
    %c0_i32_0 = arith.constant 0 : i32
    return %c0_i32, %arg0 : i32, i32
  }
  func.func @transform_8(%arg0: i32) -> (i32, i32) {
    %c0_i32 = arith.constant 0 : i32
    %c0_i32_0 = arith.constant 0 : i32
    return %c0_i32, %arg0 : i32, i32
  }
  func.func @transform_9(%arg0: i32) -> (i32, i32) {
    %c0_i32 = arith.constant 0 : i32
    %c0_i32_0 = arith.constant 0 : i32
    return %c0_i32, %arg0 : i32, i32
  }
}

module attributes {stable_mosaic.version = 11 : i64} {
  func.func @_gemm_bias_kernel(%arg0: i32, %arg1: i32, %arg2: i32, %arg3: memref<112x1600xbf16, #tpu.memory_space<vmem>>, %arg4: memref<1600x128xbf16, #tpu.memory_space<vmem>>, %arg5: memref<1x128xf32, #tpu.memory_space<vmem>>, %arg6: memref<112x128xbf16, #tpu.memory_space<vmem>>, %arg7: memref<112x128xf32, #tpu.memory_space<vmem>>) attributes {dimension_semantics = [#tpu.dimension_semantics<parallel>, #tpu.dimension_semantics<parallel>, #tpu.dimension_semantics<arbitrary>], iteration_bounds = array<i64: 2, 1, 1>, scalar_prefetch = 0 : i64, scratch_operands = 1 : i64, tpu.core_type = #tpu.core_type<tc>, window_params = [{transform_indices = @transform_0, window_bounds = array<i64: 112, 1600>}, {transform_indices = @transform_1, window_bounds = array<i64: 1600, 128>}, {transform_indices = @transform_2, window_bounds = array<i64: 1, 128>}, {transform_indices = @transform_3, window_bounds = array<i64: 112, 128>}]} {
    %c0_i32 = arith.constant 0 : i32
    %0 = arith.cmpi eq, %arg2, %c0_i32 : i32
    %1 = arith.extui %0 : i1 to i32
    %c0_i32_0 = arith.constant 0 : i32
    %2 = arith.cmpi ne, %1, %c0_i32_0 : i32
    scf.if %2 {
      %c0_10 = arith.constant 0 : index
      %c0_11 = arith.constant 0 : index
      %12 = vector.load %arg5[%c0_10, %c0_11] : memref<1x128xf32, #tpu.memory_space<vmem>>, vector<1x128xf32>
      %13 = vector.shape_cast %12 : vector<1x128xf32> to vector<1x128xf32>
      %14 = vector.broadcast %13 : vector<1x128xf32> to vector<112x128xf32>
      %c0_12 = arith.constant 0 : index
      %c0_13 = arith.constant 0 : index
      %15 = vector.load %arg7[%c0_12, %c0_13] : memref<112x128xf32, #tpu.memory_space<vmem>>, vector<112x128xf32>
      tpu.vector_store %arg7[%c0_12, %c0_13], %14 {strides = array<i32>} : memref<112x128xf32, #tpu.memory_space<vmem>>, vector<112x128xf32>,
    } else {
    }
    %c0 = arith.constant 0 : index
    %c0_1 = arith.constant 0 : index
    %3 = vector.load %arg7[%c0, %c0_1] : memref<112x128xf32, #tpu.memory_space<vmem>>, vector<112x128xf32>
    %c0_2 = arith.constant 0 : index
    %c0_3 = arith.constant 0 : index
    %4 = vector.load %arg3[%c0_2, %c0_3] : memref<112x1600xbf16, #tpu.memory_space<vmem>>, vector<112x1600xbf16>
    %c0_4 = arith.constant 0 : index
    %c0_5 = arith.constant 0 : index
    %5 = vector.load %arg4[%c0_4, %c0_5] : memref<1600x128xbf16, #tpu.memory_space<vmem>>, vector<1600x128xbf16>
    %cst = arith.constant dense<0.000000e+00> : vector<112x128xf32>
    %6 = tpu.matmul %4, %5, %cst {dimension_numbers = #tpu.dot_dimension_numbers<[1], [0], [0], [1], [0, 0, 1, 1], [], []>} : vector<112x1600xbf16>, vector<1600x128xbf16>, vector<112x128xf32> -> vector<112x128xf32>
    %7 = arith.addf %3, %6 : vector<112x128xf32>
    %c0_6 = arith.constant 0 : index
    %c0_7 = arith.constant 0 : index
    %8 = vector.load %arg7[%c0_6, %c0_7] : memref<112x128xf32, #tpu.memory_space<vmem>>, vector<112x128xf32>
    tpu.vector_store %arg7[%c0_6, %c0_7], %7 {strides = array<i32>} : memref<112x128xf32, #tpu.memory_space<vmem>>, vector<112x128xf32>,
    %c0_i32_8 = arith.constant 0 : i32
    %9 = arith.cmpi eq, %arg2, %c0_i32_8 : i32
    %10 = arith.extui %9 : i1 to i32
    %c0_i32_9 = arith.constant 0 : i32
    %11 = arith.cmpi ne, %10, %c0_i32_9 : i32
    scf.if %11 {
      %c0_10 = arith.constant 0 : index
      %c0_11 = arith.constant 0 : index
      %12 = vector.load %arg7[%c0_10, %c0_11] : memref<112x128xf32, #tpu.memory_space<vmem>>, vector<112x128xf32>
      %cst_12 = arith.constant 0.000000e+00 : f32
      %13 = vector.broadcast %cst_12 : f32 to vector<112x128xf32>
      %14 = arith.maximumf %12, %13 : vector<112x128xf32>
      %15 = arith.truncf %14 : vector<112x128xf32> to vector<112x128xbf16>
      %c0_13 = arith.constant 0 : index
      %c0_14 = arith.constant 0 : index
      %16 = vector.load %arg6[%c0_13, %c0_14] : memref<112x128xbf16, #tpu.memory_space<vmem>>, vector<112x128xbf16>
      tpu.vector_store %arg6[%c0_13, %c0_14], %15 {strides = array<i32>} : memref<112x128xbf16, #tpu.memory_space<vmem>>, vector<112x128xbf16>,
    } else {
    }
    return
  }
  func.func @transform_0(%arg0: i32, %arg1: i32, %arg2: i32) -> (i32, i32) {
    %c0_i32 = arith.constant 0 : i32
    return %arg1, %arg2 : i32, i32
  }
  func.func @transform_1(%arg0: i32, %arg1: i32, %arg2: i32) -> (i32, i32) {
    %c0_i32 = arith.constant 0 : i32
    return %arg2, %arg0 : i32, i32
  }
  func.func @transform_2(%arg0: i32, %arg1: i32, %arg2: i32) -> (i32, i32) {
    %c0_i32 = arith.constant 0 : i32
    %c0_i32_0 = arith.constant 0 : i32
    return %c0_i32, %arg0 : i32, i32
  }
  func.func @transform_3(%arg0: i32, %arg1: i32, %arg2: i32) -> (i32, i32) {
    %c0_i32 = arith.constant 0 : i32
    return %arg1, %arg0 : i32, i32
  }
}

module attributes {stable_mosaic.version = 11 : i64} {
  func.func @_max9_kernel(%arg0: i32, %arg1: memref<6x576xbf16, #tpu.memory_space<vmem>>, %arg2: memref<6x576xbf16, #tpu.memory_space<vmem>>, %arg3: memref<6x576xbf16, #tpu.memory_space<vmem>>, %arg4: memref<6x576xbf16, #tpu.memory_space<vmem>>, %arg5: memref<6x576xbf16, #tpu.memory_space<vmem>>, %arg6: memref<6x576xbf16, #tpu.memory_space<vmem>>, %arg7: memref<6x576xbf16, #tpu.memory_space<vmem>>, %arg8: memref<6x576xbf16, #tpu.memory_space<vmem>>, %arg9: memref<6x576xbf16, #tpu.memory_space<vmem>>, %arg10: memref<6x576xbf16, #tpu.memory_space<vmem>>) attributes {dimension_semantics = [#tpu.dimension_semantics<parallel>], iteration_bounds = array<i64: 1>, scalar_prefetch = 0 : i64, scratch_operands = 0 : i64, tpu.core_type = #tpu.core_type<tc>, window_params = [{transform_indices = @transform_0, window_bounds = array<i64: 6, 576>}, {transform_indices = @transform_1, window_bounds = array<i64: 6, 576>}, {transform_indices = @transform_2, window_bounds = array<i64: 6, 576>}, {transform_indices = @transform_3, window_bounds = array<i64: 6, 576>}, {transform_indices = @transform_4, window_bounds = array<i64: 6, 576>}, {transform_indices = @transform_5, window_bounds = array<i64: 6, 576>}, {transform_indices = @transform_6, window_bounds = array<i64: 6, 576>}, {transform_indices = @transform_7, window_bounds = array<i64: 6, 576>}, {transform_indices = @transform_8, window_bounds = array<i64: 6, 576>}, {transform_indices = @transform_9, window_bounds = array<i64: 6, 576>}]} {
    %c0 = arith.constant 0 : index
    %c0_0 = arith.constant 0 : index
    %0 = vector.load %arg1[%c0, %c0_0] : memref<6x576xbf16, #tpu.memory_space<vmem>>, vector<6x576xbf16>
    %c0_1 = arith.constant 0 : index
    %c0_2 = arith.constant 0 : index
    %1 = vector.load %arg2[%c0_1, %c0_2] : memref<6x576xbf16, #tpu.memory_space<vmem>>, vector<6x576xbf16>
    %2 = arith.maximumf %0, %1 : vector<6x576xbf16>
    %c0_3 = arith.constant 0 : index
    %c0_4 = arith.constant 0 : index
    %3 = vector.load %arg3[%c0_3, %c0_4] : memref<6x576xbf16, #tpu.memory_space<vmem>>, vector<6x576xbf16>
    %4 = arith.maximumf %2, %3 : vector<6x576xbf16>
    %c0_5 = arith.constant 0 : index
    %c0_6 = arith.constant 0 : index
    %5 = vector.load %arg4[%c0_5, %c0_6] : memref<6x576xbf16, #tpu.memory_space<vmem>>, vector<6x576xbf16>
    %6 = arith.maximumf %4, %5 : vector<6x576xbf16>
    %c0_7 = arith.constant 0 : index
    %c0_8 = arith.constant 0 : index
    %7 = vector.load %arg5[%c0_7, %c0_8] : memref<6x576xbf16, #tpu.memory_space<vmem>>, vector<6x576xbf16>
    %8 = arith.maximumf %6, %7 : vector<6x576xbf16>
    %c0_9 = arith.constant 0 : index
    %c0_10 = arith.constant 0 : index
    %9 = vector.load %arg6[%c0_9, %c0_10] : memref<6x576xbf16, #tpu.memory_space<vmem>>, vector<6x576xbf16>
    %10 = arith.maximumf %8, %9 : vector<6x576xbf16>
    %c0_11 = arith.constant 0 : index
    %c0_12 = arith.constant 0 : index
    %11 = vector.load %arg7[%c0_11, %c0_12] : memref<6x576xbf16, #tpu.memory_space<vmem>>, vector<6x576xbf16>
    %12 = arith.maximumf %10, %11 : vector<6x576xbf16>
    %c0_13 = arith.constant 0 : index
    %c0_14 = arith.constant 0 : index
    %13 = vector.load %arg8[%c0_13, %c0_14] : memref<6x576xbf16, #tpu.memory_space<vmem>>, vector<6x576xbf16>
    %14 = arith.maximumf %12, %13 : vector<6x576xbf16>
    %c0_15 = arith.constant 0 : index
    %c0_16 = arith.constant 0 : index
    %15 = vector.load %arg9[%c0_15, %c0_16] : memref<6x576xbf16, #tpu.memory_space<vmem>>, vector<6x576xbf16>
    %16 = arith.maximumf %14, %15 : vector<6x576xbf16>
    %c0_17 = arith.constant 0 : index
    %c0_18 = arith.constant 0 : index
    %17 = vector.load %arg10[%c0_17, %c0_18] : memref<6x576xbf16, #tpu.memory_space<vmem>>, vector<6x576xbf16>
    tpu.vector_store %arg10[%c0_17, %c0_18], %16 {strides = array<i32>} : memref<6x576xbf16, #tpu.memory_space<vmem>>, vector<6x576xbf16>,
    return
  }
  func.func @transform_0(%arg0: i32) -> (i32, i32) {
    %c0_i32 = arith.constant 0 : i32
    %c0_i32_0 = arith.constant 0 : i32
    return %c0_i32, %arg0 : i32, i32
  }
  func.func @transform_1(%arg0: i32) -> (i32, i32) {
    %c0_i32 = arith.constant 0 : i32
    %c0_i32_0 = arith.constant 0 : i32
    return %c0_i32, %arg0 : i32, i32
  }
  func.func @transform_2(%arg0: i32) -> (i32, i32) {
    %c0_i32 = arith.constant 0 : i32
    %c0_i32_0 = arith.constant 0 : i32
    return %c0_i32, %arg0 : i32, i32
  }
  func.func @transform_3(%arg0: i32) -> (i32, i32) {
    %c0_i32 = arith.constant 0 : i32
    %c0_i32_0 = arith.constant 0 : i32
    return %c0_i32, %arg0 : i32, i32
  }
  func.func @transform_4(%arg0: i32) -> (i32, i32) {
    %c0_i32 = arith.constant 0 : i32
    %c0_i32_0 = arith.constant 0 : i32
    return %c0_i32, %arg0 : i32, i32
  }
  func.func @transform_5(%arg0: i32) -> (i32, i32) {
    %c0_i32 = arith.constant 0 : i32
    %c0_i32_0 = arith.constant 0 : i32
    return %c0_i32, %arg0 : i32, i32
  }
  func.func @transform_6(%arg0: i32) -> (i32, i32) {
    %c0_i32 = arith.constant 0 : i32
    %c0_i32_0 = arith.constant 0 : i32
    return %c0_i32, %arg0 : i32, i32
  }
  func.func @transform_7(%arg0: i32) -> (i32, i32) {
    %c0_i32 = arith.constant 0 : i32
    %c0_i32_0 = arith.constant 0 : i32
    return %c0_i32, %arg0 : i32, i32
  }
  func.func @transform_8(%arg0: i32) -> (i32, i32) {
    %c0_i32 = arith.constant 0 : i32
    %c0_i32_0 = arith.constant 0 : i32
    return %c0_i32, %arg0 : i32, i32
  }
  func.func @transform_9(%arg0: i32) -> (i32, i32) {
    %c0_i32 = arith.constant 0 : i32
    %c0_i32_0 = arith.constant 0 : i32
    return %c0_i32, %arg0 : i32, i32
  }
}

module attributes {stable_mosaic.version = 11 : i64} {
  func.func @_gemm_bias_kernel(%arg0: i32, %arg1: i32, %arg2: i32, %arg3: memref<32x1728xbf16, #tpu.memory_space<vmem>>, %arg4: memref<1728x128xbf16, #tpu.memory_space<vmem>>, %arg5: memref<1x128xf32, #tpu.memory_space<vmem>>, %arg6: memref<32x128xbf16, #tpu.memory_space<vmem>>, %arg7: memref<32x128xf32, #tpu.memory_space<vmem>>) attributes {dimension_semantics = [#tpu.dimension_semantics<parallel>, #tpu.dimension_semantics<parallel>, #tpu.dimension_semantics<arbitrary>], iteration_bounds = array<i64: 3, 1, 1>, scalar_prefetch = 0 : i64, scratch_operands = 1 : i64, tpu.core_type = #tpu.core_type<tc>, window_params = [{transform_indices = @transform_0, window_bounds = array<i64: 32, 1728>}, {transform_indices = @transform_1, window_bounds = array<i64: 1728, 128>}, {transform_indices = @transform_2, window_bounds = array<i64: 1, 128>}, {transform_indices = @transform_3, window_bounds = array<i64: 32, 128>}]} {
    %c0_i32 = arith.constant 0 : i32
    %0 = arith.cmpi eq, %arg2, %c0_i32 : i32
    %1 = arith.extui %0 : i1 to i32
    %c0_i32_0 = arith.constant 0 : i32
    %2 = arith.cmpi ne, %1, %c0_i32_0 : i32
    scf.if %2 {
      %c0_10 = arith.constant 0 : index
      %c0_11 = arith.constant 0 : index
      %12 = vector.load %arg5[%c0_10, %c0_11] : memref<1x128xf32, #tpu.memory_space<vmem>>, vector<1x128xf32>
      %13 = vector.shape_cast %12 : vector<1x128xf32> to vector<1x128xf32>
      %14 = vector.broadcast %13 : vector<1x128xf32> to vector<32x128xf32>
      %c0_12 = arith.constant 0 : index
      %c0_13 = arith.constant 0 : index
      %15 = vector.load %arg7[%c0_12, %c0_13] : memref<32x128xf32, #tpu.memory_space<vmem>>, vector<32x128xf32>
      tpu.vector_store %arg7[%c0_12, %c0_13], %14 {strides = array<i32>} : memref<32x128xf32, #tpu.memory_space<vmem>>, vector<32x128xf32>,
    } else {
    }
    %c0 = arith.constant 0 : index
    %c0_1 = arith.constant 0 : index
    %3 = vector.load %arg7[%c0, %c0_1] : memref<32x128xf32, #tpu.memory_space<vmem>>, vector<32x128xf32>
    %c0_2 = arith.constant 0 : index
    %c0_3 = arith.constant 0 : index
    %4 = vector.load %arg3[%c0_2, %c0_3] : memref<32x1728xbf16, #tpu.memory_space<vmem>>, vector<32x1728xbf16>
    %c0_4 = arith.constant 0 : index
    %c0_5 = arith.constant 0 : index
    %5 = vector.load %arg4[%c0_4, %c0_5] : memref<1728x128xbf16, #tpu.memory_space<vmem>>, vector<1728x128xbf16>
    %cst = arith.constant dense<0.000000e+00> : vector<32x128xf32>
    %6 = tpu.matmul %4, %5, %cst {dimension_numbers = #tpu.dot_dimension_numbers<[1], [0], [0], [1], [0, 0, 1, 1], [], []>} : vector<32x1728xbf16>, vector<1728x128xbf16>, vector<32x128xf32> -> vector<32x128xf32>
    %7 = arith.addf %3, %6 : vector<32x128xf32>
    %c0_6 = arith.constant 0 : index
    %c0_7 = arith.constant 0 : index
    %8 = vector.load %arg7[%c0_6, %c0_7] : memref<32x128xf32, #tpu.memory_space<vmem>>, vector<32x128xf32>
    tpu.vector_store %arg7[%c0_6, %c0_7], %7 {strides = array<i32>} : memref<32x128xf32, #tpu.memory_space<vmem>>, vector<32x128xf32>,
    %c0_i32_8 = arith.constant 0 : i32
    %9 = arith.cmpi eq, %arg2, %c0_i32_8 : i32
    %10 = arith.extui %9 : i1 to i32
    %c0_i32_9 = arith.constant 0 : i32
    %11 = arith.cmpi ne, %10, %c0_i32_9 : i32
    scf.if %11 {
      %c0_10 = arith.constant 0 : index
      %c0_11 = arith.constant 0 : index
      %12 = vector.load %arg7[%c0_10, %c0_11] : memref<32x128xf32, #tpu.memory_space<vmem>>, vector<32x128xf32>
      %cst_12 = arith.constant 0.000000e+00 : f32
      %13 = vector.broadcast %cst_12 : f32 to vector<32x128xf32>
      %14 = arith.maximumf %12, %13 : vector<32x128xf32>
      %15 = arith.truncf %14 : vector<32x128xf32> to vector<32x128xbf16>
      %c0_13 = arith.constant 0 : index
      %c0_14 = arith.constant 0 : index
      %16 = vector.load %arg6[%c0_13, %c0_14] : memref<32x128xbf16, #tpu.memory_space<vmem>>, vector<32x128xbf16>
      tpu.vector_store %arg6[%c0_13, %c0_14], %15 {strides = array<i32>} : memref<32x128xbf16, #tpu.memory_space<vmem>>, vector<32x128xbf16>,
    } else {
    }
    return
  }
  func.func @transform_0(%arg0: i32, %arg1: i32, %arg2: i32) -> (i32, i32) {
    %c0_i32 = arith.constant 0 : i32
    return %arg1, %arg2 : i32, i32
  }
  func.func @transform_1(%arg0: i32, %arg1: i32, %arg2: i32) -> (i32, i32) {
    %c0_i32 = arith.constant 0 : i32
    return %arg2, %arg0 : i32, i32
  }
  func.func @transform_2(%arg0: i32, %arg1: i32, %arg2: i32) -> (i32, i32) {
    %c0_i32 = arith.constant 0 : i32
    %c0_i32_0 = arith.constant 0 : i32
    return %c0_i32, %arg0 : i32, i32
  }
  func.func @transform_3(%arg0: i32, %arg1: i32, %arg2: i32) -> (i32, i32) {
    %c0_i32 = arith.constant 0 : i32
    return %arg1, %arg0 : i32, i32
  }
}

module attributes {stable_mosaic.version = 11 : i64} {
  func.func @_gemm_bias_kernel(%arg0: i32, %arg1: i32, %arg2: i32, %arg3: memref<16x512xbf16, #tpu.memory_space<vmem>>, %arg4: memref<512x128xbf16, #tpu.memory_space<vmem>>, %arg5: memref<1x128xf32, #tpu.memory_space<vmem>>, %arg6: memref<16x128xf32, #tpu.memory_space<vmem>>, %arg7: memref<16x128xf32, #tpu.memory_space<vmem>>) attributes {dimension_semantics = [#tpu.dimension_semantics<parallel>, #tpu.dimension_semantics<parallel>, #tpu.dimension_semantics<arbitrary>], iteration_bounds = array<i64: 1, 1, 7>, scalar_prefetch = 0 : i64, scratch_operands = 1 : i64, tpu.core_type = #tpu.core_type<tc>, window_params = [{transform_indices = @transform_0, window_bounds = array<i64: 16, 512>}, {transform_indices = @transform_1, window_bounds = array<i64: 512, 128>}, {transform_indices = @transform_2, window_bounds = array<i64: 1, 128>}, {transform_indices = @transform_3, window_bounds = array<i64: 16, 128>}]} {
    %c0_i32 = arith.constant 0 : i32
    %0 = arith.cmpi eq, %arg2, %c0_i32 : i32
    %1 = arith.extui %0 : i1 to i32
    %c0_i32_0 = arith.constant 0 : i32
    %2 = arith.cmpi ne, %1, %c0_i32_0 : i32
    scf.if %2 {
      %c0_9 = arith.constant 0 : index
      %c0_10 = arith.constant 0 : index
      %12 = vector.load %arg5[%c0_9, %c0_10] : memref<1x128xf32, #tpu.memory_space<vmem>>, vector<1x128xf32>
      %13 = vector.shape_cast %12 : vector<1x128xf32> to vector<1x128xf32>
      %14 = vector.broadcast %13 : vector<1x128xf32> to vector<16x128xf32>
      %c0_11 = arith.constant 0 : index
      %c0_12 = arith.constant 0 : index
      %15 = vector.load %arg7[%c0_11, %c0_12] : memref<16x128xf32, #tpu.memory_space<vmem>>, vector<16x128xf32>
      tpu.vector_store %arg7[%c0_11, %c0_12], %14 {strides = array<i32>} : memref<16x128xf32, #tpu.memory_space<vmem>>, vector<16x128xf32>,
    } else {
    }
    %c0 = arith.constant 0 : index
    %c0_1 = arith.constant 0 : index
    %3 = vector.load %arg7[%c0, %c0_1] : memref<16x128xf32, #tpu.memory_space<vmem>>, vector<16x128xf32>
    %c0_2 = arith.constant 0 : index
    %c0_3 = arith.constant 0 : index
    %4 = vector.load %arg3[%c0_2, %c0_3] : memref<16x512xbf16, #tpu.memory_space<vmem>>, vector<16x512xbf16>
    %c0_4 = arith.constant 0 : index
    %c0_5 = arith.constant 0 : index
    %5 = vector.load %arg4[%c0_4, %c0_5] : memref<512x128xbf16, #tpu.memory_space<vmem>>, vector<512x128xbf16>
    %cst = arith.constant dense<0.000000e+00> : vector<16x128xf32>
    %6 = tpu.matmul %4, %5, %cst {dimension_numbers = #tpu.dot_dimension_numbers<[1], [0], [0], [1], [0, 0, 1, 1], [], []>} : vector<16x512xbf16>, vector<512x128xbf16>, vector<16x128xf32> -> vector<16x128xf32>
    %7 = arith.addf %3, %6 : vector<16x128xf32>
    %c0_6 = arith.constant 0 : index
    %c0_7 = arith.constant 0 : index
    %8 = vector.load %arg7[%c0_6, %c0_7] : memref<16x128xf32, #tpu.memory_space<vmem>>, vector<16x128xf32>
    tpu.vector_store %arg7[%c0_6, %c0_7], %7 {strides = array<i32>} : memref<16x128xf32, #tpu.memory_space<vmem>>, vector<16x128xf32>,
    %c6_i32 = arith.constant 6 : i32
    %9 = arith.cmpi eq, %arg2, %c6_i32 : i32
    %10 = arith.extui %9 : i1 to i32
    %c0_i32_8 = arith.constant 0 : i32
    %11 = arith.cmpi ne, %10, %c0_i32_8 : i32
    scf.if %11 {
      %c0_9 = arith.constant 0 : index
      %c0_10 = arith.constant 0 : index
      %12 = vector.load %arg7[%c0_9, %c0_10] : memref<16x128xf32, #tpu.memory_space<vmem>>, vector<16x128xf32>
      %c0_11 = arith.constant 0 : index
      %c0_12 = arith.constant 0 : index
      %13 = vector.load %arg6[%c0_11, %c0_12] : memref<16x128xf32, #tpu.memory_space<vmem>>, vector<16x128xf32>
      tpu.vector_store %arg6[%c0_11, %c0_12], %12 {strides = array<i32>} : memref<16x128xf32, #tpu.memory_space<vmem>>, vector<16x128xf32>,
    } else {
    }
    return
  }
  func.func @transform_0(%arg0: i32, %arg1: i32, %arg2: i32) -> (i32, i32) {
    %c0_i32 = arith.constant 0 : i32
    return %arg1, %arg2 : i32, i32
  }
  func.func @transform_1(%arg0: i32, %arg1: i32, %arg2: i32) -> (i32, i32) {
    %c0_i32 = arith.constant 0 : i32
    return %arg2, %arg0 : i32, i32
  }
  func.func @transform_2(%arg0: i32, %arg1: i32, %arg2: i32) -> (i32, i32) {
    %c0_i32 = arith.constant 0 : i32
    %c0_i32_0 = arith.constant 0 : i32
    return %c0_i32, %arg0 : i32, i32
  }
  func.func @transform_3(%arg0: i32, %arg1: i32, %arg2: i32) -> (i32, i32) {
    %c0_i32 = arith.constant 0 : i32
    return %arg1, %arg0 : i32, i32
  }
}

</mosaic_0001>

<llo_original>
// kernel: _lambda_.6
$region0: #{_lambda_.6}
  #allocation0 [shape = 'u32[]', space=smem, size = 0x4, offset = 0x4, fixed_abs, tag = 'smem constant byte address 0x4 - core index']
  #allocation1 [shape = 'u32[144,128]{1,0:T(1,128)}', space=vmem, size = 0x12000, scoped, tag = 'internal scratch']
  #allocation2 [shape = 'f32[256,128]{1,0:T(8,128)}', space=vmem, size = 0x20000, scoped, tag = 'scratch operand']
  %s0 = inlined_call_operand.vmem [shape: bf16[512,363], index: 0, kind: input, shape index: {}]
  %s1 = inlined_call_operand.vmem [shape: bf16[363,128], index: 1, kind: input, shape index: {}]
  %s2 = inlined_call_operand.vmem [shape: f32[1,128], index: 2, kind: input, shape index: {}]
  %s3 = inlined_call_operand.vmem [shape: bf16[512,128], index: 3, kind: output, shape index: {}]
  %s4 = sld [smem:[#allocation0]]
  $region53: #{_lambda_.6} parent=0
    _
  %s6 = ssub.s32 1, %s4
  %s7 = scalar_select 0, %s6, %s4
  loop: start=0, step=1, limit=4
  $region2: #{_lambda_.6} parent=0 // loop_pre_header
    _
  $region3: #{_lambda_.6} parent=0 // loop_header
    %s9 = sphi 0, %s13
    %p10 = scmp.ge.s32.totalorder %s9, 4
    %s16 = sphi 0, %s35
    %s17 = sphi 0, %s31
    %s18 = sphi 0, %s27
    %s19 = sphi 0, %s16
    %s20 = sphi 0, %s17
    %s21 = sphi 0, %s18
    %s22 = sphi 0, %s19
    %s23 = sphi 0, %s20
    %s24 = sphi 0, %s21
    %s40 = sphi 0, %s42
    %s43 = sphi 0, %s40
    %s44 = sphi 0, %s43
    %s60 = sphi 0, %s44
    %s68 = sphi 0, %s70
    %s71 = sphi 0, %s68
    %s72 = sphi 0, %s71
    %s88 = sphi 0, %s72
    %s94 = sphi 0, %s96
    %s97 = sphi 0, %s94
    %s98 = sphi 0, %s97
    %s114 = sphi 0, %s98
    %s122 = sphi 0, %s124
    %s125 = sphi 0, %s122
    %s126 = sphi 0, %s125
    %s142 = sphi 0, %s126
  $region4: #{_lambda_.6} parent=0 // loop_header_branch
    %12 = sbr.rel (%p10) target = $region8
  $region5: #{_lambda_.6} parent=0 // loop_body
    %s14 = ssub.s32 %s9, 1
    %s15 = ssub.s32 %s9, 2
    %s25 = sadd.s32 1, %s18
    %p26 = scmp.ge.s32.totalorder %s25, 1
    %s27 = scalar_select %p26, 0, %s25
    %s28 = sadd.s32 1, %s17
    %s29 = scalar_select %p26, %s28, %s17
    %p30 = scmp.ge.s32.totalorder %s29, 2
    %s31 = scalar_select %p30, 0, %s29
    %s32 = sadd.s32 1, %s16
    %s33 = scalar_select %p30, %s32, %s16
    %p34 = scmp.ge.s32.totalorder %s33, 1
    %s35 = scalar_select %p34, 0, %s33
    %s36 = ssub.s32 %s17, %s31
    %s37 = ssub.s32 %s18, %s27
    %s38 = sor.u32 %s36, %s37
    %p39 = scmp.eq.s32.totalorder %s38, 0
    %s41 = sadd.s32 %s40, 1
    %s42 = scalar_select %p39, %s40, %s41
    %p45 = pneg %p39
    %p46 = scmp.eq.s32.totalorder %s9, 1
    %p47 = por %p45, %p46
    %p48 = scmp.ne.s32.totalorder %s40, %s43
    %p49 = scmp.eq.s32.totalorder %s9, 0
    %p50 = por %p48, %p49
    %p51 = scmp.ne.s32.totalorder %s40, %s43
    %p52 = scmp.eq.s32.totalorder %s14, 1
    %p53 = por %p51, %p52
    %p54 = scmp.ne.s32.totalorder %s43, %s44
    %p55 = scmp.eq.s32.totalorder %s14, 0
    %p56 = por %p54, %p55
    %p57 = scmp.ne.s32.totalorder %s43, %s44
    %p58 = scmp.eq.s32.totalorder %s15, 1
    %p59 = por %p57, %p58
    %p61 = scmp.ne.s32.totalorder %s44, %s60
    %p62 = scmp.eq.s32.totalorder %s15, 0
    %p63 = por %p61, %p62
    %s64 = ssub.s32 %s18, %s27
    %s65 = ssub.s32 %s16, %s35
    %s66 = sor.u32 %s64, %s65
    %p67 = scmp.eq.s32.totalorder %s66, 0
    %s69 = sadd.s32 %s68, 1
    %s70 = scalar_select %p67, %s68, %s69
    %p73 = pneg %p67
    %p74 = scmp.eq.s32.totalorder %s9, 1
    %p75 = por %p73, %p74
    %p76 = scmp.ne.s32.totalorder %s68, %s71
    %p77 = scmp.eq.s32.totalorder %s9, 0
    %p78 = por %p76, %p77
    %p79 = scmp.ne.s32.totalorder %s68, %s71
    %p80 = scmp.eq.s32.totalorder %s14, 1
    %p81 = por %p79, %p80
    %p82 = scmp.ne.s32.totalorder %s71, %s72
    %p83 = scmp.eq.s32.totalorder %s14, 0
    %p84 = por %p82, %p83
    %p85 = scmp.ne.s32.totalorder %s71, %s72
    %p86 = scmp.eq.s32.totalorder %s15, 1
    %p87 = por %p85, %p86
    %p89 = scmp.ne.s32.totalorder %s72, %s88
    %p90 = scmp.eq.s32.totalorder %s15, 0
    %p91 = por %p89, %p90
    %s92 = ssub.s32 %s16, %s35
    %p93 = scmp.eq.s32.totalorder %s92, 0
    %s95 = sadd.s32 %s94, 1
    %s96 = scalar_select %p93, %s94, %s95
    %p99 = pneg %p93
    %p100 = scmp.eq.s32.totalorder %s9, 1
    %p101 = por %p99, %p100
    %p102 = scmp.ne.s32.totalorder %s94, %s97
    %p103 = scmp.eq.s32.totalorder %s9, 0
    %p104 = por %p102, %p103
    %p105 = scmp.ne.s32.totalorder %s94, %s97
    %p106 = scmp.eq.s32.totalorder %s14, 1
    %p107 = por %p105, %p106
    %p108 = scmp.ne.s32.totalorder %s97, %s98
    %p109 = scmp.eq.s32.totalorder %s14, 0
    %p110 = por %p108, %p109
    %p111 = scmp.ne.s32.totalorder %s97, %s98
    %p112 = scmp.eq.s32.totalorder %s15, 1
    %p113 = por %p111, %p112
    %p115 = scmp.ne.s32.totalorder %s98, %s114
    %p116 = scmp.eq.s32.totalorder %s15, 0
    %p117 = por %p115, %p116
    %s118 = ssub.s32 %s17, %s31
    %s119 = ssub.s32 %s16, %s35
    %s120 = sor.u32 %s118, %s119
    %p121 = scmp.eq.s32.totalorder %s120, 0
    %s123 = sadd.s32 %s122, 1
    %s124 = scalar_select %p121, %s122, %s123
    %p127 = pneg %p121
    %p128 = scmp.eq.s32.totalorder %s9, 1
    %p129 = por %p127, %p128
    %p130 = scmp.ne.s32.totalorder %s122, %s125
    %p131 = scmp.eq.s32.totalorder %s9, 0
    %p132 = por %p130, %p131
    %p133 = scmp.ne.s32.totalorder %s122, %s125
    %p134 = scmp.eq.s32.totalorder %s14, 1
    %p135 = por %p133, %p134
    %p136 = scmp.ne.s32.totalorder %s125, %s126
    %p137 = scmp.eq.s32.totalorder %s14, 0
    %p138 = por %p136, %p137
    %p139 = scmp.ne.s32.totalorder %s125, %s126
    %p140 = scmp.eq.s32.totalorder %s15, 1
    %p141 = por %p139, %p140
    %p143 = scmp.ne.s32.totalorder %s126, %s142
    %p144 = scmp.eq.s32.totalorder %s15, 0
    %p145 = por %p143, %p144
    %p146 = scmp.le.s32.totalorder 1, %s9
    %p147 = scmp.lt.s32.totalorder %s9, 3
    %p148 = pnand %p146, %p147
    %p149 = pneg %p148
    // Predicated region
    $region9: #{_lambda_.6} parent=5 // pred_check
      _
    $region10: #{_lambda_.6} parent=5 // pred_check_branch
      %151 = sbr.rel (%p148) target = $region12
    $region11: #{_lambda_.6} parent=5 // pred_region
      %s152 = ssub.s32 %s9, 1
      // Predicated region
      $region13: #{_lambda_.6} parent=11 // pred_check
        %p153 = pneg %p84
      $region14: #{_lambda_.6} parent=11 // pred_check_branch
        %155 = sbr.rel (%p153) target = $region16
      $region15: #{_lambda_.6} parent=11 // pred_region
        %s156 = smul.u32 46, %s21
        %p157 = scmp.lt.s32.totalorder %s156, 45
        %s158 = scalar_select %p157, %s156, 45
        %p159 = scmp.lt.s32.totalorder %s19, 0
        %s160 = scalar_select %p159, %s19, 0
        %s161 = sadd.s32 %s160, %s158
        %s162 = smul.addr %s161, 4
        %s163 = scalar_lea.vmem %s1, %s162
        %s164 = smul.u32 46, %s21
      $region16: #{_lambda_.6} parent=11 // pred_fallthru
        _
      // Predicated region
      $region17: #{_lambda_.6} parent=11 // pred_check
        %p165 = pneg %p110
      $region18: #{_lambda_.6} parent=11 // pred_check_branch
        %167 = sbr.rel (%p165) target = $region20
      $region19: #{_lambda_.6} parent=11 // pred_region
        %p168 = scmp.lt.s32.totalorder %s19, 0
        %s169 = scalar_select %p168, %s19, 0
        %s170 = scalar_lea.vmem %s2, %s169
      $region20: #{_lambda_.6} parent=11 // pred_fallthru
        _
    $region12: #{_lambda_.6} parent=5 // pred_fallthru
      _
    %p171 = scmp.lt.s32.totalorder %s9, 2
    // Predicated region
    $region21: #{_lambda_.6} parent=5 // pred_check
      %p172 = pneg %p171
    $region22: #{_lambda_.6} parent=5 // pred_check_branch
      %174 = sbr.rel (%p172) target = $region24
    $region23: #{_lambda_.6} parent=5 // pred_region
      // Predicated region
      $region25: #{_lambda_.6} parent=23 // pred_check
        %p175 = pneg %p50
      $region26: #{_lambda_.6} parent=23 // pred_check_branch
        %177 = sbr.rel (%p175) target = $region28
      $region27: #{_lambda_.6} parent=23 // pred_region
        %s178 = smul.u32 32, %s17
        %s179 = smul.u32 3, %s18
        %p180 = scmp.lt.s32.totalorder %s178, 63
        %s181 = scalar_select %p180, %s178, 63
        %p182 = scmp.lt.s32.totalorder %s179, 2
        %s183 = scalar_select %p182, %s179, 2
        %s184 = smul.addr %s181, 3
        %s185 = sadd.s32 %s183, %s184
        %s186 = smul.addr %s185, 4
        %s187 = scalar_lea.vmem %s0, %s186
        %s188 = smul.u32 32, %s17
        %s189 = smul.u32 3, %s18
      $region28: #{_lambda_.6} parent=23 // pred_fallthru
        _
    $region24: #{_lambda_.6} parent=5 // pred_fallthru
      _
    %p190 = scmp.le.s32.totalorder 1, %s9
    %p191 = scmp.lt.s32.totalorder %s9, 3
    %p192 = pnand %p190, %p191
    %p193 = pneg %p192
    // Predicated region
    $region29: #{_lambda_.6} parent=5 // pred_check
      _
    $region30: #{_lambda_.6} parent=5 // pred_check_branch
      %195 = sbr.rel (%p192) target = $region32
    $region31: #{_lambda_.6} parent=5 // pred_region
      %s196 = ssub.s32 %s9, 1
      %s197 = smul.u32 32, %s20
      %s198 = smul.u32 3, %s21
      %p199 = scmp.lt.s32.totalorder %s197, 63
      %s200 = scalar_select %p199, %s197, 63
      %p201 = scmp.lt.s32.totalorder %s198, 2
      %s202 = scalar_select %p201, %s198, 2
      %s203 = smul.addr %s200, 3
      %s204 = sadd.s32 %s202, %s203
      %s205 = smul.addr %s204, 4
      %s206 = scalar_lea.vmem %s0, %s205
      %p207 = pneg %p56
      %p208 = pneg %p53
      %s209 = smul.u32 46, %s21
      %p210 = scmp.lt.s32.totalorder %s209, 45
      %s211 = scalar_select %p210, %s209, 45
      %p212 = scmp.lt.s32.totalorder %s19, 0
      %s213 = scalar_select %p212, %s19, 0
      %s214 = sadd.s32 %s213, %s211
      %s215 = smul.addr %s214, 4
      %s216 = scalar_lea.vmem %s1, %s215
      %p217 = pneg %p84
      %p218 = pneg %p81
      %p219 = scmp.lt.s32.totalorder %s19, 0
      %s220 = scalar_select %p219, %s19, 0
      %s221 = scalar_lea.vmem %s2, %s220
      %p222 = pneg %p110
      %p223 = pneg %p107
      %p224 = pneg %p138
      %p225 = pneg %p135
      %s226 = smul.u32 32, %s20
      %p227 = scmp.lt.s32.totalorder %s226, 63
      %s228 = scalar_select %p227, %s226, 63
      %p229 = scmp.lt.s32.totalorder %s19, 0
      %s230 = scalar_select %p229, %s19, 0
      %s231 = sadd.s32 %s230, %s228
      %s232 = smul.addr %s231, 4
      %s233 = scalar_lea.vmem %s3, %s232
      %s234 = smul.u32 32, %s20
      %s235 = smul.u32 3, %s21
      %p236 = scmp.lt.s32.totalorder %s234, 63
      %s237 = scalar_select %p236, %s234, 63
      %p238 = scmp.lt.s32.totalorder %s235, 2
      %s239 = scalar_select %p238, %s235, 2
      %s240 = smul.addr %s237, 3
      %s241 = sadd.s32 %s239, %s240
      %s242 = smul.addr %s241, 4
      %s243 = scalar_lea.vmem %s0, %s242
      %s244 = smul.u32 32, %s20
      %s245 = smul.u32 3, %s21
      %s246 = smul.u32 46, %s21
      %p247 = scmp.lt.s32.totalorder %s246, 45
      %s248 = scalar_select %p247, %s246, 45
      %p249 = scmp.lt.s32.totalorder %s19, 0
      %s250 = scalar_select %p249, %s19, 0
      %s251 = sadd.s32 %s250, %s248
      %s252 = smul.addr %s251, 4
      %s253 = scalar_lea.vmem %s1, %s252
      %s254 = smul.u32 46, %s21
      %p255 = scmp.lt.s32.totalorder %s19, 0
      %s256 = scalar_select %p255, %s19, 0
      %s257 = scalar_lea.vmem %s2, %s256
      %s258 = smul.u32 32, %s20
      %p259 = scmp.lt.s32.totalorder %s258, 63
      %s260 = scalar_select %p259, %s258, 63
      %p261 = scmp.lt.s32.totalorder %s19, 0
      %s262 = scalar_select %p261, %s19, 0
      %s263 = sadd.s32 %s262, %s260
      %s264 = smul.addr %s263, 4
      %s265 = scalar_lea.vmem %s3, %s264
      %s266 = smul.u32 32, %s20
      %p268 = scmp.eq.s32.totalorder %s21, 0
      // Predicated region
      $region33: #{_lambda_.6} parent=31 // pred_check
        %p269 = pneg %p268
      $region34: #{_lambda_.6} parent=31 // pred_check_branch
        %271 = sbr.rel (%p269) target = $region36
      $region35: #{_lambda_.6} parent=31 // pred_region
        %v272 = vld [vmem:[%s257] sm:$0x1]
        %v274 = vlaneseq
        %v275 = vshrl.u32 %v274, 7
        %v276 = vsub.s32 0, %v275
        %v277 = vrot.slane %v272, %v276
        %279 = vst [vmem:[#allocation2] sm:$0xff] %v277
        %280 = vst [vmem:[#allocation2 + $0x8] sm:$0xff] %v277
        %281 = vst [vmem:[#allocation2 + $0x10] sm:$0xff] %v277
        %282 = vst [vmem:[#allocation2 + $0x18] sm:$0xff] %v277
        %283 = vst [vmem:[#allocation2 + $0x20] sm:$0xff] %v277
        %284 = vst [vmem:[#allocation2 + $0x28] sm:$0xff] %v277
        %285 = vst [vmem:[#allocation2 + $0x30] sm:$0xff] %v277
        %286 = vst [vmem:[#allocation2 + $0x38] sm:$0xff] %v277
        %287 = vst [vmem:[#allocation2 + $0x40] sm:$0xff] %v277
        %288 = vst [vmem:[#allocation2 + $0x48] sm:$0xff] %v277
        %289 = vst [vmem:[#allocation2 + $0x50] sm:$0xff] %v277
        %290 = vst [vmem:[#allocation2 + $0x58] sm:$0xff] %v277
        %291 = vst [vmem:[#allocation2 + $0x60] sm:$0xff] %v277
        %292 = vst [vmem:[#allocation2 + $0x68] sm:$0xff] %v277
        %293 = vst [vmem:[#allocation2 + $0x70] sm:$0xff] %v277
        %294 = vst [vmem:[#allocation2 + $0x78] sm:$0xff] %v277
        %295 = vst [vmem:[#allocation2 + $0x80] sm:$0xff] %v277
        %296 = vst [vmem:[#allocation2 + $0x88] sm:$0xff] %v277
        %297 = vst [vmem:[#allocation2 + $0x90] sm:$0xff] %v277
        %298 = vst [vmem:[#allocation2 + $0x98] sm:$0xff] %v277
        %299 = vst [vmem:[#allocation2 + $0xa0] sm:$0xff] %v277
        %300 = vst [vmem:[#allocation2 + $0xa8] sm:$0xff] %v277
        %301 = vst [vmem:[#allocation2 + $0xb0] sm:$0xff] %v277
        %302 = vst [vmem:[#allocation2 + $0xb8] sm:$0xff] %v277
        %303 = vst [vmem:[#allocation2 + $0xc0] sm:$0xff] %v277
        %304 = vst [vmem:[#allocation2 + $0xc8] sm:$0xff] %v277
        %305 = vst [vmem:[#allocation2 + $0xd0] sm:$0xff] %v277
        %306 = vst [vmem:[#allocation2 + $0xd8] sm:$0xff] %v277
        %307 = vst [vmem:[#allocation2 + $0xe0] sm:$0xff] %v277
        %308 = vst [vmem:[#allocation2 + $0xe8] sm:$0xff] %v277
        %309 = vst [vmem:[#allocation2 + $0xf0] sm:$0xff] %v277
        %310 = vst [vmem:[#allocation2 + $0xf8] sm:$0xff] %v277
      $region36: #{_lambda_.6} parent=31 // pred_fallthru
        _
      %v311 = vld [vmem:[#allocation2] sm:$0xff]
      %v312 = vld [vmem:[#allocation2 + $0x8] sm:$0xff]
      %v313 = vld [vmem:[#allocation2 + $0x10] sm:$0xff]
      %v314 = vld [vmem:[#allocation2 + $0x18] sm:$0xff]
      %v315 = vld [vmem:[#allocation2 + $0x20] sm:$0xff]
      %v316 = vld [vmem:[#allocation2 + $0x28] sm:$0xff]
      %v317 = vld [vmem:[#allocation2 + $0x30] sm:$0xff]
      %v318 = vld [vmem:[#allocation2 + $0x38] sm:$0xff]
      %v319 = vld [vmem:[#allocation2 + $0x40] sm:$0xff]
      %v320 = vld [vmem:[#allocation2 + $0x48] sm:$0xff]
      %v321 = vld [vmem:[#allocation2 + $0x50] sm:$0xff]
      %v322 = vld [vmem:[#allocation2 + $0x58] sm:$0xff]
      %v323 = vld [vmem:[#allocation2 + $0x60] sm:$0xff]
      %v324 = vld [vmem:[#allocation2 + $0x68] sm:$0xff]
      %v325 = vld [vmem:[#allocation2 + $0x70] sm:$0xff]
      %v326 = vld [vmem:[#allocation2 + $0x78] sm:$0xff]
      %v327 = vld [vmem:[#allocation2 + $0x80] sm:$0xff]
      %v328 = vld [vmem:[#allocation2 + $0x88] sm:$0xff]
      %v329 = vld [vmem:[#allocation2 + $0x90] sm:$0xff]
      %v330 = vld [vmem:[#allocation2 + $0x98] sm:$0xff]
      %v331 = vld [vmem:[#allocation2 + $0xa0] sm:$0xff]
      %v332 = vld [vmem:[#allocation2 + $0xa8] sm:$0xff]
      %v333 = vld [vmem:[#allocation2 + $0xb0] sm:$0xff]
      %v334 = vld [vmem:[#allocation2 + $0xb8] sm:$0xff]
      %v335 = vld [vmem:[#allocation2 + $0xc0] sm:$0xff]
      %v336 = vld [vmem:[#allocation2 + $0xc8] sm:$0xff]
      %v337 = vld [vmem:[#allocation2 + $0xd0] sm:$0xff]
      %v338 = vld [vmem:[#allocation2 + $0xd8] sm:$0xff]
      %v339 = vld [vmem:[#allocation2 + $0xe0] sm:$0xff]
      %v340 = vld [vmem:[#allocation2 + $0xe8] sm:$0xff]
      %v341 = vld [vmem:[#allocation2 + $0xf0] sm:$0xff]
      %v342 = vld [vmem:[#allocation2 + $0xf8] sm:$0xff]
      %v343 = vld [vmem:[%s243] sm:$0xff]
      %v344 = vld [vmem:[%s243 + $0x8] sm:$0xf]
      %v345 = vld [vmem:[%s243 + $0xc] sm:$0xff]
      %v346 = vld [vmem:[%s243 + $0x14] sm:$0xf]
      %v347 = vld [vmem:[%s243 + $0x18] sm:$0xff]
      %v348 = vld [vmem:[%s243 + $0x20] sm:$0xf]
      %v349 = vld [vmem:[%s243 + $0x24] sm:$0xff]
      %v350 = vld [vmem:[%s243 + $0x2c] sm:$0xf]
      %v351 = vld [vmem:[%s243 + $0x30] sm:$0xff]
      %v352 = vld [vmem:[%s243 + $0x38] sm:$0xf]
      %v353 = vld [vmem:[%s243 + $0x3c] sm:$0xff]
      %v354 = vld [vmem:[%s243 + $0x44] sm:$0xf]
      %v355 = vld [vmem:[%s243 + $0x48] sm:$0xff]
      %v356 = vld [vmem:[%s243 + $0x50] sm:$0xf]
      %v357 = vld [vmem:[%s243 + $0x54] sm:$0xff]
      %v358 = vld [vmem:[%s243 + $0x5c] sm:$0xf]
      %v359 = vld [vmem:[%s243 + $0x60] sm:$0xff]
      %v360 = vld [vmem:[%s243 + $0x68] sm:$0xf]
      %v361 = vld [vmem:[%s243 + $0x6c] sm:$0xff]
      %v362 = vld [vmem:[%s243 + $0x74] sm:$0xf]
      %v363 = vld [vmem:[%s243 + $0x78] sm:$0xff]
      %v364 = vld [vmem:[%s243 + $0x80] sm:$0xf]
      %v365 = vld [vmem:[%s243 + $0x84] sm:$0xff]
      %v366 = vld [vmem:[%s243 + $0x8c] sm:$0xf]
      %v367 = vld [vmem:[%s243 + $0x90] sm:$0xff]
      %v368 = vld [vmem:[%s243 + $0x98] sm:$0xf]
      %v369 = vld [vmem:[%s243 + $0x9c] sm:$0xff]
      %v370 = vld [vmem:[%s243 + $0xa4] sm:$0xf]
      %v371 = vld [vmem:[%s243 + $0xa8] sm:$0xff]
      %v372 = vld [vmem:[%s243 + $0xb0] sm:$0xf]
      %v373 = vld [vmem:[%s243 + $0xb4] sm:$0xff]
      %v374 = vld [vmem:[%s243 + $0xbc] sm:$0xf]
      %v375 = vld [vmem:[%s243 + $0xc0] sm:$0xff]
      %v376 = vld [vmem:[%s243 + $0xc8] sm:$0xf]
      %v377 = vld [vmem:[%s243 + $0xcc] sm:$0xff]
      %v378 = vld [vmem:[%s243 + $0xd4] sm:$0xf]
      %v379 = vld [vmem:[%s243 + $0xd8] sm:$0xff]
      %v380 = vld [vmem:[%s243 + $0xe0] sm:$0xf]
      %v381 = vld [vmem:[%s243 + $0xe4] sm:$0xff]
      %v382 = vld [vmem:[%s243 + $0xec] sm:$0xf]
      %v383 = vld [vmem:[%s243 + $0xf0] sm:$0xff]
      %v384 = vld [vmem:[%s243 + $0xf8] sm:$0xf]
      %v385 = vld [vmem:[%s243 + $0xfc] sm:$0xff]
      %v386 = vld [vmem:[%s243 + $0x104] sm:$0xf]
      %v387 = vld [vmem:[%s243 + $0x108] sm:$0xff]
      %v388 = vld [vmem:[%s243 + $0x110] sm:$0xf]
      %v389 = vld [vmem:[%s243 + $0x114] sm:$0xff]
      %v390 = vld [vmem:[%s243 + $0x11c] sm:$0xf]
      %v391 = vld [vmem:[%s243 + $0x120] sm:$0xff]
      %v392 = vld [vmem:[%s243 + $0x128] sm:$0xf]
      %v393 = vld [vmem:[%s243 + $0x12c] sm:$0xff]
      %v394 = vld [vmem:[%s243 + $0x134] sm:$0xf]
      %v395 = vld [vmem:[%s243 + $0x138] sm:$0xff]
      %v396 = vld [vmem:[%s243 + $0x140] sm:$0xf]
      %v397 = vld [vmem:[%s243 + $0x144] sm:$0xff]
      %v398 = vld [vmem:[%s243 + $0x14c] sm:$0xf]
      %v399 = vld [vmem:[%s243 + $0x150] sm:$0xff]
      %v400 = vld [vmem:[%s243 + $0x158] sm:$0xf]
      %v401 = vld [vmem:[%s243 + $0x15c] sm:$0xff]
      %v402 = vld [vmem:[%s243 + $0x164] sm:$0xf]
      %v403 = vld [vmem:[%s243 + $0x168] sm:$0xff]
      %v404 = vld [vmem:[%s243 + $0x170] sm:$0xf]
      %v405 = vld [vmem:[%s243 + $0x174] sm:$0xff]
      %v406 = vld [vmem:[%s243 + $0x17c] sm:$0xf]
      %v407 = vld [vmem:[%s253] sm:$0xf]
      %v408 = vld [vmem:[%s253 + $0x4] sm:$0xf]
      %v409 = vld [vmem:[%s253 + $0x8] sm:$0xf]
      %v410 = vld [vmem:[%s253 + $0xc] sm:$0xf]
      %v411 = vld [vmem:[%s253 + $0x10] sm:$0xf]
      %v412 = vld [vmem:[%s253 + $0x14] sm:$0xf]
      %v413 = vld [vmem:[%s253 + $0x18] sm:$0xf]
      %v414 = vld [vmem:[%s253 + $0x1c] sm:$0xf]
      %v415 = vld [vmem:[%s253 + $0x20] sm:$0xf]
      %v416 = vld [vmem:[%s253 + $0x24] sm:$0xf]
      %v417 = vld [vmem:[%s253 + $0x28] sm:$0xf]
      %v418 = vld [vmem:[%s253 + $0x2c] sm:$0xf]
      %v419 = vld [vmem:[%s253 + $0x30] sm:$0xf]
      %v420 = vld [vmem:[%s253 + $0x34] sm:$0xf]
      %v421 = vld [vmem:[%s253 + $0x38] sm:$0xf]
      %v422 = vld [vmem:[%s253 + $0x3c] sm:$0xf]
      %v423 = vld [vmem:[%s253 + $0x40] sm:$0xf]
      %v424 = vld [vmem:[%s253 + $0x44] sm:$0xf]
      %v425 = vld [vmem:[%s253 + $0x48] sm:$0xf]
      %v426 = vld [vmem:[%s253 + $0x4c] sm:$0xf]
      %v427 = vld [vmem:[%s253 + $0x50] sm:$0xf]
      %v428 = vld [vmem:[%s253 + $0x54] sm:$0xf]
      %v429 = vld [vmem:[%s253 + $0x58] sm:$0xf]
      %v430 = vld [vmem:[%s253 + $0x5c] sm:$0xf]
      %v431 = vld [vmem:[%s253 + $0x60] sm:$0xf]
      %v432 = vld [vmem:[%s253 + $0x64] sm:$0xf]
      %v433 = vld [vmem:[%s253 + $0x68] sm:$0xf]
      %v434 = vld [vmem:[%s253 + $0x6c] sm:$0xf]
      %v435 = vld [vmem:[%s253 + $0x70] sm:$0xf]
      %v436 = vld [vmem:[%s253 + $0x74] sm:$0xf]
      %v437 = vld [vmem:[%s253 + $0x78] sm:$0xf]
      %v438 = vld [vmem:[%s253 + $0x7c] sm:$0xf]
      %v439 = vld [vmem:[%s253 + $0x80] sm:$0xf]
      %v440 = vld [vmem:[%s253 + $0x84] sm:$0xf]
      %v441 = vld [vmem:[%s253 + $0x88] sm:$0xf]
      %v442 = vld [vmem:[%s253 + $0x8c] sm:$0xf]
      %v443 = vld [vmem:[%s253 + $0x90] sm:$0xf]
      %v444 = vld [vmem:[%s253 + $0x94] sm:$0xf]
      %v445 = vld [vmem:[%s253 + $0x98] sm:$0xf]
      %v446 = vld [vmem:[%s253 + $0x9c] sm:$0xf]
      %v447 = vld [vmem:[%s253 + $0xa0] sm:$0xf]
      %v448 = vld [vmem:[%s253 + $0xa4] sm:$0xf]
      %v449 = vld [vmem:[%s253 + $0xa8] sm:$0xf]
      %v450 = vld [vmem:[%s253 + $0xac] sm:$0xf]
      %v451 = vld [vmem:[%s253 + $0xb0] sm:$0xf]
      %v452 = vld [vmem:[%s253 + $0xb4] sm:$0x3]
      %v517 = vunpack.c.l.b16 %v343
      %v518 = vunpack.c.h.b16 %v343
      %v519 = vunpack.c.l.b16 %v344
      %v520 = vunpack.c.l.b16 %v345
      %v521 = vunpack.c.h.b16 %v345
      %v522 = vunpack.c.l.b16 %v346
      %v523 = vunpack.c.l.b16 %v347
      %v524 = vunpack.c.h.b16 %v347
      %v525 = vunpack.c.l.b16 %v348
      %v526 = vunpack.c.l.b16 %v349
      %v527 = vunpack.c.h.b16 %v349
      %v528 = vunpack.c.l.b16 %v350
      %v529 = vunpack.c.l.b16 %v351
      %v530 = vunpack.c.h.b16 %v351
      %v531 = vunpack.c.l.b16 %v352
      %v532 = vunpack.c.l.b16 %v353
      %v533 = vunpack.c.h.b16 %v353
      %v534 = vunpack.c.l.b16 %v354
      %v535 = vunpack.c.l.b16 %v355
      %v536 = vunpack.c.h.b16 %v355
      %v537 = vunpack.c.l.b16 %v356
      %v538 = vunpack.c.l.b16 %v357
      %v539 = vunpack.c.h.b16 %v357
      %v540 = vunpack.c.l.b16 %v358
      %v541 = vunpack.c.l.b16 %v359
      %v542 = vunpack.c.h.b16 %v359
      %v543 = vunpack.c.l.b16 %v360
      %v544 = vunpack.c.l.b16 %v361
      %v545 = vunpack.c.h.b16 %v361
      %v546 = vunpack.c.l.b16 %v362
      %v547 = vunpack.c.l.b16 %v363
      %v548 = vunpack.c.h.b16 %v363
      %v549 = vunpack.c.l.b16 %v364
      %v550 = vunpack.c.l.b16 %v365
      %v551 = vunpack.c.h.b16 %v365
      %v552 = vunpack.c.l.b16 %v366
      %v553 = vunpack.c.l.b16 %v367
      %v554 = vunpack.c.h.b16 %v367
      %v555 = vunpack.c.l.b16 %v368
      %v556 = vunpack.c.l.b16 %v369
      %v557 = vunpack.c.h.b16 %v369
      %v558 = vunpack.c.l.b16 %v370
      %v559 = vunpack.c.l.b16 %v371
      %v560 = vunpack.c.h.b16 %v371
      %v561 = vunpack.c.l.b16 %v372
      %v562 = vunpack.c.l.b16 %v373
      %v563 = vunpack.c.h.b16 %v373
      %v564 = vunpack.c.l.b16 %v374
      %v565 = vunpack.c.l.b16 %v375
      %v566 = vunpack.c.h.b16 %v375
      %v567 = vunpack.c.l.b16 %v376
      %v568 = vunpack.c.l.b16 %v377
      %v569 = vunpack.c.h.b16 %v377
      %v570 = vunpack.c.l.b16 %v378
      %v571 = vunpack.c.l.b16 %v379
      %v572 = vunpack.c.h.b16 %v379
      %v573 = vunpack.c.l.b16 %v380
      %v574 = vunpack.c.l.b16 %v381
      %v575 = vunpack.c.h.b16 %v381
      %v576 = vunpack.c.l.b16 %v382
      %v577 = vunpack.c.l.b16 %v383
      %v578 = vunpack.c.h.b16 %v383
      %v579 = vunpack.c.l.b16 %v384
      %v580 = vunpack.c.l.b16 %v385
      %v581 = vunpack.c.h.b16 %v385
      %v582 = vunpack.c.l.b16 %v386
      %v583 = vunpack.c.l.b16 %v387
      %v584 = vunpack.c.h.b16 %v387
      %v585 = vunpack.c.l.b16 %v388
      %v586 = vunpack.c.l.b16 %v389
      %v587 = vunpack.c.h.b16 %v389
      %v588 = vunpack.c.l.b16 %v390
      %v589 = vunpack.c.l.b16 %v391
      %v590 = vunpack.c.h.b16 %v391
      %v591 = vunpack.c.l.b16 %v392
      %v592 = vunpack.c.l.b16 %v393
      %v593 = vunpack.c.h.b16 %v393
      %v594 = vunpack.c.l.b16 %v394
      %v595 = vunpack.c.l.b16 %v395
      %v596 = vunpack.c.h.b16 %v395
      %v597 = vunpack.c.l.b16 %v396
      %v598 = vunpack.c.l.b16 %v397
      %v599 = vunpack.c.h.b16 %v397
      %v600 = vunpack.c.l.b16 %v398
      %v601 = vunpack.c.l.b16 %v399
      %v602 = vunpack.c.h.b16 %v399
      %v603 = vunpack.c.l.b16 %v400
      %v604 = vunpack.c.l.b16 %v401
      %v605 = vunpack.c.h.b16 %v401
      %v606 = vunpack.c.l.b16 %v402
      %v607 = vunpack.c.l.b16 %v403
      %v608 = vunpack.c.h.b16 %v403
      %v609 = vunpack.c.l.b16 %v404
      %v610 = vunpack.c.l.b16 %v405
      %v611 = vunpack.c.h.b16 %v405
      %v612 = vunpack.c.l.b16 %v406
      %v613 = vpack.c.b16 %v520, %v517
      %v614 = vpack.c.b16 %v521, %v518
      %v615 = vpack.c.b16 %v522, %v519
      %v616 = vpack.c.b16 %v526, %v523
      %v617 = vpack.c.b16 %v527, %v524
      %v618 = vpack.c.b16 %v528, %v525
      %v619 = vpack.c.b16 %v532, %v529
      %v620 = vpack.c.b16 %v533, %v530
      %v621 = vpack.c.b16 %v534, %v531
      %v622 = vpack.c.b16 %v538, %v535
      %v623 = vpack.c.b16 %v539, %v536
      %v624 = vpack.c.b16 %v540, %v537
      %v625 = vpack.c.b16 %v544, %v541
      %v626 = vpack.c.b16 %v545, %v542
      %v627 = vpack.c.b16 %v546, %v543
      %v628 = vpack.c.b16 %v550, %v547
      %v629 = vpack.c.b16 %v551, %v548
      %v630 = vpack.c.b16 %v552, %v549
      %v631 = vpack.c.b16 %v556, %v553
      %v632 = vpack.c.b16 %v557, %v554
      %v633 = vpack.c.b16 %v558, %v555
      %v634 = vpack.c.b16 %v562, %v559
      %v635 = vpack.c.b16 %v563, %v560
      %v636 = vpack.c.b16 %v564, %v561
      %v637 = vpack.c.b16 %v568, %v565
      %v638 = vpack.c.b16 %v569, %v566
      %v639 = vpack.c.b16 %v570, %v567
      %v640 = vpack.c.b16 %v574, %v571
      %v641 = vpack.c.b16 %v575, %v572
      %v642 = vpack.c.b16 %v576, %v573
      %v643 = vpack.c.b16 %v580, %v577
      %v644 = vpack.c.b16 %v581, %v578
      %v645 = vpack.c.b16 %v582, %v579
      %v646 = vpack.c.b16 %v586, %v583
      %v647 = vpack.c.b16 %v587, %v584
      %v648 = vpack.c.b16 %v588, %v585
      %v649 = vpack.c.b16 %v592, %v589
      %v650 = vpack.c.b16 %v593, %v590
      %v651 = vpack.c.b16 %v594, %v591
      %v652 = vpack.c.b16 %v598, %v595
      %v653 = vpack.c.b16 %v599, %v596
      %v654 = vpack.c.b16 %v600, %v597
      %v655 = vpack.c.b16 %v604, %v601
      %v656 = vpack.c.b16 %v605, %v602
      %v657 = vpack.c.b16 %v606, %v603
      %v658 = vpack.c.b16 %v610, %v607
      %v659 = vpack.c.b16 %v611, %v608
      %v660 = vpack.c.b16 %v612, %v609
      %v739 = vunpack.c.l.b16 %v407
      %v740 = vunpack.c.l.b16 %v408
      %v741 = vunpack.c.l.b16 %v409
      %v742 = vunpack.c.l.b16 %v410
      %v743 = vunpack.c.l.b16 %v411
      %v744 = vunpack.c.l.b16 %v412
      %v745 = vunpack.c.l.b16 %v413
      %v746 = vunpack.c.l.b16 %v414
      %v747 = vunpack.c.l.b16 %v415
      %v748 = vunpack.c.l.b16 %v416
      %v749 = vunpack.c.l.b16 %v417
      %v750 = vunpack.c.l.b16 %v418
      %v751 = vunpack.c.l.b16 %v419
      %v752 = vunpack.c.l.b16 %v420
      %v753 = vunpack.c.l.b16 %v421
      %v754 = vunpack.c.l.b16 %v422
      %v755 = vunpack.c.l.b16 %v423
      %v756 = vunpack.c.l.b16 %v424
      %v757 = vunpack.c.l.b16 %v425
      %v758 = vunpack.c.l.b16 %v426
      %v759 = vunpack.c.l.b16 %v427
      %v760 = vunpack.c.l.b16 %v428
      %v761 = vunpack.c.l.b16 %v429
      %v762 = vunpack.c.l.b16 %v430
      %v763 = vunpack.c.l.b16 %v431
      %v764 = vunpack.c.l.b16 %v432
      %v765 = vunpack.c.l.b16 %v433
      %v766 = vunpack.c.l.b16 %v434
      %v767 = vunpack.c.l.b16 %v435
      %v768 = vunpack.c.l.b16 %v436
      %v769 = vunpack.c.l.b16 %v437
      %v770 = vunpack.c.l.b16 %v438
      %v771 = vunpack.c.l.b16 %v439
      %v772 = vunpack.c.l.b16 %v440
      %v773 = vunpack.c.l.b16 %v441
      %v774 = vunpack.c.l.b16 %v442
      %v775 = vunpack.c.l.b16 %v443
      %v776 = vunpack.c.l.b16 %v444
      %v777 = vunpack.c.l.b16 %v445
      %v778 = vunpack.c.l.b16 %v446
      %v779 = vunpack.c.l.b16 %v447
      %v780 = vunpack.c.l.b16 %v448
      %v781 = vunpack.c.l.b16 %v449
      %v782 = vunpack.c.l.b16 %v450
      %v783 = vunpack.c.l.b16 %v451
      %v784 = vunpack.c.l.b16 %v452
      %v785 = vpack.c.b16 %v740, %v739
      %v786 = vpack.c.b16 %v742, %v741
      %v787 = vpack.c.b16 %v744, %v743
      %v788 = vpack.c.b16 %v746, %v745
      %v789 = vpack.c.b16 %v748, %v747
      %v790 = vpack.c.b16 %v750, %v749
      %v791 = vpack.c.b16 %v752, %v751
      %v792 = vpack.c.b16 %v754, %v753
      %v793 = vpack.c.b16 %v756, %v755
      %v794 = vpack.c.b16 %v758, %v757
      %v795 = vpack.c.b16 %v760, %v759
      %v796 = vpack.c.b16 %v762, %v761
      %v797 = vpack.c.b16 %v764, %v763
      %v798 = vpack.c.b16 %v766, %v765
      %v799 = vpack.c.b16 %v768, %v767
      %v800 = vpack.c.b16 %v770, %v769
      %v801 = vpack.c.b16 %v772, %v771
      %v802 = vpack.c.b16 %v774, %v773
      %v803 = vpack.c.b16 %v776, %v775
      %v804 = vpack.c.b16 %v778, %v777
      %v805 = vpack.c.b16 %v780, %v779
      %v806 = vpack.c.b16 %v782, %v781
      %v807 = vpack.c.b16 %v784, %v783
      %vm830 = vcmask 875520
      %v832 = vsel %vm830, %v615, 0
      %v835 = vsel %vm830, %v618, 0
      %v838 = vsel %vm830, %v621, 0
      %v841 = vsel %vm830, %v624, 0
      %v844 = vsel %vm830, %v627, 0
      %v847 = vsel %vm830, %v630, 0
      %v850 = vsel %vm830, %v633, 0
      %v853 = vsel %vm830, %v636, 0
      %v856 = vsel %vm830, %v639, 0
      %v859 = vsel %vm830, %v642, 0
      %v862 = vsel %vm830, %v645, 0
      %v865 = vsel %vm830, %v648, 0
      %v868 = vsel %vm830, %v651, 0
      %v871 = vsel %vm830, %v654, 0
      %v874 = vsel %vm830, %v657, 0
      %v877 = vsel %vm830, %v660, 0
      %vm879 = vcmask 1044480
      %vm880 = vcmask 1045504
      %v881 = vsel %vm879, 4294967295, 65535
      %v882 = vsel %vm880, %v881, 0
      %v884 = vand.u32 %v807, %v882
      %886 = vmatprep.subr.bf16.mxu0 0
      %887 = vmatpush1.bf16.msra.mxu0 %v792
      %888 = vmatprep.subr.bf16.mxu0 0
      %889 = vmatpush1.bf16.msra.mxu0 %v791
      %890 = vmatprep.subr.bf16.mxu0 0
      %891 = vmatpush1.bf16.msra.mxu0 %v790
      %892 = vmatprep.subr.bf16.mxu0 0
      %893 = vmatpush1.bf16.msra.mxu0 %v789
      %894 = vmatprep.subr.bf16.mxu0 0
      %895 = vmatpush1.bf16.msra.mxu0 %v788
      %896 = vmatprep.subr.bf16.mxu0 0
      %897 = vmatpush1.bf16.msra.mxu0 %v787
      %898 = vmatprep.subr.bf16.mxu0 0
      %899 = vmatpush1.bf16.msra.mxu0 %v786
      %900 = vmatprep.subr.bf16.mxu0 0
      %901 = vmatpush1.bf16.msra.mxu0 %v785
      %902 = vmatprep.subr.bf16.mxu0 0
      %903 = vmatpush2.bf16.msra.mxu0 %v800
      %904 = vmatprep.subr.bf16.mxu0 0
      %905 = vmatpush2.bf16.msra.mxu0 %v799
      %906 = vmatprep.subr.bf16.mxu0 0
      %907 = vmatpush2.bf16.msra.mxu0 %v798
      %908 = vmatprep.subr.bf16.mxu0 0
      %909 = vmatpush2.bf16.msra.mxu0 %v797
      %910 = vmatprep.subr.bf16.mxu0 0
      %911 = vmatpush2.bf16.msra.mxu0 %v796
      %912 = vmatprep.subr.bf16.mxu0 0
      %913 = vmatpush2.bf16.msra.mxu0 %v795
      %914 = vmatprep.subr.bf16.mxu0 0
      %915 = vmatpush2.bf16.msra.mxu0 %v794
      %916 = vmatprep.subr.bf16.mxu0 0
      %917 = vmatpush2.bf16.msra.mxu0 %v793
      %918 = vmatprep.mubr.bf16.mxu0 %v614
      %919 = vmatmul.mubr.bf16.gmra.mxu0 %v613
      %v920 = vpop.f32.mrf.mxu0
      %v921 = vadd.f32 0.0, %v920
      %v922 = vpop.f32.mrf.mxu0
      %v923 = vpop.f32.mrf.mxu0
      %v924 = vadd.f32 0.0, %v923
      %v925 = vpop.f32.mrf.mxu0
      %926 = vmatprep.mubr.bf16.mxu0 %v617
      %927 = vmatmul.mubr.bf16.gmra.mxu0 %v616
      %v928 = vpop.f32.mrf.mxu0
      %v929 = vadd.f32 0.0, %v928
      %v930 = vpop.f32.mrf.mxu0
      %v931 = vpop.f32.mrf.mxu0
      %v932 = vadd.f32 0.0, %v931
      %v933 = vpop.f32.mrf.mxu0
      %934 = vmatprep.mubr.bf16.mxu0 %v620
      %935 = vmatmul.mubr.bf16.gmra.mxu0 %v619
      %v936 = vpop.f32.mrf.mxu0
      %v937 = vadd.f32 0.0, %v936
      %v938 = vpop.f32.mrf.mxu0
      %v939 = vpop.f32.mrf.mxu0
      %v940 = vadd.f32 0.0, %v939
      %v941 = vpop.f32.mrf.mxu0
      %942 = vmatprep.mubr.bf16.mxu0 %v623
      %943 = vmatmul.mubr.bf16.gmra.mxu0 %v622
      %v944 = vpop.f32.mrf.mxu0
      %v945 = vadd.f32 0.0, %v944
      %v946 = vpop.f32.mrf.mxu0
      %v947 = vpop.f32.mrf.mxu0
      %v948 = vadd.f32 0.0, %v947
      %v949 = vpop.f32.mrf.mxu0
      %950 = vmatprep.mubr.bf16.mxu0 %v626
      %951 = vmatmul.mubr.bf16.gmra.mxu0 %v625
      %v952 = vpop.f32.mrf.mxu0
      %v953 = vadd.f32 0.0, %v952
      %v954 = vpop.f32.mrf.mxu0
      %v955 = vpop.f32.mrf.mxu0
      %v956 = vadd.f32 0.0, %v955
      %v957 = vpop.f32.mrf.mxu0
      %958 = vmatprep.mubr.bf16.mxu0 %v629
      %959 = vmatmul.mubr.bf16.gmra.mxu0 %v628
      %v960 = vpop.f32.mrf.mxu0
      %v961 = vadd.f32 0.0, %v960
      %v962 = vpop.f32.mrf.mxu0
      %v963 = vpop.f32.mrf.mxu0
      %v964 = vadd.f32 0.0, %v963
      %v965 = vpop.f32.mrf.mxu0
      %966 = vmatprep.mubr.bf16.mxu0 %v632
      %967 = vmatmul.mubr.bf16.gmra.mxu0 %v631
      %v968 = vpop.f32.mrf.mxu0
      %v969 = vadd.f32 0.0, %v968
      %v970 = vpop.f32.mrf.mxu0
      %v971 = vpop.f32.mrf.mxu0
      %v972 = vadd.f32 0.0, %v971
      %v973 = vpop.f32.mrf.mxu0
      %974 = vmatprep.mubr.bf16.mxu0 %v635
      %975 = vmatmul.mubr.bf16.gmra.mxu0 %v634
      %v976 = vpop.f32.mrf.mxu0
      %v977 = vadd.f32 0.0, %v976
      %v978 = vpop.f32.mrf.mxu0
      %v979 = vpop.f32.mrf.mxu0
      %v980 = vadd.f32 0.0, %v979
      %v981 = vpop.f32.mrf.mxu0
      %982 = vmatprep.mubr.bf16.mxu0 %v638
      %983 = vmatmul.mubr.bf16.gmra.mxu0 %v637
      %v984 = vpop.f32.mrf.mxu0
      %v985 = vadd.f32 0.0, %v984
      %v986 = vpop.f32.mrf.mxu0
      %v987 = vpop.f32.mrf.mxu0
      %v988 = vadd.f32 0.0, %v987
      %v989 = vpop.f32.mrf.mxu0
      %990 = vmatprep.mubr.bf16.mxu0 %v641
      %991 = vmatmul.mubr.bf16.gmra.mxu0 %v640
      %v992 = vpop.f32.mrf.mxu0
      %v993 = vadd.f32 0.0, %v992
      %v994 = vpop.f32.mrf.mxu0
      %v995 = vpop.f32.mrf.mxu0
      %v996 = vadd.f32 0.0, %v995
      %v997 = vpop.f32.mrf.mxu0
      %998 = vmatprep.mubr.bf16.mxu0 %v644
      %999 = vmatmul.mubr.bf16.gmra.mxu0 %v643
      %v1000 = vpop.f32.mrf.mxu0
      %v1001 = vadd.f32 0.0, %v1000
      %v1002 = vpop.f32.mrf.mxu0
      %v1003 = vpop.f32.mrf.mxu0
      %v1004 = vadd.f32 0.0, %v1003
      %v1005 = vpop.f32.mrf.mxu0
      %1006 = vmatprep.mubr.bf16.mxu0 %v647
      %1007 = vmatmul.mubr.bf16.gmra.mxu0 %v646
      %v1008 = vpop.f32.mrf.mxu0
      %v1009 = vadd.f32 0.0, %v1008
      %v1010 = vpop.f32.mrf.mxu0
      %v1011 = vpop.f32.mrf.mxu0
      %v1012 = vadd.f32 0.0, %v1011
      %v1013 = vpop.f32.mrf.mxu0
      %1014 = vmatprep.mubr.bf16.mxu0 %v650
      %1015 = vmatmul.mubr.bf16.gmra.mxu0 %v649
      %v1016 = vpop.f32.mrf.mxu0
      %v1017 = vadd.f32 0.0, %v1016
      %v1018 = vpop.f32.mrf.mxu0
      %v1019 = vpop.f32.mrf.mxu0
      %v1020 = vadd.f32 0.0, %v1019
      %v1021 = vpop.f32.mrf.mxu0
      %1022 = vmatprep.mubr.bf16.mxu0 %v653
      %1023 = vmatmul.mubr.bf16.gmra.mxu0 %v652
      %v1024 = vpop.f32.mrf.mxu0
      %v1025 = vadd.f32 0.0, %v1024
      %v1026 = vpop.f32.mrf.mxu0
      %v1027 = vpop.f32.mrf.mxu0
      %v1028 = vadd.f32 0.0, %v1027
      %v1029 = vpop.f32.mrf.mxu0
      %1030 = vmatprep.mubr.bf16.mxu0 %v656
      %1031 = vmatmul.mubr.bf16.gmra.mxu0 %v655
      %v1032 = vpop.f32.mrf.mxu0
      %v1033 = vadd.f32 0.0, %v1032
      %v1034 = vpop.f32.mrf.mxu0
      %v1035 = vpop.f32.mrf.mxu0
      %v1036 = vadd.f32 0.0, %v1035
      %v1037 = vpop.f32.mrf.mxu0
      %1038 = vmatprep.mubr.bf16.mxu0 %v659
      %1039 = vmatmul.mubr.bf16.gmra.mxu0 %v658
      %v1040 = vpop.f32.mrf.mxu0
      %v1041 = vadd.f32 0.0, %v1040
      %v1042 = vpop.f32.mrf.mxu0
      %v1043 = vpop.f32.mrf.mxu0
      %v1044 = vadd.f32 0.0, %v1043
      %v1045 = vpop.f32.mrf.mxu0
      %1046 = vdwg.mxu0
      %1047 = vmatprep.subr.bf16.mxu0 0
      %1048 = vmatpush1.bf16.msra.mxu0 0
      %1049 = vmatprep.subr.bf16.mxu0 0
      %1050 = vmatpush1.bf16.msra.mxu0 %v884
      %1051 = vmatprep.subr.bf16.mxu0 0
      %1052 = vmatpush1.bf16.msra.mxu0 %v806
      %1053 = vmatprep.subr.bf16.mxu0 0
      %1054 = vmatpush1.bf16.msra.mxu0 %v805
      %1055 = vmatprep.subr.bf16.mxu0 0
      %1056 = vmatpush1.bf16.msra.mxu0 %v804
      %1057 = vmatprep.subr.bf16.mxu0 0
      %1058 = vmatpush1.bf16.msra.mxu0 %v803
      %1059 = vmatprep.subr.bf16.mxu0 0
      %1060 = vmatpush1.bf16.msra.mxu0 %v802
      %1061 = vmatprep.subr.bf16.mxu0 0
      %1062 = vmatpush1.bf16.msra.mxu0 %v801
      %1063 = vmatprep.subr.bf16.mxu0 0
      %1064 = vmatpush2.bf16.msra.mxu0 0
      %1065 = vmatprep.subr.bf16.mxu0 0
      %1066 = vmatpush2.bf16.msra.mxu0 0
      %1067 = vmatprep.subr.bf16.mxu0 0
      %1068 = vmatpush2.bf16.msra.mxu0 0
      %1069 = vmatprep.subr.bf16.mxu0 0
      %1070 = vmatpush2.bf16.msra.mxu0 0
      %1071 = vmatprep.subr.bf16.mxu0 0
      %1072 = vmatpush2.bf16.msra.mxu0 0
      %1073 = vmatprep.subr.bf16.mxu0 0
      %1074 = vmatpush2.bf16.msra.mxu0 0
      %1075 = vmatprep.subr.bf16.mxu0 0
      %1076 = vmatpush2.bf16.msra.mxu0 0
      %1077 = vmatprep.subr.bf16.mxu0 0
      %1078 = vmatpush2.bf16.msra.mxu0 0
      %1079 = vmatprep.mubr.bf16.mxu0 0
      %1080 = vmatmul.mubr.bf16.gmra.mxu0 %v832
      %v1081 = vpop.f32.mrf.mxu0
      %v1082 = vadd.f32 %v921, %v1081
      %v1083 = vpop.f32.mrf.mxu0
      %v1084 = vpop.f32.mrf.mxu0
      %v1085 = vadd.f32 %v924, %v1084
      %v1086 = vpop.f32.mrf.mxu0
      %1087 = vmatprep.mubr.bf16.mxu0 0
      %1088 = vmatmul.mubr.bf16.gmra.mxu0 %v835
      %v1089 = vpop.f32.mrf.mxu0
      %v1090 = vadd.f32 %v929, %v1089
      %v1091 = vpop.f32.mrf.mxu0
      %v1092 = vpop.f32.mrf.mxu0
      %v1093 = vadd.f32 %v932, %v1092
      %v1094 = vpop.f32.mrf.mxu0
      %1095 = vmatprep.mubr.bf16.mxu0 0
      %1096 = vmatmul.mubr.bf16.gmra.mxu0 %v838
      %v1097 = vpop.f32.mrf.mxu0
      %v1098 = vadd.f32 %v937, %v1097
      %v1099 = vpop.f32.mrf.mxu0
      %v1100 = vpop.f32.mrf.mxu0
      %v1101 = vadd.f32 %v940, %v1100
      %v1102 = vpop.f32.mrf.mxu0
      %1103 = vmatprep.mubr.bf16.mxu0 0
      %1104 = vmatmul.mubr.bf16.gmra.mxu0 %v841
      %v1105 = vpop.f32.mrf.mxu0
      %v1106 = vadd.f32 %v945, %v1105
      %v1107 = vpop.f32.mrf.mxu0
      %v1108 = vpop.f32.mrf.mxu0
      %v1109 = vadd.f32 %v948, %v1108
      %v1110 = vpop.f32.mrf.mxu0
      %1111 = vmatprep.mubr.bf16.mxu0 0
      %1112 = vmatmul.mubr.bf16.gmra.mxu0 %v844
      %v1113 = vpop.f32.mrf.mxu0
      %v1114 = vadd.f32 %v953, %v1113
      %v1115 = vpop.f32.mrf.mxu0
      %v1116 = vpop.f32.mrf.mxu0
      %v1117 = vadd.f32 %v956, %v1116
      %v1118 = vpop.f32.mrf.mxu0
      %1119 = vmatprep.mubr.bf16.mxu0 0
      %1120 = vmatmul.mubr.bf16.gmra.mxu0 %v847
      %v1121 = vpop.f32.mrf.mxu0
      %v1122 = vadd.f32 %v961, %v1121
      %v1123 = vpop.f32.mrf.mxu0
      %v1124 = vpop.f32.mrf.mxu0
      %v1125 = vadd.f32 %v964, %v1124
      %v1126 = vpop.f32.mrf.mxu0
      %1127 = vmatprep.mubr.bf16.mxu0 0
      %1128 = vmatmul.mubr.bf16.gmra.mxu0 %v850
      %v1129 = vpop.f32.mrf.mxu0
      %v1130 = vadd.f32 %v969, %v1129
      %v1131 = vpop.f32.mrf.mxu0
      %v1132 = vpop.f32.mrf.mxu0
      %v1133 = vadd.f32 %v972, %v1132
      %v1134 = vpop.f32.mrf.mxu0
      %1135 = vmatprep.mubr.bf16.mxu0 0
      %1136 = vmatmul.mubr.bf16.gmra.mxu0 %v853
      %v1137 = vpop.f32.mrf.mxu0
      %v1138 = vadd.f32 %v977, %v1137
      %v1139 = vpop.f32.mrf.mxu0
      %v1140 = vpop.f32.mrf.mxu0
      %v1141 = vadd.f32 %v980, %v1140
      %v1142 = vpop.f32.mrf.mxu0
      %1143 = vmatprep.mubr.bf16.mxu0 0
      %1144 = vmatmul.mubr.bf16.gmra.mxu0 %v856
      %v1145 = vpop.f32.mrf.mxu0
      %v1146 = vadd.f32 %v985, %v1145
      %v1147 = vpop.f32.mrf.mxu0
      %v1148 = vpop.f32.mrf.mxu0
      %v1149 = vadd.f32 %v988, %v1148
      %v1150 = vpop.f32.mrf.mxu0
      %1151 = vmatprep.mubr.bf16.mxu0 0
      %1152 = vmatmul.mubr.bf16.gmra.mxu0 %v859
      %v1153 = vpop.f32.mrf.mxu0
      %v1154 = vadd.f32 %v993, %v1153
      %v1155 = vpop.f32.mrf.mxu0
      %v1156 = vpop.f32.mrf.mxu0
      %v1157 = vadd.f32 %v996, %v1156
      %v1158 = vpop.f32.mrf.mxu0
      %1159 = vmatprep.mubr.bf16.mxu0 0
      %1160 = vmatmul.mubr.bf16.gmra.mxu0 %v862
      %v1161 = vpop.f32.mrf.mxu0
      %v1162 = vadd.f32 %v1001, %v1161
      %v1163 = vpop.f32.mrf.mxu0
      %v1164 = vpop.f32.mrf.mxu0
      %v1165 = vadd.f32 %v1004, %v1164
      %v1166 = vpop.f32.mrf.mxu0
      %1167 = vmatprep.mubr.bf16.mxu0 0
      %1168 = vmatmul.mubr.bf16.gmra.mxu0 %v865
      %v1169 = vpop.f32.mrf.mxu0
      %v1170 = vadd.f32 %v1009, %v1169
      %v1171 = vpop.f32.mrf.mxu0
      %v1172 = vpop.f32.mrf.mxu0
      %v1173 = vadd.f32 %v1012, %v1172
      %v1174 = vpop.f32.mrf.mxu0
      %1175 = vmatprep.mubr.bf16.mxu0 0
      %1176 = vmatmul.mubr.bf16.gmra.mxu0 %v868
      %v1177 = vpop.f32.mrf.mxu0
      %v1178 = vadd.f32 %v1017, %v1177
      %v1179 = vpop.f32.mrf.mxu0
      %v1180 = vpop.f32.mrf.mxu0
      %v1181 = vadd.f32 %v1020, %v1180
      %v1182 = vpop.f32.mrf.mxu0
      %1183 = vmatprep.mubr.bf16.mxu0 0
      %1184 = vmatmul.mubr.bf16.gmra.mxu0 %v871
      %v1185 = vpop.f32.mrf.mxu0
      %v1186 = vadd.f32 %v1025, %v1185
      %v1187 = vpop.f32.mrf.mxu0
      %v1188 = vpop.f32.mrf.mxu0
      %v1189 = vadd.f32 %v1028, %v1188
      %v1190 = vpop.f32.mrf.mxu0
      %1191 = vmatprep.mubr.bf16.mxu0 0
      %1192 = vmatmul.mubr.bf16.gmra.mxu0 %v874
      %v1193 = vpop.f32.mrf.mxu0
      %v1194 = vadd.f32 %v1033, %v1193
      %v1195 = vpop.f32.mrf.mxu0
      %v1196 = vpop.f32.mrf.mxu0
      %v1197 = vadd.f32 %v1036, %v1196
      %v1198 = vpop.f32.mrf.mxu0
      %1199 = vmatprep.mubr.bf16.mxu0 0
      %1200 = vmatmul.mubr.bf16.gmra.mxu0 %v877
      %v1201 = vpop.f32.mrf.mxu0
      %v1202 = vadd.f32 %v1041, %v1201
      %v1203 = vpop.f32.mrf.mxu0
      %v1204 = vpop.f32.mrf.mxu0
      %v1205 = vadd.f32 %v1044, %v1204
      %v1206 = vpop.f32.mrf.mxu0
      %1207 = vdwg.mxu0
      %v1208 = vadd.f32 %v311, %v1082
      %v1209 = vadd.f32 %v312, %v1085
      %v1210 = vadd.f32 %v313, %v1090
      %v1211 = vadd.f32 %v314, %v1093
      %v1212 = vadd.f32 %v315, %v1098
      %v1213 = vadd.f32 %v316, %v1101
      %v1214 = vadd.f32 %v317, %v1106
      %v1215 = vadd.f32 %v318, %v1109
      %v1216 = vadd.f32 %v319, %v1114
      %v1217 = vadd.f32 %v320, %v1117
      %v1218 = vadd.f32 %v321, %v1122
      %v1219 = vadd.f32 %v322, %v1125
      %v1220 = vadd.f32 %v323, %v1130
      %v1221 = vadd.f32 %v324, %v1133
      %v1222 = vadd.f32 %v325, %v1138
      %v1223 = vadd.f32 %v326, %v1141
      %v1224 = vadd.f32 %v327, %v1146
      %v1225 = vadd.f32 %v328, %v1149
      %v1226 = vadd.f32 %v329, %v1154
      %v1227 = vadd.f32 %v330, %v1157
      %v1228 = vadd.f32 %v331, %v1162
      %v1229 = vadd.f32 %v332, %v1165
      %v1230 = vadd.f32 %v333, %v1170
      %v1231 = vadd.f32 %v334, %v1173
      %v1232 = vadd.f32 %v335, %v1178
      %v1233 = vadd.f32 %v336, %v1181
      %v1234 = vadd.f32 %v337, %v1186
      %v1235 = vadd.f32 %v338, %v1189
      %v1236 = vadd.f32 %v339, %v1194
      %v1237 = vadd.f32 %v340, %v1197
      %v1238 = vadd.f32 %v341, %v1202
      %v1239 = vadd.f32 %v342, %v1205
      %1240 = vst [vmem:[#allocation2] sm:$0xff] %v1208
      %1241 = vst [vmem:[#allocation2 + $0x8] sm:$0xff] %v1209
      %1242 = vst [vmem:[#allocation2 + $0x10] sm:$0xff] %v1210
      %1243 = vst [vmem:[#allocation2 + $0x18] sm:$0xff] %v1211
      %1244 = vst [vmem:[#allocation2 + $0x20] sm:$0xff] %v1212
      %1245 = vst [vmem:[#allocation2 + $0x28] sm:$0xff] %v1213
      %1246 = vst [vmem:[#allocation2 + $0x30] sm:$0xff] %v1214
      %1247 = vst [vmem:[#allocation2 + $0x38] sm:$0xff] %v1215
      %1248 = vst [vmem:[#allocation2 + $0x40] sm:$0xff] %v1216
      %1249 = vst [vmem:[#allocation2 + $0x48] sm:$0xff] %v1217
      %1250 = vst [vmem:[#allocation2 + $0x50] sm:$0xff] %v1218
      %1251 = vst [vmem:[#allocation2 + $0x58] sm:$0xff] %v1219
      %1252 = vst [vmem:[#allocation2 + $0x60] sm:$0xff] %v1220
      %1253 = vst [vmem:[#allocation2 + $0x68] sm:$0xff] %v1221
      %1254 = vst [vmem:[#allocation2 + $0x70] sm:$0xff] %v1222
      %1255 = vst [vmem:[#allocation2 + $0x78] sm:$0xff] %v1223
      %1256 = vst [vmem:[#allocation2 + $0x80] sm:$0xff] %v1224
      %1257 = vst [vmem:[#allocation2 + $0x88] sm:$0xff] %v1225
      %1258 = vst [vmem:[#allocation2 + $0x90] sm:$0xff] %v1226
      %1259 = vst [vmem:[#allocation2 + $0x98] sm:$0xff] %v1227
      %1260 = vst [vmem:[#allocation2 + $0xa0] sm:$0xff] %v1228
      %1261 = vst [vmem:[#allocation2 + $0xa8] sm:$0xff] %v1229
      %1262 = vst [vmem:[#allocation2 + $0xb0] sm:$0xff] %v1230
      %1263 = vst [vmem:[#allocation2 + $0xb8] sm:$0xff] %v1231
      %1264 = vst [vmem:[#allocation2 + $0xc0] sm:$0xff] %v1232
      %1265 = vst [vmem:[#allocation2 + $0xc8] sm:$0xff] %v1233
      %1266 = vst [vmem:[#allocation2 + $0xd0] sm:$0xff] %v1234
      %1267 = vst [vmem:[#allocation2 + $0xd8] sm:$0xff] %v1235
      %1268 = vst [vmem:[#allocation2 + $0xe0] sm:$0xff] %v1236
      %1269 = vst [vmem:[#allocation2 + $0xe8] sm:$0xff] %v1237
      %1270 = vst [vmem:[#allocation2 + $0xf0] sm:$0xff] %v1238
      %1271 = vst [vmem:[#allocation2 + $0xf8] sm:$0xff] %v1239
      // Predicated region
      $region37: #{_lambda_.6} parent=31 // pred_check
        %p1272 = pneg %p268
      $region38: #{_lambda_.6} parent=31 // pred_check_branch
        %1274 = sbr.rel (%p1272) target = $region40
      $region39: #{_lambda_.6} parent=31 // pred_region
        %v1275 = vld [vmem:[#allocation2] sm:$0xff]
        %v1276 = vld [vmem:[#allocation2 + $0x8] sm:$0xff]
        %v1277 = vld [vmem:[#allocation2 + $0x10] sm:$0xff]
        %v1278 = vld [vmem:[#allocation2 + $0x18] sm:$0xff]
        %v1279 = vld [vmem:[#allocation2 + $0x20] sm:$0xff]
        %v1280 = vld [vmem:[#allocation2 + $0x28] sm:$0xff]
        %v1281 = vld [vmem:[#allocation2 + $0x30] sm:$0xff]
        %v1282 = vld [vmem:[#allocation2 + $0x38] sm:$0xff]
        %v1283 = vld [vmem:[#allocation2 + $0x40] sm:$0xff]
        %v1284 = vld [vmem:[#allocation2 + $0x48] sm:$0xff]
        %v1285 = vld [vmem:[#allocation2 + $0x50] sm:$0xff]
        %v1286 = vld [vmem:[#allocation2 + $0x58] sm:$0xff]
        %v1287 = vld [vmem:[#allocation2 + $0x60] sm:$0xff]
        %v1288 = vld [vmem:[#allocation2 + $0x68] sm:$0xff]
        %v1289 = vld [vmem:[#allocation2 + $0x70] sm:$0xff]
        %v1290 = vld [vmem:[#allocation2 + $0x78] sm:$0xff]
        %v1291 = vld [vmem:[#allocation2 + $0x80] sm:$0xff]
        %v1292 = vld [vmem:[#allocation2 + $0x88] sm:$0xff]
        %v1293 = vld [vmem:[#allocation2 + $0x90] sm:$0xff]
        %v1294 = vld [vmem:[#allocation2 + $0x98] sm:$0xff]
        %v1295 = vld [vmem:[#allocation2 + $0xa0] sm:$0xff]
        %v1296 = vld [vmem:[#allocation2 + $0xa8] sm:$0xff]
        %v1297 = vld [vmem:[#allocation2 + $0xb0] sm:$0xff]
        %v1298 = vld [vmem:[#allocation2 + $0xb8] sm:$0xff]
        %v1299 = vld [vmem:[#allocation2 + $0xc0] sm:$0xff]
        %v1300 = vld [vmem:[#allocation2 + $0xc8] sm:$0xff]
        %v1301 = vld [vmem:[#allocation2 + $0xd0] sm:$0xff]
        %v1302 = vld [vmem:[#allocation2 + $0xd8] sm:$0xff]
        %v1303 = vld [vmem:[#allocation2 + $0xe0] sm:$0xff]
        %v1304 = vld [vmem:[#allocation2 + $0xe8] sm:$0xff]
        %v1305 = vld [vmem:[#allocation2 + $0xf0] sm:$0xff]
        %v1306 = vld [vmem:[#allocation2 + $0xf8] sm:$0xff]
        %v1307 = vmax.f32 %v1275, 0.0
        %v1308 = vmax.f32 %v1276, 0.0
        %v1309 = vmax.f32 %v1277, 0.0
        %v1310 = vmax.f32 %v1278, 0.0
        %v1311 = vmax.f32 %v1279, 0.0
        %v1312 = vmax.f32 %v1280, 0.0
        %v1313 = vmax.f32 %v1281, 0.0
        %v1314 = vmax.f32 %v1282, 0.0
        %v1315 = vmax.f32 %v1283, 0.0
        %v1316 = vmax.f32 %v1284, 0.0
        %v1317 = vmax.f32 %v1285, 0.0
        %v1318 = vmax.f32 %v1286, 0.0
        %v1319 = vmax.f32 %v1287, 0.0
        %v1320 = vmax.f32 %v1288, 0.0
        %v1321 = vmax.f32 %v1289, 0.0
        %v1322 = vmax.f32 %v1290, 0.0
        %v1323 = vmax.f32 %v1291, 0.0
        %v1324 = vmax.f32 %v1292, 0.0
        %v1325 = vmax.f32 %v1293, 0.0
        %v1326 = vmax.f32 %v1294, 0.0
        %v1327 = vmax.f32 %v1295, 0.0
        %v1328 = vmax.f32 %v1296, 0.0
        %v1329 = vmax.f32 %v1297, 0.0
        %v1330 = vmax.f32 %v1298, 0.0
        %v1331 = vmax.f32 %v1299, 0.0
        %v1332 = vmax.f32 %v1300, 0.0
        %v1333 = vmax.f32 %v1301, 0.0
        %v1334 = vmax.f32 %v1302, 0.0
        %v1335 = vmax.f32 %v1303, 0.0
        %v1336 = vmax.f32 %v1304, 0.0
        %v1337 = vmax.f32 %v1305, 0.0
        %v1338 = vmax.f32 %v1306, 0.0
        %v1339 = vpack.c.bf16 %v1308, %v1307
        %v1340 = vpack.c.bf16 %v1310, %v1309
        %v1341 = vpack.c.bf16 %v1312, %v1311
        %v1342 = vpack.c.bf16 %v1314, %v1313
        %v1343 = vpack.c.bf16 %v1316, %v1315
        %v1344 = vpack.c.bf16 %v1318, %v1317
        %v1345 = vpack.c.bf16 %v1320, %v1319
        %v1346 = vpack.c.bf16 %v1322, %v1321
        %v1347 = vpack.c.bf16 %v1324, %v1323
        %v1348 = vpack.c.bf16 %v1326, %v1325
        %v1349 = vpack.c.bf16 %v1328, %v1327
        %v1350 = vpack.c.bf16 %v1330, %v1329
        %v1351 = vpack.c.bf16 %v1332, %v1331
        %v1352 = vpack.c.bf16 %v1334, %v1333
        %v1353 = vpack.c.bf16 %v1336, %v1335
        %v1354 = vpack.c.bf16 %v1338, %v1337
        %v1371 = vunpack.c.l.b16 %v1339
        %v1372 = vunpack.c.h.b16 %v1339
        %v1373 = vunpack.c.l.b16 %v1340
        %v1374 = vunpack.c.h.b16 %v1340
        %v1375 = vunpack.c.l.b16 %v1341
        %v1376 = vunpack.c.h.b16 %v1341
        %v1377 = vunpack.c.l.b16 %v1342
        %v1378 = vunpack.c.h.b16 %v1342
        %v1379 = vunpack.c.l.b16 %v1343
        %v1380 = vunpack.c.h.b16 %v1343
        %v1381 = vunpack.c.l.b16 %v1344
        %v1382 = vunpack.c.h.b16 %v1344
        %v1383 = vunpack.c.l.b16 %v1345
        %v1384 = vunpack.c.h.b16 %v1345
        %v1385 = vunpack.c.l.b16 %v1346
        %v1386 = vunpack.c.h.b16 %v1346
        %v1387 = vunpack.c.l.b16 %v1347
        %v1388 = vunpack.c.h.b16 %v1347
        %v1389 = vunpack.c.l.b16 %v1348
        %v1390 = vunpack.c.h.b16 %v1348
        %v1391 = vunpack.c.l.b16 %v1349
        %v1392 = vunpack.c.h.b16 %v1349
        %v1393 = vunpack.c.l.b16 %v1350
        %v1394 = vunpack.c.h.b16 %v1350
        %v1395 = vunpack.c.l.b16 %v1351
        %v1396 = vunpack.c.h.b16 %v1351
        %v1397 = vunpack.c.l.b16 %v1352
        %v1398 = vunpack.c.h.b16 %v1352
        %v1399 = vunpack.c.l.b16 %v1353
        %v1400 = vunpack.c.h.b16 %v1353
        %v1401 = vunpack.c.l.b16 %v1354
        %v1402 = vunpack.c.h.b16 %v1354
        %v1403 = vpack.c.b16 %v1371, %v1371
        %v1404 = vpack.c.b16 %v1372, %v1372
        %v1405 = vpack.c.b16 %v1373, %v1373
        %v1406 = vpack.c.b16 %v1374, %v1374
        %v1407 = vpack.c.b16 %v1375, %v1375
        %v1408 = vpack.c.b16 %v1376, %v1376
        %v1409 = vpack.c.b16 %v1377, %v1377
        %v1410 = vpack.c.b16 %v1378, %v1378
        %v1411 = vpack.c.b16 %v1379, %v1379
        %v1412 = vpack.c.b16 %v1380, %v1380
        %v1413 = vpack.c.b16 %v1381, %v1381
        %v1414 = vpack.c.b16 %v1382, %v1382
        %v1415 = vpack.c.b16 %v1383, %v1383
        %v1416 = vpack.c.b16 %v1384, %v1384
        %v1417 = vpack.c.b16 %v1385, %v1385
        %v1418 = vpack.c.b16 %v1386, %v1386
        %v1419 = vpack.c.b16 %v1387, %v1387
        %v1420 = vpack.c.b16 %v1388, %v1388
        %v1421 = vpack.c.b16 %v1389, %v1389
        %v1422 = vpack.c.b16 %v1390, %v1390
        %v1423 = vpack.c.b16 %v1391, %v1391
        %v1424 = vpack.c.b16 %v1392, %v1392
        %v1425 = vpack.c.b16 %v1393, %v1393
        %v1426 = vpack.c.b16 %v1394, %v1394
        %v1427 = vpack.c.b16 %v1395, %v1395
        %v1428 = vpack.c.b16 %v1396, %v1396
        %v1429 = vpack.c.b16 %v1397, %v1397
        %v1430 = vpack.c.b16 %v1398, %v1398
        %v1431 = vpack.c.b16 %v1399, %v1399
        %v1432 = vpack.c.b16 %v1400, %v1400
        %v1433 = vpack.c.b16 %v1401, %v1401
        %v1434 = vpack.c.b16 %v1402, %v1402
        %1467 = vst [vmem:[%s265] sm:$0xf] %v1403
        %1468 = vst [vmem:[%s265 + $0x4] sm:$0xf] %v1404
        %1469 = vst [vmem:[%s265 + $0x8] sm:$0xf] %v1405
        %1470 = vst [vmem:[%s265 + $0xc] sm:$0xf] %v1406
        %1471 = vst [vmem:[%s265 + $0x10] sm:$0xf] %v1407
        %1472 = vst [vmem:[%s265 + $0x14] sm:$0xf] %v1408
        %1473 = vst [vmem:[%s265 + $0x18] sm:$0xf] %v1409
        %1474 = vst [vmem:[%s265 + $0x1c] sm:$0xf] %v1410
        %1475 = vst [vmem:[%s265 + $0x20] sm:$0xf] %v1411
        %1476 = vst [vmem:[%s265 + $0x24] sm:$0xf] %v1412
        %1477 = vst [vmem:[%s265 + $0x28] sm:$0xf] %v1413
        %1478 = vst [vmem:[%s265 + $0x2c] sm:$0xf] %v1414
        %1479 = vst [vmem:[%s265 + $0x30] sm:$0xf] %v1415
        %1480 = vst [vmem:[%s265 + $0x34] sm:$0xf] %v1416
        %1481 = vst [vmem:[%s265 + $0x38] sm:$0xf] %v1417
        %1482 = vst [vmem:[%s265 + $0x3c] sm:$0xf] %v1418
        %1483 = vst [vmem:[%s265 + $0x40] sm:$0xf] %v1419
        %1484 = vst [vmem:[%s265 + $0x44] sm:$0xf] %v1420
        %1485 = vst [vmem:[%s265 + $0x48] sm:$0xf] %v1421
        %1486 = vst [vmem:[%s265 + $0x4c] sm:$0xf] %v1422
        %1487 = vst [vmem:[%s265 + $0x50] sm:$0xf] %v1423
        %1488 = vst [vmem:[%s265 + $0x54] sm:$0xf] %v1424
        %1489 = vst [vmem:[%s265 + $0x58] sm:$0xf] %v1425
        %1490 = vst [vmem:[%s265 + $0x5c] sm:$0xf] %v1426
        %1491 = vst [vmem:[%s265 + $0x60] sm:$0xf] %v1427
        %1492 = vst [vmem:[%s265 + $0x64] sm:$0xf] %v1428
        %1493 = vst [vmem:[%s265 + $0x68] sm:$0xf] %v1429
        %1494 = vst [vmem:[%s265 + $0x6c] sm:$0xf] %v1430
        %1495 = vst [vmem:[%s265 + $0x70] sm:$0xf] %v1431
        %1496 = vst [vmem:[%s265 + $0x74] sm:$0xf] %v1432
        %1497 = vst [vmem:[%s265 + $0x78] sm:$0xf] %v1433
        %1498 = vst [vmem:[%s265 + $0x7c] sm:$0xf] %v1434
      $region40: #{_lambda_.6} parent=31 // pred_fallthru
        _
      %s1499 = smul.u32 32, %s20
      %p1500 = scmp.lt.s32.totalorder %s1499, 63
      %s1501 = scalar_select %p1500, %s1499, 63
      %p1502 = scmp.lt.s32.totalorder %s19, 0
      %s1503 = scalar_select %p1502, %s19, 0
      %s1504 = sadd.s32 %s1503, %s1501
      %s1505 = smul.addr %s1504, 4
      %s1506 = scalar_lea.vmem %s3, %s1505
      // Predicated region
      $region41: #{_lambda_.6} parent=31 // pred_check
        %p1507 = pneg %p135
      $region42: #{_lambda_.6} parent=31 // pred_check_branch
        %1509 = sbr.rel (%p1507) target = $region44
      $region43: #{_lambda_.6} parent=31 // pred_region
        %s1510 = smul.u32 32, %s20
      $region44: #{_lambda_.6} parent=31 // pred_fallthru
        _
    $region32: #{_lambda_.6} parent=5 // pred_fallthru
      _
    %p1511 = scmp.le.s32.totalorder 2, %s9
    // Predicated region
    $region45: #{_lambda_.6} parent=5 // pred_check
      %p1512 = pneg %p1511
    $region46: #{_lambda_.6} parent=5 // pred_check_branch
      %1514 = sbr.rel (%p1512) target = $region48
    $region47: #{_lambda_.6} parent=5 // pred_region
      %s1515 = ssub.s32 %s9, 2
      // Predicated region
      $region49: #{_lambda_.6} parent=47 // pred_check
        %p1516 = pneg %p141
      $region50: #{_lambda_.6} parent=47 // pred_check_branch
        %1518 = sbr.rel (%p1516) target = $region52
      $region51: #{_lambda_.6} parent=47 // pred_region
        %s1519 = smul.u32 32, %s23
        %p1520 = scmp.lt.s32.totalorder %s1519, 63
        %s1521 = scalar_select %p1520, %s1519, 63
        %p1522 = scmp.lt.s32.totalorder %s22, 0
        %s1523 = scalar_select %p1522, %s22, 0
        %s1524 = sadd.s32 %s1523, %s1521
        %s1525 = smul.addr %s1524, 4
        %s1526 = scalar_lea.vmem %s3, %s1525
      $region52: #{_lambda_.6} parent=47 // pred_fallthru
        _
    $region48: #{_lambda_.6} parent=5 // pred_fallthru
      _
  $region6: #{_lambda_.6} parent=0 // loop_footer
    %s13 = sadd.s32 1, %s9
  $region7: #{_lambda_.6} parent=0 // loop_footer_branch
    %8 = sbr.rel target = $region3
  $region8: #{_lambda_.6} parent=0 // loop_exit
    _

// kernel: _lambda_.7
$region0: #{_lambda_.7}
  #allocation0 [shape = 'u32[]', space=smem, size = 0x4, offset = 0x4, fixed_abs, tag = 'smem constant byte address 0x4 - core index']
  #allocation1 [shape = 'u32[144,128]{1,0:T(1,128)}', space=vmem, size = 0x12000, scoped, tag = 'internal scratch']
  %s0 = inlined_call_operand.vmem [shape: bf16[14,448], index: 0, kind: input, shape index: {}]
  %s1 = inlined_call_operand.vmem [shape: bf16[14,448], index: 1, kind: input, shape index: {}]
  %s2 = inlined_call_operand.vmem [shape: bf16[14,448], index: 2, kind: input, shape index: {}]
  %s3 = inlined_call_operand.vmem [shape: bf16[14,448], index: 3, kind: input, shape index: {}]
  %s4 = inlined_call_operand.vmem [shape: bf16[14,448], index: 4, kind: input, shape index: {}]
  %s5 = inlined_call_operand.vmem [shape: bf16[14,448], index: 5, kind: input, shape index: {}]
  %s6 = inlined_call_operand.vmem [shape: bf16[14,448], index: 6, kind: input, shape index: {}]
  %s7 = inlined_call_operand.vmem [shape: bf16[14,448], index: 7, kind: input, shape index: {}]
  %s8 = inlined_call_operand.vmem [shape: bf16[14,448], index: 8, kind: input, shape index: {}]
  %s9 = inlined_call_operand.vmem [shape: bf16[14,448], index: 9, kind: output, shape index: {}]
  %s10 = sld [smem:[#allocation0]]
  $region46: #{_lambda_.7} parent=0
    _
  %s12 = ssub.s32 1, %s10
  %s13 = scalar_select 0, %s12, %s10
  // Predicated region
  $region2: #{_lambda_.7} parent=0 // pred_check
    _
  $region3: #{_lambda_.7} parent=0 // pred_check_branch
    %15 = sbr.rel (0) target = $region5
  $region4: #{_lambda_.7} parent=0 // pred_region
    _
  $region5: #{_lambda_.7} parent=0 // pred_fallthru
    _
  // Predicated region
  $region6: #{_lambda_.7} parent=0 // pred_check
    _
  $region7: #{_lambda_.7} parent=0 // pred_check_branch
    %17 = sbr.rel (0) target = $region9
  $region8: #{_lambda_.7} parent=0 // pred_region
    _
  $region9: #{_lambda_.7} parent=0 // pred_fallthru
    _
  // Predicated region
  $region10: #{_lambda_.7} parent=0 // pred_check
    _
  $region11: #{_lambda_.7} parent=0 // pred_check_branch
    %19 = sbr.rel (0) target = $region13
  $region12: #{_lambda_.7} parent=0 // pred_region
    _
  $region13: #{_lambda_.7} parent=0 // pred_fallthru
    _
  // Predicated region
  $region14: #{_lambda_.7} parent=0 // pred_check
    _
  $region15: #{_lambda_.7} parent=0 // pred_check_branch
    %21 = sbr.rel (0) target = $region17
  $region16: #{_lambda_.7} parent=0 // pred_region
    _
  $region17: #{_lambda_.7} parent=0 // pred_fallthru
    _
  // Predicated region
  $region18: #{_lambda_.7} parent=0 // pred_check
    _
  $region19: #{_lambda_.7} parent=0 // pred_check_branch
    %23 = sbr.rel (0) target = $region21
  $region20: #{_lambda_.7} parent=0 // pred_region
    _
  $region21: #{_lambda_.7} parent=0 // pred_fallthru
    _
  // Predicated region
  $region22: #{_lambda_.7} parent=0 // pred_check
    _
  $region23: #{_lambda_.7} parent=0 // pred_check_branch
    %25 = sbr.rel (0) target = $region25
  $region24: #{_lambda_.7} parent=0 // pred_region
    _
  $region25: #{_lambda_.7} parent=0 // pred_fallthru
    _
  // Predicated region
  $region26: #{_lambda_.7} parent=0 // pred_check
    _
  $region27: #{_lambda_.7} parent=0 // pred_check_branch
    %27 = sbr.rel (0) target = $region29
  $region28: #{_lambda_.7} parent=0 // pred_region
    _
  $region29: #{_lambda_.7} parent=0 // pred_fallthru
    _
  // Predicated region
  $region30: #{_lambda_.7} parent=0 // pred_check
    _
  $region31: #{_lambda_.7} parent=0 // pred_check_branch
    %29 = sbr.rel (0) target = $region33
  $region32: #{_lambda_.7} parent=0 // pred_region
    _
  $region33: #{_lambda_.7} parent=0 // pred_fallthru
    _
  // Predicated region
  $region34: #{_lambda_.7} parent=0 // pred_check
    _
  $region35: #{_lambda_.7} parent=0 // pred_check_branch
    %31 = sbr.rel (0) target = $region37
  $region36: #{_lambda_.7} parent=0 // pred_region
    _
  $region37: #{_lambda_.7} parent=0 // pred_fallthru
    _
  %v32 = vld [vmem:[%s0] sm:$0xff]
  %v33 = vld [vmem:[%s0 + $0x8] sm:$0xff]
  %v34 = vld [vmem:[%s0 + $0x10] sm:$0x77]
  %v35 = vld [vmem:[%s0 + $0x18] sm:$0x77]
  %v36 = vld [vmem:[%s1] sm:$0xff]
  %v37 = vld [vmem:[%s1 + $0x8] sm:$0xff]
  %v38 = vld [vmem:[%s1 + $0x10] sm:$0x77]
  %v39 = vld [vmem:[%s1 + $0x18] sm:$0x77]
  %v40 = vmax.bf16 %v32, %v36
  %v41 = vmax.bf16 %v33, %v37
  %v42 = vmax.bf16 %v34, %v38
  %v43 = vmax.bf16 %v35, %v39
  %v44 = vld [vmem:[%s2] sm:$0xff]
  %v45 = vld [vmem:[%s2 + $0x8] sm:$0xff]
  %v46 = vld [vmem:[%s2 + $0x10] sm:$0x77]
  %v47 = vld [vmem:[%s2 + $0x18] sm:$0x77]
  %v48 = vmax.bf16 %v40, %v44
  %v49 = vmax.bf16 %v41, %v45
  %v50 = vmax.bf16 %v42, %v46
  %v51 = vmax.bf16 %v43, %v47
  %v52 = vld [vmem:[%s3] sm:$0xff]
  %v53 = vld [vmem:[%s3 + $0x8] sm:$0xff]
  %v54 = vld [vmem:[%s3 + $0x10] sm:$0x77]
  %v55 = vld [vmem:[%s3 + $0x18] sm:$0x77]
  %v56 = vmax.bf16 %v48, %v52
  %v57 = vmax.bf16 %v49, %v53
  %v58 = vmax.bf16 %v50, %v54
  %v59 = vmax.bf16 %v51, %v55
  %v60 = vld [vmem:[%s4] sm:$0xff]
  %v61 = vld [vmem:[%s4 + $0x8] sm:$0xff]
  %v62 = vld [vmem:[%s4 + $0x10] sm:$0x77]
  %v63 = vld [vmem:[%s4 + $0x18] sm:$0x77]
  %v64 = vmax.bf16 %v56, %v60
  %v65 = vmax.bf16 %v57, %v61
  %v66 = vmax.bf16 %v58, %v62
  %v67 = vmax.bf16 %v59, %v63
  %v68 = vld [vmem:[%s5] sm:$0xff]
  %v69 = vld [vmem:[%s5 + $0x8] sm:$0xff]
  %v70 = vld [vmem:[%s5 + $0x10] sm:$0x77]
  %v71 = vld [vmem:[%s5 + $0x18] sm:$0x77]
  %v72 = vmax.bf16 %v64, %v68
  %v73 = vmax.bf16 %v65, %v69
  %v74 = vmax.bf16 %v66, %v70
  %v75 = vmax.bf16 %v67, %v71
  %v76 = vld [vmem:[%s6] sm:$0xff]
  %v77 = vld [vmem:[%s6 + $0x8] sm:$0xff]
  %v78 = vld [vmem:[%s6 + $0x10] sm:$0x77]
  %v79 = vld [vmem:[%s6 + $0x18] sm:$0x77]
  %v80 = vmax.bf16 %v72, %v76
  %v81 = vmax.bf16 %v73, %v77
  %v82 = vmax.bf16 %v74, %v78
  %v83 = vmax.bf16 %v75, %v79
  %v84 = vld [vmem:[%s7] sm:$0xff]
  %v85 = vld [vmem:[%s7 + $0x8] sm:$0xff]
  %v86 = vld [vmem:[%s7 + $0x10] sm:$0x77]
  %v87 = vld [vmem:[%s7 + $0x18] sm:$0x77]
  %v88 = vmax.bf16 %v80, %v84
  %v89 = vmax.bf16 %v81, %v85
  %v90 = vmax.bf16 %v82, %v86
  %v91 = vmax.bf16 %v83, %v87
  %v92 = vld [vmem:[%s8] sm:$0xff]
  %v93 = vld [vmem:[%s8 + $0x8] sm:$0xff]
  %v94 = vld [vmem:[%s8 + $0x10] sm:$0x77]
  %v95 = vld [vmem:[%s8 + $0x18] sm:$0x77]
  %v96 = vmax.bf16 %v88, %v92
  %v97 = vmax.bf16 %v89, %v93
  %v98 = vmax.bf16 %v90, %v94
  %v99 = vmax.bf16 %v91, %v95
  %100 = vst [vmem:[%s9] sm:$0xff] %v96
  %vm101 = vcmask 1043456
  %vm102 = vcmask 523268
  %vm103 = vmor %vm102, %vm101
  %104 = vst.msk [vmem:[%s9 + $0x8] sm:$0xff] %vm103, %v97
  %105 = vst [vmem:[%s9 + $0x10] sm:$0x77] %v98
  %vm106 = vcmask 1042432
  %vm107 = vcmask 522244
  %vm108 = vmor %vm107, %vm106
  %109 = vst.msk [vmem:[%s9 + $0x18] sm:$0x77] %vm108, %v99
  // Predicated region
  $region38: #{_lambda_.7} parent=0 // pred_check
    _
  $region39: #{_lambda_.7} parent=0 // pred_check_branch
    %111 = sbr.rel (0) target = $region41
  $region40: #{_lambda_.7} parent=0 // pred_region
    _
  $region41: #{_lambda_.7} parent=0 // pred_fallthru
    _
  // Predicated region
  $region42: #{_lambda_.7} parent=0 // pred_check
    _
  $region43: #{_lambda_.7} parent=0 // pred_check_branch
    %113 = sbr.rel (0) target = $region45
  $region44: #{_lambda_.7} parent=0 // pred_region
    _
  $region45: #{_lambda_.7} parent=0 // pred_fallthru
    _

// kernel: _lambda_.8
$region0: #{_lambda_.8}
  #allocation0 [shape = 'u32[]', space=smem, size = 0x4, offset = 0x4, fixed_abs, tag = 'smem constant byte address 0x4 - core index']
  #allocation1 [shape = 'u32[144,128]{1,0:T(1,128)}', space=vmem, size = 0x12000, scoped, tag = 'internal scratch']
  #allocation2 [shape = 'f32[112,128]{1,0:T(8,128)}', space=vmem, size = 0xe000, scoped, tag = 'scratch operand']
  %s0 = inlined_call_operand.vmem [shape: bf16[112,1600], index: 0, kind: input, shape index: {}]
  %s1 = inlined_call_operand.vmem [shape: bf16[1600,256], index: 1, kind: input, shape index: {}]
  %s2 = inlined_call_operand.vmem [shape: f32[1,256], index: 2, kind: input, shape index: {}]
  %s3 = inlined_call_operand.vmem [shape: bf16[112,256], index: 3, kind: output, shape index: {}]
  %s4 = sld [smem:[#allocation0]]
  $region131: #{_lambda_.8} parent=0
    _
  %s6 = ssub.s32 1, %s4
  %s7 = scalar_select 0, %s6, %s4
  $region1: #{_lambda_.8} parent=0
    #allocation3 [shape = 'u8[819200]{0}', space=vmem, size = 0xc8000, scoped, tag = 'input window, operand 1']
    #allocation4 [shape = 'u8[57344]{0}', space=vmem, size = 0xe000, scoped, tag = 'output window, operand 0']
    loop: start=0, step=1, limit=4
    $region2: #{_lambda_.8} parent=1 // loop_pre_header
      _
    $region3: #{_lambda_.8} parent=1 // loop_header
      %s9 = sphi 0, %s13
      %p10 = scmp.ge.s32.totalorder %s9, 4
      %s16 = sphi 0, %s35
      %s17 = sphi 0, %s31
      %s18 = sphi 0, %s27
      %s19 = sphi 0, %s16
      %s20 = sphi 0, %s17
      %s21 = sphi 0, %s18
      %s22 = sphi 0, %s19
      %s23 = sphi 0, %s20
      %s24 = sphi 0, %s21
      %s40 = sphi 0, %s42
      %s43 = sphi 0, %s40
      %s44 = sphi 0, %s43
      %s60 = sphi 0, %s44
      %s68 = sphi 0, %s70
      %s71 = sphi 0, %s68
      %s72 = sphi 0, %s71
      %s88 = sphi 0, %s72
      %s94 = sphi 0, %s96
      %s97 = sphi 0, %s94
      %s98 = sphi 0, %s97
      %s114 = sphi 0, %s98
      %s122 = sphi 0, %s124
      %s125 = sphi 0, %s122
      %s126 = sphi 0, %s125
      %s142 = sphi 0, %s126
    $region4: #{_lambda_.8} parent=1 // loop_header_branch
      %12 = sbr.rel (%p10) target = $region8
    $region5: #{_lambda_.8} parent=1 // loop_body
      %s14 = ssub.s32 %s9, 1
      %s15 = ssub.s32 %s9, 2
      %s25 = sadd.s32 1, %s18
      %p26 = scmp.ge.s32.totalorder %s25, 1
      %s27 = scalar_select %p26, 0, %s25
      %s28 = sadd.s32 1, %s17
      %s29 = scalar_select %p26, %s28, %s17
      %p30 = scmp.ge.s32.totalorder %s29, 1
      %s31 = scalar_select %p30, 0, %s29
      %s32 = sadd.s32 1, %s16
      %s33 = scalar_select %p30, %s32, %s16
      %p34 = scmp.ge.s32.totalorder %s33, 2
      %s35 = scalar_select %p34, 0, %s33
      %s36 = ssub.s32 %s17, %s31
      %s37 = ssub.s32 %s18, %s27
      %s38 = sor.u32 %s36, %s37
      %p39 = scmp.eq.s32.totalorder %s38, 0
      %s41 = sadd.s32 %s40, 1
      %s42 = scalar_select %p39, %s40, %s41
      %p45 = pneg %p39
      %p46 = scmp.eq.s32.totalorder %s9, 1
      %p47 = por %p45, %p46
      %p48 = scmp.ne.s32.totalorder %s40, %s43
      %p49 = scmp.eq.s32.totalorder %s9, 0
      %p50 = por %p48, %p49
      %p51 = scmp.ne.s32.totalorder %s40, %s43
      %p52 = scmp.eq.s32.totalorder %s14, 1
      %p53 = por %p51, %p52
      %p54 = scmp.ne.s32.totalorder %s43, %s44
      %p55 = scmp.eq.s32.totalorder %s14, 0
      %p56 = por %p54, %p55
      %p57 = scmp.ne.s32.totalorder %s43, %s44
      %p58 = scmp.eq.s32.totalorder %s15, 1
      %p59 = por %p57, %p58
      %p61 = scmp.ne.s32.totalorder %s44, %s60
      %p62 = scmp.eq.s32.totalorder %s15, 0
      %p63 = por %p61, %p62
      %s64 = ssub.s32 %s18, %s27
      %s65 = ssub.s32 %s16, %s35
      %s66 = sor.u32 %s64, %s65
      %p67 = scmp.eq.s32.totalorder %s66, 0
      %s69 = sadd.s32 %s68, 1
      %s70 = scalar_select %p67, %s68, %s69
      %p73 = pneg %p67
      %p74 = scmp.eq.s32.totalorder %s9, 1
      %p75 = por %p73, %p74
      %p76 = scmp.ne.s32.totalorder %s68, %s71
      %p77 = scmp.eq.s32.totalorder %s9, 0
      %p78 = por %p76, %p77
      %p79 = scmp.ne.s32.totalorder %s68, %s71
      %p80 = scmp.eq.s32.totalorder %s14, 1
      %p81 = por %p79, %p80
      %p82 = scmp.ne.s32.totalorder %s71, %s72
      %p83 = scmp.eq.s32.totalorder %s14, 0
      %p84 = por %p82, %p83
      %p85 = scmp.ne.s32.totalorder %s71, %s72
      %p86 = scmp.eq.s32.totalorder %s15, 1
      %p87 = por %p85, %p86
      %p89 = scmp.ne.s32.totalorder %s72, %s88
      %p90 = scmp.eq.s32.totalorder %s15, 0
      %p91 = por %p89, %p90
      %s92 = ssub.s32 %s16, %s35
      %p93 = scmp.eq.s32.totalorder %s92, 0
      %s95 = sadd.s32 %s94, 1
      %s96 = scalar_select %p93, %s94, %s95
      %p99 = pneg %p93
      %p100 = scmp.eq.s32.totalorder %s9, 1
      %p101 = por %p99, %p100
      %p102 = scmp.ne.s32.totalorder %s94, %s97
      %p103 = scmp.eq.s32.totalorder %s9, 0
      %p104 = por %p102, %p103
      %p105 = scmp.ne.s32.totalorder %s94, %s97
      %p106 = scmp.eq.s32.totalorder %s14, 1
      %p107 = por %p105, %p106
      %p108 = scmp.ne.s32.totalorder %s97, %s98
      %p109 = scmp.eq.s32.totalorder %s14, 0
      %p110 = por %p108, %p109
      %p111 = scmp.ne.s32.totalorder %s97, %s98
      %p112 = scmp.eq.s32.totalorder %s15, 1
      %p113 = por %p111, %p112
      %p115 = scmp.ne.s32.totalorder %s98, %s114
      %p116 = scmp.eq.s32.totalorder %s15, 0
      %p117 = por %p115, %p116
      %s118 = ssub.s32 %s17, %s31
      %s119 = ssub.s32 %s16, %s35
      %s120 = sor.u32 %s118, %s119
      %p121 = scmp.eq.s32.totalorder %s120, 0
      %s123 = sadd.s32 %s122, 1
      %s124 = scalar_select %p121, %s122, %s123
      %p127 = pneg %p121
      %p128 = scmp.eq.s32.totalorder %s9, 1
      %p129 = por %p127, %p128
      %p130 = scmp.ne.s32.totalorder %s122, %s125
      %p131 = scmp.eq.s32.totalorder %s9, 0
      %p132 = por %p130, %p131
      %p133 = scmp.ne.s32.totalorder %s122, %s125
      %p134 = scmp.eq.s32.totalorder %s14, 1
      %p135 = por %p133, %p134
      %p136 = scmp.ne.s32.totalorder %s125, %s126
      %p137 = scmp.eq.s32.totalorder %s14, 0
      %p138 = por %p136, %p137
      %p139 = scmp.ne.s32.totalorder %s125, %s126
      %p140 = scmp.eq.s32.totalorder %s15, 1
      %p141 = por %p139, %p140
      %p143 = scmp.ne.s32.totalorder %s126, %s142
      %p144 = scmp.eq.s32.totalorder %s15, 0
      %p145 = por %p143, %p144
      %p146 = scmp.le.s32.totalorder 1, %s9
      %p147 = scmp.lt.s32.totalorder %s9, 3
      %p148 = pnand %p146, %p147
      %p149 = pneg %p148
      // Predicated region
      $region9: #{_lambda_.8} parent=5 // pred_check
        _
      $region10: #{_lambda_.8} parent=5 // pred_check_branch
        %151 = sbr.rel (%p148) target = $region12
      $region11: #{_lambda_.8} parent=5 // pred_region
        %s152 = ssub.s32 %s9, 1
        // Predicated region
        $region13: #{_lambda_.8} parent=11 // pred_check
          %p153 = pneg %p56
        $region14: #{_lambda_.8} parent=11 // pred_check_branch
          %155 = sbr.rel (%p153) target = $region16
        $region15: #{_lambda_.8} parent=11 // pred_region
          %s156 = smul.u32 14, %s20
          %s157 = smul.u32 13, %s21
          %p158 = scmp.lt.s32.totalorder %s156, 13
          %s159 = scalar_select %p158, %s156, 13
          %p160 = scmp.lt.s32.totalorder %s157, 12
          %s161 = scalar_select %p160, %s157, 12
          %s162 = smul.addr %s159, 13
          %s163 = sadd.s32 %s161, %s162
          %s164 = smul.addr %s163, 4
          %s165 = scalar_lea.vmem %s0, %s164
          %s166 = smul.u32 14, %s20
          %s167 = smul.u32 13, %s21
        $region16: #{_lambda_.8} parent=11 // pred_fallthru
          _
      $region12: #{_lambda_.8} parent=5 // pred_fallthru
        _
      %p168 = scmp.lt.s32.totalorder %s9, 2
      // Predicated region
      $region17: #{_lambda_.8} parent=5 // pred_check
        %p169 = pneg %p168
      $region18: #{_lambda_.8} parent=5 // pred_check_branch
        %171 = sbr.rel (%p169) target = $region20
      $region19: #{_lambda_.8} parent=5 // pred_region
        // Predicated region
        $region21: #{_lambda_.8} parent=19 // pred_check
          %p172 = pneg %p78
        $region22: #{_lambda_.8} parent=19 // pred_check_branch
          %174 = sbr.rel (%p172) target = $region24
        $region23: #{_lambda_.8} parent=19 // pred_region
          %s175 = sand.u32 %s68, 1
          %s176 = sand.u32 %s68, 1
          %s177 = smul.addr %s176, 800
          %s178 = scalar_lea.vmem [#allocation3], %s177
          %s179 = smul.u32 200, %s18
          %s180 = smul.addr %s179, 2
          %s181 = sadd.s32 %s16, %s180
          %s182 = smul.addr %s181, 4
          %s183 = scalar_lea.vmem %s1, %s182
          // Predicated region
          $region25: #{_lambda_.8} parent=23 // pred_check
            _
          $region26: #{_lambda_.8} parent=23 // pred_check_branch
            %185 = sbr.rel (0) target = $region28
          $region27: #{_lambda_.8} parent=23 // pred_region
            // Predicated region
            $region29: #{_lambda_.8} parent=27 // pred_check
              _
            $region30: #{_lambda_.8} parent=27 // pred_check_branch
              %187 = sbr.rel target = $region32
            $region31: #{_lambda_.8} parent=27 // pred_region
              // Predicated region
              $region44: #{_lambda_.8} parent=31 // pred_check
                _
              $region45: #{_lambda_.8} parent=31 // pred_check_branch
                %601 = sbr.rel (0) target = $region47
              $region46: #{_lambda_.8} parent=31 // pred_region
                loop: start=0, step=1, limit=1
                $region48: #{_lambda_.8} parent=46 // loop_pre_header
                  _
                $region49: #{_lambda_.8} parent=46 // loop_header
                  %s603 = sphi 0, %s607
                  %p604 = scmp.ge.s32.totalorder %s603, 1
                  %s608 = sphi %s183, %s183
                  %s609 = sphi %s178, %s178
                $region50: #{_lambda_.8} parent=46 // loop_header_branch
                  %606 = sbr.rel (%p604) target = $region54
                $region51: #{_lambda_.8} parent=46 // loop_body
                  _
                $region52: #{_lambda_.8} parent=46 // loop_footer
                  %s607 = sadd.s32 1, %s603
                $region53: #{_lambda_.8} parent=46 // loop_footer_branch
                  %602 = sbr.rel target = $region49
                $region54: #{_lambda_.8} parent=46 // loop_exit
                  _
                %s611 = ssub.s32 16, 1
                loop: start=0, step=1, limit=1
                $region55: #{_lambda_.8} parent=46 // loop_pre_header
                  _
                $region56: #{_lambda_.8} parent=46 // loop_header
                  %s613 = sphi 0, %s617
                  %p614 = scmp.ge.s32.totalorder %s613, 1
                  %s618 = sphi %s183, %s183
                  %s619 = sphi %s178, %s178
                $region57: #{_lambda_.8} parent=46 // loop_header_branch
                  %616 = sbr.rel (%p614) target = $region61
                $region58: #{_lambda_.8} parent=46 // loop_body
                  %v620 = vld [vmem:[%s618] sm:%s611]
                  %621 = vst [vmem:[%s619] sm:%s611] %v620
                  %v622 = vld [vmem:[%s618 + $0x8] sm:%s611]
                  %623 = vst [vmem:[%s619 + $0x4] sm:%s611] %v622
                  %v624 = vld [vmem:[%s618 + $0x10] sm:%s611]
                  %625 = vst [vmem:[%s619 + $0x8] sm:%s611] %v624
                  %v626 = vld [vmem:[%s618 + $0x18] sm:%s611]
                  %627 = vst [vmem:[%s619 + $0xc] sm:%s611] %v626
                  %v628 = vld [vmem:[%s618 + $0x20] sm:%s611]
                  %629 = vst [vmem:[%s619 + $0x10] sm:%s611] %v628
                  %v630 = vld [vmem:[%s618 + $0x28] sm:%s611]
                  %631 = vst [vmem:[%s619 + $0x14] sm:%s611] %v630
                  %v632 = vld [vmem:[%s618 + $0x30] sm:%s611]
                  %633 = vst [vmem:[%s619 + $0x18] sm:%s611] %v632
                  %v634 = vld [vmem:[%s618 + $0x38] sm:%s611]
                  %635 = vst [vmem:[%s619 + $0x1c] sm:%s611] %v634
                  %v636 = vld [vmem:[%s618 + $0x40] sm:%s611]
                  %637 = vst [vmem:[%s619 + $0x20] sm:%s611] %v636
                  %v638 = vld [vmem:[%s618 + $0x48] sm:%s611]
                  %639 = vst [vmem:[%s619 + $0x24] sm:%s611] %v638
                  %v640 = vld [vmem:[%s618 + $0x50] sm:%s611]
                  %641 = vst [vmem:[%s619 + $0x28] sm:%s611] %v640
                  %v642 = vld [vmem:[%s618 + $0x58] sm:%s611]
                  %643 = vst [vmem:[%s619 + $0x2c] sm:%s611] %v642
                  %v644 = vld [vmem:[%s618 + $0x60] sm:%s611]
                  %645 = vst [vmem:[%s619 + $0x30] sm:%s611] %v644
                  %v646 = vld [vmem:[%s618 + $0x68] sm:%s611]
                  %647 = vst [vmem:[%s619 + $0x34] sm:%s611] %v646
                  %v648 = vld [vmem:[%s618 + $0x70] sm:%s611]
                  %649 = vst [vmem:[%s619 + $0x38] sm:%s611] %v648
                  %v650 = vld [vmem:[%s618 + $0x78] sm:%s611]
                  %651 = vst [vmem:[%s619 + $0x3c] sm:%s611] %v650
                  %v652 = vld [vmem:[%s618 + $0x80] sm:%s611]
                  %653 = vst [vmem:[%s619 + $0x40] sm:%s611] %v652
                  %v654 = vld [vmem:[%s618 + $0x88] sm:%s611]
                  %655 = vst [vmem:[%s619 + $0x44] sm:%s611] %v654
                  %v656 = vld [vmem:[%s618 + $0x90] sm:%s611]
                  %657 = vst [vmem:[%s619 + $0x48] sm:%s611] %v656
                  %v658 = vld [vmem:[%s618 + $0x98] sm:%s611]
                  %659 = vst [vmem:[%s619 + $0x4c] sm:%s611] %v658
                  %v660 = vld [vmem:[%s618 + $0xa0] sm:%s611]
                  %661 = vst [vmem:[%s619 + $0x50] sm:%s611] %v660
                  %v662 = vld [vmem:[%s618 + $0xa8] sm:%s611]
                  %663 = vst [vmem:[%s619 + $0x54] sm:%s611] %v662
                  %v664 = vld [vmem:[%s618 + $0xb0] sm:%s611]
                  %665 = vst [vmem:[%s619 + $0x58] sm:%s611] %v664
                  %v666 = vld [vmem:[%s618 + $0xb8] sm:%s611]
                  %667 = vst [vmem:[%s619 + $0x5c] sm:%s611] %v666
                  %v668 = vld [vmem:[%s618 + $0xc0] sm:%s611]
                  %669 = vst [vmem:[%s619 + $0x60] sm:%s611] %v668
                  %v670 = vld [vmem:[%s618 + $0xc8] sm:%s611]
                  %671 = vst [vmem:[%s619 + $0x64] sm:%s611] %v670
                  %v672 = vld [vmem:[%s618 + $0xd0] sm:%s611]
                  %673 = vst [vmem:[%s619 + $0x68] sm:%s611] %v672
                  %v674 = vld [vmem:[%s618 + $0xd8] sm:%s611]
                  %675 = vst [vmem:[%s619 + $0x6c] sm:%s611] %v674
                  %v676 = vld [vmem:[%s618 + $0xe0] sm:%s611]
                  %677 = vst [vmem:[%s619 + $0x70] sm:%s611] %v676
                  %v678 = vld [vmem:[%s618 + $0xe8] sm:%s611]
                  %679 = vst [vmem:[%s619 + $0x74] sm:%s611] %v678
                  %v680 = vld [vmem:[%s618 + $0xf0] sm:%s611]
                  %681 = vst [vmem:[%s619 + $0x78] sm:%s611] %v680
                  %v682 = vld [vmem:[%s618 + $0xf8] sm:%s611]
                  %683 = vst [vmem:[%s619 + $0x7c] sm:%s611] %v682
                  %v684 = vld [vmem:[%s618 + $0x100] sm:%s611]
                  %685 = vst [vmem:[%s619 + $0x80] sm:%s611] %v684
                  %v686 = vld [vmem:[%s618 + $0x108] sm:%s611]
                  %687 = vst [vmem:[%s619 + $0x84] sm:%s611] %v686
                  %v688 = vld [vmem:[%s618 + $0x110] sm:%s611]
                  %689 = vst [vmem:[%s619 + $0x88] sm:%s611] %v688
                  %v690 = vld [vmem:[%s618 + $0x118] sm:%s611]
                  %691 = vst [vmem:[%s619 + $0x8c] sm:%s611] %v690
                  %v692 = vld [vmem:[%s618 + $0x120] sm:%s611]
                  %693 = vst [vmem:[%s619 + $0x90] sm:%s611] %v692
                  %v694 = vld [vmem:[%s618 + $0x128] sm:%s611]
                  %695 = vst [vmem:[%s619 + $0x94] sm:%s611] %v694
                  %v696 = vld [vmem:[%s618 + $0x130] sm:%s611]
                  %697 = vst [vmem:[%s619 + $0x98] sm:%s611] %v696
                  %v698 = vld [vmem:[%s618 + $0x138] sm:%s611]
                  %699 = vst [vmem:[%s619 + $0x9c] sm:%s611] %v698
                  %v700 = vld [vmem:[%s618 + $0x140] sm:%s611]
                  %701 = vst [vmem:[%s619 + $0xa0] sm:%s611] %v700
                  %v702 = vld [vmem:[%s618 + $0x148] sm:%s611]
                  %703 = vst [vmem:[%s619 + $0xa4] sm:%s611] %v702
                  %v704 = vld [vmem:[%s618 + $0x150] sm:%s611]
                  %705 = vst [vmem:[%s619 + $0xa8] sm:%s611] %v704
                  %v706 = vld [vmem:[%s618 + $0x158] sm:%s611]
                  %707 = vst [vmem:[%s619 + $0xac] sm:%s611] %v706
                  %v708 = vld [vmem:[%s618 + $0x160] sm:%s611]
                  %709 = vst [vmem:[%s619 + $0xb0] sm:%s611] %v708
                  %v710 = vld [vmem:[%s618 + $0x168] sm:%s611]
                  %711 = vst [vmem:[%s619 + $0xb4] sm:%s611] %v710
                  %v712 = vld [vmem:[%s618 + $0x170] sm:%s611]
                  %713 = vst [vmem:[%s619 + $0xb8] sm:%s611] %v712
                  %v714 = vld [vmem:[%s618 + $0x178] sm:%s611]
                  %715 = vst [vmem:[%s619 + $0xbc] sm:%s611] %v714
                  %v716 = vld [vmem:[%s618 + $0x180] sm:%s611]
                  %717 = vst [vmem:[%s619 + $0xc0] sm:%s611] %v716
                  %v718 = vld [vmem:[%s618 + $0x188] sm:%s611]
                  %719 = vst [vmem:[%s619 + $0xc4] sm:%s611] %v718
                  %v720 = vld [vmem:[%s618 + $0x190] sm:%s611]
                  %721 = vst [vmem:[%s619 + $0xc8] sm:%s611] %v720
                  %v722 = vld [vmem:[%s618 + $0x198] sm:%s611]
                  %723 = vst [vmem:[%s619 + $0xcc] sm:%s611] %v722
                  %v724 = vld [vmem:[%s618 + $0x1a0] sm:%s611]
                  %725 = vst [vmem:[%s619 + $0xd0] sm:%s611] %v724
                  %v726 = vld [vmem:[%s618 + $0x1a8] sm:%s611]
                  %727 = vst [vmem:[%s619 + $0xd4] sm:%s611] %v726
                  %v728 = vld [vmem:[%s618 + $0x1b0] sm:%s611]
                  %729 = vst [vmem:[%s619 + $0xd8] sm:%s611] %v728
                  %v730 = vld [vmem:[%s618 + $0x1b8] sm:%s611]
                  %731 = vst [vmem:[%s619 + $0xdc] sm:%s611] %v730
                  %v732 = vld [vmem:[%s618 + $0x1c0] sm:%s611]
                  %733 = vst [vmem:[%s619 + $0xe0] sm:%s611] %v732
                  %v734 = vld [vmem:[%s618 + $0x1c8] sm:%s611]
                  %735 = vst [vmem:[%s619 + $0xe4] sm:%s611] %v734
                  %v736 = vld [vmem:[%s618 + $0x1d0] sm:%s611]
                  %737 = vst [vmem:[%s619 + $0xe8] sm:%s611] %v736
                  %v738 = vld [vmem:[%s618 + $0x1d8] sm:%s611]
                  %739 = vst [vmem:[%s619 + $0xec] sm:%s611] %v738
                  %v740 = vld [vmem:[%s618 + $0x1e0] sm:%s611]
                  %741 = vst [vmem:[%s619 + $0xf0] sm:%s611] %v740
                  %v742 = vld [vmem:[%s618 + $0x1e8] sm:%s611]
                  %743 = vst [vmem:[%s619 + $0xf4] sm:%s611] %v742
                  %v744 = vld [vmem:[%s618 + $0x1f0] sm:%s611]
                  %745 = vst [vmem:[%s619 + $0xf8] sm:%s611] %v744
                  %v746 = vld [vmem:[%s618 + $0x1f8] sm:%s611]
                  %747 = vst [vmem:[%s619 + $0xfc] sm:%s611] %v746
                  %v748 = vld [vmem:[%s618 + $0x200] sm:%s611]
                  %749 = vst [vmem:[%s619 + $0x100] sm:%s611] %v748
                  %v750 = vld [vmem:[%s618 + $0x208] sm:%s611]
                  %751 = vst [vmem:[%s619 + $0x104] sm:%s611] %v750
                  %v752 = vld [vmem:[%s618 + $0x210] sm:%s611]
                  %753 = vst [vmem:[%s619 + $0x108] sm:%s611] %v752
                  %v754 = vld [vmem:[%s618 + $0x218] sm:%s611]
                  %755 = vst [vmem:[%s619 + $0x10c] sm:%s611] %v754
                  %v756 = vld [vmem:[%s618 + $0x220] sm:%s611]
                  %757 = vst [vmem:[%s619 + $0x110] sm:%s611] %v756
                  %v758 = vld [vmem:[%s618 + $0x228] sm:%s611]
                  %759 = vst [vmem:[%s619 + $0x114] sm:%s611] %v758
                  %v760 = vld [vmem:[%s618 + $0x230] sm:%s611]
                  %761 = vst [vmem:[%s619 + $0x118] sm:%s611] %v760
                  %v762 = vld [vmem:[%s618 + $0x238] sm:%s611]
                  %763 = vst [vmem:[%s619 + $0x11c] sm:%s611] %v762
                  %v764 = vld [vmem:[%s618 + $0x240] sm:%s611]
                  %765 = vst [vmem:[%s619 + $0x120] sm:%s611] %v764
                  %v766 = vld [vmem:[%s618 + $0x248] sm:%s611]
                  %767 = vst [vmem:[%s619 + $0x124] sm:%s611] %v766
                  %v768 = vld [vmem:[%s618 + $0x250] sm:%s611]
                  %769 = vst [vmem:[%s619 + $0x128] sm:%s611] %v768
                  %v770 = vld [vmem:[%s618 + $0x258] sm:%s611]
                  %771 = vst [vmem:[%s619 + $0x12c] sm:%s611] %v770
                  %v772 = vld [vmem:[%s618 + $0x260] sm:%s611]
                  %773 = vst [vmem:[%s619 + $0x130] sm:%s611] %v772
                  %v774 = vld [vmem:[%s618 + $0x268] sm:%s611]
                  %775 = vst [vmem:[%s619 + $0x134] sm:%s611] %v774
                  %v776 = vld [vmem:[%s618 + $0x270] sm:%s611]
                  %777 = vst [vmem:[%s619 + $0x138] sm:%s611] %v776
                  %v778 = vld [vmem:[%s618 + $0x278] sm:%s611]
                  %779 = vst [vmem:[%s619 + $0x13c] sm:%s611] %v778
                  %v780 = vld [vmem:[%s618 + $0x280] sm:%s611]
                  %781 = vst [vmem:[%s619 + $0x140] sm:%s611] %v780
                  %v782 = vld [vmem:[%s618 + $0x288] sm:%s611]
                  %783 = vst [vmem:[%s619 + $0x144] sm:%s611] %v782
                  %v784 = vld [vmem:[%s618 + $0x290] sm:%s611]
                  %785 = vst [vmem:[%s619 + $0x148] sm:%s611] %v784
                  %v786 = vld [vmem:[%s618 + $0x298] sm:%s611]
                  %787 = vst [vmem:[%s619 + $0x14c] sm:%s611] %v786
                  %v788 = vld [vmem:[%s618 + $0x2a0] sm:%s611]
                  %789 = vst [vmem:[%s619 + $0x150] sm:%s611] %v788
                  %v790 = vld [vmem:[%s618 + $0x2a8] sm:%s611]
                  %791 = vst [vmem:[%s619 + $0x154] sm:%s611] %v790
                  %v792 = vld [vmem:[%s618 + $0x2b0] sm:%s611]
                  %793 = vst [vmem:[%s619 + $0x158] sm:%s611] %v792
                  %v794 = vld [vmem:[%s618 + $0x2b8] sm:%s611]
                  %795 = vst [vmem:[%s619 + $0x15c] sm:%s611] %v794
                  %v796 = vld [vmem:[%s618 + $0x2c0] sm:%s611]
                  %797 = vst [vmem:[%s619 + $0x160] sm:%s611] %v796
                  %v798 = vld [vmem:[%s618 + $0x2c8] sm:%s611]
                  %799 = vst [vmem:[%s619 + $0x164] sm:%s611] %v798
                  %v800 = vld [vmem:[%s618 + $0x2d0] sm:%s611]
                  %801 = vst [vmem:[%s619 + $0x168] sm:%s611] %v800
                  %v802 = vld [vmem:[%s618 + $0x2d8] sm:%s611]
                  %803 = vst [vmem:[%s619 + $0x16c] sm:%s611] %v802
                  %v804 = vld [vmem:[%s618 + $0x2e0] sm:%s611]
                  %805 = vst [vmem:[%s619 + $0x170] sm:%s611] %v804
                  %v806 = vld [vmem:[%s618 + $0x2e8] sm:%s611]
                  %807 = vst [vmem:[%s619 + $0x174] sm:%s611] %v806
                  %v808 = vld [vmem:[%s618 + $0x2f0] sm:%s611]
                  %809 = vst [vmem:[%s619 + $0x178] sm:%s611] %v808
                  %v810 = vld [vmem:[%s618 + $0x2f8] sm:%s611]
                  %811 = vst [vmem:[%s619 + $0x17c] sm:%s611] %v810
                  %v812 = vld [vmem:[%s618 + $0x300] sm:%s611]
                  %813 = vst [vmem:[%s619 + $0x180] sm:%s611] %v812
                  %v814 = vld [vmem:[%s618 + $0x308] sm:%s611]
                  %815 = vst [vmem:[%s619 + $0x184] sm:%s611] %v814
                  %v816 = vld [vmem:[%s618 + $0x310] sm:%s611]
                  %817 = vst [vmem:[%s619 + $0x188] sm:%s611] %v816
                  %v818 = vld [vmem:[%s618 + $0x318] sm:%s611]
                  %819 = vst [vmem:[%s619 + $0x18c] sm:%s611] %v818
                  %v820 = vld [vmem:[%s618 + $0x320] sm:%s611]
                  %821 = vst [vmem:[%s619 + $0x190] sm:%s611] %v820
                  %v822 = vld [vmem:[%s618 + $0x328] sm:%s611]
                  %823 = vst [vmem:[%s619 + $0x194] sm:%s611] %v822
                  %v824 = vld [vmem:[%s618 + $0x330] sm:%s611]
                  %825 = vst [vmem:[%s619 + $0x198] sm:%s611] %v824
                  %v826 = vld [vmem:[%s618 + $0x338] sm:%s611]
                  %827 = vst [vmem:[%s619 + $0x19c] sm:%s611] %v826
                  %v828 = vld [vmem:[%s618 + $0x340] sm:%s611]
                  %829 = vst [vmem:[%s619 + $0x1a0] sm:%s611] %v828
                  %v830 = vld [vmem:[%s618 + $0x348] sm:%s611]
                  %831 = vst [vmem:[%s619 + $0x1a4] sm:%s611] %v830
                  %v832 = vld [vmem:[%s618 + $0x350] sm:%s611]
                  %833 = vst [vmem:[%s619 + $0x1a8] sm:%s611] %v832
                  %v834 = vld [vmem:[%s618 + $0x358] sm:%s611]
                  %835 = vst [vmem:[%s619 + $0x1ac] sm:%s611] %v834
                  %v836 = vld [vmem:[%s618 + $0x360] sm:%s611]
                  %837 = vst [vmem:[%s619 + $0x1b0] sm:%s611] %v836
                  %v838 = vld [vmem:[%s618 + $0x368] sm:%s611]
                  %839 = vst [vmem:[%s619 + $0x1b4] sm:%s611] %v838
                  %v840 = vld [vmem:[%s618 + $0x370] sm:%s611]
                  %841 = vst [vmem:[%s619 + $0x1b8] sm:%s611] %v840
                  %v842 = vld [vmem:[%s618 + $0x378] sm:%s611]
                  %843 = vst [vmem:[%s619 + $0x1bc] sm:%s611] %v842
                  %v844 = vld [vmem:[%s618 + $0x380] sm:%s611]
                  %845 = vst [vmem:[%s619 + $0x1c0] sm:%s611] %v844
                  %v846 = vld [vmem:[%s618 + $0x388] sm:%s611]
                  %847 = vst [vmem:[%s619 + $0x1c4] sm:%s611] %v846
                  %v848 = vld [vmem:[%s618 + $0x390] sm:%s611]
                  %849 = vst [vmem:[%s619 + $0x1c8] sm:%s611] %v848
                  %v850 = vld [vmem:[%s618 + $0x398] sm:%s611]
                  %851 = vst [vmem:[%s619 + $0x1cc] sm:%s611] %v850
                  %v852 = vld [vmem:[%s618 + $0x3a0] sm:%s611]
                  %853 = vst [vmem:[%s619 + $0x1d0] sm:%s611] %v852
                  %v854 = vld [vmem:[%s618 + $0x3a8] sm:%s611]
                  %855 = vst [vmem:[%s619 + $0x1d4] sm:%s611] %v854
                  %v856 = vld [vmem:[%s618 + $0x3b0] sm:%s611]
                  %857 = vst [vmem:[%s619 + $0x1d8] sm:%s611] %v856
                  %v858 = vld [vmem:[%s618 + $0x3b8] sm:%s611]
                  %859 = vst [vmem:[%s619 + $0x1dc] sm:%s611] %v858
                  %v860 = vld [vmem:[%s618 + $0x3c0] sm:%s611]
                  %861 = vst [vmem:[%s619 + $0x1e0] sm:%s611] %v860
                  %v862 = vld [vmem:[%s618 + $0x3c8] sm:%s611]
                  %863 = vst [vmem:[%s619 + $0x1e4] sm:%s611] %v862
                  %v864 = vld [vmem:[%s618 + $0x3d0] sm:%s611]
                  %865 = vst [vmem:[%s619 + $0x1e8] sm:%s611] %v864
                  %v866 = vld [vmem:[%s618 + $0x3d8] sm:%s611]
                  %867 = vst [vmem:[%s619 + $0x1ec] sm:%s611] %v866
                  %v868 = vld [vmem:[%s618 + $0x3e0] sm:%s611]
                  %869 = vst [vmem:[%s619 + $0x1f0] sm:%s611] %v868
                  %v870 = vld [vmem:[%s618 + $0x3e8] sm:%s611]
                  %871 = vst [vmem:[%s619 + $0x1f4] sm:%s611] %v870
                  %v872 = vld [vmem:[%s618 + $0x3f0] sm:%s611]
                  %873 = vst [vmem:[%s619 + $0x1f8] sm:%s611] %v872
                  %v874 = vld [vmem:[%s618 + $0x3f8] sm:%s611]
                  %875 = vst [vmem:[%s619 + $0x1fc] sm:%s611] %v874
                  %v876 = vld [vmem:[%s618 + $0x400] sm:%s611]
                  %877 = vst [vmem:[%s619 + $0x200] sm:%s611] %v876
                  %v878 = vld [vmem:[%s618 + $0x408] sm:%s611]
                  %879 = vst [vmem:[%s619 + $0x204] sm:%s611] %v878
                  %v880 = vld [vmem:[%s618 + $0x410] sm:%s611]
                  %881 = vst [vmem:[%s619 + $0x208] sm:%s611] %v880
                  %v882 = vld [vmem:[%s618 + $0x418] sm:%s611]
                  %883 = vst [vmem:[%s619 + $0x20c] sm:%s611] %v882
                  %v884 = vld [vmem:[%s618 + $0x420] sm:%s611]
                  %885 = vst [vmem:[%s619 + $0x210] sm:%s611] %v884
                  %v886 = vld [vmem:[%s618 + $0x428] sm:%s611]
                  %887 = vst [vmem:[%s619 + $0x214] sm:%s611] %v886
                  %v888 = vld [vmem:[%s618 + $0x430] sm:%s611]
                  %889 = vst [vmem:[%s619 + $0x218] sm:%s611] %v888
                  %v890 = vld [vmem:[%s618 + $0x438] sm:%s611]
                  %891 = vst [vmem:[%s619 + $0x21c] sm:%s611] %v890
                  %v892 = vld [vmem:[%s618 + $0x440] sm:%s611]
                  %893 = vst [vmem:[%s619 + $0x220] sm:%s611] %v892
                  %v894 = vld [vmem:[%s618 + $0x448] sm:%s611]
                  %895 = vst [vmem:[%s619 + $0x224] sm:%s611] %v894
                  %v896 = vld [vmem:[%s618 + $0x450] sm:%s611]
                  %897 = vst [vmem:[%s619 + $0x228] sm:%s611] %v896
                  %v898 = vld [vmem:[%s618 + $0x458] sm:%s611]
                  %899 = vst [vmem:[%s619 + $0x22c] sm:%s611] %v898
                  %v900 = vld [vmem:[%s618 + $0x460] sm:%s611]
                  %901 = vst [vmem:[%s619 + $0x230] sm:%s611] %v900
                  %v902 = vld [vmem:[%s618 + $0x468] sm:%s611]
                  %903 = vst [vmem:[%s619 + $0x234] sm:%s611] %v902
                  %v904 = vld [vmem:[%s618 + $0x470] sm:%s611]
                  %905 = vst [vmem:[%s619 + $0x238] sm:%s611] %v904
                  %v906 = vld [vmem:[%s618 + $0x478] sm:%s611]
                  %907 = vst [vmem:[%s619 + $0x23c] sm:%s611] %v906
                  %v908 = vld [vmem:[%s618 + $0x480] sm:%s611]
                  %909 = vst [vmem:[%s619 + $0x240] sm:%s611] %v908
                  %v910 = vld [vmem:[%s618 + $0x488] sm:%s611]
                  %911 = vst [vmem:[%s619 + $0x244] sm:%s611] %v910
                  %v912 = vld [vmem:[%s618 + $0x490] sm:%s611]
                  %913 = vst [vmem:[%s619 + $0x248] sm:%s611] %v912
                  %v914 = vld [vmem:[%s618 + $0x498] sm:%s611]
                  %915 = vst [vmem:[%s619 + $0x24c] sm:%s611] %v914
                  %v916 = vld [vmem:[%s618 + $0x4a0] sm:%s611]
                  %917 = vst [vmem:[%s619 + $0x250] sm:%s611] %v916
                  %v918 = vld [vmem:[%s618 + $0x4a8] sm:%s611]
                  %919 = vst [vmem:[%s619 + $0x254] sm:%s611] %v918
                  %v920 = vld [vmem:[%s618 + $0x4b0] sm:%s611]
                  %921 = vst [vmem:[%s619 + $0x258] sm:%s611] %v920
                  %v922 = vld [vmem:[%s618 + $0x4b8] sm:%s611]
                  %923 = vst [vmem:[%s619 + $0x25c] sm:%s611] %v922
                  %v924 = vld [vmem:[%s618 + $0x4c0] sm:%s611]
                  %925 = vst [vmem:[%s619 + $0x260] sm:%s611] %v924
                  %v926 = vld [vmem:[%s618 + $0x4c8] sm:%s611]
                  %927 = vst [vmem:[%s619 + $0x264] sm:%s611] %v926
                  %v928 = vld [vmem:[%s618 + $0x4d0] sm:%s611]
                  %929 = vst [vmem:[%s619 + $0x268] sm:%s611] %v928
                  %v930 = vld [vmem:[%s618 + $0x4d8] sm:%s611]
                  %931 = vst [vmem:[%s619 + $0x26c] sm:%s611] %v930
                  %v932 = vld [vmem:[%s618 + $0x4e0] sm:%s611]
                  %933 = vst [vmem:[%s619 + $0x270] sm:%s611] %v932
                  %v934 = vld [vmem:[%s618 + $0x4e8] sm:%s611]
                  %935 = vst [vmem:[%s619 + $0x274] sm:%s611] %v934
                  %v936 = vld [vmem:[%s618 + $0x4f0] sm:%s611]
                  %937 = vst [vmem:[%s619 + $0x278] sm:%s611] %v936
                  %v938 = vld [vmem:[%s618 + $0x4f8] sm:%s611]
                  %939 = vst [vmem:[%s619 + $0x27c] sm:%s611] %v938
                  %v940 = vld [vmem:[%s618 + $0x500] sm:%s611]
                  %941 = vst [vmem:[%s619 + $0x280] sm:%s611] %v940
                  %v942 = vld [vmem:[%s618 + $0x508] sm:%s611]
                  %943 = vst [vmem:[%s619 + $0x284] sm:%s611] %v942
                  %v944 = vld [vmem:[%s618 + $0x510] sm:%s611]
                  %945 = vst [vmem:[%s619 + $0x288] sm:%s611] %v944
                  %v946 = vld [vmem:[%s618 + $0x518] sm:%s611]
                  %947 = vst [vmem:[%s619 + $0x28c] sm:%s611] %v946
                  %v948 = vld [vmem:[%s618 + $0x520] sm:%s611]
                  %949 = vst [vmem:[%s619 + $0x290] sm:%s611] %v948
                  %v950 = vld [vmem:[%s618 + $0x528] sm:%s611]
                  %951 = vst [vmem:[%s619 + $0x294] sm:%s611] %v950
                  %v952 = vld [vmem:[%s618 + $0x530] sm:%s611]
                  %953 = vst [vmem:[%s619 + $0x298] sm:%s611] %v952
                  %v954 = vld [vmem:[%s618 + $0x538] sm:%s611]
                  %955 = vst [vmem:[%s619 + $0x29c] sm:%s611] %v954
                  %v956 = vld [vmem:[%s618 + $0x540] sm:%s611]
                  %957 = vst [vmem:[%s619 + $0x2a0] sm:%s611] %v956
                  %v958 = vld [vmem:[%s618 + $0x548] sm:%s611]
                  %959 = vst [vmem:[%s619 + $0x2a4] sm:%s611] %v958
                  %v960 = vld [vmem:[%s618 + $0x550] sm:%s611]
                  %961 = vst [vmem:[%s619 + $0x2a8] sm:%s611] %v960
                  %v962 = vld [vmem:[%s618 + $0x558] sm:%s611]
                  %963 = vst [vmem:[%s619 + $0x2ac] sm:%s611] %v962
                  %v964 = vld [vmem:[%s618 + $0x560] sm:%s611]
                  %965 = vst [vmem:[%s619 + $0x2b0] sm:%s611] %v964
                  %v966 = vld [vmem:[%s618 + $0x568] sm:%s611]
                  %967 = vst [vmem:[%s619 + $0x2b4] sm:%s611] %v966
                  %v968 = vld [vmem:[%s618 + $0x570] sm:%s611]
                  %969 = vst [vmem:[%s619 + $0x2b8] sm:%s611] %v968
                  %v970 = vld [vmem:[%s618 + $0x578] sm:%s611]
                  %971 = vst [vmem:[%s619 + $0x2bc] sm:%s611] %v970
                  %v972 = vld [vmem:[%s618 + $0x580] sm:%s611]
                  %973 = vst [vmem:[%s619 + $0x2c0] sm:%s611] %v972
                  %v974 = vld [vmem:[%s618 + $0x588] sm:%s611]
                  %975 = vst [vmem:[%s619 + $0x2c4] sm:%s611] %v974
                  %v976 = vld [vmem:[%s618 + $0x590] sm:%s611]
                  %977 = vst [vmem:[%s619 + $0x2c8] sm:%s611] %v976
                  %v978 = vld [vmem:[%s618 + $0x598] sm:%s611]
                  %979 = vst [vmem:[%s619 + $0x2cc] sm:%s611] %v978
                  %v980 = vld [vmem:[%s618 + $0x5a0] sm:%s611]
                  %981 = vst [vmem:[%s619 + $0x2d0] sm:%s611] %v980
                  %v982 = vld [vmem:[%s618 + $0x5a8] sm:%s611]
                  %983 = vst [vmem:[%s619 + $0x2d4] sm:%s611] %v982
                  %v984 = vld [vmem:[%s618 + $0x5b0] sm:%s611]
                  %985 = vst [vmem:[%s619 + $0x2d8] sm:%s611] %v984
                  %v986 = vld [vmem:[%s618 + $0x5b8] sm:%s611]
                  %987 = vst [vmem:[%s619 + $0x2dc] sm:%s611] %v986
                  %v988 = vld [vmem:[%s618 + $0x5c0] sm:%s611]
                  %989 = vst [vmem:[%s619 + $0x2e0] sm:%s611] %v988
                  %v990 = vld [vmem:[%s618 + $0x5c8] sm:%s611]
                  %991 = vst [vmem:[%s619 + $0x2e4] sm:%s611] %v990
                  %v992 = vld [vmem:[%s618 + $0x5d0] sm:%s611]
                  %993 = vst [vmem:[%s619 + $0x2e8] sm:%s611] %v992
                  %v994 = vld [vmem:[%s618 + $0x5d8] sm:%s611]
                  %995 = vst [vmem:[%s619 + $0x2ec] sm:%s611] %v994
                  %v996 = vld [vmem:[%s618 + $0x5e0] sm:%s611]
                  %997 = vst [vmem:[%s619 + $0x2f0] sm:%s611] %v996
                  %v998 = vld [vmem:[%s618 + $0x5e8] sm:%s611]
                  %999 = vst [vmem:[%s619 + $0x2f4] sm:%s611] %v998
                  %v1000 = vld [vmem:[%s618 + $0x5f0] sm:%s611]
                  %1001 = vst [vmem:[%s619 + $0x2f8] sm:%s611] %v1000
                  %v1002 = vld [vmem:[%s618 + $0x5f8] sm:%s611]
                  %1003 = vst [vmem:[%s619 + $0x2fc] sm:%s611] %v1002
                  %v1004 = vld [vmem:[%s618 + $0x600] sm:%s611]
                  %1005 = vst [vmem:[%s619 + $0x300] sm:%s611] %v1004
                  %v1006 = vld [vmem:[%s618 + $0x608] sm:%s611]
                  %1007 = vst [vmem:[%s619 + $0x304] sm:%s611] %v1006
                  %v1008 = vld [vmem:[%s618 + $0x610] sm:%s611]
                  %1009 = vst [vmem:[%s619 + $0x308] sm:%s611] %v1008
                  %v1010 = vld [vmem:[%s618 + $0x618] sm:%s611]
                  %1011 = vst [vmem:[%s619 + $0x30c] sm:%s611] %v1010
                  %v1012 = vld [vmem:[%s618 + $0x620] sm:%s611]
                  %1013 = vst [vmem:[%s619 + $0x310] sm:%s611] %v1012
                  %v1014 = vld [vmem:[%s618 + $0x628] sm:%s611]
                  %1015 = vst [vmem:[%s619 + $0x314] sm:%s611] %v1014
                  %v1016 = vld [vmem:[%s618 + $0x630] sm:%s611]
                  %1017 = vst [vmem:[%s619 + $0x318] sm:%s611] %v1016
                  %v1018 = vld [vmem:[%s618 + $0x638] sm:%s611]
                  %1019 = vst [vmem:[%s619 + $0x31c] sm:%s611] %v1018
                $region59: #{_lambda_.8} parent=46 // loop_footer
                  %s617 = sadd.s32 1, %s613
                $region60: #{_lambda_.8} parent=46 // loop_footer_branch
                  %612 = sbr.rel target = $region56
                $region61: #{_lambda_.8} parent=46 // loop_exit
                  _
              $region47: #{_lambda_.8} parent=31 // pred_fallthru
                _
            $region32: #{_lambda_.8} parent=27 // pred_fallthru
              _
            // Predicated region
            $region33: #{_lambda_.8} parent=27 // pred_check
              _
            $region34: #{_lambda_.8} parent=27 // pred_check_branch
              %189 = sbr.rel (0) target = $region36
            $region35: #{_lambda_.8} parent=27 // pred_region
              %s191 = ssub.s32 16, 1
              loop: start=0, step=1, limit=1
              $region37: #{_lambda_.8} parent=35 // loop_pre_header
                _
              $region38: #{_lambda_.8} parent=35 // loop_header
                %s193 = sphi 0, %s197
                %p194 = scmp.ge.s32.totalorder %s193, 1
                %s198 = sphi %s183, %s183
                %s199 = sphi %s178, %s178
              $region39: #{_lambda_.8} parent=35 // loop_header_branch
                %196 = sbr.rel (%p194) target = $region43
              $region40: #{_lambda_.8} parent=35 // loop_body
                %v200 = vld [vmem:[%s198] sm:%s191]
                %201 = vst [vmem:[%s199] sm:%s191] %v200
                %v202 = vld [vmem:[%s198 + $0x8] sm:%s191]
                %203 = vst [vmem:[%s199 + $0x4] sm:%s191] %v202
                %v204 = vld [vmem:[%s198 + $0x10] sm:%s191]
                %205 = vst [vmem:[%s199 + $0x8] sm:%s191] %v204
                %v206 = vld [vmem:[%s198 + $0x18] sm:%s191]
                %207 = vst [vmem:[%s199 + $0xc] sm:%s191] %v206
                %v208 = vld [vmem:[%s198 + $0x20] sm:%s191]
                %209 = vst [vmem:[%s199 + $0x10] sm:%s191] %v208
                %v210 = vld [vmem:[%s198 + $0x28] sm:%s191]
                %211 = vst [vmem:[%s199 + $0x14] sm:%s191] %v210
                %v212 = vld [vmem:[%s198 + $0x30] sm:%s191]
                %213 = vst [vmem:[%s199 + $0x18] sm:%s191] %v212
                %v214 = vld [vmem:[%s198 + $0x38] sm:%s191]
                %215 = vst [vmem:[%s199 + $0x1c] sm:%s191] %v214
                %v216 = vld [vmem:[%s198 + $0x40] sm:%s191]
                %217 = vst [vmem:[%s199 + $0x20] sm:%s191] %v216
                %v218 = vld [vmem:[%s198 + $0x48] sm:%s191]
                %219 = vst [vmem:[%s199 + $0x24] sm:%s191] %v218
                %v220 = vld [vmem:[%s198 + $0x50] sm:%s191]
                %221 = vst [vmem:[%s199 + $0x28] sm:%s191] %v220
                %v222 = vld [vmem:[%s198 + $0x58] sm:%s191]
                %223 = vst [vmem:[%s199 + $0x2c] sm:%s191] %v222
                %v224 = vld [vmem:[%s198 + $0x60] sm:%s191]
                %225 = vst [vmem:[%s199 + $0x30] sm:%s191] %v224
                %v226 = vld [vmem:[%s198 + $0x68] sm:%s191]
                %227 = vst [vmem:[%s199 + $0x34] sm:%s191] %v226
                %v228 = vld [vmem:[%s198 + $0x70] sm:%s191]
                %229 = vst [vmem:[%s199 + $0x38] sm:%s191] %v228
                %v230 = vld [vmem:[%s198 + $0x78] sm:%s191]
                %231 = vst [vmem:[%s199 + $0x3c] sm:%s191] %v230
                %v232 = vld [vmem:[%s198 + $0x80] sm:%s191]
                %233 = vst [vmem:[%s199 + $0x40] sm:%s191] %v232
                %v234 = vld [vmem:[%s198 + $0x88] sm:%s191]
                %235 = vst [vmem:[%s199 + $0x44] sm:%s191] %v234
                %v236 = vld [vmem:[%s198 + $0x90] sm:%s191]
                %237 = vst [vmem:[%s199 + $0x48] sm:%s191] %v236
                %v238 = vld [vmem:[%s198 + $0x98] sm:%s191]
                %239 = vst [vmem:[%s199 + $0x4c] sm:%s191] %v238
                %v240 = vld [vmem:[%s198 + $0xa0] sm:%s191]
                %241 = vst [vmem:[%s199 + $0x50] sm:%s191] %v240
                %v242 = vld [vmem:[%s198 + $0xa8] sm:%s191]
                %243 = vst [vmem:[%s199 + $0x54] sm:%s191] %v242
                %v244 = vld [vmem:[%s198 + $0xb0] sm:%s191]
                %245 = vst [vmem:[%s199 + $0x58] sm:%s191] %v244
                %v246 = vld [vmem:[%s198 + $0xb8] sm:%s191]
                %247 = vst [vmem:[%s199 + $0x5c] sm:%s191] %v246
                %v248 = vld [vmem:[%s198 + $0xc0] sm:%s191]
                %249 = vst [vmem:[%s199 + $0x60] sm:%s191] %v248
                %v250 = vld [vmem:[%s198 + $0xc8] sm:%s191]
                %251 = vst [vmem:[%s199 + $0x64] sm:%s191] %v250
                %v252 = vld [vmem:[%s198 + $0xd0] sm:%s191]
                %253 = vst [vmem:[%s199 + $0x68] sm:%s191] %v252
                %v254 = vld [vmem:[%s198 + $0xd8] sm:%s191]
                %255 = vst [vmem:[%s199 + $0x6c] sm:%s191] %v254
                %v256 = vld [vmem:[%s198 + $0xe0] sm:%s191]
                %257 = vst [vmem:[%s199 + $0x70] sm:%s191] %v256
                %v258 = vld [vmem:[%s198 + $0xe8] sm:%s191]
                %259 = vst [vmem:[%s199 + $0x74] sm:%s191] %v258
                %v260 = vld [vmem:[%s198 + $0xf0] sm:%s191]
                %261 = vst [vmem:[%s199 + $0x78] sm:%s191] %v260
                %v262 = vld [vmem:[%s198 + $0xf8] sm:%s191]
                %263 = vst [vmem:[%s199 + $0x7c] sm:%s191] %v262
                %v264 = vld [vmem:[%s198 + $0x100] sm:%s191]
                %265 = vst [vmem:[%s199 + $0x80] sm:%s191] %v264
                %v266 = vld [vmem:[%s198 + $0x108] sm:%s191]
                %267 = vst [vmem:[%s199 + $0x84] sm:%s191] %v266
                %v268 = vld [vmem:[%s198 + $0x110] sm:%s191]
                %269 = vst [vmem:[%s199 + $0x88] sm:%s191] %v268
                %v270 = vld [vmem:[%s198 + $0x118] sm:%s191]
                %271 = vst [vmem:[%s199 + $0x8c] sm:%s191] %v270
                %v272 = vld [vmem:[%s198 + $0x120] sm:%s191]
                %273 = vst [vmem:[%s199 + $0x90] sm:%s191] %v272
                %v274 = vld [vmem:[%s198 + $0x128] sm:%s191]
                %275 = vst [vmem:[%s199 + $0x94] sm:%s191] %v274
                %v276 = vld [vmem:[%s198 + $0x130] sm:%s191]
                %277 = vst [vmem:[%s199 + $0x98] sm:%s191] %v276
                %v278 = vld [vmem:[%s198 + $0x138] sm:%s191]
                %279 = vst [vmem:[%s199 + $0x9c] sm:%s191] %v278
                %v280 = vld [vmem:[%s198 + $0x140] sm:%s191]
                %281 = vst [vmem:[%s199 + $0xa0] sm:%s191] %v280
                %v282 = vld [vmem:[%s198 + $0x148] sm:%s191]
                %283 = vst [vmem:[%s199 + $0xa4] sm:%s191] %v282
                %v284 = vld [vmem:[%s198 + $0x150] sm:%s191]
                %285 = vst [vmem:[%s199 + $0xa8] sm:%s191] %v284
                %v286 = vld [vmem:[%s198 + $0x158] sm:%s191]
                %287 = vst [vmem:[%s199 + $0xac] sm:%s191] %v286
                %v288 = vld [vmem:[%s198 + $0x160] sm:%s191]
                %289 = vst [vmem:[%s199 + $0xb0] sm:%s191] %v288
                %v290 = vld [vmem:[%s198 + $0x168] sm:%s191]
                %291 = vst [vmem:[%s199 + $0xb4] sm:%s191] %v290
                %v292 = vld [vmem:[%s198 + $0x170] sm:%s191]
                %293 = vst [vmem:[%s199 + $0xb8] sm:%s191] %v292
                %v294 = vld [vmem:[%s198 + $0x178] sm:%s191]
                %295 = vst [vmem:[%s199 + $0xbc] sm:%s191] %v294
                %v296 = vld [vmem:[%s198 + $0x180] sm:%s191]
                %297 = vst [vmem:[%s199 + $0xc0] sm:%s191] %v296
                %v298 = vld [vmem:[%s198 + $0x188] sm:%s191]
                %299 = vst [vmem:[%s199 + $0xc4] sm:%s191] %v298
                %v300 = vld [vmem:[%s198 + $0x190] sm:%s191]
                %301 = vst [vmem:[%s199 + $0xc8] sm:%s191] %v300
                %v302 = vld [vmem:[%s198 + $0x198] sm:%s191]
                %303 = vst [vmem:[%s199 + $0xcc] sm:%s191] %v302
                %v304 = vld [vmem:[%s198 + $0x1a0] sm:%s191]
                %305 = vst [vmem:[%s199 + $0xd0] sm:%s191] %v304
                %v306 = vld [vmem:[%s198 + $0x1a8] sm:%s191]
                %307 = vst [vmem:[%s199 + $0xd4] sm:%s191] %v306
                %v308 = vld [vmem:[%s198 + $0x1b0] sm:%s191]
                %309 = vst [vmem:[%s199 + $0xd8] sm:%s191] %v308
                %v310 = vld [vmem:[%s198 + $0x1b8] sm:%s191]
                %311 = vst [vmem:[%s199 + $0xdc] sm:%s191] %v310
                %v312 = vld [vmem:[%s198 + $0x1c0] sm:%s191]
                %313 = vst [vmem:[%s199 + $0xe0] sm:%s191] %v312
                %v314 = vld [vmem:[%s198 + $0x1c8] sm:%s191]
                %315 = vst [vmem:[%s199 + $0xe4] sm:%s191] %v314
                %v316 = vld [vmem:[%s198 + $0x1d0] sm:%s191]
                %317 = vst [vmem:[%s199 + $0xe8] sm:%s191] %v316
                %v318 = vld [vmem:[%s198 + $0x1d8] sm:%s191]
                %319 = vst [vmem:[%s199 + $0xec] sm:%s191] %v318
                %v320 = vld [vmem:[%s198 + $0x1e0] sm:%s191]
                %321 = vst [vmem:[%s199 + $0xf0] sm:%s191] %v320
                %v322 = vld [vmem:[%s198 + $0x1e8] sm:%s191]
                %323 = vst [vmem:[%s199 + $0xf4] sm:%s191] %v322
                %v324 = vld [vmem:[%s198 + $0x1f0] sm:%s191]
                %325 = vst [vmem:[%s199 + $0xf8] sm:%s191] %v324
                %v326 = vld [vmem:[%s198 + $0x1f8] sm:%s191]
                %327 = vst [vmem:[%s199 + $0xfc] sm:%s191] %v326
                %v328 = vld [vmem:[%s198 + $0x200] sm:%s191]
                %329 = vst [vmem:[%s199 + $0x100] sm:%s191] %v328
                %v330 = vld [vmem:[%s198 + $0x208] sm:%s191]
                %331 = vst [vmem:[%s199 + $0x104] sm:%s191] %v330
                %v332 = vld [vmem:[%s198 + $0x210] sm:%s191]
                %333 = vst [vmem:[%s199 + $0x108] sm:%s191] %v332
                %v334 = vld [vmem:[%s198 + $0x218] sm:%s191]
                %335 = vst [vmem:[%s199 + $0x10c] sm:%s191] %v334
                %v336 = vld [vmem:[%s198 + $0x220] sm:%s191]
                %337 = vst [vmem:[%s199 + $0x110] sm:%s191] %v336
                %v338 = vld [vmem:[%s198 + $0x228] sm:%s191]
                %339 = vst [vmem:[%s199 + $0x114] sm:%s191] %v338
                %v340 = vld [vmem:[%s198 + $0x230] sm:%s191]
                %341 = vst [vmem:[%s199 + $0x118] sm:%s191] %v340
                %v342 = vld [vmem:[%s198 + $0x238] sm:%s191]
                %343 = vst [vmem:[%s199 + $0x11c] sm:%s191] %v342
                %v344 = vld [vmem:[%s198 + $0x240] sm:%s191]
                %345 = vst [vmem:[%s199 + $0x120] sm:%s191] %v344
                %v346 = vld [vmem:[%s198 + $0x248] sm:%s191]
                %347 = vst [vmem:[%s199 + $0x124] sm:%s191] %v346
                %v348 = vld [vmem:[%s198 + $0x250] sm:%s191]
                %349 = vst [vmem:[%s199 + $0x128] sm:%s191] %v348
                %v350 = vld [vmem:[%s198 + $0x258] sm:%s191]
                %351 = vst [vmem:[%s199 + $0x12c] sm:%s191] %v350
                %v352 = vld [vmem:[%s198 + $0x260] sm:%s191]
                %353 = vst [vmem:[%s199 + $0x130] sm:%s191] %v352
                %v354 = vld [vmem:[%s198 + $0x268] sm:%s191]
                %355 = vst [vmem:[%s199 + $0x134] sm:%s191] %v354
                %v356 = vld [vmem:[%s198 + $0x270] sm:%s191]
                %357 = vst [vmem:[%s199 + $0x138] sm:%s191] %v356
                %v358 = vld [vmem:[%s198 + $0x278] sm:%s191]
                %359 = vst [vmem:[%s199 + $0x13c] sm:%s191] %v358
                %v360 = vld [vmem:[%s198 + $0x280] sm:%s191]
                %361 = vst [vmem:[%s199 + $0x140] sm:%s191] %v360
                %v362 = vld [vmem:[%s198 + $0x288] sm:%s191]
                %363 = vst [vmem:[%s199 + $0x144] sm:%s191] %v362
                %v364 = vld [vmem:[%s198 + $0x290] sm:%s191]
                %365 = vst [vmem:[%s199 + $0x148] sm:%s191] %v364
                %v366 = vld [vmem:[%s198 + $0x298] sm:%s191]
                %367 = vst [vmem:[%s199 + $0x14c] sm:%s191] %v366
                %v368 = vld [vmem:[%s198 + $0x2a0] sm:%s191]
                %369 = vst [vmem:[%s199 + $0x150] sm:%s191] %v368
                %v370 = vld [vmem:[%s198 + $0x2a8] sm:%s191]
                %371 = vst [vmem:[%s199 + $0x154] sm:%s191] %v370
                %v372 = vld [vmem:[%s198 + $0x2b0] sm:%s191]
                %373 = vst [vmem:[%s199 + $0x158] sm:%s191] %v372
                %v374 = vld [vmem:[%s198 + $0x2b8] sm:%s191]
                %375 = vst [vmem:[%s199 + $0x15c] sm:%s191] %v374
                %v376 = vld [vmem:[%s198 + $0x2c0] sm:%s191]
                %377 = vst [vmem:[%s199 + $0x160] sm:%s191] %v376
                %v378 = vld [vmem:[%s198 + $0x2c8] sm:%s191]
                %379 = vst [vmem:[%s199 + $0x164] sm:%s191] %v378
                %v380 = vld [vmem:[%s198 + $0x2d0] sm:%s191]
                %381 = vst [vmem:[%s199 + $0x168] sm:%s191] %v380
                %v382 = vld [vmem:[%s198 + $0x2d8] sm:%s191]
                %383 = vst [vmem:[%s199 + $0x16c] sm:%s191] %v382
                %v384 = vld [vmem:[%s198 + $0x2e0] sm:%s191]
                %385 = vst [vmem:[%s199 + $0x170] sm:%s191] %v384
                %v386 = vld [vmem:[%s198 + $0x2e8] sm:%s191]
                %387 = vst [vmem:[%s199 + $0x174] sm:%s191] %v386
                %v388 = vld [vmem:[%s198 + $0x2f0] sm:%s191]
                %389 = vst [vmem:[%s199 + $0x178] sm:%s191] %v388
                %v390 = vld [vmem:[%s198 + $0x2f8] sm:%s191]
                %391 = vst [vmem:[%s199 + $0x17c] sm:%s191] %v390
                %v392 = vld [vmem:[%s198 + $0x300] sm:%s191]
                %393 = vst [vmem:[%s199 + $0x180] sm:%s191] %v392
                %v394 = vld [vmem:[%s198 + $0x308] sm:%s191]
                %395 = vst [vmem:[%s199 + $0x184] sm:%s191] %v394
                %v396 = vld [vmem:[%s198 + $0x310] sm:%s191]
                %397 = vst [vmem:[%s199 + $0x188] sm:%s191] %v396
                %v398 = vld [vmem:[%s198 + $0x318] sm:%s191]
                %399 = vst [vmem:[%s199 + $0x18c] sm:%s191] %v398
                %v400 = vld [vmem:[%s198 + $0x320] sm:%s191]
                %401 = vst [vmem:[%s199 + $0x190] sm:%s191] %v400
                %v402 = vld [vmem:[%s198 + $0x328] sm:%s191]
                %403 = vst [vmem:[%s199 + $0x194] sm:%s191] %v402
                %v404 = vld [vmem:[%s198 + $0x330] sm:%s191]
                %405 = vst [vmem:[%s199 + $0x198] sm:%s191] %v404
                %v406 = vld [vmem:[%s198 + $0x338] sm:%s191]
                %407 = vst [vmem:[%s199 + $0x19c] sm:%s191] %v406
                %v408 = vld [vmem:[%s198 + $0x340] sm:%s191]
                %409 = vst [vmem:[%s199 + $0x1a0] sm:%s191] %v408
                %v410 = vld [vmem:[%s198 + $0x348] sm:%s191]
                %411 = vst [vmem:[%s199 + $0x1a4] sm:%s191] %v410
                %v412 = vld [vmem:[%s198 + $0x350] sm:%s191]
                %413 = vst [vmem:[%s199 + $0x1a8] sm:%s191] %v412
                %v414 = vld [vmem:[%s198 + $0x358] sm:%s191]
                %415 = vst [vmem:[%s199 + $0x1ac] sm:%s191] %v414
                %v416 = vld [vmem:[%s198 + $0x360] sm:%s191]
                %417 = vst [vmem:[%s199 + $0x1b0] sm:%s191] %v416
                %v418 = vld [vmem:[%s198 + $0x368] sm:%s191]
                %419 = vst [vmem:[%s199 + $0x1b4] sm:%s191] %v418
                %v420 = vld [vmem:[%s198 + $0x370] sm:%s191]
                %421 = vst [vmem:[%s199 + $0x1b8] sm:%s191] %v420
                %v422 = vld [vmem:[%s198 + $0x378] sm:%s191]
                %423 = vst [vmem:[%s199 + $0x1bc] sm:%s191] %v422
                %v424 = vld [vmem:[%s198 + $0x380] sm:%s191]
                %425 = vst [vmem:[%s199 + $0x1c0] sm:%s191] %v424
                %v426 = vld [vmem:[%s198 + $0x388] sm:%s191]
                %427 = vst [vmem:[%s199 + $0x1c4] sm:%s191] %v426
                %v428 = vld [vmem:[%s198 + $0x390] sm:%s191]
                %429 = vst [vmem:[%s199 + $0x1c8] sm:%s191] %v428
                %v430 = vld [vmem:[%s198 + $0x398] sm:%s191]
                %431 = vst [vmem:[%s199 + $0x1cc] sm:%s191] %v430
                %v432 = vld [vmem:[%s198 + $0x3a0] sm:%s191]
                %433 = vst [vmem:[%s199 + $0x1d0] sm:%s191] %v432
                %v434 = vld [vmem:[%s198 + $0x3a8] sm:%s191]
                %435 = vst [vmem:[%s199 + $0x1d4] sm:%s191] %v434
                %v436 = vld [vmem:[%s198 + $0x3b0] sm:%s191]
                %437 = vst [vmem:[%s199 + $0x1d8] sm:%s191] %v436
                %v438 = vld [vmem:[%s198 + $0x3b8] sm:%s191]
                %439 = vst [vmem:[%s199 + $0x1dc] sm:%s191] %v438
                %v440 = vld [vmem:[%s198 + $0x3c0] sm:%s191]
                %441 = vst [vmem:[%s199 + $0x1e0] sm:%s191] %v440
                %v442 = vld [vmem:[%s198 + $0x3c8] sm:%s191]
                %443 = vst [vmem:[%s199 + $0x1e4] sm:%s191] %v442
                %v444 = vld [vmem:[%s198 + $0x3d0] sm:%s191]
                %445 = vst [vmem:[%s199 + $0x1e8] sm:%s191] %v444
                %v446 = vld [vmem:[%s198 + $0x3d8] sm:%s191]
                %447 = vst [vmem:[%s199 + $0x1ec] sm:%s191] %v446
                %v448 = vld [vmem:[%s198 + $0x3e0] sm:%s191]
                %449 = vst [vmem:[%s199 + $0x1f0] sm:%s191] %v448
                %v450 = vld [vmem:[%s198 + $0x3e8] sm:%s191]
                %451 = vst [vmem:[%s199 + $0x1f4] sm:%s191] %v450
                %v452 = vld [vmem:[%s198 + $0x3f0] sm:%s191]
                %453 = vst [vmem:[%s199 + $0x1f8] sm:%s191] %v452
                %v454 = vld [vmem:[%s198 + $0x3f8] sm:%s191]
                %455 = vst [vmem:[%s199 + $0x1fc] sm:%s191] %v454
                %v456 = vld [vmem:[%s198 + $0x400] sm:%s191]
                %457 = vst [vmem:[%s199 + $0x200] sm:%s191] %v456
                %v458 = vld [vmem:[%s198 + $0x408] sm:%s191]
                %459 = vst [vmem:[%s199 + $0x204] sm:%s191] %v458
                %v460 = vld [vmem:[%s198 + $0x410] sm:%s191]
                %461 = vst [vmem:[%s199 + $0x208] sm:%s191] %v460
                %v462 = vld [vmem:[%s198 + $0x418] sm:%s191]
                %463 = vst [vmem:[%s199 + $0x20c] sm:%s191] %v462
                %v464 = vld [vmem:[%s198 + $0x420] sm:%s191]
                %465 = vst [vmem:[%s199 + $0x210] sm:%s191] %v464
                %v466 = vld [vmem:[%s198 + $0x428] sm:%s191]
                %467 = vst [vmem:[%s199 + $0x214] sm:%s191] %v466
                %v468 = vld [vmem:[%s198 + $0x430] sm:%s191]
                %469 = vst [vmem:[%s199 + $0x218] sm:%s191] %v468
                %v470 = vld [vmem:[%s198 + $0x438] sm:%s191]
                %471 = vst [vmem:[%s199 + $0x21c] sm:%s191] %v470
                %v472 = vld [vmem:[%s198 + $0x440] sm:%s191]
                %473 = vst [vmem:[%s199 + $0x220] sm:%s191] %v472
                %v474 = vld [vmem:[%s198 + $0x448] sm:%s191]
                %475 = vst [vmem:[%s199 + $0x224] sm:%s191] %v474
                %v476 = vld [vmem:[%s198 + $0x450] sm:%s191]
                %477 = vst [vmem:[%s199 + $0x228] sm:%s191] %v476
                %v478 = vld [vmem:[%s198 + $0x458] sm:%s191]
                %479 = vst [vmem:[%s199 + $0x22c] sm:%s191] %v478
                %v480 = vld [vmem:[%s198 + $0x460] sm:%s191]
                %481 = vst [vmem:[%s199 + $0x230] sm:%s191] %v480
                %v482 = vld [vmem:[%s198 + $0x468] sm:%s191]
                %483 = vst [vmem:[%s199 + $0x234] sm:%s191] %v482
                %v484 = vld [vmem:[%s198 + $0x470] sm:%s191]
                %485 = vst [vmem:[%s199 + $0x238] sm:%s191] %v484
                %v486 = vld [vmem:[%s198 + $0x478] sm:%s191]
                %487 = vst [vmem:[%s199 + $0x23c] sm:%s191] %v486
                %v488 = vld [vmem:[%s198 + $0x480] sm:%s191]
                %489 = vst [vmem:[%s199 + $0x240] sm:%s191] %v488
                %v490 = vld [vmem:[%s198 + $0x488] sm:%s191]
                %491 = vst [vmem:[%s199 + $0x244] sm:%s191] %v490
                %v492 = vld [vmem:[%s198 + $0x490] sm:%s191]
                %493 = vst [vmem:[%s199 + $0x248] sm:%s191] %v492
                %v494 = vld [vmem:[%s198 + $0x498] sm:%s191]
                %495 = vst [vmem:[%s199 + $0x24c] sm:%s191] %v494
                %v496 = vld [vmem:[%s198 + $0x4a0] sm:%s191]
                %497 = vst [vmem:[%s199 + $0x250] sm:%s191] %v496
                %v498 = vld [vmem:[%s198 + $0x4a8] sm:%s191]
                %499 = vst [vmem:[%s199 + $0x254] sm:%s191] %v498
                %v500 = vld [vmem:[%s198 + $0x4b0] sm:%s191]
                %501 = vst [vmem:[%s199 + $0x258] sm:%s191] %v500
                %v502 = vld [vmem:[%s198 + $0x4b8] sm:%s191]
                %503 = vst [vmem:[%s199 + $0x25c] sm:%s191] %v502
                %v504 = vld [vmem:[%s198 + $0x4c0] sm:%s191]
                %505 = vst [vmem:[%s199 + $0x260] sm:%s191] %v504
                %v506 = vld [vmem:[%s198 + $0x4c8] sm:%s191]
                %507 = vst [vmem:[%s199 + $0x264] sm:%s191] %v506
                %v508 = vld [vmem:[%s198 + $0x4d0] sm:%s191]
                %509 = vst [vmem:[%s199 + $0x268] sm:%s191] %v508
                %v510 = vld [vmem:[%s198 + $0x4d8] sm:%s191]
                %511 = vst [vmem:[%s199 + $0x26c] sm:%s191] %v510
                %v512 = vld [vmem:[%s198 + $0x4e0] sm:%s191]
                %513 = vst [vmem:[%s199 + $0x270] sm:%s191] %v512
                %v514 = vld [vmem:[%s198 + $0x4e8] sm:%s191]
                %515 = vst [vmem:[%s199 + $0x274] sm:%s191] %v514
                %v516 = vld [vmem:[%s198 + $0x4f0] sm:%s191]
                %517 = vst [vmem:[%s199 + $0x278] sm:%s191] %v516
                %v518 = vld [vmem:[%s198 + $0x4f8] sm:%s191]
                %519 = vst [vmem:[%s199 + $0x27c] sm:%s191] %v518
                %v520 = vld [vmem:[%s198 + $0x500] sm:%s191]
                %521 = vst [vmem:[%s199 + $0x280] sm:%s191] %v520
                %v522 = vld [vmem:[%s198 + $0x508] sm:%s191]
                %523 = vst [vmem:[%s199 + $0x284] sm:%s191] %v522
                %v524 = vld [vmem:[%s198 + $0x510] sm:%s191]
                %525 = vst [vmem:[%s199 + $0x288] sm:%s191] %v524
                %v526 = vld [vmem:[%s198 + $0x518] sm:%s191]
                %527 = vst [vmem:[%s199 + $0x28c] sm:%s191] %v526
                %v528 = vld [vmem:[%s198 + $0x520] sm:%s191]
                %529 = vst [vmem:[%s199 + $0x290] sm:%s191] %v528
                %v530 = vld [vmem:[%s198 + $0x528] sm:%s191]
                %531 = vst [vmem:[%s199 + $0x294] sm:%s191] %v530
                %v532 = vld [vmem:[%s198 + $0x530] sm:%s191]
                %533 = vst [vmem:[%s199 + $0x298] sm:%s191] %v532
                %v534 = vld [vmem:[%s198 + $0x538] sm:%s191]
                %535 = vst [vmem:[%s199 + $0x29c] sm:%s191] %v534
                %v536 = vld [vmem:[%s198 + $0x540] sm:%s191]
                %537 = vst [vmem:[%s199 + $0x2a0] sm:%s191] %v536
                %v538 = vld [vmem:[%s198 + $0x548] sm:%s191]
                %539 = vst [vmem:[%s199 + $0x2a4] sm:%s191] %v538
                %v540 = vld [vmem:[%s198 + $0x550] sm:%s191]
                %541 = vst [vmem:[%s199 + $0x2a8] sm:%s191] %v540
                %v542 = vld [vmem:[%s198 + $0x558] sm:%s191]
                %543 = vst [vmem:[%s199 + $0x2ac] sm:%s191] %v542
                %v544 = vld [vmem:[%s198 + $0x560] sm:%s191]
                %545 = vst [vmem:[%s199 + $0x2b0] sm:%s191] %v544
                %v546 = vld [vmem:[%s198 + $0x568] sm:%s191]
                %547 = vst [vmem:[%s199 + $0x2b4] sm:%s191] %v546
                %v548 = vld [vmem:[%s198 + $0x570] sm:%s191]
                %549 = vst [vmem:[%s199 + $0x2b8] sm:%s191] %v548
                %v550 = vld [vmem:[%s198 + $0x578] sm:%s191]
                %551 = vst [vmem:[%s199 + $0x2bc] sm:%s191] %v550
                %v552 = vld [vmem:[%s198 + $0x580] sm:%s191]
                %553 = vst [vmem:[%s199 + $0x2c0] sm:%s191] %v552
                %v554 = vld [vmem:[%s198 + $0x588] sm:%s191]
                %555 = vst [vmem:[%s199 + $0x2c4] sm:%s191] %v554
                %v556 = vld [vmem:[%s198 + $0x590] sm:%s191]
                %557 = vst [vmem:[%s199 + $0x2c8] sm:%s191] %v556
                %v558 = vld [vmem:[%s198 + $0x598] sm:%s191]
                %559 = vst [vmem:[%s199 + $0x2cc] sm:%s191] %v558
                %v560 = vld [vmem:[%s198 + $0x5a0] sm:%s191]
                %561 = vst [vmem:[%s199 + $0x2d0] sm:%s191] %v560
                %v562 = vld [vmem:[%s198 + $0x5a8] sm:%s191]
                %563 = vst [vmem:[%s199 + $0x2d4] sm:%s191] %v562
                %v564 = vld [vmem:[%s198 + $0x5b0] sm:%s191]
                %565 = vst [vmem:[%s199 + $0x2d8] sm:%s191] %v564
                %v566 = vld [vmem:[%s198 + $0x5b8] sm:%s191]
                %567 = vst [vmem:[%s199 + $0x2dc] sm:%s191] %v566
                %v568 = vld [vmem:[%s198 + $0x5c0] sm:%s191]
                %569 = vst [vmem:[%s199 + $0x2e0] sm:%s191] %v568
                %v570 = vld [vmem:[%s198 + $0x5c8] sm:%s191]
                %571 = vst [vmem:[%s199 + $0x2e4] sm:%s191] %v570
                %v572 = vld [vmem:[%s198 + $0x5d0] sm:%s191]
                %573 = vst [vmem:[%s199 + $0x2e8] sm:%s191] %v572
                %v574 = vld [vmem:[%s198 + $0x5d8] sm:%s191]
                %575 = vst [vmem:[%s199 + $0x2ec] sm:%s191] %v574
                %v576 = vld [vmem:[%s198 + $0x5e0] sm:%s191]
                %577 = vst [vmem:[%s199 + $0x2f0] sm:%s191] %v576
                %v578 = vld [vmem:[%s198 + $0x5e8] sm:%s191]
                %579 = vst [vmem:[%s199 + $0x2f4] sm:%s191] %v578
                %v580 = vld [vmem:[%s198 + $0x5f0] sm:%s191]
                %581 = vst [vmem:[%s199 + $0x2f8] sm:%s191] %v580
                %v582 = vld [vmem:[%s198 + $0x5f8] sm:%s191]
                %583 = vst [vmem:[%s199 + $0x2fc] sm:%s191] %v582
                %v584 = vld [vmem:[%s198 + $0x600] sm:%s191]
                %585 = vst [vmem:[%s199 + $0x300] sm:%s191] %v584
                %v586 = vld [vmem:[%s198 + $0x608] sm:%s191]
                %587 = vst [vmem:[%s199 + $0x304] sm:%s191] %v586
                %v588 = vld [vmem:[%s198 + $0x610] sm:%s191]
                %589 = vst [vmem:[%s199 + $0x308] sm:%s191] %v588
                %v590 = vld [vmem:[%s198 + $0x618] sm:%s191]
                %591 = vst [vmem:[%s199 + $0x30c] sm:%s191] %v590
                %v592 = vld [vmem:[%s198 + $0x620] sm:%s191]
                %593 = vst [vmem:[%s199 + $0x310] sm:%s191] %v592
                %v594 = vld [vmem:[%s198 + $0x628] sm:%s191]
                %595 = vst [vmem:[%s199 + $0x314] sm:%s191] %v594
                %v596 = vld [vmem:[%s198 + $0x630] sm:%s191]
                %597 = vst [vmem:[%s199 + $0x318] sm:%s191] %v596
                %v598 = vld [vmem:[%s198 + $0x638] sm:%s191]
                %599 = vst [vmem:[%s199 + $0x31c] sm:%s191] %v598
              $region41: #{_lambda_.8} parent=35 // loop_footer
                %s197 = sadd.s32 1, %s193
              $region42: #{_lambda_.8} parent=35 // loop_footer_branch
                %192 = sbr.rel target = $region38
              $region43: #{_lambda_.8} parent=35 // loop_exit
                _
            $region36: #{_lambda_.8} parent=27 // pred_fallthru
              _
          $region28: #{_lambda_.8} parent=23 // pred_fallthru
            _
          %1020 = vnop
        $region24: #{_lambda_.8} parent=19 // pred_fallthru
          _
        // Predicated region
        $region62: #{_lambda_.8} parent=19 // pred_check
          %p1021 = pneg %p104
        $region63: #{_lambda_.8} parent=19 // pred_check_branch
          %1023 = sbr.rel (%p1021) target = $region65
        $region64: #{_lambda_.8} parent=19 // pred_region
          %p1024 = scmp.lt.s32.totalorder %s16, 1
          %s1025 = scalar_select %p1024, %s16, 1
          %s1026 = scalar_lea.vmem %s2, %s1025
        $region65: #{_lambda_.8} parent=19 // pred_fallthru
          _
      $region20: #{_lambda_.8} parent=5 // pred_fallthru
        _
      %p1027 = scmp.le.s32.totalorder 1, %s9
      %p1028 = scmp.lt.s32.totalorder %s9, 3
      %p1029 = pnand %p1027, %p1028
      %p1030 = pneg %p1029
      // Predicated region
      $region66: #{_lambda_.8} parent=5 // pred_check
        _
      $region67: #{_lambda_.8} parent=5 // pred_check_branch
        %1032 = sbr.rel (%p1029) target = $region69
      $region68: #{_lambda_.8} parent=5 // pred_region
        %s1033 = ssub.s32 %s9, 1
        %s1034 = sand.u32 %s71, 1
        %s1035 = sand.u32 %s71, 1
        %s1036 = smul.addr %s1035, 800
        %s1037 = scalar_lea.vmem [#allocation3], %s1036
        // Predicated region
        $region70: #{_lambda_.8} parent=68 // pred_check
          %p1038 = pneg %p84
        $region71: #{_lambda_.8} parent=68 // pred_check_branch
          %1040 = sbr.rel (%p1038) target = $region73
        $region72: #{_lambda_.8} parent=68 // pred_region
          _
        $region73: #{_lambda_.8} parent=68 // pred_fallthru
          _
        %s1041 = smul.u32 14, %s20
        %s1042 = smul.u32 13, %s21
        %p1043 = scmp.lt.s32.totalorder %s1041, 13
        %s1044 = scalar_select %p1043, %s1041, 13
        %p1045 = scmp.lt.s32.totalorder %s1042, 12
        %s1046 = scalar_select %p1045, %s1042, 12
        %s1047 = smul.addr %s1044, 13
        %s1048 = sadd.s32 %s1046, %s1047
        %s1049 = smul.addr %s1048, 4
        %s1050 = scalar_lea.vmem %s0, %s1049
        %p1051 = pneg %p56
        %p1052 = pneg %p53
        %s1053 = sand.u32 %s71, 1
        %s1054 = sand.u32 %s71, 1
        %s1055 = smul.addr %s1054, 800
        %s1056 = scalar_lea.vmem [#allocation3], %s1055
        %p1057 = pneg %p84
        %p1058 = pneg %p81
        %p1059 = scmp.lt.s32.totalorder %s19, 1
        %s1060 = scalar_select %p1059, %s19, 1
        %s1061 = scalar_lea.vmem %s2, %s1060
        %p1062 = pneg %p110
        %p1063 = pneg %p107
        %p1064 = pneg %p138
        %p1065 = pneg %p135
        %s1066 = sand.u32 %s125, 1
        %s1067 = sand.u32 %s125, 1
        %s1068 = smul.addr %s1067, 56
        %s1069 = scalar_lea.vmem [#allocation4], %s1068
        %s1070 = smul.u32 14, %s20
        %s1071 = smul.u32 13, %s21
        %p1072 = scmp.lt.s32.totalorder %s1070, 13
        %s1073 = scalar_select %p1072, %s1070, 13
        %p1074 = scmp.lt.s32.totalorder %s1071, 12
        %s1075 = scalar_select %p1074, %s1071, 12
        %s1076 = smul.addr %s1073, 13
        %s1077 = sadd.s32 %s1075, %s1076
        %s1078 = smul.addr %s1077, 4
        %s1079 = scalar_lea.vmem %s0, %s1078
        %s1080 = smul.u32 14, %s20
        %s1081 = smul.u32 13, %s21
        %s1082 = smul.u32 200, %s21
        %p1083 = scmp.lt.s32.totalorder %s19, 1
        %s1084 = scalar_select %p1083, %s19, 1
        %s1085 = scalar_lea.vmem %s2, %s1084
        %s1086 = smul.u32 14, %s20
        %p1088 = scmp.eq.s32.totalorder %s21, 0
        // Predicated region
        $region74: #{_lambda_.8} parent=68 // pred_check
          %p1089 = pneg %p1088
        $region75: #{_lambda_.8} parent=68 // pred_check_branch
          %1091 = sbr.rel (%p1089) target = $region77
        $region76: #{_lambda_.8} parent=68 // pred_region
          %v1092 = vld [vmem:[%s1085] sm:$0x1]
          %v1094 = vlaneseq
          %v1095 = vshrl.u32 %v1094, 7
          %v1096 = vsub.s32 0, %v1095
          %v1097 = vrot.slane %v1092, %v1096
          %1099 = vst [vmem:[#allocation2] sm:$0xff] %v1097
          %1100 = vst [vmem:[#allocation2 + $0x8] sm:$0xff] %v1097
          %1101 = vst [vmem:[#allocation2 + $0x10] sm:$0xff] %v1097
          %1102 = vst [vmem:[#allocation2 + $0x18] sm:$0xff] %v1097
          %1103 = vst [vmem:[#allocation2 + $0x20] sm:$0xff] %v1097
          %1104 = vst [vmem:[#allocation2 + $0x28] sm:$0xff] %v1097
          %1105 = vst [vmem:[#allocation2 + $0x30] sm:$0xff] %v1097
          %1106 = vst [vmem:[#allocation2 + $0x38] sm:$0xff] %v1097
          %1107 = vst [vmem:[#allocation2 + $0x40] sm:$0xff] %v1097
          %1108 = vst [vmem:[#allocation2 + $0x48] sm:$0xff] %v1097
          %1109 = vst [vmem:[#allocation2 + $0x50] sm:$0xff] %v1097
          %1110 = vst [vmem:[#allocation2 + $0x58] sm:$0xff] %v1097
          %1111 = vst [vmem:[#allocation2 + $0x60] sm:$0xff] %v1097
          %1112 = vst [vmem:[#allocation2 + $0x68] sm:$0xff] %v1097
        $region77: #{_lambda_.8} parent=68 // pred_fallthru
          _
        %v1113 = vld [vmem:[#allocation2] sm:$0xff]
        %v1114 = vld [vmem:[#allocation2 + $0x8] sm:$0xff]
        %v1115 = vld [vmem:[#allocation2 + $0x10] sm:$0xff]
        %v1116 = vld [vmem:[#allocation2 + $0x18] sm:$0xff]
        %v1117 = vld [vmem:[#allocation2 + $0x20] sm:$0xff]
        %v1118 = vld [vmem:[#allocation2 + $0x28] sm:$0xff]
        %v1119 = vld [vmem:[#allocation2 + $0x30] sm:$0xff]
        %v1120 = vld [vmem:[#allocation2 + $0x38] sm:$0xff]
        %v1121 = vld [vmem:[#allocation2 + $0x40] sm:$0xff]
        %v1122 = vld [vmem:[#allocation2 + $0x48] sm:$0xff]
        %v1123 = vld [vmem:[#allocation2 + $0x50] sm:$0xff]
        %v1124 = vld [vmem:[#allocation2 + $0x58] sm:$0xff]
        %v1125 = vld [vmem:[#allocation2 + $0x60] sm:$0xff]
        %v1126 = vld [vmem:[#allocation2 + $0x68] sm:$0xff]
        %v1127 = vld [vmem:[%s1079] sm:$0xff]
        %v1128 = vld [vmem:[%s1079 + $0x8] sm:$0xff]
        %v1129 = vld [vmem:[%s1079 + $0x10] sm:$0xff]
        %v1130 = vld [vmem:[%s1079 + $0x18] sm:$0xff]
        %v1131 = vld [vmem:[%s1079 + $0x20] sm:$0xff]
        %v1132 = vld [vmem:[%s1079 + $0x28] sm:$0xff]
        %v1133 = vld [vmem:[%s1079 + $0x30] sm:$0xf]
        %v1134 = vld [vmem:[%s1079 + $0x34] sm:$0xff]
        %v1135 = vld [vmem:[%s1079 + $0x3c] sm:$0xff]
        %v1136 = vld [vmem:[%s1079 + $0x44] sm:$0xff]
        %v1137 = vld [vmem:[%s1079 + $0x4c] sm:$0xff]
        %v1138 = vld [vmem:[%s1079 + $0x54] sm:$0xff]
        %v1139 = vld [vmem:[%s1079 + $0x5c] sm:$0xff]
        %v1140 = vld [vmem:[%s1079 + $0x64] sm:$0xf]
        %v1141 = vld [vmem:[%s1079 + $0x68] sm:$0xff]
        %v1142 = vld [vmem:[%s1079 + $0x70] sm:$0xff]
        %v1143 = vld [vmem:[%s1079 + $0x78] sm:$0xff]
        %v1144 = vld [vmem:[%s1079 + $0x80] sm:$0xff]
        %v1145 = vld [vmem:[%s1079 + $0x88] sm:$0xff]
        %v1146 = vld [vmem:[%s1079 + $0x90] sm:$0xff]
        %v1147 = vld [vmem:[%s1079 + $0x98] sm:$0xf]
        %v1148 = vld [vmem:[%s1079 + $0x9c] sm:$0xff]
        %v1149 = vld [vmem:[%s1079 + $0xa4] sm:$0xff]
        %v1150 = vld [vmem:[%s1079 + $0xac] sm:$0xff]
        %v1151 = vld [vmem:[%s1079 + $0xb4] sm:$0xff]
        %v1152 = vld [vmem:[%s1079 + $0xbc] sm:$0xff]
        %v1153 = vld [vmem:[%s1079 + $0xc4] sm:$0xff]
        %v1154 = vld [vmem:[%s1079 + $0xcc] sm:$0xf]
        %v1155 = vld [vmem:[%s1079 + $0xd0] sm:$0xff]
        %v1156 = vld [vmem:[%s1079 + $0xd8] sm:$0xff]
        %v1157 = vld [vmem:[%s1079 + $0xe0] sm:$0xff]
        %v1158 = vld [vmem:[%s1079 + $0xe8] sm:$0xff]
        %v1159 = vld [vmem:[%s1079 + $0xf0] sm:$0xff]
        %v1160 = vld [vmem:[%s1079 + $0xf8] sm:$0xff]
        %v1161 = vld [vmem:[%s1079 + $0x100] sm:$0xf]
        %v1162 = vld [vmem:[%s1079 + $0x104] sm:$0xff]
        %v1163 = vld [vmem:[%s1079 + $0x10c] sm:$0xff]
        %v1164 = vld [vmem:[%s1079 + $0x114] sm:$0xff]
        %v1165 = vld [vmem:[%s1079 + $0x11c] sm:$0xff]
        %v1166 = vld [vmem:[%s1079 + $0x124] sm:$0xff]
        %v1167 = vld [vmem:[%s1079 + $0x12c] sm:$0xff]
        %v1168 = vld [vmem:[%s1079 + $0x134] sm:$0xf]
        %v1169 = vld [vmem:[%s1079 + $0x138] sm:$0xff]
        %v1170 = vld [vmem:[%s1079 + $0x140] sm:$0xff]
        %v1171 = vld [vmem:[%s1079 + $0x148] sm:$0xff]
        %v1172 = vld [vmem:[%s1079 + $0x150] sm:$0xff]
        %v1173 = vld [vmem:[%s1079 + $0x158] sm:$0xff]
        %v1174 = vld [vmem:[%s1079 + $0x160] sm:$0xff]
        %v1175 = vld [vmem:[%s1079 + $0x168] sm:$0xf]
        %v1176 = vld [vmem:[%s1079 + $0x16c] sm:$0xff]
        %v1177 = vld [vmem:[%s1079 + $0x174] sm:$0xff]
        %v1178 = vld [vmem:[%s1079 + $0x17c] sm:$0xff]
        %v1179 = vld [vmem:[%s1079 + $0x184] sm:$0xff]
        %v1180 = vld [vmem:[%s1079 + $0x18c] sm:$0xff]
        %v1181 = vld [vmem:[%s1079 + $0x194] sm:$0xff]
        %v1182 = vld [vmem:[%s1079 + $0x19c] sm:$0xf]
        %v1183 = vld [vmem:[%s1079 + $0x1a0] sm:$0xff]
        %v1184 = vld [vmem:[%s1079 + $0x1a8] sm:$0xff]
        %v1185 = vld [vmem:[%s1079 + $0x1b0] sm:$0xff]
        %v1186 = vld [vmem:[%s1079 + $0x1b8] sm:$0xff]
        %v1187 = vld [vmem:[%s1079 + $0x1c0] sm:$0xff]
        %v1188 = vld [vmem:[%s1079 + $0x1c8] sm:$0xff]
        %v1189 = vld [vmem:[%s1079 + $0x1d0] sm:$0xf]
        %v1190 = vld [vmem:[%s1079 + $0x1d4] sm:$0xff]
        %v1191 = vld [vmem:[%s1079 + $0x1dc] sm:$0xff]
        %v1192 = vld [vmem:[%s1079 + $0x1e4] sm:$0xff]
        %v1193 = vld [vmem:[%s1079 + $0x1ec] sm:$0xff]
        %v1194 = vld [vmem:[%s1079 + $0x1f4] sm:$0xff]
        %v1195 = vld [vmem:[%s1079 + $0x1fc] sm:$0xff]
        %v1196 = vld [vmem:[%s1079 + $0x204] sm:$0xf]
        %v1197 = vld [vmem:[%s1079 + $0x208] sm:$0xff]
        %v1198 = vld [vmem:[%s1079 + $0x210] sm:$0xff]
        %v1199 = vld [vmem:[%s1079 + $0x218] sm:$0xff]
        %v1200 = vld [vmem:[%s1079 + $0x220] sm:$0xff]
        %v1201 = vld [vmem:[%s1079 + $0x228] sm:$0xff]
        %v1202 = vld [vmem:[%s1079 + $0x230] sm:$0xff]
        %v1203 = vld [vmem:[%s1079 + $0x238] sm:$0xf]
        %v1204 = vld [vmem:[%s1079 + $0x23c] sm:$0xff]
        %v1205 = vld [vmem:[%s1079 + $0x244] sm:$0xff]
        %v1206 = vld [vmem:[%s1079 + $0x24c] sm:$0xff]
        %v1207 = vld [vmem:[%s1079 + $0x254] sm:$0xff]
        %v1208 = vld [vmem:[%s1079 + $0x25c] sm:$0xff]
        %v1209 = vld [vmem:[%s1079 + $0x264] sm:$0xff]
        %v1210 = vld [vmem:[%s1079 + $0x26c] sm:$0xf]
        %v1211 = vld [vmem:[%s1079 + $0x270] sm:$0xff]
        %v1212 = vld [vmem:[%s1079 + $0x278] sm:$0xff]
        %v1213 = vld [vmem:[%s1079 + $0x280] sm:$0xff]
        %v1214 = vld [vmem:[%s1079 + $0x288] sm:$0xff]
        %v1215 = vld [vmem:[%s1079 + $0x290] sm:$0xff]
        %v1216 = vld [vmem:[%s1079 + $0x298] sm:$0xff]
        %v1217 = vld [vmem:[%s1079 + $0x2a0] sm:$0xf]
        %v1218 = vld [vmem:[%s1079 + $0x2a4] sm:$0xff]
        %v1219 = vld [vmem:[%s1079 + $0x2ac] sm:$0xff]
        %v1220 = vld [vmem:[%s1079 + $0x2b4] sm:$0xff]
        %v1221 = vld [vmem:[%s1079 + $0x2bc] sm:$0xff]
        %v1222 = vld [vmem:[%s1079 + $0x2c4] sm:$0xff]
        %v1223 = vld [vmem:[%s1079 + $0x2cc] sm:$0xff]
        %v1224 = vld [vmem:[%s1079 + $0x2d4] sm:$0xf]
        %v1225 = vld [vmem:[%s1037] sm:$0xf]
        %v1226 = vld [vmem:[%s1037 + $0x4] sm:$0xf]
        %v1227 = vld [vmem:[%s1037 + $0x8] sm:$0xf]
        %v1228 = vld [vmem:[%s1037 + $0xc] sm:$0xf]
        %v1229 = vld [vmem:[%s1037 + $0x10] sm:$0xf]
        %v1230 = vld [vmem:[%s1037 + $0x14] sm:$0xf]
        %v1231 = vld [vmem:[%s1037 + $0x18] sm:$0xf]
        %v1232 = vld [vmem:[%s1037 + $0x1c] sm:$0xf]
        %v1233 = vld [vmem:[%s1037 + $0x20] sm:$0xf]
        %v1234 = vld [vmem:[%s1037 + $0x24] sm:$0xf]
        %v1235 = vld [vmem:[%s1037 + $0x28] sm:$0xf]
        %v1236 = vld [vmem:[%s1037 + $0x2c] sm:$0xf]
        %v1237 = vld [vmem:[%s1037 + $0x30] sm:$0xf]
        %v1238 = vld [vmem:[%s1037 + $0x34] sm:$0xf]
        %v1239 = vld [vmem:[%s1037 + $0x38] sm:$0xf]
        %v1240 = vld [vmem:[%s1037 + $0x3c] sm:$0xf]
        %v1241 = vld [vmem:[%s1037 + $0x40] sm:$0xf]
        %v1242 = vld [vmem:[%s1037 + $0x44] sm:$0xf]
        %v1243 = vld [vmem:[%s1037 + $0x48] sm:$0xf]
        %v1244 = vld [vmem:[%s1037 + $0x4c] sm:$0xf]
        %v1245 = vld [vmem:[%s1037 + $0x50] sm:$0xf]
        %v1246 = vld [vmem:[%s1037 + $0x54] sm:$0xf]
        %v1247 = vld [vmem:[%s1037 + $0x58] sm:$0xf]
        %v1248 = vld [vmem:[%s1037 + $0x5c] sm:$0xf]
        %v1249 = vld [vmem:[%s1037 + $0x60] sm:$0xf]
        %v1250 = vld [vmem:[%s1037 + $0x64] sm:$0xf]
        %v1251 = vld [vmem:[%s1037 + $0x68] sm:$0xf]
        %v1252 = vld [vmem:[%s1037 + $0x6c] sm:$0xf]
        %v1253 = vld [vmem:[%s1037 + $0x70] sm:$0xf]
        %v1254 = vld [vmem:[%s1037 + $0x74] sm:$0xf]
        %v1255 = vld [vmem:[%s1037 + $0x78] sm:$0xf]
        %v1256 = vld [vmem:[%s1037 + $0x7c] sm:$0xf]
        %v1257 = vld [vmem:[%s1037 + $0x80] sm:$0xf]
        %v1258 = vld [vmem:[%s1037 + $0x84] sm:$0xf]
        %v1259 = vld [vmem:[%s1037 + $0x88] sm:$0xf]
        %v1260 = vld [vmem:[%s1037 + $0x8c] sm:$0xf]
        %v1261 = vld [vmem:[%s1037 + $0x90] sm:$0xf]
        %v1262 = vld [vmem:[%s1037 + $0x94] sm:$0xf]
        %v1263 = vld [vmem:[%s1037 + $0x98] sm:$0xf]
        %v1264 = vld [vmem:[%s1037 + $0x9c] sm:$0xf]
        %v1265 = vld [vmem:[%s1037 + $0xa0] sm:$0xf]
        %v1266 = vld [vmem:[%s1037 + $0xa4] sm:$0xf]
        %v1267 = vld [vmem:[%s1037 + $0xa8] sm:$0xf]
        %v1268 = vld [vmem:[%s1037 + $0xac] sm:$0xf]
        %v1269 = vld [vmem:[%s1037 + $0xb0] sm:$0xf]
        %v1270 = vld [vmem:[%s1037 + $0xb4] sm:$0xf]
        %v1271 = vld [vmem:[%s1037 + $0xb8] sm:$0xf]
        %v1272 = vld [vmem:[%s1037 + $0xbc] sm:$0xf]
        %v1273 = vld [vmem:[%s1037 + $0xc0] sm:$0xf]
        %v1274 = vld [vmem:[%s1037 + $0xc4] sm:$0xf]
        %v1275 = vld [vmem:[%s1037 + $0xc8] sm:$0xf]
        %v1276 = vld [vmem:[%s1037 + $0xcc] sm:$0xf]
        %v1277 = vld [vmem:[%s1037 + $0xd0] sm:$0xf]
        %v1278 = vld [vmem:[%s1037 + $0xd4] sm:$0xf]
        %v1279 = vld [vmem:[%s1037 + $0xd8] sm:$0xf]
        %v1280 = vld [vmem:[%s1037 + $0xdc] sm:$0xf]
        %v1281 = vld [vmem:[%s1037 + $0xe0] sm:$0xf]
        %v1282 = vld [vmem:[%s1037 + $0xe4] sm:$0xf]
        %v1283 = vld [vmem:[%s1037 + $0xe8] sm:$0xf]
        %v1284 = vld [vmem:[%s1037 + $0xec] sm:$0xf]
        %v1285 = vld [vmem:[%s1037 + $0xf0] sm:$0xf]
        %v1286 = vld [vmem:[%s1037 + $0xf4] sm:$0xf]
        %v1287 = vld [vmem:[%s1037 + $0xf8] sm:$0xf]
        %v1288 = vld [vmem:[%s1037 + $0xfc] sm:$0xf]
        %v1289 = vld [vmem:[%s1037 + $0x100] sm:$0xf]
        %v1290 = vld [vmem:[%s1037 + $0x104] sm:$0xf]
        %v1291 = vld [vmem:[%s1037 + $0x108] sm:$0xf]
        %v1292 = vld [vmem:[%s1037 + $0x10c] sm:$0xf]
        %v1293 = vld [vmem:[%s1037 + $0x110] sm:$0xf]
        %v1294 = vld [vmem:[%s1037 + $0x114] sm:$0xf]
        %v1295 = vld [vmem:[%s1037 + $0x118] sm:$0xf]
        %v1296 = vld [vmem:[%s1037 + $0x11c] sm:$0xf]
        %v1297 = vld [vmem:[%s1037 + $0x120] sm:$0xf]
        %v1298 = vld [vmem:[%s1037 + $0x124] sm:$0xf]
        %v1299 = vld [vmem:[%s1037 + $0x128] sm:$0xf]
        %v1300 = vld [vmem:[%s1037 + $0x12c] sm:$0xf]
        %v1301 = vld [vmem:[%s1037 + $0x130] sm:$0xf]
        %v1302 = vld [vmem:[%s1037 + $0x134] sm:$0xf]
        %v1303 = vld [vmem:[%s1037 + $0x138] sm:$0xf]
        %v1304 = vld [vmem:[%s1037 + $0x13c] sm:$0xf]
        %v1305 = vld [vmem:[%s1037 + $0x140] sm:$0xf]
        %v1306 = vld [vmem:[%s1037 + $0x144] sm:$0xf]
        %v1307 = vld [vmem:[%s1037 + $0x148] sm:$0xf]
        %v1308 = vld [vmem:[%s1037 + $0x14c] sm:$0xf]
        %v1309 = vld [vmem:[%s1037 + $0x150] sm:$0xf]
        %v1310 = vld [vmem:[%s1037 + $0x154] sm:$0xf]
        %v1311 = vld [vmem:[%s1037 + $0x158] sm:$0xf]
        %v1312 = vld [vmem:[%s1037 + $0x15c] sm:$0xf]
        %v1313 = vld [vmem:[%s1037 + $0x160] sm:$0xf]
        %v1314 = vld [vmem:[%s1037 + $0x164] sm:$0xf]
        %v1315 = vld [vmem:[%s1037 + $0x168] sm:$0xf]
        %v1316 = vld [vmem:[%s1037 + $0x16c] sm:$0xf]
        %v1317 = vld [vmem:[%s1037 + $0x170] sm:$0xf]
        %v1318 = vld [vmem:[%s1037 + $0x174] sm:$0xf]
        %v1319 = vld [vmem:[%s1037 + $0x178] sm:$0xf]
        %v1320 = vld [vmem:[%s1037 + $0x17c] sm:$0xf]
        %v1321 = vld [vmem:[%s1037 + $0x180] sm:$0xf]
        %v1322 = vld [vmem:[%s1037 + $0x184] sm:$0xf]
        %v1323 = vld [vmem:[%s1037 + $0x188] sm:$0xf]
        %v1324 = vld [vmem:[%s1037 + $0x18c] sm:$0xf]
        %v1325 = vld [vmem:[%s1037 + $0x190] sm:$0xf]
        %v1326 = vld [vmem:[%s1037 + $0x194] sm:$0xf]
        %v1327 = vld [vmem:[%s1037 + $0x198] sm:$0xf]
        %v1328 = vld [vmem:[%s1037 + $0x19c] sm:$0xf]
        %v1329 = vld [vmem:[%s1037 + $0x1a0] sm:$0xf]
        %v1330 = vld [vmem:[%s1037 + $0x1a4] sm:$0xf]
        %v1331 = vld [vmem:[%s1037 + $0x1a8] sm:$0xf]
        %v1332 = vld [vmem:[%s1037 + $0x1ac] sm:$0xf]
        %v1333 = vld [vmem:[%s1037 + $0x1b0] sm:$0xf]
        %v1334 = vld [vmem:[%s1037 + $0x1b4] sm:$0xf]
        %v1335 = vld [vmem:[%s1037 + $0x1b8] sm:$0xf]
        %v1336 = vld [vmem:[%s1037 + $0x1bc] sm:$0xf]
        %v1337 = vld [vmem:[%s1037 + $0x1c0] sm:$0xf]
        %v1338 = vld [vmem:[%s1037 + $0x1c4] sm:$0xf]
        %v1339 = vld [vmem:[%s1037 + $0x1c8] sm:$0xf]
        %v1340 = vld [vmem:[%s1037 + $0x1cc] sm:$0xf]
        %v1341 = vld [vmem:[%s1037 + $0x1d0] sm:$0xf]
        %v1342 = vld [vmem:[%s1037 + $0x1d4] sm:$0xf]
        %v1343 = vld [vmem:[%s1037 + $0x1d8] sm:$0xf]
        %v1344 = vld [vmem:[%s1037 + $0x1dc] sm:$0xf]
        %v1345 = vld [vmem:[%s1037 + $0x1e0] sm:$0xf]
        %v1346 = vld [vmem:[%s1037 + $0x1e4] sm:$0xf]
        %v1347 = vld [vmem:[%s1037 + $0x1e8] sm:$0xf]
        %v1348 = vld [vmem:[%s1037 + $0x1ec] sm:$0xf]
        %v1349 = vld [vmem:[%s1037 + $0x1f0] sm:$0xf]
        %v1350 = vld [vmem:[%s1037 + $0x1f4] sm:$0xf]
        %v1351 = vld [vmem:[%s1037 + $0x1f8] sm:$0xf]
        %v1352 = vld [vmem:[%s1037 + $0x1fc] sm:$0xf]
        %v1353 = vld [vmem:[%s1037 + $0x200] sm:$0xf]
        %v1354 = vld [vmem:[%s1037 + $0x204] sm:$0xf]
        %v1355 = vld [vmem:[%s1037 + $0x208] sm:$0xf]
        %v1356 = vld [vmem:[%s1037 + $0x20c] sm:$0xf]
        %v1357 = vld [vmem:[%s1037 + $0x210] sm:$0xf]
        %v1358 = vld [vmem:[%s1037 + $0x214] sm:$0xf]
        %v1359 = vld [vmem:[%s1037 + $0x218] sm:$0xf]
        %v1360 = vld [vmem:[%s1037 + $0x21c] sm:$0xf]
        %v1361 = vld [vmem:[%s1037 + $0x220] sm:$0xf]
        %v1362 = vld [vmem:[%s1037 + $0x224] sm:$0xf]
        %v1363 = vld [vmem:[%s1037 + $0x228] sm:$0xf]
        %v1364 = vld [vmem:[%s1037 + $0x22c] sm:$0xf]
        %v1365 = vld [vmem:[%s1037 + $0x230] sm:$0xf]
        %v1366 = vld [vmem:[%s1037 + $0x234] sm:$0xf]
        %v1367 = vld [vmem:[%s1037 + $0x238] sm:$0xf]
        %v1368 = vld [vmem:[%s1037 + $0x23c] sm:$0xf]
        %v1369 = vld [vmem:[%s1037 + $0x240] sm:$0xf]
        %v1370 = vld [vmem:[%s1037 + $0x244] sm:$0xf]
        %v1371 = vld [vmem:[%s1037 + $0x248] sm:$0xf]
        %v1372 = vld [vmem:[%s1037 + $0x24c] sm:$0xf]
        %v1373 = vld [vmem:[%s1037 + $0x250] sm:$0xf]
        %v1374 = vld [vmem:[%s1037 + $0x254] sm:$0xf]
        %v1375 = vld [vmem:[%s1037 + $0x258] sm:$0xf]
        %v1376 = vld [vmem:[%s1037 + $0x25c] sm:$0xf]
        %v1377 = vld [vmem:[%s1037 + $0x260] sm:$0xf]
        %v1378 = vld [vmem:[%s1037 + $0x264] sm:$0xf]
        %v1379 = vld [vmem:[%s1037 + $0x268] sm:$0xf]
        %v1380 = vld [vmem:[%s1037 + $0x26c] sm:$0xf]
        %v1381 = vld [vmem:[%s1037 + $0x270] sm:$0xf]
        %v1382 = vld [vmem:[%s1037 + $0x274] sm:$0xf]
        %v1383 = vld [vmem:[%s1037 + $0x278] sm:$0xf]
        %v1384 = vld [vmem:[%s1037 + $0x27c] sm:$0xf]
        %v1385 = vld [vmem:[%s1037 + $0x280] sm:$0xf]
        %v1386 = vld [vmem:[%s1037 + $0x284] sm:$0xf]
        %v1387 = vld [vmem:[%s1037 + $0x288] sm:$0xf]
        %v1388 = vld [vmem:[%s1037 + $0x28c] sm:$0xf]
        %v1389 = vld [vmem:[%s1037 + $0x290] sm:$0xf]
        %v1390 = vld [vmem:[%s1037 + $0x294] sm:$0xf]
        %v1391 = vld [vmem:[%s1037 + $0x298] sm:$0xf]
        %v1392 = vld [vmem:[%s1037 + $0x29c] sm:$0xf]
        %v1393 = vld [vmem:[%s1037 + $0x2a0] sm:$0xf]
        %v1394 = vld [vmem:[%s1037 + $0x2a4] sm:$0xf]
        %v1395 = vld [vmem:[%s1037 + $0x2a8] sm:$0xf]
        %v1396 = vld [vmem:[%s1037 + $0x2ac] sm:$0xf]
        %v1397 = vld [vmem:[%s1037 + $0x2b0] sm:$0xf]
        %v1398 = vld [vmem:[%s1037 + $0x2b4] sm:$0xf]
        %v1399 = vld [vmem:[%s1037 + $0x2b8] sm:$0xf]
        %v1400 = vld [vmem:[%s1037 + $0x2bc] sm:$0xf]
        %v1401 = vld [vmem:[%s1037 + $0x2c0] sm:$0xf]
        %v1402 = vld [vmem:[%s1037 + $0x2c4] sm:$0xf]
        %v1403 = vld [vmem:[%s1037 + $0x2c8] sm:$0xf]
        %v1404 = vld [vmem:[%s1037 + $0x2cc] sm:$0xf]
        %v1405 = vld [vmem:[%s1037 + $0x2d0] sm:$0xf]
        %v1406 = vld [vmem:[%s1037 + $0x2d4] sm:$0xf]
        %v1407 = vld [vmem:[%s1037 + $0x2d8] sm:$0xf]
        %v1408 = vld [vmem:[%s1037 + $0x2dc] sm:$0xf]
        %v1409 = vld [vmem:[%s1037 + $0x2e0] sm:$0xf]
        %v1410 = vld [vmem:[%s1037 + $0x2e4] sm:$0xf]
        %v1411 = vld [vmem:[%s1037 + $0x2e8] sm:$0xf]
        %v1412 = vld [vmem:[%s1037 + $0x2ec] sm:$0xf]
        %v1413 = vld [vmem:[%s1037 + $0x2f0] sm:$0xf]
        %v1414 = vld [vmem:[%s1037 + $0x2f4] sm:$0xf]
        %v1415 = vld [vmem:[%s1037 + $0x2f8] sm:$0xf]
        %v1416 = vld [vmem:[%s1037 + $0x2fc] sm:$0xf]
        %v1417 = vld [vmem:[%s1037 + $0x300] sm:$0xf]
        %v1418 = vld [vmem:[%s1037 + $0x304] sm:$0xf]
        %v1419 = vld [vmem:[%s1037 + $0x308] sm:$0xf]
        %v1420 = vld [vmem:[%s1037 + $0x30c] sm:$0xf]
        %v1421 = vld [vmem:[%s1037 + $0x310] sm:$0xf]
        %v1422 = vld [vmem:[%s1037 + $0x314] sm:$0xf]
        %v1423 = vld [vmem:[%s1037 + $0x318] sm:$0xf]
        %v1424 = vld [vmem:[%s1037 + $0x31c] sm:$0xf]
        %v1523 = vunpack.c.l.b16 %v1127
        %v1524 = vunpack.c.h.b16 %v1127
        %v1525 = vunpack.c.l.b16 %v1128
        %v1526 = vunpack.c.h.b16 %v1128
        %v1527 = vunpack.c.l.b16 %v1129
        %v1528 = vunpack.c.h.b16 %v1129
        %v1529 = vunpack.c.l.b16 %v1130
        %v1530 = vunpack.c.h.b16 %v1130
        %v1531 = vunpack.c.l.b16 %v1131
        %v1532 = vunpack.c.h.b16 %v1131
        %v1533 = vunpack.c.l.b16 %v1132
        %v1534 = vunpack.c.h.b16 %v1132
        %v1535 = vunpack.c.l.b16 %v1133
        %v1536 = vunpack.c.l.b16 %v1134
        %v1537 = vunpack.c.h.b16 %v1134
        %v1538 = vunpack.c.l.b16 %v1135
        %v1539 = vunpack.c.h.b16 %v1135
        %v1540 = vunpack.c.l.b16 %v1136
        %v1541 = vunpack.c.h.b16 %v1136
        %v1542 = vunpack.c.l.b16 %v1137
        %v1543 = vunpack.c.h.b16 %v1137
        %v1544 = vunpack.c.l.b16 %v1138
        %v1545 = vunpack.c.h.b16 %v1138
        %v1546 = vunpack.c.l.b16 %v1139
        %v1547 = vunpack.c.h.b16 %v1139
        %v1548 = vunpack.c.l.b16 %v1140
        %v1549 = vunpack.c.l.b16 %v1141
        %v1550 = vunpack.c.h.b16 %v1141
        %v1551 = vunpack.c.l.b16 %v1142
        %v1552 = vunpack.c.h.b16 %v1142
        %v1553 = vunpack.c.l.b16 %v1143
        %v1554 = vunpack.c.h.b16 %v1143
        %v1555 = vunpack.c.l.b16 %v1144
        %v1556 = vunpack.c.h.b16 %v1144
        %v1557 = vunpack.c.l.b16 %v1145
        %v1558 = vunpack.c.h.b16 %v1145
        %v1559 = vunpack.c.l.b16 %v1146
        %v1560 = vunpack.c.h.b16 %v1146
        %v1561 = vunpack.c.l.b16 %v1147
        %v1562 = vunpack.c.l.b16 %v1148
        %v1563 = vunpack.c.h.b16 %v1148
        %v1564 = vunpack.c.l.b16 %v1149
        %v1565 = vunpack.c.h.b16 %v1149
        %v1566 = vunpack.c.l.b16 %v1150
        %v1567 = vunpack.c.h.b16 %v1150
        %v1568 = vunpack.c.l.b16 %v1151
        %v1569 = vunpack.c.h.b16 %v1151
        %v1570 = vunpack.c.l.b16 %v1152
        %v1571 = vunpack.c.h.b16 %v1152
        %v1572 = vunpack.c.l.b16 %v1153
        %v1573 = vunpack.c.h.b16 %v1153
        %v1574 = vunpack.c.l.b16 %v1154
        %v1575 = vunpack.c.l.b16 %v1155
        %v1576 = vunpack.c.h.b16 %v1155
        %v1577 = vunpack.c.l.b16 %v1156
        %v1578 = vunpack.c.h.b16 %v1156
        %v1579 = vunpack.c.l.b16 %v1157
        %v1580 = vunpack.c.h.b16 %v1157
        %v1581 = vunpack.c.l.b16 %v1158
        %v1582 = vunpack.c.h.b16 %v1158
        %v1583 = vunpack.c.l.b16 %v1159
        %v1584 = vunpack.c.h.b16 %v1159
        %v1585 = vunpack.c.l.b16 %v1160
        %v1586 = vunpack.c.h.b16 %v1160
        %v1587 = vunpack.c.l.b16 %v1161
        %v1588 = vunpack.c.l.b16 %v1162
        %v1589 = vunpack.c.h.b16 %v1162
        %v1590 = vunpack.c.l.b16 %v1163
        %v1591 = vunpack.c.h.b16 %v1163
        %v1592 = vunpack.c.l.b16 %v1164
        %v1593 = vunpack.c.h.b16 %v1164
        %v1594 = vunpack.c.l.b16 %v1165
        %v1595 = vunpack.c.h.b16 %v1165
        %v1596 = vunpack.c.l.b16 %v1166
        %v1597 = vunpack.c.h.b16 %v1166
        %v1598 = vunpack.c.l.b16 %v1167
        %v1599 = vunpack.c.h.b16 %v1167
        %v1600 = vunpack.c.l.b16 %v1168
        %v1601 = vunpack.c.l.b16 %v1169
        %v1602 = vunpack.c.h.b16 %v1169
        %v1603 = vunpack.c.l.b16 %v1170
        %v1604 = vunpack.c.h.b16 %v1170
        %v1605 = vunpack.c.l.b16 %v1171
        %v1606 = vunpack.c.h.b16 %v1171
        %v1607 = vunpack.c.l.b16 %v1172
        %v1608 = vunpack.c.h.b16 %v1172
        %v1609 = vunpack.c.l.b16 %v1173
        %v1610 = vunpack.c.h.b16 %v1173
        %v1611 = vunpack.c.l.b16 %v1174
        %v1612 = vunpack.c.h.b16 %v1174
        %v1613 = vunpack.c.l.b16 %v1175
        %v1614 = vunpack.c.l.b16 %v1176
        %v1615 = vunpack.c.h.b16 %v1176
        %v1616 = vunpack.c.l.b16 %v1177
        %v1617 = vunpack.c.h.b16 %v1177
        %v1618 = vunpack.c.l.b16 %v1178
        %v1619 = vunpack.c.h.b16 %v1178
        %v1620 = vunpack.c.l.b16 %v1179
        %v1621 = vunpack.c.h.b16 %v1179
        %v1622 = vunpack.c.l.b16 %v1180
        %v1623 = vunpack.c.h.b16 %v1180
        %v1624 = vunpack.c.l.b16 %v1181
        %v1625 = vunpack.c.h.b16 %v1181
        %v1626 = vunpack.c.l.b16 %v1182
        %v1627 = vunpack.c.l.b16 %v1183
        %v1628 = vunpack.c.h.b16 %v1183
        %v1629 = vunpack.c.l.b16 %v1184
        %v1630 = vunpack.c.h.b16 %v1184
        %v1631 = vunpack.c.l.b16 %v1185
        %v1632 = vunpack.c.h.b16 %v1185
        %v1633 = vunpack.c.l.b16 %v1186
        %v1634 = vunpack.c.h.b16 %v1186
        %v1635 = vunpack.c.l.b16 %v1187
        %v1636 = vunpack.c.h.b16 %v1187
        %v1637 = vunpack.c.l.b16 %v1188
        %v1638 = vunpack.c.h.b16 %v1188
        %v1639 = vunpack.c.l.b16 %v1189
        %v1640 = vunpack.c.l.b16 %v1190
        %v1641 = vunpack.c.h.b16 %v1190
        %v1642 = vunpack.c.l.b16 %v1191
        %v1643 = vunpack.c.h.b16 %v1191
        %v1644 = vunpack.c.l.b16 %v1192
        %v1645 = vunpack.c.h.b16 %v1192
        %v1646 = vunpack.c.l.b16 %v1193
        %v1647 = vunpack.c.h.b16 %v1193
        %v1648 = vunpack.c.l.b16 %v1194
        %v1649 = vunpack.c.h.b16 %v1194
        %v1650 = vunpack.c.l.b16 %v1195
        %v1651 = vunpack.c.h.b16 %v1195
        %v1652 = vunpack.c.l.b16 %v1196
        %v1653 = vunpack.c.l.b16 %v1197
        %v1654 = vunpack.c.h.b16 %v1197
        %v1655 = vunpack.c.l.b16 %v1198
        %v1656 = vunpack.c.h.b16 %v1198
        %v1657 = vunpack.c.l.b16 %v1199
        %v1658 = vunpack.c.h.b16 %v1199
        %v1659 = vunpack.c.l.b16 %v1200
        %v1660 = vunpack.c.h.b16 %v1200
        %v1661 = vunpack.c.l.b16 %v1201
        %v1662 = vunpack.c.h.b16 %v1201
        %v1663 = vunpack.c.l.b16 %v1202
        %v1664 = vunpack.c.h.b16 %v1202
        %v1665 = vunpack.c.l.b16 %v1203
        %v1666 = vunpack.c.l.b16 %v1204
        %v1667 = vunpack.c.h.b16 %v1204
        %v1668 = vunpack.c.l.b16 %v1205
        %v1669 = vunpack.c.h.b16 %v1205
        %v1670 = vunpack.c.l.b16 %v1206
        %v1671 = vunpack.c.h.b16 %v1206
        %v1672 = vunpack.c.l.b16 %v1207
        %v1673 = vunpack.c.h.b16 %v1207
        %v1674 = vunpack.c.l.b16 %v1208
        %v1675 = vunpack.c.h.b16 %v1208
        %v1676 = vunpack.c.l.b16 %v1209
        %v1677 = vunpack.c.h.b16 %v1209
        %v1678 = vunpack.c.l.b16 %v1210
        %v1679 = vunpack.c.l.b16 %v1211
        %v1680 = vunpack.c.h.b16 %v1211
        %v1681 = vunpack.c.l.b16 %v1212
        %v1682 = vunpack.c.h.b16 %v1212
        %v1683 = vunpack.c.l.b16 %v1213
        %v1684 = vunpack.c.h.b16 %v1213
        %v1685 = vunpack.c.l.b16 %v1214
        %v1686 = vunpack.c.h.b16 %v1214
        %v1687 = vunpack.c.l.b16 %v1215
        %v1688 = vunpack.c.h.b16 %v1215
        %v1689 = vunpack.c.l.b16 %v1216
        %v1690 = vunpack.c.h.b16 %v1216
        %v1691 = vunpack.c.l.b16 %v1217
        %v1692 = vunpack.c.l.b16 %v1218
        %v1693 = vunpack.c.h.b16 %v1218
        %v1694 = vunpack.c.l.b16 %v1219
        %v1695 = vunpack.c.h.b16 %v1219
        %v1696 = vunpack.c.l.b16 %v1220
        %v1697 = vunpack.c.h.b16 %v1220
        %v1698 = vunpack.c.l.b16 %v1221
        %v1699 = vunpack.c.h.b16 %v1221
        %v1700 = vunpack.c.l.b16 %v1222
        %v1701 = vunpack.c.h.b16 %v1222
        %v1702 = vunpack.c.l.b16 %v1223
        %v1703 = vunpack.c.h.b16 %v1223
        %v1704 = vunpack.c.l.b16 %v1224
        %v1705 = vpack.c.b16 %v1536, %v1523
        %v1706 = vpack.c.b16 %v1537, %v1524
        %v1707 = vpack.c.b16 %v1538, %v1525
        %v1708 = vpack.c.b16 %v1539, %v1526
        %v1709 = vpack.c.b16 %v1540, %v1527
        %v1710 = vpack.c.b16 %v1541, %v1528
        %v1711 = vpack.c.b16 %v1542, %v1529
        %v1712 = vpack.c.b16 %v1543, %v1530
        %v1713 = vpack.c.b16 %v1544, %v1531
        %v1714 = vpack.c.b16 %v1545, %v1532
        %v1715 = vpack.c.b16 %v1546, %v1533
        %v1716 = vpack.c.b16 %v1547, %v1534
        %v1717 = vpack.c.b16 %v1548, %v1535
        %v1718 = vpack.c.b16 %v1562, %v1549
        %v1719 = vpack.c.b16 %v1563, %v1550
        %v1720 = vpack.c.b16 %v1564, %v1551
        %v1721 = vpack.c.b16 %v1565, %v1552
        %v1722 = vpack.c.b16 %v1566, %v1553
        %v1723 = vpack.c.b16 %v1567, %v1554
        %v1724 = vpack.c.b16 %v1568, %v1555
        %v1725 = vpack.c.b16 %v1569, %v1556
        %v1726 = vpack.c.b16 %v1570, %v1557
        %v1727 = vpack.c.b16 %v1571, %v1558
        %v1728 = vpack.c.b16 %v1572, %v1559
        %v1729 = vpack.c.b16 %v1573, %v1560
        %v1730 = vpack.c.b16 %v1574, %v1561
        %v1731 = vpack.c.b16 %v1588, %v1575
        %v1732 = vpack.c.b16 %v1589, %v1576
        %v1733 = vpack.c.b16 %v1590, %v1577
        %v1734 = vpack.c.b16 %v1591, %v1578
        %v1735 = vpack.c.b16 %v1592, %v1579
        %v1736 = vpack.c.b16 %v1593, %v1580
        %v1737 = vpack.c.b16 %v1594, %v1581
        %v1738 = vpack.c.b16 %v1595, %v1582
        %v1739 = vpack.c.b16 %v1596, %v1583
        %v1740 = vpack.c.b16 %v1597, %v1584
        %v1741 = vpack.c.b16 %v1598, %v1585
        %v1742 = vpack.c.b16 %v1599, %v1586
        %v1743 = vpack.c.b16 %v1600, %v1587
        %v1744 = vpack.c.b16 %v1614, %v1601
        %v1745 = vpack.c.b16 %v1615, %v1602
        %v1746 = vpack.c.b16 %v1616, %v1603
        %v1747 = vpack.c.b16 %v1617, %v1604
        %v1748 = vpack.c.b16 %v1618, %v1605
        %v1749 = vpack.c.b16 %v1619, %v1606
        %v1750 = vpack.c.b16 %v1620, %v1607
        %v1751 = vpack.c.b16 %v1621, %v1608
        %v1752 = vpack.c.b16 %v1622, %v1609
        %v1753 = vpack.c.b16 %v1623, %v1610
        %v1754 = vpack.c.b16 %v1624, %v1611
        %v1755 = vpack.c.b16 %v1625, %v1612
        %v1756 = vpack.c.b16 %v1626, %v1613
        %v1757 = vpack.c.b16 %v1640, %v1627
        %v1758 = vpack.c.b16 %v1641, %v1628
        %v1759 = vpack.c.b16 %v1642, %v1629
        %v1760 = vpack.c.b16 %v1643, %v1630
        %v1761 = vpack.c.b16 %v1644, %v1631
        %v1762 = vpack.c.b16 %v1645, %v1632
        %v1763 = vpack.c.b16 %v1646, %v1633
        %v1764 = vpack.c.b16 %v1647, %v1634
        %v1765 = vpack.c.b16 %v1648, %v1635
        %v1766 = vpack.c.b16 %v1649, %v1636
        %v1767 = vpack.c.b16 %v1650, %v1637
        %v1768 = vpack.c.b16 %v1651, %v1638
        %v1769 = vpack.c.b16 %v1652, %v1639
        %v1770 = vpack.c.b16 %v1666, %v1653
        %v1771 = vpack.c.b16 %v1667, %v1654
        %v1772 = vpack.c.b16 %v1668, %v1655
        %v1773 = vpack.c.b16 %v1669, %v1656
        %v1774 = vpack.c.b16 %v1670, %v1657
        %v1775 = vpack.c.b16 %v1671, %v1658
        %v1776 = vpack.c.b16 %v1672, %v1659
        %v1777 = vpack.c.b16 %v1673, %v1660
        %v1778 = vpack.c.b16 %v1674, %v1661
        %v1779 = vpack.c.b16 %v1675, %v1662
        %v1780 = vpack.c.b16 %v1676, %v1663
        %v1781 = vpack.c.b16 %v1677, %v1664
        %v1782 = vpack.c.b16 %v1678, %v1665
        %v1783 = vpack.c.b16 %v1692, %v1679
        %v1784 = vpack.c.b16 %v1693, %v1680
        %v1785 = vpack.c.b16 %v1694, %v1681
        %v1786 = vpack.c.b16 %v1695, %v1682
        %v1787 = vpack.c.b16 %v1696, %v1683
        %v1788 = vpack.c.b16 %v1697, %v1684
        %v1789 = vpack.c.b16 %v1698, %v1685
        %v1790 = vpack.c.b16 %v1699, %v1686
        %v1791 = vpack.c.b16 %v1700, %v1687
        %v1792 = vpack.c.b16 %v1701, %v1688
        %v1793 = vpack.c.b16 %v1702, %v1689
        %v1794 = vpack.c.b16 %v1703, %v1690
        %v1795 = vpack.c.b16 %v1704, %v1691
        %v2080 = vunpack.c.l.b16 %v1225
        %v2081 = vunpack.c.l.b16 %v1226
        %v2082 = vunpack.c.l.b16 %v1227
        %v2083 = vunpack.c.l.b16 %v1228
        %v2084 = vunpack.c.l.b16 %v1229
        %v2085 = vunpack.c.l.b16 %v1230
        %v2086 = vunpack.c.l.b16 %v1231
        %v2087 = vunpack.c.l.b16 %v1232
        %v2088 = vunpack.c.l.b16 %v1233
        %v2089 = vunpack.c.l.b16 %v1234
        %v2090 = vunpack.c.l.b16 %v1235
        %v2091 = vunpack.c.l.b16 %v1236
        %v2092 = vunpack.c.l.b16 %v1237
        %v2093 = vunpack.c.l.b16 %v1238
        %v2094 = vunpack.c.l.b16 %v1239
        %v2095 = vunpack.c.l.b16 %v1240
        %v2096 = vunpack.c.l.b16 %v1241
        %v2097 = vunpack.c.l.b16 %v1242
        %v2098 = vunpack.c.l.b16 %v1243
        %v2099 = vunpack.c.l.b16 %v1244
        %v2100 = vunpack.c.l.b16 %v1245
        %v2101 = vunpack.c.l.b16 %v1246
        %v2102 = vunpack.c.l.b16 %v1247
        %v2103 = vunpack.c.l.b16 %v1248
        %v2104 = vunpack.c.l.b16 %v1249
        %v2105 = vunpack.c.l.b16 %v1250
        %v2106 = vunpack.c.l.b16 %v1251
        %v2107 = vunpack.c.l.b16 %v1252
        %v2108 = vunpack.c.l.b16 %v1253
        %v2109 = vunpack.c.l.b16 %v1254
        %v2110 = vunpack.c.l.b16 %v1255
        %v2111 = vunpack.c.l.b16 %v1256
        %v2112 = vunpack.c.l.b16 %v1257
        %v2113 = vunpack.c.l.b16 %v1258
        %v2114 = vunpack.c.l.b16 %v1259
        %v2115 = vunpack.c.l.b16 %v1260
        %v2116 = vunpack.c.l.b16 %v1261
        %v2117 = vunpack.c.l.b16 %v1262
        %v2118 = vunpack.c.l.b16 %v1263
        %v2119 = vunpack.c.l.b16 %v1264
        %v2120 = vunpack.c.l.b16 %v1265
        %v2121 = vunpack.c.l.b16 %v1266
        %v2122 = vunpack.c.l.b16 %v1267
        %v2123 = vunpack.c.l.b16 %v1268
        %v2124 = vunpack.c.l.b16 %v1269
        %v2125 = vunpack.c.l.b16 %v1270
        %v2126 = vunpack.c.l.b16 %v1271
        %v2127 = vunpack.c.l.b16 %v1272
        %v2128 = vunpack.c.l.b16 %v1273
        %v2129 = vunpack.c.l.b16 %v1274
        %v2130 = vunpack.c.l.b16 %v1275
        %v2131 = vunpack.c.l.b16 %v1276
        %v2132 = vunpack.c.l.b16 %v1277
        %v2133 = vunpack.c.l.b16 %v1278
        %v2134 = vunpack.c.l.b16 %v1279
        %v2135 = vunpack.c.l.b16 %v1280
        %v2136 = vunpack.c.l.b16 %v1281
        %v2137 = vunpack.c.l.b16 %v1282
        %v2138 = vunpack.c.l.b16 %v1283
        %v2139 = vunpack.c.l.b16 %v1284
        %v2140 = vunpack.c.l.b16 %v1285
        %v2141 = vunpack.c.l.b16 %v1286
        %v2142 = vunpack.c.l.b16 %v1287
        %v2143 = vunpack.c.l.b16 %v1288
        %v2144 = vunpack.c.l.b16 %v1289
        %v2145 = vunpack.c.l.b16 %v1290
        %v2146 = vunpack.c.l.b16 %v1291
        %v2147 = vunpack.c.l.b16 %v1292
        %v2148 = vunpack.c.l.b16 %v1293
        %v2149 = vunpack.c.l.b16 %v1294
        %v2150 = vunpack.c.l.b16 %v1295
        %v2151 = vunpack.c.l.b16 %v1296
        %v2152 = vunpack.c.l.b16 %v1297
        %v2153 = vunpack.c.l.b16 %v1298
        %v2154 = vunpack.c.l.b16 %v1299
        %v2155 = vunpack.c.l.b16 %v1300
        %v2156 = vunpack.c.l.b16 %v1301
        %v2157 = vunpack.c.l.b16 %v1302
        %v2158 = vunpack.c.l.b16 %v1303
        %v2159 = vunpack.c.l.b16 %v1304
        %v2160 = vunpack.c.l.b16 %v1305
        %v2161 = vunpack.c.l.b16 %v1306
        %v2162 = vunpack.c.l.b16 %v1307
        %v2163 = vunpack.c.l.b16 %v1308
        %v2164 = vunpack.c.l.b16 %v1309
        %v2165 = vunpack.c.l.b16 %v1310
        %v2166 = vunpack.c.l.b16 %v1311
        %v2167 = vunpack.c.l.b16 %v1312
        %v2168 = vunpack.c.l.b16 %v1313
        %v2169 = vunpack.c.l.b16 %v1314
        %v2170 = vunpack.c.l.b16 %v1315
        %v2171 = vunpack.c.l.b16 %v1316
        %v2172 = vunpack.c.l.b16 %v1317
        %v2173 = vunpack.c.l.b16 %v1318
        %v2174 = vunpack.c.l.b16 %v1319
        %v2175 = vunpack.c.l.b16 %v1320
        %v2176 = vunpack.c.l.b16 %v1321
        %v2177 = vunpack.c.l.b16 %v1322
        %v2178 = vunpack.c.l.b16 %v1323
        %v2179 = vunpack.c.l.b16 %v1324
        %v2180 = vunpack.c.l.b16 %v1325
        %v2181 = vunpack.c.l.b16 %v1326
        %v2182 = vunpack.c.l.b16 %v1327
        %v2183 = vunpack.c.l.b16 %v1328
        %v2184 = vunpack.c.l.b16 %v1329
        %v2185 = vunpack.c.l.b16 %v1330
        %v2186 = vunpack.c.l.b16 %v1331
        %v2187 = vunpack.c.l.b16 %v1332
        %v2188 = vunpack.c.l.b16 %v1333
        %v2189 = vunpack.c.l.b16 %v1334
        %v2190 = vunpack.c.l.b16 %v1335
        %v2191 = vunpack.c.l.b16 %v1336
        %v2192 = vunpack.c.l.b16 %v1337
        %v2193 = vunpack.c.l.b16 %v1338
        %v2194 = vunpack.c.l.b16 %v1339
        %v2195 = vunpack.c.l.b16 %v1340
        %v2196 = vunpack.c.l.b16 %v1341
        %v2197 = vunpack.c.l.b16 %v1342
        %v2198 = vunpack.c.l.b16 %v1343
        %v2199 = vunpack.c.l.b16 %v1344
        %v2200 = vunpack.c.l.b16 %v1345
        %v2201 = vunpack.c.l.b16 %v1346
        %v2202 = vunpack.c.l.b16 %v1347
        %v2203 = vunpack.c.l.b16 %v1348
        %v2204 = vunpack.c.l.b16 %v1349
        %v2205 = vunpack.c.l.b16 %v1350
        %v2206 = vunpack.c.l.b16 %v1351
        %v2207 = vunpack.c.l.b16 %v1352
        %v2208 = vunpack.c.l.b16 %v1353
        %v2209 = vunpack.c.l.b16 %v1354
        %v2210 = vunpack.c.l.b16 %v1355
        %v2211 = vunpack.c.l.b16 %v1356
        %v2212 = vunpack.c.l.b16 %v1357
        %v2213 = vunpack.c.l.b16 %v1358
        %v2214 = vunpack.c.l.b16 %v1359
        %v2215 = vunpack.c.l.b16 %v1360
        %v2216 = vunpack.c.l.b16 %v1361
        %v2217 = vunpack.c.l.b16 %v1362
        %v2218 = vunpack.c.l.b16 %v1363
        %v2219 = vunpack.c.l.b16 %v1364
        %v2220 = vunpack.c.l.b16 %v1365
        %v2221 = vunpack.c.l.b16 %v1366
        %v2222 = vunpack.c.l.b16 %v1367
        %v2223 = vunpack.c.l.b16 %v1368
        %v2224 = vunpack.c.l.b16 %v1369
        %v2225 = vunpack.c.l.b16 %v1370
        %v2226 = vunpack.c.l.b16 %v1371
        %v2227 = vunpack.c.l.b16 %v1372
        %v2228 = vunpack.c.l.b16 %v1373
        %v2229 = vunpack.c.l.b16 %v1374
        %v2230 = vunpack.c.l.b16 %v1375
        %v2231 = vunpack.c.l.b16 %v1376
        %v2232 = vunpack.c.l.b16 %v1377
        %v2233 = vunpack.c.l.b16 %v1378
        %v2234 = vunpack.c.l.b16 %v1379
        %v2235 = vunpack.c.l.b16 %v1380
        %v2236 = vunpack.c.l.b16 %v1381
        %v2237 = vunpack.c.l.b16 %v1382
        %v2238 = vunpack.c.l.b16 %v1383
        %v2239 = vunpack.c.l.b16 %v1384
        %v2240 = vunpack.c.l.b16 %v1385
        %v2241 = vunpack.c.l.b16 %v1386
        %v2242 = vunpack.c.l.b16 %v1387
        %v2243 = vunpack.c.l.b16 %v1388
        %v2244 = vunpack.c.l.b16 %v1389
        %v2245 = vunpack.c.l.b16 %v1390
        %v2246 = vunpack.c.l.b16 %v1391
        %v2247 = vunpack.c.l.b16 %v1392
        %v2248 = vunpack.c.l.b16 %v1393
        %v2249 = vunpack.c.l.b16 %v1394
        %v2250 = vunpack.c.l.b16 %v1395
        %v2251 = vunpack.c.l.b16 %v1396
        %v2252 = vunpack.c.l.b16 %v1397
        %v2253 = vunpack.c.l.b16 %v1398
        %v2254 = vunpack.c.l.b16 %v1399
        %v2255 = vunpack.c.l.b16 %v1400
        %v2256 = vunpack.c.l.b16 %v1401
        %v2257 = vunpack.c.l.b16 %v1402
        %v2258 = vunpack.c.l.b16 %v1403
        %v2259 = vunpack.c.l.b16 %v1404
        %v2260 = vunpack.c.l.b16 %v1405
        %v2261 = vunpack.c.l.b16 %v1406
        %v2262 = vunpack.c.l.b16 %v1407
        %v2263 = vunpack.c.l.b16 %v1408
        %v2264 = vunpack.c.l.b16 %v1409
        %v2265 = vunpack.c.l.b16 %v1410
        %v2266 = vunpack.c.l.b16 %v1411
        %v2267 = vunpack.c.l.b16 %v1412
        %v2268 = vunpack.c.l.b16 %v1413
        %v2269 = vunpack.c.l.b16 %v1414
        %v2270 = vunpack.c.l.b16 %v1415
        %v2271 = vunpack.c.l.b16 %v1416
        %v2272 = vunpack.c.l.b16 %v1417
        %v2273 = vunpack.c.l.b16 %v1418
        %v2274 = vunpack.c.l.b16 %v1419
        %v2275 = vunpack.c.l.b16 %v1420
        %v2276 = vunpack.c.l.b16 %v1421
        %v2277 = vunpack.c.l.b16 %v1422
        %v2278 = vunpack.c.l.b16 %v1423
        %v2279 = vunpack.c.l.b16 %v1424
        %v2280 = vpack.c.b16 %v2081, %v2080
        %v2281 = vpack.c.b16 %v2083, %v2082
        %v2282 = vpack.c.b16 %v2085, %v2084
        %v2283 = vpack.c.b16 %v2087, %v2086
        %v2284 = vpack.c.b16 %v2089, %v2088
        %v2285 = vpack.c.b16 %v2091, %v2090
        %v2286 = vpack.c.b16 %v2093, %v2092
        %v2287 = vpack.c.b16 %v2095, %v2094
        %v2288 = vpack.c.b16 %v2097, %v2096
        %v2289 = vpack.c.b16 %v2099, %v2098
        %v2290 = vpack.c.b16 %v2101, %v2100
        %v2291 = vpack.c.b16 %v2103, %v2102
        %v2292 = vpack.c.b16 %v2105, %v2104
        %v2293 = vpack.c.b16 %v2107, %v2106
        %v2294 = vpack.c.b16 %v2109, %v2108
        %v2295 = vpack.c.b16 %v2111, %v2110
        %v2296 = vpack.c.b16 %v2113, %v2112
        %v2297 = vpack.c.b16 %v2115, %v2114
        %v2298 = vpack.c.b16 %v2117, %v2116
        %v2299 = vpack.c.b16 %v2119, %v2118
        %v2300 = vpack.c.b16 %v2121, %v2120
        %v2301 = vpack.c.b16 %v2123, %v2122
        %v2302 = vpack.c.b16 %v2125, %v2124
        %v2303 = vpack.c.b16 %v2127, %v2126
        %v2304 = vpack.c.b16 %v2129, %v2128
        %v2305 = vpack.c.b16 %v2131, %v2130
        %v2306 = vpack.c.b16 %v2133, %v2132
        %v2307 = vpack.c.b16 %v2135, %v2134
        %v2308 = vpack.c.b16 %v2137, %v2136
        %v2309 = vpack.c.b16 %v2139, %v2138
        %v2310 = vpack.c.b16 %v2141, %v2140
        %v2311 = vpack.c.b16 %v2143, %v2142
        %v2312 = vpack.c.b16 %v2145, %v2144
        %v2313 = vpack.c.b16 %v2147, %v2146
        %v2314 = vpack.c.b16 %v2149, %v2148
        %v2315 = vpack.c.b16 %v2151, %v2150
        %v2316 = vpack.c.b16 %v2153, %v2152
        %v2317 = vpack.c.b16 %v2155, %v2154
        %v2318 = vpack.c.b16 %v2157, %v2156
        %v2319 = vpack.c.b16 %v2159, %v2158
        %v2320 = vpack.c.b16 %v2161, %v2160
        %v2321 = vpack.c.b16 %v2163, %v2162
        %v2322 = vpack.c.b16 %v2165, %v2164
        %v2323 = vpack.c.b16 %v2167, %v2166
        %v2324 = vpack.c.b16 %v2169, %v2168
        %v2325 = vpack.c.b16 %v2171, %v2170
        %v2326 = vpack.c.b16 %v2173, %v2172
        %v2327 = vpack.c.b16 %v2175, %v2174
        %v2328 = vpack.c.b16 %v2177, %v2176
        %v2329 = vpack.c.b16 %v2179, %v2178
        %v2330 = vpack.c.b16 %v2181, %v2180
        %v2331 = vpack.c.b16 %v2183, %v2182
        %v2332 = vpack.c.b16 %v2185, %v2184
        %v2333 = vpack.c.b16 %v2187, %v2186
        %v2334 = vpack.c.b16 %v2189, %v2188
        %v2335 = vpack.c.b16 %v2191, %v2190
        %v2336 = vpack.c.b16 %v2193, %v2192
        %v2337 = vpack.c.b16 %v2195, %v2194
        %v2338 = vpack.c.b16 %v2197, %v2196
        %v2339 = vpack.c.b16 %v2199, %v2198
        %v2340 = vpack.c.b16 %v2201, %v2200
        %v2341 = vpack.c.b16 %v2203, %v2202
        %v2342 = vpack.c.b16 %v2205, %v2204
        %v2343 = vpack.c.b16 %v2207, %v2206
        %v2344 = vpack.c.b16 %v2209, %v2208
        %v2345 = vpack.c.b16 %v2211, %v2210
        %v2346 = vpack.c.b16 %v2213, %v2212
        %v2347 = vpack.c.b16 %v2215, %v2214
        %v2348 = vpack.c.b16 %v2217, %v2216
        %v2349 = vpack.c.b16 %v2219, %v2218
        %v2350 = vpack.c.b16 %v2221, %v2220
        %v2351 = vpack.c.b16 %v2223, %v2222
        %v2352 = vpack.c.b16 %v2225, %v2224
        %v2353 = vpack.c.b16 %v2227, %v2226
        %v2354 = vpack.c.b16 %v2229, %v2228
        %v2355 = vpack.c.b16 %v2231, %v2230
        %v2356 = vpack.c.b16 %v2233, %v2232
        %v2357 = vpack.c.b16 %v2235, %v2234
        %v2358 = vpack.c.b16 %v2237, %v2236
        %v2359 = vpack.c.b16 %v2239, %v2238
        %v2360 = vpack.c.b16 %v2241, %v2240
        %v2361 = vpack.c.b16 %v2243, %v2242
        %v2362 = vpack.c.b16 %v2245, %v2244
        %v2363 = vpack.c.b16 %v2247, %v2246
        %v2364 = vpack.c.b16 %v2249, %v2248
        %v2365 = vpack.c.b16 %v2251, %v2250
        %v2366 = vpack.c.b16 %v2253, %v2252
        %v2367 = vpack.c.b16 %v2255, %v2254
        %v2368 = vpack.c.b16 %v2257, %v2256
        %v2369 = vpack.c.b16 %v2259, %v2258
        %v2370 = vpack.c.b16 %v2261, %v2260
        %v2371 = vpack.c.b16 %v2263, %v2262
        %v2372 = vpack.c.b16 %v2265, %v2264
        %v2373 = vpack.c.b16 %v2267, %v2266
        %v2374 = vpack.c.b16 %v2269, %v2268
        %v2375 = vpack.c.b16 %v2271, %v2270
        %v2376 = vpack.c.b16 %v2273, %v2272
        %v2377 = vpack.c.b16 %v2275, %v2274
        %v2378 = vpack.c.b16 %v2277, %v2276
        %v2379 = vpack.c.b16 %v2279, %v2278
        %vm2480 = vcmask 523264
        %v2482 = vsel %vm2480, %v1717, 0
        %v2485 = vsel %vm2480, %v1730, 0
        %v2488 = vsel %vm2480, %v1743, 0
        %v2491 = vsel %vm2480, %v1756, 0
        %v2494 = vsel %vm2480, %v1769, 0
        %v2497 = vsel %vm2480, %v1782, 0
        %v2500 = vsel %vm2480, %v1795, 0
        %2502 = vmatprep.subr.bf16.mxu0 0
        %2503 = vmatpush1.bf16.msra.mxu0 %v2287
        %2504 = vmatprep.subr.bf16.mxu0 0
        %2505 = vmatpush1.bf16.msra.mxu0 %v2286
        %2506 = vmatprep.subr.bf16.mxu0 0
        %2507 = vmatpush1.bf16.msra.mxu0 %v2285
        %2508 = vmatprep.subr.bf16.mxu0 0
        %2509 = vmatpush1.bf16.msra.mxu0 %v2284
        %2510 = vmatprep.subr.bf16.mxu0 0
        %2511 = vmatpush1.bf16.msra.mxu0 %v2283
        %2512 = vmatprep.subr.bf16.mxu0 0
        %2513 = vmatpush1.bf16.msra.mxu0 %v2282
        %2514 = vmatprep.subr.bf16.mxu0 0
        %2515 = vmatpush1.bf16.msra.mxu0 %v2281
        %2516 = vmatprep.subr.bf16.mxu0 0
        %2517 = vmatpush1.bf16.msra.mxu0 %v2280
        %2518 = vmatprep.subr.bf16.mxu0 0
        %2519 = vmatpush2.bf16.msra.mxu0 %v2295
        %2520 = vmatprep.subr.bf16.mxu0 0
        %2521 = vmatpush2.bf16.msra.mxu0 %v2294
        %2522 = vmatprep.subr.bf16.mxu0 0
        %2523 = vmatpush2.bf16.msra.mxu0 %v2293
        %2524 = vmatprep.subr.bf16.mxu0 0
        %2525 = vmatpush2.bf16.msra.mxu0 %v2292
        %2526 = vmatprep.subr.bf16.mxu0 0
        %2527 = vmatpush2.bf16.msra.mxu0 %v2291
        %2528 = vmatprep.subr.bf16.mxu0 0
        %2529 = vmatpush2.bf16.msra.mxu0 %v2290
        %2530 = vmatprep.subr.bf16.mxu0 0
        %2531 = vmatpush2.bf16.msra.mxu0 %v2289
        %2532 = vmatprep.subr.bf16.mxu0 0
        %2533 = vmatpush2.bf16.msra.mxu0 %v2288
        %2534 = vmatprep.mubr.bf16.mxu0 %v1706
        %2535 = vmatmul.mubr.bf16.gmra.mxu0 %v1705
        %v2536 = vpop.f32.mrf.mxu0
        %v2537 = vadd.f32 0.0, %v2536
        %v2538 = vpop.f32.mrf.mxu0
        %v2539 = vpop.f32.mrf.mxu0
        %v2540 = vadd.f32 0.0, %v2539
        %v2541 = vpop.f32.mrf.mxu0
        %2542 = vmatprep.mubr.bf16.mxu0 %v1719
        %2543 = vmatmul.mubr.bf16.gmra.mxu0 %v1718
        %v2544 = vpop.f32.mrf.mxu0
        %v2545 = vadd.f32 0.0, %v2544
        %v2546 = vpop.f32.mrf.mxu0
        %v2547 = vpop.f32.mrf.mxu0
        %v2548 = vadd.f32 0.0, %v2547
        %v2549 = vpop.f32.mrf.mxu0
        %2550 = vmatprep.mubr.bf16.mxu0 %v1732
        %2551 = vmatmul.mubr.bf16.gmra.mxu0 %v1731
        %v2552 = vpop.f32.mrf.mxu0
        %v2553 = vadd.f32 0.0, %v2552
        %v2554 = vpop.f32.mrf.mxu0
        %v2555 = vpop.f32.mrf.mxu0
        %v2556 = vadd.f32 0.0, %v2555
        %v2557 = vpop.f32.mrf.mxu0
        %2558 = vmatprep.mubr.bf16.mxu0 %v1745
        %2559 = vmatmul.mubr.bf16.gmra.mxu0 %v1744
        %v2560 = vpop.f32.mrf.mxu0
        %v2561 = vadd.f32 0.0, %v2560
        %v2562 = vpop.f32.mrf.mxu0
        %v2563 = vpop.f32.mrf.mxu0
        %v2564 = vadd.f32 0.0, %v2563
        %v2565 = vpop.f32.mrf.mxu0
        %2566 = vmatprep.mubr.bf16.mxu0 %v1758
        %2567 = vmatmul.mubr.bf16.gmra.mxu0 %v1757
        %v2568 = vpop.f32.mrf.mxu0
        %v2569 = vadd.f32 0.0, %v2568
        %v2570 = vpop.f32.mrf.mxu0
        %v2571 = vpop.f32.mrf.mxu0
        %v2572 = vadd.f32 0.0, %v2571
        %v2573 = vpop.f32.mrf.mxu0
        %2574 = vmatprep.mubr.bf16.mxu0 %v1771
        %2575 = vmatmul.mubr.bf16.gmra.mxu0 %v1770
        %v2576 = vpop.f32.mrf.mxu0
        %v2577 = vadd.f32 0.0, %v2576
        %v2578 = vpop.f32.mrf.mxu0
        %v2579 = vpop.f32.mrf.mxu0
        %v2580 = vadd.f32 0.0, %v2579
        %v2581 = vpop.f32.mrf.mxu0
        %2582 = vmatprep.mubr.bf16.mxu0 %v1784
        %2583 = vmatmul.mubr.bf16.gmra.mxu0 %v1783
        %v2584 = vpop.f32.mrf.mxu0
        %v2585 = vadd.f32 0.0, %v2584
        %v2586 = vpop.f32.mrf.mxu0
        %v2587 = vpop.f32.mrf.mxu0
        %v2588 = vadd.f32 0.0, %v2587
        %v2589 = vpop.f32.mrf.mxu0
        %2590 = vdwg.mxu0
        %2591 = vmatprep.subr.bf16.mxu0 0
        %2592 = vmatpush1.bf16.msra.mxu0 %v2303
        %2593 = vmatprep.subr.bf16.mxu0 0
        %2594 = vmatpush1.bf16.msra.mxu0 %v2302
        %2595 = vmatprep.subr.bf16.mxu0 0
        %2596 = vmatpush1.bf16.msra.mxu0 %v2301
        %2597 = vmatprep.subr.bf16.mxu0 0
        %2598 = vmatpush1.bf16.msra.mxu0 %v2300
        %2599 = vmatprep.subr.bf16.mxu0 0
        %2600 = vmatpush1.bf16.msra.mxu0 %v2299
        %2601 = vmatprep.subr.bf16.mxu0 0
        %2602 = vmatpush1.bf16.msra.mxu0 %v2298
        %2603 = vmatprep.subr.bf16.mxu0 0
        %2604 = vmatpush1.bf16.msra.mxu0 %v2297
        %2605 = vmatprep.subr.bf16.mxu0 0
        %2606 = vmatpush1.bf16.msra.mxu0 %v2296
        %2607 = vmatprep.subr.bf16.mxu0 0
        %2608 = vmatpush2.bf16.msra.mxu0 %v2311
        %2609 = vmatprep.subr.bf16.mxu0 0
        %2610 = vmatpush2.bf16.msra.mxu0 %v2310
        %2611 = vmatprep.subr.bf16.mxu0 0
        %2612 = vmatpush2.bf16.msra.mxu0 %v2309
        %2613 = vmatprep.subr.bf16.mxu0 0
        %2614 = vmatpush2.bf16.msra.mxu0 %v2308
        %2615 = vmatprep.subr.bf16.mxu0 0
        %2616 = vmatpush2.bf16.msra.mxu0 %v2307
        %2617 = vmatprep.subr.bf16.mxu0 0
        %2618 = vmatpush2.bf16.msra.mxu0 %v2306
        %2619 = vmatprep.subr.bf16.mxu0 0
        %2620 = vmatpush2.bf16.msra.mxu0 %v2305
        %2621 = vmatprep.subr.bf16.mxu0 0
        %2622 = vmatpush2.bf16.msra.mxu0 %v2304
        %2623 = vmatprep.mubr.bf16.mxu0 %v1708
        %2624 = vmatmul.mubr.bf16.gmra.mxu0 %v1707
        %v2625 = vpop.f32.mrf.mxu0
        %v2626 = vadd.f32 %v2537, %v2625
        %v2627 = vpop.f32.mrf.mxu0
        %v2628 = vpop.f32.mrf.mxu0
        %v2629 = vadd.f32 %v2540, %v2628
        %v2630 = vpop.f32.mrf.mxu0
        %2631 = vmatprep.mubr.bf16.mxu0 %v1721
        %2632 = vmatmul.mubr.bf16.gmra.mxu0 %v1720
        %v2633 = vpop.f32.mrf.mxu0
        %v2634 = vadd.f32 %v2545, %v2633
        %v2635 = vpop.f32.mrf.mxu0
        %v2636 = vpop.f32.mrf.mxu0
        %v2637 = vadd.f32 %v2548, %v2636
        %v2638 = vpop.f32.mrf.mxu0
        %2639 = vmatprep.mubr.bf16.mxu0 %v1734
        %2640 = vmatmul.mubr.bf16.gmra.mxu0 %v1733
        %v2641 = vpop.f32.mrf.mxu0
        %v2642 = vadd.f32 %v2553, %v2641
        %v2643 = vpop.f32.mrf.mxu0
        %v2644 = vpop.f32.mrf.mxu0
        %v2645 = vadd.f32 %v2556, %v2644
        %v2646 = vpop.f32.mrf.mxu0
        %2647 = vmatprep.mubr.bf16.mxu0 %v1747
        %2648 = vmatmul.mubr.bf16.gmra.mxu0 %v1746
        %v2649 = vpop.f32.mrf.mxu0
        %v2650 = vadd.f32 %v2561, %v2649
        %v2651 = vpop.f32.mrf.mxu0
        %v2652 = vpop.f32.mrf.mxu0
        %v2653 = vadd.f32 %v2564, %v2652
        %v2654 = vpop.f32.mrf.mxu0
        %2655 = vmatprep.mubr.bf16.mxu0 %v1760
        %2656 = vmatmul.mubr.bf16.gmra.mxu0 %v1759
        %v2657 = vpop.f32.mrf.mxu0
        %v2658 = vadd.f32 %v2569, %v2657
        %v2659 = vpop.f32.mrf.mxu0
        %v2660 = vpop.f32.mrf.mxu0
        %v2661 = vadd.f32 %v2572, %v2660
        %v2662 = vpop.f32.mrf.mxu0
        %2663 = vmatprep.mubr.bf16.mxu0 %v1773
        %2664 = vmatmul.mubr.bf16.gmra.mxu0 %v1772
        %v2665 = vpop.f32.mrf.mxu0
        %v2666 = vadd.f32 %v2577, %v2665
        %v2667 = vpop.f32.mrf.mxu0
        %v2668 = vpop.f32.mrf.mxu0
        %v2669 = vadd.f32 %v2580, %v2668
        %v2670 = vpop.f32.mrf.mxu0
        %2671 = vmatprep.mubr.bf16.mxu0 %v1786
        %2672 = vmatmul.mubr.bf16.gmra.mxu0 %v1785
        %v2673 = vpop.f32.mrf.mxu0
        %v2674 = vadd.f32 %v2585, %v2673
        %v2675 = vpop.f32.mrf.mxu0
        %v2676 = vpop.f32.mrf.mxu0
        %v2677 = vadd.f32 %v2588, %v2676
        %v2678 = vpop.f32.mrf.mxu0
        %2679 = vdwg.mxu0
        %2680 = vmatprep.subr.bf16.mxu0 0
        %2681 = vmatpush1.bf16.msra.mxu0 %v2319
        %2682 = vmatprep.subr.bf16.mxu0 0
        %2683 = vmatpush1.bf16.msra.mxu0 %v2318
        %2684 = vmatprep.subr.bf16.mxu0 0
        %2685 = vmatpush1.bf16.msra.mxu0 %v2317
        %2686 = vmatprep.subr.bf16.mxu0 0
        %2687 = vmatpush1.bf16.msra.mxu0 %v2316
        %2688 = vmatprep.subr.bf16.mxu0 0
        %2689 = vmatpush1.bf16.msra.mxu0 %v2315
        %2690 = vmatprep.subr.bf16.mxu0 0
        %2691 = vmatpush1.bf16.msra.mxu0 %v2314
        %2692 = vmatprep.subr.bf16.mxu0 0
        %2693 = vmatpush1.bf16.msra.mxu0 %v2313
        %2694 = vmatprep.subr.bf16.mxu0 0
        %2695 = vmatpush1.bf16.msra.mxu0 %v2312
        %2696 = vmatprep.subr.bf16.mxu0 0
        %2697 = vmatpush2.bf16.msra.mxu0 %v2327
        %2698 = vmatprep.subr.bf16.mxu0 0
        %2699 = vmatpush2.bf16.msra.mxu0 %v2326
        %2700 = vmatprep.subr.bf16.mxu0 0
        %2701 = vmatpush2.bf16.msra.mxu0 %v2325
        %2702 = vmatprep.subr.bf16.mxu0 0
        %2703 = vmatpush2.bf16.msra.mxu0 %v2324
        %2704 = vmatprep.subr.bf16.mxu0 0
        %2705 = vmatpush2.bf16.msra.mxu0 %v2323
        %2706 = vmatprep.subr.bf16.mxu0 0
        %2707 = vmatpush2.bf16.msra.mxu0 %v2322
        %2708 = vmatprep.subr.bf16.mxu0 0
        %2709 = vmatpush2.bf16.msra.mxu0 %v2321
        %2710 = vmatprep.subr.bf16.mxu0 0
        %2711 = vmatpush2.bf16.msra.mxu0 %v2320
        %2712 = vmatprep.mubr.bf16.mxu0 %v1710
        %2713 = vmatmul.mubr.bf16.gmra.mxu0 %v1709
        %v2714 = vpop.f32.mrf.mxu0
        %v2715 = vadd.f32 %v2626, %v2714
        %v2716 = vpop.f32.mrf.mxu0
        %v2717 = vpop.f32.mrf.mxu0
        %v2718 = vadd.f32 %v2629, %v2717
        %v2719 = vpop.f32.mrf.mxu0
        %2720 = vmatprep.mubr.bf16.mxu0 %v1723
        %2721 = vmatmul.mubr.bf16.gmra.mxu0 %v1722
        %v2722 = vpop.f32.mrf.mxu0
        %v2723 = vadd.f32 %v2634, %v2722
        %v2724 = vpop.f32.mrf.mxu0
        %v2725 = vpop.f32.mrf.mxu0
        %v2726 = vadd.f32 %v2637, %v2725
        %v2727 = vpop.f32.mrf.mxu0
        %2728 = vmatprep.mubr.bf16.mxu0 %v1736
        %2729 = vmatmul.mubr.bf16.gmra.mxu0 %v1735
        %v2730 = vpop.f32.mrf.mxu0
        %v2731 = vadd.f32 %v2642, %v2730
        %v2732 = vpop.f32.mrf.mxu0
        %v2733 = vpop.f32.mrf.mxu0
        %v2734 = vadd.f32 %v2645, %v2733
        %v2735 = vpop.f32.mrf.mxu0
        %2736 = vmatprep.mubr.bf16.mxu0 %v1749
        %2737 = vmatmul.mubr.bf16.gmra.mxu0 %v1748
        %v2738 = vpop.f32.mrf.mxu0
        %v2739 = vadd.f32 %v2650, %v2738
        %v2740 = vpop.f32.mrf.mxu0
        %v2741 = vpop.f32.mrf.mxu0
        %v2742 = vadd.f32 %v2653, %v2741
        %v2743 = vpop.f32.mrf.mxu0
        %2744 = vmatprep.mubr.bf16.mxu0 %v1762
        %2745 = vmatmul.mubr.bf16.gmra.mxu0 %v1761
        %v2746 = vpop.f32.mrf.mxu0
        %v2747 = vadd.f32 %v2658, %v2746
        %v2748 = vpop.f32.mrf.mxu0
        %v2749 = vpop.f32.mrf.mxu0
        %v2750 = vadd.f32 %v2661, %v2749
        %v2751 = vpop.f32.mrf.mxu0
        %2752 = vmatprep.mubr.bf16.mxu0 %v1775
        %2753 = vmatmul.mubr.bf16.gmra.mxu0 %v1774
        %v2754 = vpop.f32.mrf.mxu0
        %v2755 = vadd.f32 %v2666, %v2754
        %v2756 = vpop.f32.mrf.mxu0
        %v2757 = vpop.f32.mrf.mxu0
        %v2758 = vadd.f32 %v2669, %v2757
        %v2759 = vpop.f32.mrf.mxu0
        %2760 = vmatprep.mubr.bf16.mxu0 %v1788
        %2761 = vmatmul.mubr.bf16.gmra.mxu0 %v1787
        %v2762 = vpop.f32.mrf.mxu0
        %v2763 = vadd.f32 %v2674, %v2762
        %v2764 = vpop.f32.mrf.mxu0
        %v2765 = vpop.f32.mrf.mxu0
        %v2766 = vadd.f32 %v2677, %v2765
        %v2767 = vpop.f32.mrf.mxu0
        %2768 = vdwg.mxu0
        %2769 = vmatprep.subr.bf16.mxu0 0
        %2770 = vmatpush1.bf16.msra.mxu0 %v2335
        %2771 = vmatprep.subr.bf16.mxu0 0
        %2772 = vmatpush1.bf16.msra.mxu0 %v2334
        %2773 = vmatprep.subr.bf16.mxu0 0
        %2774 = vmatpush1.bf16.msra.mxu0 %v2333
        %2775 = vmatprep.subr.bf16.mxu0 0
        %2776 = vmatpush1.bf16.msra.mxu0 %v2332
        %2777 = vmatprep.subr.bf16.mxu0 0
        %2778 = vmatpush1.bf16.msra.mxu0 %v2331
        %2779 = vmatprep.subr.bf16.mxu0 0
        %2780 = vmatpush1.bf16.msra.mxu0 %v2330
        %2781 = vmatprep.subr.bf16.mxu0 0
        %2782 = vmatpush1.bf16.msra.mxu0 %v2329
        %2783 = vmatprep.subr.bf16.mxu0 0
        %2784 = vmatpush1.bf16.msra.mxu0 %v2328
        %2785 = vmatprep.subr.bf16.mxu0 0
        %2786 = vmatpush2.bf16.msra.mxu0 %v2343
        %2787 = vmatprep.subr.bf16.mxu0 0
        %2788 = vmatpush2.bf16.msra.mxu0 %v2342
        %2789 = vmatprep.subr.bf16.mxu0 0
        %2790 = vmatpush2.bf16.msra.mxu0 %v2341
        %2791 = vmatprep.subr.bf16.mxu0 0
        %2792 = vmatpush2.bf16.msra.mxu0 %v2340
        %2793 = vmatprep.subr.bf16.mxu0 0
        %2794 = vmatpush2.bf16.msra.mxu0 %v2339
        %2795 = vmatprep.subr.bf16.mxu0 0
        %2796 = vmatpush2.bf16.msra.mxu0 %v2338
        %2797 = vmatprep.subr.bf16.mxu0 0
        %2798 = vmatpush2.bf16.msra.mxu0 %v2337
        %2799 = vmatprep.subr.bf16.mxu0 0
        %2800 = vmatpush2.bf16.msra.mxu0 %v2336
        %2801 = vmatprep.mubr.bf16.mxu0 %v1712
        %2802 = vmatmul.mubr.bf16.gmra.mxu0 %v1711
        %v2803 = vpop.f32.mrf.mxu0
        %v2804 = vadd.f32 %v2715, %v2803
        %v2805 = vpop.f32.mrf.mxu0
        %v2806 = vpop.f32.mrf.mxu0
        %v2807 = vadd.f32 %v2718, %v2806
        %v2808 = vpop.f32.mrf.mxu0
        %2809 = vmatprep.mubr.bf16.mxu0 %v1725
        %2810 = vmatmul.mubr.bf16.gmra.mxu0 %v1724
        %v2811 = vpop.f32.mrf.mxu0
        %v2812 = vadd.f32 %v2723, %v2811
        %v2813 = vpop.f32.mrf.mxu0
        %v2814 = vpop.f32.mrf.mxu0
        %v2815 = vadd.f32 %v2726, %v2814
        %v2816 = vpop.f32.mrf.mxu0
        %2817 = vmatprep.mubr.bf16.mxu0 %v1738
        %2818 = vmatmul.mubr.bf16.gmra.mxu0 %v1737
        %v2819 = vpop.f32.mrf.mxu0
        %v2820 = vadd.f32 %v2731, %v2819
        %v2821 = vpop.f32.mrf.mxu0
        %v2822 = vpop.f32.mrf.mxu0
        %v2823 = vadd.f32 %v2734, %v2822
        %v2824 = vpop.f32.mrf.mxu0
        %2825 = vmatprep.mubr.bf16.mxu0 %v1751
        %2826 = vmatmul.mubr.bf16.gmra.mxu0 %v1750
        %v2827 = vpop.f32.mrf.mxu0
        %v2828 = vadd.f32 %v2739, %v2827
        %v2829 = vpop.f32.mrf.mxu0
        %v2830 = vpop.f32.mrf.mxu0
        %v2831 = vadd.f32 %v2742, %v2830
        %v2832 = vpop.f32.mrf.mxu0
        %2833 = vmatprep.mubr.bf16.mxu0 %v1764
        %2834 = vmatmul.mubr.bf16.gmra.mxu0 %v1763
        %v2835 = vpop.f32.mrf.mxu0
        %v2836 = vadd.f32 %v2747, %v2835
        %v2837 = vpop.f32.mrf.mxu0
        %v2838 = vpop.f32.mrf.mxu0
        %v2839 = vadd.f32 %v2750, %v2838
        %v2840 = vpop.f32.mrf.mxu0
        %2841 = vmatprep.mubr.bf16.mxu0 %v1777
        %2842 = vmatmul.mubr.bf16.gmra.mxu0 %v1776
        %v2843 = vpop.f32.mrf.mxu0
        %v2844 = vadd.f32 %v2755, %v2843
        %v2845 = vpop.f32.mrf.mxu0
        %v2846 = vpop.f32.mrf.mxu0
        %v2847 = vadd.f32 %v2758, %v2846
        %v2848 = vpop.f32.mrf.mxu0
        %2849 = vmatprep.mubr.bf16.mxu0 %v1790
        %2850 = vmatmul.mubr.bf16.gmra.mxu0 %v1789
        %v2851 = vpop.f32.mrf.mxu0
        %v2852 = vadd.f32 %v2763, %v2851
        %v2853 = vpop.f32.mrf.mxu0
        %v2854 = vpop.f32.mrf.mxu0
        %v2855 = vadd.f32 %v2766, %v2854
        %v2856 = vpop.f32.mrf.mxu0
        %2857 = vdwg.mxu0
        %2858 = vmatprep.subr.bf16.mxu0 0
        %2859 = vmatpush1.bf16.msra.mxu0 %v2351
        %2860 = vmatprep.subr.bf16.mxu0 0
        %2861 = vmatpush1.bf16.msra.mxu0 %v2350
        %2862 = vmatprep.subr.bf16.mxu0 0
        %2863 = vmatpush1.bf16.msra.mxu0 %v2349
        %2864 = vmatprep.subr.bf16.mxu0 0
        %2865 = vmatpush1.bf16.msra.mxu0 %v2348
        %2866 = vmatprep.subr.bf16.mxu0 0
        %2867 = vmatpush1.bf16.msra.mxu0 %v2347
        %2868 = vmatprep.subr.bf16.mxu0 0
        %2869 = vmatpush1.bf16.msra.mxu0 %v2346
        %2870 = vmatprep.subr.bf16.mxu0 0
        %2871 = vmatpush1.bf16.msra.mxu0 %v2345
        %2872 = vmatprep.subr.bf16.mxu0 0
        %2873 = vmatpush1.bf16.msra.mxu0 %v2344
        %2874 = vmatprep.subr.bf16.mxu0 0
        %2875 = vmatpush2.bf16.msra.mxu0 %v2359
        %2876 = vmatprep.subr.bf16.mxu0 0
        %2877 = vmatpush2.bf16.msra.mxu0 %v2358
        %2878 = vmatprep.subr.bf16.mxu0 0
        %2879 = vmatpush2.bf16.msra.mxu0 %v2357
        %2880 = vmatprep.subr.bf16.mxu0 0
        %2881 = vmatpush2.bf16.msra.mxu0 %v2356
        %2882 = vmatprep.subr.bf16.mxu0 0
        %2883 = vmatpush2.bf16.msra.mxu0 %v2355
        %2884 = vmatprep.subr.bf16.mxu0 0
        %2885 = vmatpush2.bf16.msra.mxu0 %v2354
        %2886 = vmatprep.subr.bf16.mxu0 0
        %2887 = vmatpush2.bf16.msra.mxu0 %v2353
        %2888 = vmatprep.subr.bf16.mxu0 0
        %2889 = vmatpush2.bf16.msra.mxu0 %v2352
        %2890 = vmatprep.mubr.bf16.mxu0 %v1714
        %2891 = vmatmul.mubr.bf16.gmra.mxu0 %v1713
        %v2892 = vpop.f32.mrf.mxu0
        %v2893 = vadd.f32 %v2804, %v2892
        %v2894 = vpop.f32.mrf.mxu0
        %v2895 = vpop.f32.mrf.mxu0
        %v2896 = vadd.f32 %v2807, %v2895
        %v2897 = vpop.f32.mrf.mxu0
        %2898 = vmatprep.mubr.bf16.mxu0 %v1727
        %2899 = vmatmul.mubr.bf16.gmra.mxu0 %v1726
        %v2900 = vpop.f32.mrf.mxu0
        %v2901 = vadd.f32 %v2812, %v2900
        %v2902 = vpop.f32.mrf.mxu0
        %v2903 = vpop.f32.mrf.mxu0
        %v2904 = vadd.f32 %v2815, %v2903
        %v2905 = vpop.f32.mrf.mxu0
        %2906 = vmatprep.mubr.bf16.mxu0 %v1740
        %2907 = vmatmul.mubr.bf16.gmra.mxu0 %v1739
        %v2908 = vpop.f32.mrf.mxu0
        %v2909 = vadd.f32 %v2820, %v2908
        %v2910 = vpop.f32.mrf.mxu0
        %v2911 = vpop.f32.mrf.mxu0
        %v2912 = vadd.f32 %v2823, %v2911
        %v2913 = vpop.f32.mrf.mxu0
        %2914 = vmatprep.mubr.bf16.mxu0 %v1753
        %2915 = vmatmul.mubr.bf16.gmra.mxu0 %v1752
        %v2916 = vpop.f32.mrf.mxu0
        %v2917 = vadd.f32 %v2828, %v2916
        %v2918 = vpop.f32.mrf.mxu0
        %v2919 = vpop.f32.mrf.mxu0
        %v2920 = vadd.f32 %v2831, %v2919
        %v2921 = vpop.f32.mrf.mxu0
        %2922 = vmatprep.mubr.bf16.mxu0 %v1766
        %2923 = vmatmul.mubr.bf16.gmra.mxu0 %v1765
        %v2924 = vpop.f32.mrf.mxu0
        %v2925 = vadd.f32 %v2836, %v2924
        %v2926 = vpop.f32.mrf.mxu0
        %v2927 = vpop.f32.mrf.mxu0
        %v2928 = vadd.f32 %v2839, %v2927
        %v2929 = vpop.f32.mrf.mxu0
        %2930 = vmatprep.mubr.bf16.mxu0 %v1779
        %2931 = vmatmul.mubr.bf16.gmra.mxu0 %v1778
        %v2932 = vpop.f32.mrf.mxu0
        %v2933 = vadd.f32 %v2844, %v2932
        %v2934 = vpop.f32.mrf.mxu0
        %v2935 = vpop.f32.mrf.mxu0
        %v2936 = vadd.f32 %v2847, %v2935
        %v2937 = vpop.f32.mrf.mxu0
        %2938 = vmatprep.mubr.bf16.mxu0 %v1792
        %2939 = vmatmul.mubr.bf16.gmra.mxu0 %v1791
        %v2940 = vpop.f32.mrf.mxu0
        %v2941 = vadd.f32 %v2852, %v2940
        %v2942 = vpop.f32.mrf.mxu0
        %v2943 = vpop.f32.mrf.mxu0
        %v2944 = vadd.f32 %v2855, %v2943
        %v2945 = vpop.f32.mrf.mxu0
        %2946 = vdwg.mxu0
        %2947 = vmatprep.subr.bf16.mxu0 0
        %2948 = vmatpush1.bf16.msra.mxu0 %v2367
        %2949 = vmatprep.subr.bf16.mxu0 0
        %2950 = vmatpush1.bf16.msra.mxu0 %v2366
        %2951 = vmatprep.subr.bf16.mxu0 0
        %2952 = vmatpush1.bf16.msra.mxu0 %v2365
        %2953 = vmatprep.subr.bf16.mxu0 0
        %2954 = vmatpush1.bf16.msra.mxu0 %v2364
        %2955 = vmatprep.subr.bf16.mxu0 0
        %2956 = vmatpush1.bf16.msra.mxu0 %v2363
        %2957 = vmatprep.subr.bf16.mxu0 0
        %2958 = vmatpush1.bf16.msra.mxu0 %v2362
        %2959 = vmatprep.subr.bf16.mxu0 0
        %2960 = vmatpush1.bf16.msra.mxu0 %v2361
        %2961 = vmatprep.subr.bf16.mxu0 0
        %2962 = vmatpush1.bf16.msra.mxu0 %v2360
        %2963 = vmatprep.subr.bf16.mxu0 0
        %2964 = vmatpush2.bf16.msra.mxu0 %v2375
        %2965 = vmatprep.subr.bf16.mxu0 0
        %2966 = vmatpush2.bf16.msra.mxu0 %v2374
        %2967 = vmatprep.subr.bf16.mxu0 0
        %2968 = vmatpush2.bf16.msra.mxu0 %v2373
        %2969 = vmatprep.subr.bf16.mxu0 0
        %2970 = vmatpush2.bf16.msra.mxu0 %v2372
        %2971 = vmatprep.subr.bf16.mxu0 0
        %2972 = vmatpush2.bf16.msra.mxu0 %v2371
        %2973 = vmatprep.subr.bf16.mxu0 0
        %2974 = vmatpush2.bf16.msra.mxu0 %v2370
        %2975 = vmatprep.subr.bf16.mxu0 0
        %2976 = vmatpush2.bf16.msra.mxu0 %v2369
        %2977 = vmatprep.subr.bf16.mxu0 0
        %2978 = vmatpush2.bf16.msra.mxu0 %v2368
        %2979 = vmatprep.mubr.bf16.mxu0 %v1716
        %2980 = vmatmul.mubr.bf16.gmra.mxu0 %v1715
        %v2981 = vpop.f32.mrf.mxu0
        %v2982 = vadd.f32 %v2893, %v2981
        %v2983 = vpop.f32.mrf.mxu0
        %v2984 = vpop.f32.mrf.mxu0
        %v2985 = vadd.f32 %v2896, %v2984
        %v2986 = vpop.f32.mrf.mxu0
        %2987 = vmatprep.mubr.bf16.mxu0 %v1729
        %2988 = vmatmul.mubr.bf16.gmra.mxu0 %v1728
        %v2989 = vpop.f32.mrf.mxu0
        %v2990 = vadd.f32 %v2901, %v2989
        %v2991 = vpop.f32.mrf.mxu0
        %v2992 = vpop.f32.mrf.mxu0
        %v2993 = vadd.f32 %v2904, %v2992
        %v2994 = vpop.f32.mrf.mxu0
        %2995 = vmatprep.mubr.bf16.mxu0 %v1742
        %2996 = vmatmul.mubr.bf16.gmra.mxu0 %v1741
        %v2997 = vpop.f32.mrf.mxu0
        %v2998 = vadd.f32 %v2909, %v2997
        %v2999 = vpop.f32.mrf.mxu0
        %v3000 = vpop.f32.mrf.mxu0
        %v3001 = vadd.f32 %v2912, %v3000
        %v3002 = vpop.f32.mrf.mxu0
        %3003 = vmatprep.mubr.bf16.mxu0 %v1755
        %3004 = vmatmul.mubr.bf16.gmra.mxu0 %v1754
        %v3005 = vpop.f32.mrf.mxu0
        %v3006 = vadd.f32 %v2917, %v3005
        %v3007 = vpop.f32.mrf.mxu0
        %v3008 = vpop.f32.mrf.mxu0
        %v3009 = vadd.f32 %v2920, %v3008
        %v3010 = vpop.f32.mrf.mxu0
        %3011 = vmatprep.mubr.bf16.mxu0 %v1768
        %3012 = vmatmul.mubr.bf16.gmra.mxu0 %v1767
        %v3013 = vpop.f32.mrf.mxu0
        %v3014 = vadd.f32 %v2925, %v3013
        %v3015 = vpop.f32.mrf.mxu0
        %v3016 = vpop.f32.mrf.mxu0
        %v3017 = vadd.f32 %v2928, %v3016
        %v3018 = vpop.f32.mrf.mxu0
        %3019 = vmatprep.mubr.bf16.mxu0 %v1781
        %3020 = vmatmul.mubr.bf16.gmra.mxu0 %v1780
        %v3021 = vpop.f32.mrf.mxu0
        %v3022 = vadd.f32 %v2933, %v3021
        %v3023 = vpop.f32.mrf.mxu0
        %v3024 = vpop.f32.mrf.mxu0
        %v3025 = vadd.f32 %v2936, %v3024
        %v3026 = vpop.f32.mrf.mxu0
        %3027 = vmatprep.mubr.bf16.mxu0 %v1794
        %3028 = vmatmul.mubr.bf16.gmra.mxu0 %v1793
        %v3029 = vpop.f32.mrf.mxu0
        %v3030 = vadd.f32 %v2941, %v3029
        %v3031 = vpop.f32.mrf.mxu0
        %v3032 = vpop.f32.mrf.mxu0
        %v3033 = vadd.f32 %v2944, %v3032
        %v3034 = vpop.f32.mrf.mxu0
        %3035 = vdwg.mxu0
        %3036 = vmatprep.subr.bf16.mxu0 0
        %3037 = vmatpush1.bf16.msra.mxu0 0
        %3038 = vmatprep.subr.bf16.mxu0 0
        %3039 = vmatpush1.bf16.msra.mxu0 0
        %3040 = vmatprep.subr.bf16.mxu0 0
        %3041 = vmatpush1.bf16.msra.mxu0 0
        %3042 = vmatprep.subr.bf16.mxu0 0
        %3043 = vmatpush1.bf16.msra.mxu0 0
        %3044 = vmatprep.subr.bf16.mxu0 0
        %3045 = vmatpush1.bf16.msra.mxu0 %v2379
        %3046 = vmatprep.subr.bf16.mxu0 0
        %3047 = vmatpush1.bf16.msra.mxu0 %v2378
        %3048 = vmatprep.subr.bf16.mxu0 0
        %3049 = vmatpush1.bf16.msra.mxu0 %v2377
        %3050 = vmatprep.subr.bf16.mxu0 0
        %3051 = vmatpush1.bf16.msra.mxu0 %v2376
        %3052 = vmatprep.subr.bf16.mxu0 0
        %3053 = vmatpush2.bf16.msra.mxu0 0
        %3054 = vmatprep.subr.bf16.mxu0 0
        %3055 = vmatpush2.bf16.msra.mxu0 0
        %3056 = vmatprep.subr.bf16.mxu0 0
        %3057 = vmatpush2.bf16.msra.mxu0 0
        %3058 = vmatprep.subr.bf16.mxu0 0
        %3059 = vmatpush2.bf16.msra.mxu0 0
        %3060 = vmatprep.subr.bf16.mxu0 0
        %3061 = vmatpush2.bf16.msra.mxu0 0
        %3062 = vmatprep.subr.bf16.mxu0 0
        %3063 = vmatpush2.bf16.msra.mxu0 0
        %3064 = vmatprep.subr.bf16.mxu0 0
        %3065 = vmatpush2.bf16.msra.mxu0 0
        %3066 = vmatprep.subr.bf16.mxu0 0
        %3067 = vmatpush2.bf16.msra.mxu0 0
        %3068 = vmatprep.mubr.bf16.mxu0 0
        %3069 = vmatmul.mubr.bf16.gmra.mxu0 %v2482
        %v3070 = vpop.f32.mrf.mxu0
        %v3071 = vadd.f32 %v2982, %v3070
        %v3072 = vpop.f32.mrf.mxu0
        %v3073 = vpop.f32.mrf.mxu0
        %v3074 = vadd.f32 %v2985, %v3073
        %v3075 = vpop.f32.mrf.mxu0
        %3076 = vmatprep.mubr.bf16.mxu0 0
        %3077 = vmatmul.mubr.bf16.gmra.mxu0 %v2485
        %v3078 = vpop.f32.mrf.mxu0
        %v3079 = vadd.f32 %v2990, %v3078
        %v3080 = vpop.f32.mrf.mxu0
        %v3081 = vpop.f32.mrf.mxu0
        %v3082 = vadd.f32 %v2993, %v3081
        %v3083 = vpop.f32.mrf.mxu0
        %3084 = vmatprep.mubr.bf16.mxu0 0
        %3085 = vmatmul.mubr.bf16.gmra.mxu0 %v2488
        %v3086 = vpop.f32.mrf.mxu0
        %v3087 = vadd.f32 %v2998, %v3086
        %v3088 = vpop.f32.mrf.mxu0
        %v3089 = vpop.f32.mrf.mxu0
        %v3090 = vadd.f32 %v3001, %v3089
        %v3091 = vpop.f32.mrf.mxu0
        %3092 = vmatprep.mubr.bf16.mxu0 0
        %3093 = vmatmul.mubr.bf16.gmra.mxu0 %v2491
        %v3094 = vpop.f32.mrf.mxu0
        %v3095 = vadd.f32 %v3006, %v3094
        %v3096 = vpop.f32.mrf.mxu0
        %v3097 = vpop.f32.mrf.mxu0
        %v3098 = vadd.f32 %v3009, %v3097
        %v3099 = vpop.f32.mrf.mxu0
        %3100 = vmatprep.mubr.bf16.mxu0 0
        %3101 = vmatmul.mubr.bf16.gmra.mxu0 %v2494
        %v3102 = vpop.f32.mrf.mxu0
        %v3103 = vadd.f32 %v3014, %v3102
        %v3104 = vpop.f32.mrf.mxu0
        %v3105 = vpop.f32.mrf.mxu0
        %v3106 = vadd.f32 %v3017, %v3105
        %v3107 = vpop.f32.mrf.mxu0
        %3108 = vmatprep.mubr.bf16.mxu0 0
        %3109 = vmatmul.mubr.bf16.gmra.mxu0 %v2497
        %v3110 = vpop.f32.mrf.mxu0
        %v3111 = vadd.f32 %v3022, %v3110
        %v3112 = vpop.f32.mrf.mxu0
        %v3113 = vpop.f32.mrf.mxu0
        %v3114 = vadd.f32 %v3025, %v3113
        %v3115 = vpop.f32.mrf.mxu0
        %3116 = vmatprep.mubr.bf16.mxu0 0
        %3117 = vmatmul.mubr.bf16.gmra.mxu0 %v2500
        %v3118 = vpop.f32.mrf.mxu0
        %v3119 = vadd.f32 %v3030, %v3118
        %v3120 = vpop.f32.mrf.mxu0
        %v3121 = vpop.f32.mrf.mxu0
        %v3122 = vadd.f32 %v3033, %v3121
        %v3123 = vpop.f32.mrf.mxu0
        %3124 = vdwg.mxu0
        %v3125 = vadd.f32 %v1113, %v3071
        %v3126 = vadd.f32 %v1114, %v3074
        %v3127 = vadd.f32 %v1115, %v3079
        %v3128 = vadd.f32 %v1116, %v3082
        %v3129 = vadd.f32 %v1117, %v3087
        %v3130 = vadd.f32 %v1118, %v3090
        %v3131 = vadd.f32 %v1119, %v3095
        %v3132 = vadd.f32 %v1120, %v3098
        %v3133 = vadd.f32 %v1121, %v3103
        %v3134 = vadd.f32 %v1122, %v3106
        %v3135 = vadd.f32 %v1123, %v3111
        %v3136 = vadd.f32 %v1124, %v3114
        %v3137 = vadd.f32 %v1125, %v3119
        %v3138 = vadd.f32 %v1126, %v3122
        %3139 = vst [vmem:[#allocation2] sm:$0xff] %v3125
        %3140 = vst [vmem:[#allocation2 + $0x8] sm:$0xff] %v3126
        %3141 = vst [vmem:[#allocation2 + $0x10] sm:$0xff] %v3127
        %3142 = vst [vmem:[#allocation2 + $0x18] sm:$0xff] %v3128
        %3143 = vst [vmem:[#allocation2 + $0x20] sm:$0xff] %v3129
        %3144 = vst [vmem:[#allocation2 + $0x28] sm:$0xff] %v3130
        %3145 = vst [vmem:[#allocation2 + $0x30] sm:$0xff] %v3131
        %3146 = vst [vmem:[#allocation2 + $0x38] sm:$0xff] %v3132
        %3147 = vst [vmem:[#allocation2 + $0x40] sm:$0xff] %v3133
        %3148 = vst [vmem:[#allocation2 + $0x48] sm:$0xff] %v3134
        %3149 = vst [vmem:[#allocation2 + $0x50] sm:$0xff] %v3135
        %3150 = vst [vmem:[#allocation2 + $0x58] sm:$0xff] %v3136
        %3151 = vst [vmem:[#allocation2 + $0x60] sm:$0xff] %v3137
        %3152 = vst [vmem:[#allocation2 + $0x68] sm:$0xff] %v3138
        // Predicated region
        $region78: #{_lambda_.8} parent=68 // pred_check
          %p3153 = pneg %p1088
        $region79: #{_lambda_.8} parent=68 // pred_check_branch
          %3155 = sbr.rel (%p3153) target = $region81
        $region80: #{_lambda_.8} parent=68 // pred_region
          %v3156 = vld [vmem:[#allocation2] sm:$0xff]
          %v3157 = vld [vmem:[#allocation2 + $0x8] sm:$0xff]
          %v3158 = vld [vmem:[#allocation2 + $0x10] sm:$0xff]
          %v3159 = vld [vmem:[#allocation2 + $0x18] sm:$0xff]
          %v3160 = vld [vmem:[#allocation2 + $0x20] sm:$0xff]
          %v3161 = vld [vmem:[#allocation2 + $0x28] sm:$0xff]
          %v3162 = vld [vmem:[#allocation2 + $0x30] sm:$0xff]
          %v3163 = vld [vmem:[#allocation2 + $0x38] sm:$0xff]
          %v3164 = vld [vmem:[#allocation2 + $0x40] sm:$0xff]
          %v3165 = vld [vmem:[#allocation2 + $0x48] sm:$0xff]
          %v3166 = vld [vmem:[#allocation2 + $0x50] sm:$0xff]
          %v3167 = vld [vmem:[#allocation2 + $0x58] sm:$0xff]
          %v3168 = vld [vmem:[#allocation2 + $0x60] sm:$0xff]
          %v3169 = vld [vmem:[#allocation2 + $0x68] sm:$0xff]
          %v3170 = vmax.f32 %v3156, 0.0
          %v3171 = vmax.f32 %v3157, 0.0
          %v3172 = vmax.f32 %v3158, 0.0
          %v3173 = vmax.f32 %v3159, 0.0
          %v3174 = vmax.f32 %v3160, 0.0
          %v3175 = vmax.f32 %v3161, 0.0
          %v3176 = vmax.f32 %v3162, 0.0
          %v3177 = vmax.f32 %v3163, 0.0
          %v3178 = vmax.f32 %v3164, 0.0
          %v3179 = vmax.f32 %v3165, 0.0
          %v3180 = vmax.f32 %v3166, 0.0
          %v3181 = vmax.f32 %v3167, 0.0
          %v3182 = vmax.f32 %v3168, 0.0
          %v3183 = vmax.f32 %v3169, 0.0
          %v3184 = vpack.c.bf16 %v3171, %v3170
          %v3185 = vpack.c.bf16 %v3173, %v3172
          %v3186 = vpack.c.bf16 %v3175, %v3174
          %v3187 = vpack.c.bf16 %v3177, %v3176
          %v3188 = vpack.c.bf16 %v3179, %v3178
          %v3189 = vpack.c.bf16 %v3181, %v3180
          %v3190 = vpack.c.bf16 %v3183, %v3182
          %v3198 = vunpack.c.l.b16 %v3184
          %v3199 = vunpack.c.h.b16 %v3184
          %v3200 = vunpack.c.l.b16 %v3185
          %v3201 = vunpack.c.h.b16 %v3185
          %v3202 = vunpack.c.l.b16 %v3186
          %v3203 = vunpack.c.h.b16 %v3186
          %v3204 = vunpack.c.l.b16 %v3187
          %v3205 = vunpack.c.h.b16 %v3187
          %v3206 = vunpack.c.l.b16 %v3188
          %v3207 = vunpack.c.h.b16 %v3188
          %v3208 = vunpack.c.l.b16 %v3189
          %v3209 = vunpack.c.h.b16 %v3189
          %v3210 = vunpack.c.l.b16 %v3190
          %v3211 = vunpack.c.h.b16 %v3190
          %v3212 = vpack.c.b16 %v3198, %v3198
          %v3213 = vpack.c.b16 %v3199, %v3199
          %v3214 = vpack.c.b16 %v3200, %v3200
          %v3215 = vpack.c.b16 %v3201, %v3201
          %v3216 = vpack.c.b16 %v3202, %v3202
          %v3217 = vpack.c.b16 %v3203, %v3203
          %v3218 = vpack.c.b16 %v3204, %v3204
          %v3219 = vpack.c.b16 %v3205, %v3205
          %v3220 = vpack.c.b16 %v3206, %v3206
          %v3221 = vpack.c.b16 %v3207, %v3207
          %v3222 = vpack.c.b16 %v3208, %v3208
          %v3223 = vpack.c.b16 %v3209, %v3209
          %v3224 = vpack.c.b16 %v3210, %v3210
          %v3225 = vpack.c.b16 %v3211, %v3211
          %3240 = vst [vmem:[%s1069] sm:$0xf] %v3212
          %3241 = vst [vmem:[%s1069 + $0x4] sm:$0xf] %v3213
          %3242 = vst [vmem:[%s1069 + $0x8] sm:$0xf] %v3214
          %3243 = vst [vmem:[%s1069 + $0xc] sm:$0xf] %v3215
          %3244 = vst [vmem:[%s1069 + $0x10] sm:$0xf] %v3216
          %3245 = vst [vmem:[%s1069 + $0x14] sm:$0xf] %v3217
          %3246 = vst [vmem:[%s1069 + $0x18] sm:$0xf] %v3218
          %3247 = vst [vmem:[%s1069 + $0x1c] sm:$0xf] %v3219
          %3248 = vst [vmem:[%s1069 + $0x20] sm:$0xf] %v3220
          %3249 = vst [vmem:[%s1069 + $0x24] sm:$0xf] %v3221
          %3250 = vst [vmem:[%s1069 + $0x28] sm:$0xf] %v3222
          %3251 = vst [vmem:[%s1069 + $0x2c] sm:$0xf] %v3223
          %3252 = vst [vmem:[%s1069 + $0x30] sm:$0xf] %v3224
          %3253 = vst [vmem:[%s1069 + $0x34] sm:$0xf] %v3225
        $region81: #{_lambda_.8} parent=68 // pred_fallthru
          _
        %s3254 = sand.u32 %s125, 1
        %s3255 = sand.u32 %s125, 1
        %s3256 = smul.addr %s3255, 56
        %s3257 = scalar_lea.vmem [#allocation4], %s3256
        // Predicated region
        $region82: #{_lambda_.8} parent=68 // pred_check
          %p3258 = pneg %p135
        $region83: #{_lambda_.8} parent=68 // pred_check_branch
          %3260 = sbr.rel (%p3258) target = $region85
        $region84: #{_lambda_.8} parent=68 // pred_region
          %s3261 = smul.u32 14, %s20
          %s3262 = smul.addr %s3261, 2
          %s3263 = sadd.s32 %s19, %s3262
          %s3264 = smul.addr %s3263, 4
          %s3265 = scalar_lea.vmem %s3, %s3264
          // Predicated region
          $region86: #{_lambda_.8} parent=84 // pred_check
            _
          $region87: #{_lambda_.8} parent=84 // pred_check_branch
            %3267 = sbr.rel (0) target = $region89
          $region88: #{_lambda_.8} parent=84 // pred_region
            // Predicated region
            $region90: #{_lambda_.8} parent=88 // pred_check
              _
            $region91: #{_lambda_.8} parent=88 // pred_check_branch
              %3269 = sbr.rel target = $region93
            $region92: #{_lambda_.8} parent=88 // pred_region
              // Predicated region
              $region105: #{_lambda_.8} parent=92 // pred_check
                _
              $region106: #{_lambda_.8} parent=92 // pred_check_branch
                %3311 = sbr.rel (0) target = $region108
              $region107: #{_lambda_.8} parent=92 // pred_region
                loop: start=0, step=1, limit=1
                $region109: #{_lambda_.8} parent=107 // loop_pre_header
                  _
                $region110: #{_lambda_.8} parent=107 // loop_header
                  %s3313 = sphi 0, %s3317
                  %p3314 = scmp.ge.s32.totalorder %s3313, 1
                  %s3318 = sphi %s3257, %s3257
                  %s3319 = sphi %s3265, %s3265
                $region111: #{_lambda_.8} parent=107 // loop_header_branch
                  %3316 = sbr.rel (%p3314) target = $region115
                $region112: #{_lambda_.8} parent=107 // loop_body
                  _
                $region113: #{_lambda_.8} parent=107 // loop_footer
                  %s3317 = sadd.s32 1, %s3313
                $region114: #{_lambda_.8} parent=107 // loop_footer_branch
                  %3312 = sbr.rel target = $region110
                $region115: #{_lambda_.8} parent=107 // loop_exit
                  _
                %s3321 = ssub.s32 16, 1
                loop: start=0, step=1, limit=1
                $region116: #{_lambda_.8} parent=107 // loop_pre_header
                  _
                $region117: #{_lambda_.8} parent=107 // loop_header
                  %s3323 = sphi 0, %s3327
                  %p3324 = scmp.ge.s32.totalorder %s3323, 1
                  %s3328 = sphi %s3257, %s3257
                  %s3329 = sphi %s3265, %s3265
                $region118: #{_lambda_.8} parent=107 // loop_header_branch
                  %3326 = sbr.rel (%p3324) target = $region122
                $region119: #{_lambda_.8} parent=107 // loop_body
                  %v3330 = vld [vmem:[%s3328] sm:%s3321]
                  %3331 = vst [vmem:[%s3329] sm:%s3321] %v3330
                  %v3332 = vld [vmem:[%s3328 + $0x4] sm:%s3321]
                  %3333 = vst [vmem:[%s3329 + $0x8] sm:%s3321] %v3332
                  %v3334 = vld [vmem:[%s3328 + $0x8] sm:%s3321]
                  %3335 = vst [vmem:[%s3329 + $0x10] sm:%s3321] %v3334
                  %v3336 = vld [vmem:[%s3328 + $0xc] sm:%s3321]
                  %3337 = vst [vmem:[%s3329 + $0x18] sm:%s3321] %v3336
                  %v3338 = vld [vmem:[%s3328 + $0x10] sm:%s3321]
                  %3339 = vst [vmem:[%s3329 + $0x20] sm:%s3321] %v3338
                  %v3340 = vld [vmem:[%s3328 + $0x14] sm:%s3321]
                  %3341 = vst [vmem:[%s3329 + $0x28] sm:%s3321] %v3340
                  %v3342 = vld [vmem:[%s3328 + $0x18] sm:%s3321]
                  %3343 = vst [vmem:[%s3329 + $0x30] sm:%s3321] %v3342
                  %v3344 = vld [vmem:[%s3328 + $0x1c] sm:%s3321]
                  %3345 = vst [vmem:[%s3329 + $0x38] sm:%s3321] %v3344
                  %v3346 = vld [vmem:[%s3328 + $0x20] sm:%s3321]
                  %3347 = vst [vmem:[%s3329 + $0x40] sm:%s3321] %v3346
                  %v3348 = vld [vmem:[%s3328 + $0x24] sm:%s3321]
                  %3349 = vst [vmem:[%s3329 + $0x48] sm:%s3321] %v3348
                  %v3350 = vld [vmem:[%s3328 + $0x28] sm:%s3321]
                  %3351 = vst [vmem:[%s3329 + $0x50] sm:%s3321] %v3350
                  %v3352 = vld [vmem:[%s3328 + $0x2c] sm:%s3321]
                  %3353 = vst [vmem:[%s3329 + $0x58] sm:%s3321] %v3352
                  %v3354 = vld [vmem:[%s3328 + $0x30] sm:%s3321]
                  %3355 = vst [vmem:[%s3329 + $0x60] sm:%s3321] %v3354
                  %v3356 = vld [vmem:[%s3328 + $0x34] sm:%s3321]
                  %3357 = vst [vmem:[%s3329 + $0x68] sm:%s3321] %v3356
                $region120: #{_lambda_.8} parent=107 // loop_footer
                  %s3327 = sadd.s32 1, %s3323
                $region121: #{_lambda_.8} parent=107 // loop_footer_branch
                  %3322 = sbr.rel target = $region117
                $region122: #{_lambda_.8} parent=107 // loop_exit
                  _
              $region108: #{_lambda_.8} parent=92 // pred_fallthru
                _
            $region93: #{_lambda_.8} parent=88 // pred_fallthru
              _
            // Predicated region
            $region94: #{_lambda_.8} parent=88 // pred_check
              _
            $region95: #{_lambda_.8} parent=88 // pred_check_branch
              %3271 = sbr.rel (0) target = $region97
            $region96: #{_lambda_.8} parent=88 // pred_region
              %s3273 = ssub.s32 16, 1
              loop: start=0, step=1, limit=1
              $region98: #{_lambda_.8} parent=96 // loop_pre_header
                _
              $region99: #{_lambda_.8} parent=96 // loop_header
                %s3275 = sphi 0, %s3279
                %p3276 = scmp.ge.s32.totalorder %s3275, 1
                %s3280 = sphi %s3257, %s3257
                %s3281 = sphi %s3265, %s3265
              $region100: #{_lambda_.8} parent=96 // loop_header_branch
                %3278 = sbr.rel (%p3276) target = $region104
              $region101: #{_lambda_.8} parent=96 // loop_body
                %v3282 = vld [vmem:[%s3280] sm:%s3273]
                %3283 = vst [vmem:[%s3281] sm:%s3273] %v3282
                %v3284 = vld [vmem:[%s3280 + $0x4] sm:%s3273]
                %3285 = vst [vmem:[%s3281 + $0x8] sm:%s3273] %v3284
                %v3286 = vld [vmem:[%s3280 + $0x8] sm:%s3273]
                %3287 = vst [vmem:[%s3281 + $0x10] sm:%s3273] %v3286
                %v3288 = vld [vmem:[%s3280 + $0xc] sm:%s3273]
                %3289 = vst [vmem:[%s3281 + $0x18] sm:%s3273] %v3288
                %v3290 = vld [vmem:[%s3280 + $0x10] sm:%s3273]
                %3291 = vst [vmem:[%s3281 + $0x20] sm:%s3273] %v3290
                %v3292 = vld [vmem:[%s3280 + $0x14] sm:%s3273]
                %3293 = vst [vmem:[%s3281 + $0x28] sm:%s3273] %v3292
                %v3294 = vld [vmem:[%s3280 + $0x18] sm:%s3273]
                %3295 = vst [vmem:[%s3281 + $0x30] sm:%s3273] %v3294
                %v3296 = vld [vmem:[%s3280 + $0x1c] sm:%s3273]
                %3297 = vst [vmem:[%s3281 + $0x38] sm:%s3273] %v3296
                %v3298 = vld [vmem:[%s3280 + $0x20] sm:%s3273]
                %3299 = vst [vmem:[%s3281 + $0x40] sm:%s3273] %v3298
                %v3300 = vld [vmem:[%s3280 + $0x24] sm:%s3273]
                %3301 = vst [vmem:[%s3281 + $0x48] sm:%s3273] %v3300
                %v3302 = vld [vmem:[%s3280 + $0x28] sm:%s3273]
                %3303 = vst [vmem:[%s3281 + $0x50] sm:%s3273] %v3302
                %v3304 = vld [vmem:[%s3280 + $0x2c] sm:%s3273]
                %3305 = vst [vmem:[%s3281 + $0x58] sm:%s3273] %v3304
                %v3306 = vld [vmem:[%s3280 + $0x30] sm:%s3273]
                %3307 = vst [vmem:[%s3281 + $0x60] sm:%s3273] %v3306
                %v3308 = vld [vmem:[%s3280 + $0x34] sm:%s3273]
                %3309 = vst [vmem:[%s3281 + $0x68] sm:%s3273] %v3308
              $region102: #{_lambda_.8} parent=96 // loop_footer
                %s3279 = sadd.s32 1, %s3275
              $region103: #{_lambda_.8} parent=96 // loop_footer_branch
                %3274 = sbr.rel target = $region99
              $region104: #{_lambda_.8} parent=96 // loop_exit
                _
            $region97: #{_lambda_.8} parent=88 // pred_fallthru
              _
          $region89: #{_lambda_.8} parent=84 // pred_fallthru
            _
          %3358 = vnop
        $region85: #{_lambda_.8} parent=68 // pred_fallthru
          _
      $region69: #{_lambda_.8} parent=5 // pred_fallthru
        _
      %p3359 = scmp.le.s32.totalorder 2, %s9
      // Predicated region
      $region123: #{_lambda_.8} parent=5 // pred_check
        %p3360 = pneg %p3359
      $region124: #{_lambda_.8} parent=5 // pred_check_branch
        %3362 = sbr.rel (%p3360) target = $region126
      $region125: #{_lambda_.8} parent=5 // pred_region
        %s3363 = ssub.s32 %s9, 2
        // Predicated region
        $region127: #{_lambda_.8} parent=125 // pred_check
          %p3364 = pneg %p141
        $region128: #{_lambda_.8} parent=125 // pred_check_branch
          %3366 = sbr.rel (%p3364) target = $region130
        $region129: #{_lambda_.8} parent=125 // pred_region
          %s3367 = sand.u32 %s126, 1
          %s3368 = sand.u32 %s126, 1
          %s3369 = smul.addr %s3368, 56
          %s3370 = scalar_lea.vmem [#allocation4], %s3369
        $region130: #{_lambda_.8} parent=125 // pred_fallthru
          _
      $region126: #{_lambda_.8} parent=5 // pred_fallthru
        _
    $region6: #{_lambda_.8} parent=1 // loop_footer
      %s13 = sadd.s32 1, %s9
    $region7: #{_lambda_.8} parent=1 // loop_footer_branch
      %8 = sbr.rel target = $region3
    $region8: #{_lambda_.8} parent=1 // loop_exit
      _

// kernel: _lambda_.9
$region0: #{_lambda_.9}
  #allocation0 [shape = 'u32[]', space=smem, size = 0x4, offset = 0x4, fixed_abs, tag = 'smem constant byte address 0x4 - core index']
  #allocation1 [shape = 'u32[144,128]{1,0:T(1,128)}', space=vmem, size = 0x12000, scoped, tag = 'internal scratch']
  %s0 = inlined_call_operand.vmem [shape: bf16[6,576], index: 0, kind: input, shape index: {}]
  %s1 = inlined_call_operand.vmem [shape: bf16[6,576], index: 1, kind: input, shape index: {}]
  %s2 = inlined_call_operand.vmem [shape: bf16[6,576], index: 2, kind: input, shape index: {}]
  %s3 = inlined_call_operand.vmem [shape: bf16[6,576], index: 3, kind: input, shape index: {}]
  %s4 = inlined_call_operand.vmem [shape: bf16[6,576], index: 4, kind: input, shape index: {}]
  %s5 = inlined_call_operand.vmem [shape: bf16[6,576], index: 5, kind: input, shape index: {}]
  %s6 = inlined_call_operand.vmem [shape: bf16[6,576], index: 6, kind: input, shape index: {}]
  %s7 = inlined_call_operand.vmem [shape: bf16[6,576], index: 7, kind: input, shape index: {}]
  %s8 = inlined_call_operand.vmem [shape: bf16[6,576], index: 8, kind: input, shape index: {}]
  %s9 = inlined_call_operand.vmem [shape: bf16[6,576], index: 9, kind: output, shape index: {}]
  %s10 = sld [smem:[#allocation0]]
  $region46: #{_lambda_.9} parent=0
    _
  %s12 = ssub.s32 1, %s10
  %s13 = scalar_select 0, %s12, %s10
  // Predicated region
  $region2: #{_lambda_.9} parent=0 // pred_check
    _
  $region3: #{_lambda_.9} parent=0 // pred_check_branch
    %15 = sbr.rel (0) target = $region5
  $region4: #{_lambda_.9} parent=0 // pred_region
    _
  $region5: #{_lambda_.9} parent=0 // pred_fallthru
    _
  // Predicated region
  $region6: #{_lambda_.9} parent=0 // pred_check
    _
  $region7: #{_lambda_.9} parent=0 // pred_check_branch
    %17 = sbr.rel (0) target = $region9
  $region8: #{_lambda_.9} parent=0 // pred_region
    _
  $region9: #{_lambda_.9} parent=0 // pred_fallthru
    _
  // Predicated region
  $region10: #{_lambda_.9} parent=0 // pred_check
    _
  $region11: #{_lambda_.9} parent=0 // pred_check_branch
    %19 = sbr.rel (0) target = $region13
  $region12: #{_lambda_.9} parent=0 // pred_region
    _
  $region13: #{_lambda_.9} parent=0 // pred_fallthru
    _
  // Predicated region
  $region14: #{_lambda_.9} parent=0 // pred_check
    _
  $region15: #{_lambda_.9} parent=0 // pred_check_branch
    %21 = sbr.rel (0) target = $region17
  $region16: #{_lambda_.9} parent=0 // pred_region
    _
  $region17: #{_lambda_.9} parent=0 // pred_fallthru
    _
  // Predicated region
  $region18: #{_lambda_.9} parent=0 // pred_check
    _
  $region19: #{_lambda_.9} parent=0 // pred_check_branch
    %23 = sbr.rel (0) target = $region21
  $region20: #{_lambda_.9} parent=0 // pred_region
    _
  $region21: #{_lambda_.9} parent=0 // pred_fallthru
    _
  // Predicated region
  $region22: #{_lambda_.9} parent=0 // pred_check
    _
  $region23: #{_lambda_.9} parent=0 // pred_check_branch
    %25 = sbr.rel (0) target = $region25
  $region24: #{_lambda_.9} parent=0 // pred_region
    _
  $region25: #{_lambda_.9} parent=0 // pred_fallthru
    _
  // Predicated region
  $region26: #{_lambda_.9} parent=0 // pred_check
    _
  $region27: #{_lambda_.9} parent=0 // pred_check_branch
    %27 = sbr.rel (0) target = $region29
  $region28: #{_lambda_.9} parent=0 // pred_region
    _
  $region29: #{_lambda_.9} parent=0 // pred_fallthru
    _
  // Predicated region
  $region30: #{_lambda_.9} parent=0 // pred_check
    _
  $region31: #{_lambda_.9} parent=0 // pred_check_branch
    %29 = sbr.rel (0) target = $region33
  $region32: #{_lambda_.9} parent=0 // pred_region
    _
  $region33: #{_lambda_.9} parent=0 // pred_fallthru
    _
  // Predicated region
  $region34: #{_lambda_.9} parent=0 // pred_check
    _
  $region35: #{_lambda_.9} parent=0 // pred_check_branch
    %31 = sbr.rel (0) target = $region37
  $region36: #{_lambda_.9} parent=0 // pred_region
    _
  $region37: #{_lambda_.9} parent=0 // pred_fallthru
    _
  %v32 = vld [vmem:[%s0] sm:$0x77]
  %v33 = vld [vmem:[%s0 + $0x8] sm:$0x77]
  %v34 = vld [vmem:[%s0 + $0x10] sm:$0x7]
  %v35 = vld [vmem:[%s1] sm:$0x77]
  %v36 = vld [vmem:[%s1 + $0x8] sm:$0x77]
  %v37 = vld [vmem:[%s1 + $0x10] sm:$0x7]
  %v38 = vmax.bf16 %v32, %v35
  %v39 = vmax.bf16 %v33, %v36
  %v40 = vmax.bf16 %v34, %v37
  %v41 = vld [vmem:[%s2] sm:$0x77]
  %v42 = vld [vmem:[%s2 + $0x8] sm:$0x77]
  %v43 = vld [vmem:[%s2 + $0x10] sm:$0x7]
  %v44 = vmax.bf16 %v38, %v41
  %v45 = vmax.bf16 %v39, %v42
  %v46 = vmax.bf16 %v40, %v43
  %v47 = vld [vmem:[%s3] sm:$0x77]
  %v48 = vld [vmem:[%s3 + $0x8] sm:$0x77]
  %v49 = vld [vmem:[%s3 + $0x10] sm:$0x7]
  %v50 = vmax.bf16 %v44, %v47
  %v51 = vmax.bf16 %v45, %v48
  %v52 = vmax.bf16 %v46, %v49
  %v53 = vld [vmem:[%s4] sm:$0x77]
  %v54 = vld [vmem:[%s4 + $0x8] sm:$0x77]
  %v55 = vld [vmem:[%s4 + $0x10] sm:$0x7]
  %v56 = vmax.bf16 %v50, %v53
  %v57 = vmax.bf16 %v51, %v54
  %v58 = vmax.bf16 %v52, %v55
  %v59 = vld [vmem:[%s5] sm:$0x77]
  %v60 = vld [vmem:[%s5 + $0x8] sm:$0x77]
  %v61 = vld [vmem:[%s5 + $0x10] sm:$0x7]
  %v62 = vmax.bf16 %v56, %v59
  %v63 = vmax.bf16 %v57, %v60
  %v64 = vmax.bf16 %v58, %v61
  %v65 = vld [vmem:[%s6] sm:$0x77]
  %v66 = vld [vmem:[%s6 + $0x8] sm:$0x77]
  %v67 = vld [vmem:[%s6 + $0x10] sm:$0x7]
  %v68 = vmax.bf16 %v62, %v65
  %v69 = vmax.bf16 %v63, %v66
  %v70 = vmax.bf16 %v64, %v67
  %v71 = vld [vmem:[%s7] sm:$0x77]
  %v72 = vld [vmem:[%s7 + $0x8] sm:$0x77]
  %v73 = vld [vmem:[%s7 + $0x10] sm:$0x7]
  %v74 = vmax.bf16 %v68, %v71
  %v75 = vmax.bf16 %v69, %v72
  %v76 = vmax.bf16 %v70, %v73
  %v77 = vld [vmem:[%s8] sm:$0x77]
  %v78 = vld [vmem:[%s8 + $0x8] sm:$0x77]
  %v79 = vld [vmem:[%s8 + $0x10] sm:$0x7]
  %v80 = vmax.bf16 %v74, %v77
  %v81 = vmax.bf16 %v75, %v78
  %v82 = vmax.bf16 %v76, %v79
  %83 = vst [vmem:[%s9] sm:$0x77] %v80
  %84 = vst [vmem:[%s9 + $0x8] sm:$0x77] %v81
  %vm85 = vcmask 518144
  %86 = vst.msk [vmem:[%s9 + $0x10] sm:$0x7] %vm85, %v82
  // Predicated region
  $region38: #{_lambda_.9} parent=0 // pred_check
    _
  $region39: #{_lambda_.9} parent=0 // pred_check_branch
    %88 = sbr.rel (0) target = $region41
  $region40: #{_lambda_.9} parent=0 // pred_region
    _
  $region41: #{_lambda_.9} parent=0 // pred_fallthru
    _
  // Predicated region
  $region42: #{_lambda_.9} parent=0 // pred_check
    _
  $region43: #{_lambda_.9} parent=0 // pred_check_branch
    %90 = sbr.rel (0) target = $region45
  $region44: #{_lambda_.9} parent=0 // pred_region
    _
  $region45: #{_lambda_.9} parent=0 // pred_fallthru
    _

// kernel: _lambda_.11
$region0: #{_lambda_.11}
  #allocation0 [shape = 'u32[]', space=smem, size = 0x4, offset = 0x4, fixed_abs, tag = 'smem constant byte address 0x4 - core index']
  #allocation1 [shape = 'u32[144,128]{1,0:T(1,128)}', space=vmem, size = 0x12000, scoped, tag = 'internal scratch']
  #allocation2 [shape = 'f32[16,128]{1,0:T(8,128)}', space=vmem, size = 0x2000, scoped, tag = 'scratch operand']
  %s0 = inlined_call_operand.vmem [shape: bf16[16,3584], index: 0, kind: input, shape index: {}]
  %s1 = inlined_call_operand.vmem [shape: bf16[3584,128], index: 1, kind: input, shape index: {}]
  %s2 = inlined_call_operand.vmem [shape: f32[1,128], index: 2, kind: input, shape index: {}]
  %s3 = inlined_call_operand.vmem [shape: f32[16,128], index: 3, kind: output, shape index: {}]
  %s4 = sld [smem:[#allocation0]]
  $region76: #{_lambda_.11} parent=0
    _
  %s6 = ssub.s32 1, %s4
  %s7 = scalar_select 0, %s6, %s4
  $region1: #{_lambda_.11} parent=0
    #allocation3 [shape = 'u8[32768]{0}', space=vmem, size = 0x8000, scoped, tag = 'input window, operand 0']
    loop: start=0, step=1, limit=9
    $region2: #{_lambda_.11} parent=1 // loop_pre_header
      _
    $region3: #{_lambda_.11} parent=1 // loop_header
      %s9 = sphi 0, %s13
      %p10 = scmp.ge.s32.totalorder %s9, 9
      %s16 = sphi 0, %s35
      %s17 = sphi 0, %s31
      %s18 = sphi 0, %s27
      %s19 = sphi 0, %s16
      %s20 = sphi 0, %s17
      %s21 = sphi 0, %s18
      %s22 = sphi 0, %s19
      %s23 = sphi 0, %s20
      %s24 = sphi 0, %s21
      %s40 = sphi 0, %s42
      %s43 = sphi 0, %s40
      %s44 = sphi 0, %s43
      %s60 = sphi 0, %s44
      %s68 = sphi 0, %s70
      %s71 = sphi 0, %s68
      %s72 = sphi 0, %s71
      %s88 = sphi 0, %s72
      %s94 = sphi 0, %s96
      %s97 = sphi 0, %s94
      %s98 = sphi 0, %s97
      %s114 = sphi 0, %s98
      %s122 = sphi 0, %s124
      %s125 = sphi 0, %s122
      %s126 = sphi 0, %s125
      %s142 = sphi 0, %s126
    $region4: #{_lambda_.11} parent=1 // loop_header_branch
      %12 = sbr.rel (%p10) target = $region8
    $region5: #{_lambda_.11} parent=1 // loop_body
      %s14 = ssub.s32 %s9, 1
      %s15 = ssub.s32 %s9, 2
      %s25 = sadd.s32 1, %s18
      %p26 = scmp.ge.s32.totalorder %s25, 7
      %s27 = scalar_select %p26, 0, %s25
      %s28 = sadd.s32 1, %s17
      %s29 = scalar_select %p26, %s28, %s17
      %p30 = scmp.ge.s32.totalorder %s29, 1
      %s31 = scalar_select %p30, 0, %s29
      %s32 = sadd.s32 1, %s16
      %s33 = scalar_select %p30, %s32, %s16
      %p34 = scmp.ge.s32.totalorder %s33, 1
      %s35 = scalar_select %p34, 0, %s33
      %s36 = ssub.s32 %s17, %s31
      %s37 = ssub.s32 %s18, %s27
      %s38 = sor.u32 %s36, %s37
      %p39 = scmp.eq.s32.totalorder %s38, 0
      %s41 = sadd.s32 %s40, 1
      %s42 = scalar_select %p39, %s40, %s41
      %p45 = pneg %p39
      %p46 = scmp.eq.s32.totalorder %s9, 6
      %p47 = por %p45, %p46
      %p48 = scmp.ne.s32.totalorder %s40, %s43
      %p49 = scmp.eq.s32.totalorder %s9, 0
      %p50 = por %p48, %p49
      %p51 = scmp.ne.s32.totalorder %s40, %s43
      %p52 = scmp.eq.s32.totalorder %s14, 6
      %p53 = por %p51, %p52
      %p54 = scmp.ne.s32.totalorder %s43, %s44
      %p55 = scmp.eq.s32.totalorder %s14, 0
      %p56 = por %p54, %p55
      %p57 = scmp.ne.s32.totalorder %s43, %s44
      %p58 = scmp.eq.s32.totalorder %s15, 6
      %p59 = por %p57, %p58
      %p61 = scmp.ne.s32.totalorder %s44, %s60
      %p62 = scmp.eq.s32.totalorder %s15, 0
      %p63 = por %p61, %p62
      %s64 = ssub.s32 %s18, %s27
      %s65 = ssub.s32 %s16, %s35
      %s66 = sor.u32 %s64, %s65
      %p67 = scmp.eq.s32.totalorder %s66, 0
      %s69 = sadd.s32 %s68, 1
      %s70 = scalar_select %p67, %s68, %s69
      %p73 = pneg %p67
      %p74 = scmp.eq.s32.totalorder %s9, 6
      %p75 = por %p73, %p74
      %p76 = scmp.ne.s32.totalorder %s68, %s71
      %p77 = scmp.eq.s32.totalorder %s9, 0
      %p78 = por %p76, %p77
      %p79 = scmp.ne.s32.totalorder %s68, %s71
      %p80 = scmp.eq.s32.totalorder %s14, 6
      %p81 = por %p79, %p80
      %p82 = scmp.ne.s32.totalorder %s71, %s72
      %p83 = scmp.eq.s32.totalorder %s14, 0
      %p84 = por %p82, %p83
      %p85 = scmp.ne.s32.totalorder %s71, %s72
      %p86 = scmp.eq.s32.totalorder %s15, 6
      %p87 = por %p85, %p86
      %p89 = scmp.ne.s32.totalorder %s72, %s88
      %p90 = scmp.eq.s32.totalorder %s15, 0
      %p91 = por %p89, %p90
      %s92 = ssub.s32 %s16, %s35
      %p93 = scmp.eq.s32.totalorder %s92, 0
      %s95 = sadd.s32 %s94, 1
      %s96 = scalar_select %p93, %s94, %s95
      %p99 = pneg %p93
      %p100 = scmp.eq.s32.totalorder %s9, 6
      %p101 = por %p99, %p100
      %p102 = scmp.ne.s32.totalorder %s94, %s97
      %p103 = scmp.eq.s32.totalorder %s9, 0
      %p104 = por %p102, %p103
      %p105 = scmp.ne.s32.totalorder %s94, %s97
      %p106 = scmp.eq.s32.totalorder %s14, 6
      %p107 = por %p105, %p106
      %p108 = scmp.ne.s32.totalorder %s97, %s98
      %p109 = scmp.eq.s32.totalorder %s14, 0
      %p110 = por %p108, %p109
      %p111 = scmp.ne.s32.totalorder %s97, %s98
      %p112 = scmp.eq.s32.totalorder %s15, 6
      %p113 = por %p111, %p112
      %p115 = scmp.ne.s32.totalorder %s98, %s114
      %p116 = scmp.eq.s32.totalorder %s15, 0
      %p117 = por %p115, %p116
      %s118 = ssub.s32 %s17, %s31
      %s119 = ssub.s32 %s16, %s35
      %s120 = sor.u32 %s118, %s119
      %p121 = scmp.eq.s32.totalorder %s120, 0
      %s123 = sadd.s32 %s122, 1
      %s124 = scalar_select %p121, %s122, %s123
      %p127 = pneg %p121
      %p128 = scmp.eq.s32.totalorder %s9, 6
      %p129 = por %p127, %p128
      %p130 = scmp.ne.s32.totalorder %s122, %s125
      %p131 = scmp.eq.s32.totalorder %s9, 0
      %p132 = por %p130, %p131
      %p133 = scmp.ne.s32.totalorder %s122, %s125
      %p134 = scmp.eq.s32.totalorder %s14, 6
      %p135 = por %p133, %p134
      %p136 = scmp.ne.s32.totalorder %s125, %s126
      %p137 = scmp.eq.s32.totalorder %s14, 0
      %p138 = por %p136, %p137
      %p139 = scmp.ne.s32.totalorder %s125, %s126
      %p140 = scmp.eq.s32.totalorder %s15, 6
      %p141 = por %p139, %p140
      %p143 = scmp.ne.s32.totalorder %s126, %s142
      %p144 = scmp.eq.s32.totalorder %s15, 0
      %p145 = por %p143, %p144
      %p146 = scmp.le.s32.totalorder 1, %s9
      %p147 = scmp.lt.s32.totalorder %s9, 8
      %p148 = pnand %p146, %p147
      %p149 = pneg %p148
      // Predicated region
      $region9: #{_lambda_.11} parent=5 // pred_check
        _
      $region10: #{_lambda_.11} parent=5 // pred_check_branch
        %151 = sbr.rel (%p148) target = $region12
      $region11: #{_lambda_.11} parent=5 // pred_region
        %s152 = ssub.s32 %s9, 1
        // Predicated region
        $region13: #{_lambda_.11} parent=11 // pred_check
          %p153 = pneg %p110
        $region14: #{_lambda_.11} parent=11 // pred_check_branch
          %155 = sbr.rel (%p153) target = $region16
        $region15: #{_lambda_.11} parent=11 // pred_region
          %p156 = scmp.lt.s32.totalorder %s19, 0
          %s157 = scalar_select %p156, %s19, 0
          %s158 = scalar_lea.vmem %s2, %s157
        $region16: #{_lambda_.11} parent=11 // pred_fallthru
          _
      $region12: #{_lambda_.11} parent=5 // pred_fallthru
        _
      %p159 = scmp.lt.s32.totalorder %s9, 7
      // Predicated region
      $region17: #{_lambda_.11} parent=5 // pred_check
        %p160 = pneg %p159
      $region18: #{_lambda_.11} parent=5 // pred_check_branch
        %162 = sbr.rel (%p160) target = $region20
      $region19: #{_lambda_.11} parent=5 // pred_region
        // Predicated region
        $region21: #{_lambda_.11} parent=19 // pred_check
          %p163 = pneg %p50
        $region22: #{_lambda_.11} parent=19 // pred_check_branch
          %165 = sbr.rel (%p163) target = $region24
        $region23: #{_lambda_.11} parent=19 // pred_region
          %s166 = sand.u32 %s40, 1
          %s167 = sand.u32 %s40, 1
          %s168 = smul.addr %s167, 32
          %s169 = scalar_lea.vmem [#allocation3], %s168
          %s170 = smul.u32 2, %s17
          %s171 = smul.u32 4, %s18
          %s172 = smul.addr %s170, 28
          %s173 = sadd.s32 %s171, %s172
          %s174 = smul.addr %s173, 4
          %s175 = scalar_lea.vmem %s0, %s174
          // Predicated region
          $region25: #{_lambda_.11} parent=23 // pred_check
            _
          $region26: #{_lambda_.11} parent=23 // pred_check_branch
            %177 = sbr.rel (0) target = $region28
          $region27: #{_lambda_.11} parent=23 // pred_region
            // Predicated region
            $region29: #{_lambda_.11} parent=27 // pred_check
              _
            $region30: #{_lambda_.11} parent=27 // pred_check_branch
              %179 = sbr.rel (0) target = $region32
            $region31: #{_lambda_.11} parent=27 // pred_region
              loop: start=0, step=1, limit=1
              $region33: #{_lambda_.11} parent=31 // loop_pre_header
                _
              $region34: #{_lambda_.11} parent=31 // loop_header
                %s181 = sphi 0, %s185
                %p182 = scmp.ge.s32.totalorder %s181, 1
                %s186 = sphi %s175, %s175
                %s187 = sphi %s169, %s169
              $region35: #{_lambda_.11} parent=31 // loop_header_branch
                %184 = sbr.rel (%p182) target = $region39
              $region36: #{_lambda_.11} parent=31 // loop_body
                %v188 = vld [vmem:[%s186] sm:$0xff]
                %189 = vst [vmem:[%s187] sm:$0xff] %v188
                %v190 = vld [vmem:[%s186 + $0x8] sm:$0xff]
                %191 = vst [vmem:[%s187 + $0x8] sm:$0xff] %v190
                %v192 = vld [vmem:[%s186 + $0x70] sm:$0xff]
                %193 = vst [vmem:[%s187 + $0x10] sm:$0xff] %v192
                %v194 = vld [vmem:[%s186 + $0x78] sm:$0xff]
                %195 = vst [vmem:[%s187 + $0x18] sm:$0xff] %v194
              $region37: #{_lambda_.11} parent=31 // loop_footer
                %s185 = sadd.s32 1, %s181
              $region38: #{_lambda_.11} parent=31 // loop_footer_branch
                %180 = sbr.rel target = $region34
              $region39: #{_lambda_.11} parent=31 // loop_exit
                _
            $region32: #{_lambda_.11} parent=27 // pred_fallthru
              _
            // Predicated region
            $region40: #{_lambda_.11} parent=27 // pred_check
              _
            $region41: #{_lambda_.11} parent=27 // pred_check_branch
              %197 = sbr.rel target = $region43
            $region42: #{_lambda_.11} parent=27 // pred_region
              _
            $region43: #{_lambda_.11} parent=27 // pred_fallthru
              _
          $region28: #{_lambda_.11} parent=23 // pred_fallthru
            _
          %198 = vnop
        $region24: #{_lambda_.11} parent=19 // pred_fallthru
          _
        // Predicated region
        $region44: #{_lambda_.11} parent=19 // pred_check
          %p199 = pneg %p78
        $region45: #{_lambda_.11} parent=19 // pred_check_branch
          %201 = sbr.rel (%p199) target = $region47
        $region46: #{_lambda_.11} parent=19 // pred_region
          %s202 = smul.u32 64, %s18
          %p203 = scmp.lt.s32.totalorder %s202, 447
          %s204 = scalar_select %p203, %s202, 447
          %p205 = scmp.lt.s32.totalorder %s16, 0
          %s206 = scalar_select %p205, %s16, 0
          %s207 = sadd.s32 %s206, %s204
          %s208 = smul.addr %s207, 4
          %s209 = scalar_lea.vmem %s1, %s208
          %s210 = smul.u32 64, %s18
        $region47: #{_lambda_.11} parent=19 // pred_fallthru
          _
      $region20: #{_lambda_.11} parent=5 // pred_fallthru
        _
      %p211 = scmp.le.s32.totalorder 1, %s9
      %p212 = scmp.lt.s32.totalorder %s9, 8
      %p213 = pnand %p211, %p212
      %p214 = pneg %p213
      // Predicated region
      $region48: #{_lambda_.11} parent=5 // pred_check
        _
      $region49: #{_lambda_.11} parent=5 // pred_check_branch
        %216 = sbr.rel (%p213) target = $region51
      $region50: #{_lambda_.11} parent=5 // pred_region
        %s217 = ssub.s32 %s9, 1
        %s218 = sand.u32 %s43, 1
        %s219 = sand.u32 %s43, 1
        %s220 = smul.addr %s219, 32
        %s221 = scalar_lea.vmem [#allocation3], %s220
        // Predicated region
        $region52: #{_lambda_.11} parent=50 // pred_check
          %p222 = pneg %p56
        $region53: #{_lambda_.11} parent=50 // pred_check_branch
          %224 = sbr.rel (%p222) target = $region55
        $region54: #{_lambda_.11} parent=50 // pred_region
          _
        $region55: #{_lambda_.11} parent=50 // pred_fallthru
          _
        %s225 = sand.u32 %s43, 1
        %s226 = sand.u32 %s43, 1
        %s227 = smul.addr %s226, 32
        %s228 = scalar_lea.vmem [#allocation3], %s227
        %p229 = pneg %p56
        %p230 = pneg %p53
        %s231 = smul.u32 64, %s21
        %p232 = scmp.lt.s32.totalorder %s231, 447
        %s233 = scalar_select %p232, %s231, 447
        %p234 = scmp.lt.s32.totalorder %s19, 0
        %s235 = scalar_select %p234, %s19, 0
        %s236 = sadd.s32 %s235, %s233
        %s237 = smul.addr %s236, 4
        %s238 = scalar_lea.vmem %s1, %s237
        %p239 = pneg %p84
        %p240 = pneg %p81
        %p241 = scmp.lt.s32.totalorder %s19, 0
        %s242 = scalar_select %p241, %s19, 0
        %s243 = scalar_lea.vmem %s2, %s242
        %p244 = pneg %p110
        %p245 = pneg %p107
        %p246 = pneg %p138
        %p247 = pneg %p135
        %s248 = smul.u32 2, %s20
        %p249 = scmp.lt.s32.totalorder %s248, 1
        %s250 = scalar_select %p249, %s248, 1
        %p251 = scmp.lt.s32.totalorder %s19, 0
        %s252 = scalar_select %p251, %s19, 0
        %s253 = sadd.s32 %s252, %s250
        %s254 = smul.addr %s253, 8
        %s255 = scalar_lea.vmem %s3, %s254
        %s256 = smul.u32 2, %s20
        %s257 = smul.u32 4, %s21
        %s258 = smul.u32 64, %s21
        %p259 = scmp.lt.s32.totalorder %s258, 447
        %s260 = scalar_select %p259, %s258, 447
        %p261 = scmp.lt.s32.totalorder %s19, 0
        %s262 = scalar_select %p261, %s19, 0
        %s263 = sadd.s32 %s262, %s260
        %s264 = smul.addr %s263, 4
        %s265 = scalar_lea.vmem %s1, %s264
        %s266 = smul.u32 64, %s21
        %p267 = scmp.lt.s32.totalorder %s19, 0
        %s268 = scalar_select %p267, %s19, 0
        %s269 = scalar_lea.vmem %s2, %s268
        %s270 = smul.u32 2, %s20
        %p271 = scmp.lt.s32.totalorder %s270, 1
        %s272 = scalar_select %p271, %s270, 1
        %p273 = scmp.lt.s32.totalorder %s19, 0
        %s274 = scalar_select %p273, %s19, 0
        %s275 = sadd.s32 %s274, %s272
        %s276 = smul.addr %s275, 8
        %s277 = scalar_lea.vmem %s3, %s276
        %s278 = smul.u32 2, %s20
        %p280 = scmp.eq.s32.totalorder %s21, 0
        // Predicated region
        $region56: #{_lambda_.11} parent=50 // pred_check
          %p281 = pneg %p280
        $region57: #{_lambda_.11} parent=50 // pred_check_branch
          %283 = sbr.rel (%p281) target = $region59
        $region58: #{_lambda_.11} parent=50 // pred_region
          %v284 = vld [vmem:[%s269] sm:$0x1]
          %v286 = vlaneseq
          %v287 = vshrl.u32 %v286, 7
          %v288 = vsub.s32 0, %v287
          %v289 = vrot.slane %v284, %v288
          %291 = vst [vmem:[#allocation2] sm:$0xff] %v289
          %292 = vst [vmem:[#allocation2 + $0x8] sm:$0xff] %v289
        $region59: #{_lambda_.11} parent=50 // pred_fallthru
          _
        %v293 = vld [vmem:[#allocation2] sm:$0xff]
        %v294 = vld [vmem:[#allocation2 + $0x8] sm:$0xff]
        %v295 = vld [vmem:[%s221] sm:$0xff]
        %v296 = vld [vmem:[%s221 + $0x8] sm:$0xff]
        %v297 = vld [vmem:[%s221 + $0x10] sm:$0xff]
        %v298 = vld [vmem:[%s221 + $0x18] sm:$0xff]
        %v299 = vld [vmem:[%s265] sm:$0xf]
        %v300 = vld [vmem:[%s265 + $0x4] sm:$0xf]
        %v301 = vld [vmem:[%s265 + $0x8] sm:$0xf]
        %v302 = vld [vmem:[%s265 + $0xc] sm:$0xf]
        %v303 = vld [vmem:[%s265 + $0x10] sm:$0xf]
        %v304 = vld [vmem:[%s265 + $0x14] sm:$0xf]
        %v305 = vld [vmem:[%s265 + $0x18] sm:$0xf]
        %v306 = vld [vmem:[%s265 + $0x1c] sm:$0xf]
        %v307 = vld [vmem:[%s265 + $0x20] sm:$0xf]
        %v308 = vld [vmem:[%s265 + $0x24] sm:$0xf]
        %v309 = vld [vmem:[%s265 + $0x28] sm:$0xf]
        %v310 = vld [vmem:[%s265 + $0x2c] sm:$0xf]
        %v311 = vld [vmem:[%s265 + $0x30] sm:$0xf]
        %v312 = vld [vmem:[%s265 + $0x34] sm:$0xf]
        %v313 = vld [vmem:[%s265 + $0x38] sm:$0xf]
        %v314 = vld [vmem:[%s265 + $0x3c] sm:$0xf]
        %v315 = vld [vmem:[%s265 + $0x40] sm:$0xf]
        %v316 = vld [vmem:[%s265 + $0x44] sm:$0xf]
        %v317 = vld [vmem:[%s265 + $0x48] sm:$0xf]
        %v318 = vld [vmem:[%s265 + $0x4c] sm:$0xf]
        %v319 = vld [vmem:[%s265 + $0x50] sm:$0xf]
        %v320 = vld [vmem:[%s265 + $0x54] sm:$0xf]
        %v321 = vld [vmem:[%s265 + $0x58] sm:$0xf]
        %v322 = vld [vmem:[%s265 + $0x5c] sm:$0xf]
        %v323 = vld [vmem:[%s265 + $0x60] sm:$0xf]
        %v324 = vld [vmem:[%s265 + $0x64] sm:$0xf]
        %v325 = vld [vmem:[%s265 + $0x68] sm:$0xf]
        %v326 = vld [vmem:[%s265 + $0x6c] sm:$0xf]
        %v327 = vld [vmem:[%s265 + $0x70] sm:$0xf]
        %v328 = vld [vmem:[%s265 + $0x74] sm:$0xf]
        %v329 = vld [vmem:[%s265 + $0x78] sm:$0xf]
        %v330 = vld [vmem:[%s265 + $0x7c] sm:$0xf]
        %v331 = vld [vmem:[%s265 + $0x80] sm:$0xf]
        %v332 = vld [vmem:[%s265 + $0x84] sm:$0xf]
        %v333 = vld [vmem:[%s265 + $0x88] sm:$0xf]
        %v334 = vld [vmem:[%s265 + $0x8c] sm:$0xf]
        %v335 = vld [vmem:[%s265 + $0x90] sm:$0xf]
        %v336 = vld [vmem:[%s265 + $0x94] sm:$0xf]
        %v337 = vld [vmem:[%s265 + $0x98] sm:$0xf]
        %v338 = vld [vmem:[%s265 + $0x9c] sm:$0xf]
        %v339 = vld [vmem:[%s265 + $0xa0] sm:$0xf]
        %v340 = vld [vmem:[%s265 + $0xa4] sm:$0xf]
        %v341 = vld [vmem:[%s265 + $0xa8] sm:$0xf]
        %v342 = vld [vmem:[%s265 + $0xac] sm:$0xf]
        %v343 = vld [vmem:[%s265 + $0xb0] sm:$0xf]
        %v344 = vld [vmem:[%s265 + $0xb4] sm:$0xf]
        %v345 = vld [vmem:[%s265 + $0xb8] sm:$0xf]
        %v346 = vld [vmem:[%s265 + $0xbc] sm:$0xf]
        %v347 = vld [vmem:[%s265 + $0xc0] sm:$0xf]
        %v348 = vld [vmem:[%s265 + $0xc4] sm:$0xf]
        %v349 = vld [vmem:[%s265 + $0xc8] sm:$0xf]
        %v350 = vld [vmem:[%s265 + $0xcc] sm:$0xf]
        %v351 = vld [vmem:[%s265 + $0xd0] sm:$0xf]
        %v352 = vld [vmem:[%s265 + $0xd4] sm:$0xf]
        %v353 = vld [vmem:[%s265 + $0xd8] sm:$0xf]
        %v354 = vld [vmem:[%s265 + $0xdc] sm:$0xf]
        %v355 = vld [vmem:[%s265 + $0xe0] sm:$0xf]
        %v356 = vld [vmem:[%s265 + $0xe4] sm:$0xf]
        %v357 = vld [vmem:[%s265 + $0xe8] sm:$0xf]
        %v358 = vld [vmem:[%s265 + $0xec] sm:$0xf]
        %v359 = vld [vmem:[%s265 + $0xf0] sm:$0xf]
        %v360 = vld [vmem:[%s265 + $0xf4] sm:$0xf]
        %v361 = vld [vmem:[%s265 + $0xf8] sm:$0xf]
        %v362 = vld [vmem:[%s265 + $0xfc] sm:$0xf]
        %v367 = vunpack.c.l.b16 %v295
        %v368 = vunpack.c.h.b16 %v295
        %v369 = vunpack.c.l.b16 %v296
        %v370 = vunpack.c.h.b16 %v296
        %v371 = vunpack.c.l.b16 %v297
        %v372 = vunpack.c.h.b16 %v297
        %v373 = vunpack.c.l.b16 %v298
        %v374 = vunpack.c.h.b16 %v298
        %v375 = vpack.c.b16 %v371, %v367
        %v376 = vpack.c.b16 %v372, %v368
        %v377 = vpack.c.b16 %v373, %v369
        %v378 = vpack.c.b16 %v374, %v370
        %v447 = vunpack.c.l.b16 %v299
        %v448 = vunpack.c.l.b16 %v300
        %v449 = vunpack.c.l.b16 %v301
        %v450 = vunpack.c.l.b16 %v302
        %v451 = vunpack.c.l.b16 %v303
        %v452 = vunpack.c.l.b16 %v304
        %v453 = vunpack.c.l.b16 %v305
        %v454 = vunpack.c.l.b16 %v306
        %v455 = vunpack.c.l.b16 %v307
        %v456 = vunpack.c.l.b16 %v308
        %v457 = vunpack.c.l.b16 %v309
        %v458 = vunpack.c.l.b16 %v310
        %v459 = vunpack.c.l.b16 %v311
        %v460 = vunpack.c.l.b16 %v312
        %v461 = vunpack.c.l.b16 %v313
        %v462 = vunpack.c.l.b16 %v314
        %v463 = vunpack.c.l.b16 %v315
        %v464 = vunpack.c.l.b16 %v316
        %v465 = vunpack.c.l.b16 %v317
        %v466 = vunpack.c.l.b16 %v318
        %v467 = vunpack.c.l.b16 %v319
        %v468 = vunpack.c.l.b16 %v320
        %v469 = vunpack.c.l.b16 %v321
        %v470 = vunpack.c.l.b16 %v322
        %v471 = vunpack.c.l.b16 %v323
        %v472 = vunpack.c.l.b16 %v324
        %v473 = vunpack.c.l.b16 %v325
        %v474 = vunpack.c.l.b16 %v326
        %v475 = vunpack.c.l.b16 %v327
        %v476 = vunpack.c.l.b16 %v328
        %v477 = vunpack.c.l.b16 %v329
        %v478 = vunpack.c.l.b16 %v330
        %v479 = vunpack.c.l.b16 %v331
        %v480 = vunpack.c.l.b16 %v332
        %v481 = vunpack.c.l.b16 %v333
        %v482 = vunpack.c.l.b16 %v334
        %v483 = vunpack.c.l.b16 %v335
        %v484 = vunpack.c.l.b16 %v336
        %v485 = vunpack.c.l.b16 %v337
        %v486 = vunpack.c.l.b16 %v338
        %v487 = vunpack.c.l.b16 %v339
        %v488 = vunpack.c.l.b16 %v340
        %v489 = vunpack.c.l.b16 %v341
        %v490 = vunpack.c.l.b16 %v342
        %v491 = vunpack.c.l.b16 %v343
        %v492 = vunpack.c.l.b16 %v344
        %v493 = vunpack.c.l.b16 %v345
        %v494 = vunpack.c.l.b16 %v346
        %v495 = vunpack.c.l.b16 %v347
        %v496 = vunpack.c.l.b16 %v348
        %v497 = vunpack.c.l.b16 %v349
        %v498 = vunpack.c.l.b16 %v350
        %v499 = vunpack.c.l.b16 %v351
        %v500 = vunpack.c.l.b16 %v352
        %v501 = vunpack.c.l.b16 %v353
        %v502 = vunpack.c.l.b16 %v354
        %v503 = vunpack.c.l.b16 %v355
        %v504 = vunpack.c.l.b16 %v356
        %v505 = vunpack.c.l.b16 %v357
        %v506 = vunpack.c.l.b16 %v358
        %v507 = vunpack.c.l.b16 %v359
        %v508 = vunpack.c.l.b16 %v360
        %v509 = vunpack.c.l.b16 %v361
        %v510 = vunpack.c.l.b16 %v362
        %v511 = vpack.c.b16 %v448, %v447
        %v512 = vpack.c.b16 %v450, %v449
        %v513 = vpack.c.b16 %v452, %v451
        %v514 = vpack.c.b16 %v454, %v453
        %v515 = vpack.c.b16 %v456, %v455
        %v516 = vpack.c.b16 %v458, %v457
        %v517 = vpack.c.b16 %v460, %v459
        %v518 = vpack.c.b16 %v462, %v461
        %v519 = vpack.c.b16 %v464, %v463
        %v520 = vpack.c.b16 %v466, %v465
        %v521 = vpack.c.b16 %v468, %v467
        %v522 = vpack.c.b16 %v470, %v469
        %v523 = vpack.c.b16 %v472, %v471
        %v524 = vpack.c.b16 %v474, %v473
        %v525 = vpack.c.b16 %v476, %v475
        %v526 = vpack.c.b16 %v478, %v477
        %v527 = vpack.c.b16 %v480, %v479
        %v528 = vpack.c.b16 %v482, %v481
        %v529 = vpack.c.b16 %v484, %v483
        %v530 = vpack.c.b16 %v486, %v485
        %v531 = vpack.c.b16 %v488, %v487
        %v532 = vpack.c.b16 %v490, %v489
        %v533 = vpack.c.b16 %v492, %v491
        %v534 = vpack.c.b16 %v494, %v493
        %v535 = vpack.c.b16 %v496, %v495
        %v536 = vpack.c.b16 %v498, %v497
        %v537 = vpack.c.b16 %v500, %v499
        %v538 = vpack.c.b16 %v502, %v501
        %v539 = vpack.c.b16 %v504, %v503
        %v540 = vpack.c.b16 %v506, %v505
        %v541 = vpack.c.b16 %v508, %v507
        %v542 = vpack.c.b16 %v510, %v509
        %575 = vmatprep.subr.bf16.mxu0 0
        %576 = vmatpush1.bf16.msra.mxu0 %v518
        %577 = vmatprep.subr.bf16.mxu0 0
        %578 = vmatpush1.bf16.msra.mxu0 %v517
        %579 = vmatprep.subr.bf16.mxu0 0
        %580 = vmatpush1.bf16.msra.mxu0 %v516
        %581 = vmatprep.subr.bf16.mxu0 0
        %582 = vmatpush1.bf16.msra.mxu0 %v515
        %583 = vmatprep.subr.bf16.mxu0 0
        %584 = vmatpush1.bf16.msra.mxu0 %v514
        %585 = vmatprep.subr.bf16.mxu0 0
        %586 = vmatpush1.bf16.msra.mxu0 %v513
        %587 = vmatprep.subr.bf16.mxu0 0
        %588 = vmatpush1.bf16.msra.mxu0 %v512
        %589 = vmatprep.subr.bf16.mxu0 0
        %590 = vmatpush1.bf16.msra.mxu0 %v511
        %591 = vmatprep.subr.bf16.mxu0 0
        %592 = vmatpush2.bf16.msra.mxu0 %v526
        %593 = vmatprep.subr.bf16.mxu0 0
        %594 = vmatpush2.bf16.msra.mxu0 %v525
        %595 = vmatprep.subr.bf16.mxu0 0
        %596 = vmatpush2.bf16.msra.mxu0 %v524
        %597 = vmatprep.subr.bf16.mxu0 0
        %598 = vmatpush2.bf16.msra.mxu0 %v523
        %599 = vmatprep.subr.bf16.mxu0 0
        %600 = vmatpush2.bf16.msra.mxu0 %v522
        %601 = vmatprep.subr.bf16.mxu0 0
        %602 = vmatpush2.bf16.msra.mxu0 %v521
        %603 = vmatprep.subr.bf16.mxu0 0
        %604 = vmatpush2.bf16.msra.mxu0 %v520
        %605 = vmatprep.subr.bf16.mxu0 0
        %606 = vmatpush2.bf16.msra.mxu0 %v519
        %607 = vmatprep.mubr.bf16.mxu0 %v376
        %608 = vmatmul.mubr.bf16.gmra.mxu0 %v375
        %v609 = vpop.f32.mrf.mxu0
        %v610 = vadd.f32 0.0, %v609
        %v611 = vpop.f32.mrf.mxu0
        %v612 = vpop.f32.mrf.mxu0
        %v613 = vadd.f32 0.0, %v612
        %v614 = vpop.f32.mrf.mxu0
        %615 = vdwg.mxu0
        %616 = vmatprep.subr.bf16.mxu0 0
        %617 = vmatpush1.bf16.msra.mxu0 %v534
        %618 = vmatprep.subr.bf16.mxu0 0
        %619 = vmatpush1.bf16.msra.mxu0 %v533
        %620 = vmatprep.subr.bf16.mxu0 0
        %621 = vmatpush1.bf16.msra.mxu0 %v532
        %622 = vmatprep.subr.bf16.mxu0 0
        %623 = vmatpush1.bf16.msra.mxu0 %v531
        %624 = vmatprep.subr.bf16.mxu0 0
        %625 = vmatpush1.bf16.msra.mxu0 %v530
        %626 = vmatprep.subr.bf16.mxu0 0
        %627 = vmatpush1.bf16.msra.mxu0 %v529
        %628 = vmatprep.subr.bf16.mxu0 0
        %629 = vmatpush1.bf16.msra.mxu0 %v528
        %630 = vmatprep.subr.bf16.mxu0 0
        %631 = vmatpush1.bf16.msra.mxu0 %v527
        %632 = vmatprep.subr.bf16.mxu0 0
        %633 = vmatpush2.bf16.msra.mxu0 %v542
        %634 = vmatprep.subr.bf16.mxu0 0
        %635 = vmatpush2.bf16.msra.mxu0 %v541
        %636 = vmatprep.subr.bf16.mxu0 0
        %637 = vmatpush2.bf16.msra.mxu0 %v540
        %638 = vmatprep.subr.bf16.mxu0 0
        %639 = vmatpush2.bf16.msra.mxu0 %v539
        %640 = vmatprep.subr.bf16.mxu0 0
        %641 = vmatpush2.bf16.msra.mxu0 %v538
        %642 = vmatprep.subr.bf16.mxu0 0
        %643 = vmatpush2.bf16.msra.mxu0 %v537
        %644 = vmatprep.subr.bf16.mxu0 0
        %645 = vmatpush2.bf16.msra.mxu0 %v536
        %646 = vmatprep.subr.bf16.mxu0 0
        %647 = vmatpush2.bf16.msra.mxu0 %v535
        %648 = vmatprep.mubr.bf16.mxu0 %v378
        %649 = vmatmul.mubr.bf16.gmra.mxu0 %v377
        %v650 = vpop.f32.mrf.mxu0
        %v651 = vadd.f32 %v610, %v650
        %v652 = vpop.f32.mrf.mxu0
        %v653 = vpop.f32.mrf.mxu0
        %v654 = vadd.f32 %v613, %v653
        %v655 = vpop.f32.mrf.mxu0
        %656 = vdwg.mxu0
        %v657 = vadd.f32 %v293, %v651
        %v658 = vadd.f32 %v294, %v654
        %659 = vst [vmem:[#allocation2] sm:$0xff] %v657
        %660 = vst [vmem:[#allocation2 + $0x8] sm:$0xff] %v658
        %p661 = scmp.eq.s32.totalorder %s21, 6
        // Predicated region
        $region60: #{_lambda_.11} parent=50 // pred_check
          %p662 = pneg %p661
        $region61: #{_lambda_.11} parent=50 // pred_check_branch
          %664 = sbr.rel (%p662) target = $region63
        $region62: #{_lambda_.11} parent=50 // pred_region
          %v665 = vld [vmem:[#allocation2] sm:$0xff]
          %v666 = vld [vmem:[#allocation2 + $0x8] sm:$0xff]
          %667 = vst [vmem:[%s277] sm:$0xff] %v665
          %668 = vst [vmem:[%s277 + $0x8] sm:$0xff] %v666
        $region63: #{_lambda_.11} parent=50 // pred_fallthru
          _
        %s669 = smul.u32 2, %s20
        %p670 = scmp.lt.s32.totalorder %s669, 1
        %s671 = scalar_select %p670, %s669, 1
        %p672 = scmp.lt.s32.totalorder %s19, 0
        %s673 = scalar_select %p672, %s19, 0
        %s674 = sadd.s32 %s673, %s671
        %s675 = smul.addr %s674, 8
        %s676 = scalar_lea.vmem %s3, %s675
        // Predicated region
        $region64: #{_lambda_.11} parent=50 // pred_check
          %p677 = pneg %p135
        $region65: #{_lambda_.11} parent=50 // pred_check_branch
          %679 = sbr.rel (%p677) target = $region67
        $region66: #{_lambda_.11} parent=50 // pred_region
          %s680 = smul.u32 2, %s20
        $region67: #{_lambda_.11} parent=50 // pred_fallthru
          _
        // Predicated region
        $region68: #{_lambda_.11} parent=50 // pred_check
          %p681 = pneg %p135
        $region69: #{_lambda_.11} parent=50 // pred_check_branch
          %683 = sbr.rel (%p681) target = $region71
        $region70: #{_lambda_.11} parent=50 // pred_region
          %s684 = smul.u32 2, %s20
          %p685 = scmp.lt.s32.totalorder %s684, 1
          %s686 = scalar_select %p685, %s684, 1
          %p687 = scmp.lt.s32.totalorder %s19, 0
          %s688 = scalar_select %p687, %s19, 0
          %s689 = sadd.s32 %s688, %s686
          %s690 = smul.addr %s689, 8
          %s691 = scalar_lea.vmem %s3, %s690
        $region71: #{_lambda_.11} parent=50 // pred_fallthru
          _
      $region51: #{_lambda_.11} parent=5 // pred_fallthru
        _
      %p692 = scmp.le.s32.totalorder 2, %s9
      // Predicated region
      $region72: #{_lambda_.11} parent=5 // pred_check
        %p693 = pneg %p692
      $region73: #{_lambda_.11} parent=5 // pred_check_branch
        %695 = sbr.rel (%p693) target = $region75
      $region74: #{_lambda_.11} parent=5 // pred_region
        %s696 = ssub.s32 %s9, 2
      $region75: #{_lambda_.11} parent=5 // pred_fallthru
        _
    $region6: #{_lambda_.11} parent=1 // loop_footer
      %s13 = sadd.s32 1, %s9
    $region7: #{_lambda_.11} parent=1 // loop_footer_branch
      %8 = sbr.rel target = $region3
    $region8: #{_lambda_.11} parent=1 // loop_exit
      _

// kernel: _lambda_.10
$region0: #{_lambda_.10}
  #allocation0 [shape = 'u32[]', space=smem, size = 0x4, offset = 0x4, fixed_abs, tag = 'smem constant byte address 0x4 - core index']
  #allocation1 [shape = 'u32[144,128]{1,0:T(1,128)}', space=vmem, size = 0x12000, scoped, tag = 'internal scratch']
  #allocation2 [shape = 'f32[32,128]{1,0:T(8,128)}', space=vmem, size = 0x4000, scoped, tag = 'scratch operand']
  %s0 = inlined_call_operand.vmem [shape: bf16[32,1728], index: 0, kind: input, shape index: {}]
  %s1 = inlined_call_operand.vmem [shape: bf16[1728,384], index: 1, kind: input, shape index: {}]
  %s2 = inlined_call_operand.vmem [shape: f32[1,384], index: 2, kind: input, shape index: {}]
  %s3 = inlined_call_operand.vmem [shape: bf16[32,384], index: 3, kind: output, shape index: {}]
  %s4 = sld [smem:[#allocation0]]
  $region131: #{_lambda_.10} parent=0
    _
  %s6 = ssub.s32 1, %s4
  %s7 = scalar_select 0, %s6, %s4
  $region1: #{_lambda_.10} parent=0
    #allocation3 [shape = 'u8[884736]{0}', space=vmem, size = 0xd8000, scoped, tag = 'input window, operand 1']
    #allocation4 [shape = 'u8[16384]{0}', space=vmem, size = 0x4000, scoped, tag = 'output window, operand 0']
    loop: start=0, step=1, limit=5
    $region2: #{_lambda_.10} parent=1 // loop_pre_header
      _
    $region3: #{_lambda_.10} parent=1 // loop_header
      %s9 = sphi 0, %s13
      %p10 = scmp.ge.s32.totalorder %s9, 5
      %s16 = sphi 0, %s35
      %s17 = sphi 0, %s31
      %s18 = sphi 0, %s27
      %s19 = sphi 0, %s16
      %s20 = sphi 0, %s17
      %s21 = sphi 0, %s18
      %s22 = sphi 0, %s19
      %s23 = sphi 0, %s20
      %s24 = sphi 0, %s21
      %s40 = sphi 0, %s42
      %s43 = sphi 0, %s40
      %s44 = sphi 0, %s43
      %s60 = sphi 0, %s44
      %s68 = sphi 0, %s70
      %s71 = sphi 0, %s68
      %s72 = sphi 0, %s71
      %s88 = sphi 0, %s72
      %s94 = sphi 0, %s96
      %s97 = sphi 0, %s94
      %s98 = sphi 0, %s97
      %s114 = sphi 0, %s98
      %s122 = sphi 0, %s124
      %s125 = sphi 0, %s122
      %s126 = sphi 0, %s125
      %s142 = sphi 0, %s126
    $region4: #{_lambda_.10} parent=1 // loop_header_branch
      %12 = sbr.rel (%p10) target = $region8
    $region5: #{_lambda_.10} parent=1 // loop_body
      %s14 = ssub.s32 %s9, 1
      %s15 = ssub.s32 %s9, 2
      %s25 = sadd.s32 1, %s18
      %p26 = scmp.ge.s32.totalorder %s25, 1
      %s27 = scalar_select %p26, 0, %s25
      %s28 = sadd.s32 1, %s17
      %s29 = scalar_select %p26, %s28, %s17
      %p30 = scmp.ge.s32.totalorder %s29, 1
      %s31 = scalar_select %p30, 0, %s29
      %s32 = sadd.s32 1, %s16
      %s33 = scalar_select %p30, %s32, %s16
      %p34 = scmp.ge.s32.totalorder %s33, 3
      %s35 = scalar_select %p34, 0, %s33
      %s36 = ssub.s32 %s17, %s31
      %s37 = ssub.s32 %s18, %s27
      %s38 = sor.u32 %s36, %s37
      %p39 = scmp.eq.s32.totalorder %s38, 0
      %s41 = sadd.s32 %s40, 1
      %s42 = scalar_select %p39, %s40, %s41
      %p45 = pneg %p39
      %p46 = scmp.eq.s32.totalorder %s9, 2
      %p47 = por %p45, %p46
      %p48 = scmp.ne.s32.totalorder %s40, %s43
      %p49 = scmp.eq.s32.totalorder %s9, 0
      %p50 = por %p48, %p49
      %p51 = scmp.ne.s32.totalorder %s40, %s43
      %p52 = scmp.eq.s32.totalorder %s14, 2
      %p53 = por %p51, %p52
      %p54 = scmp.ne.s32.totalorder %s43, %s44
      %p55 = scmp.eq.s32.totalorder %s14, 0
      %p56 = por %p54, %p55
      %p57 = scmp.ne.s32.totalorder %s43, %s44
      %p58 = scmp.eq.s32.totalorder %s15, 2
      %p59 = por %p57, %p58
      %p61 = scmp.ne.s32.totalorder %s44, %s60
      %p62 = scmp.eq.s32.totalorder %s15, 0
      %p63 = por %p61, %p62
      %s64 = ssub.s32 %s18, %s27
      %s65 = ssub.s32 %s16, %s35
      %s66 = sor.u32 %s64, %s65
      %p67 = scmp.eq.s32.totalorder %s66, 0
      %s69 = sadd.s32 %s68, 1
      %s70 = scalar_select %p67, %s68, %s69
      %p73 = pneg %p67
      %p74 = scmp.eq.s32.totalorder %s9, 2
      %p75 = por %p73, %p74
      %p76 = scmp.ne.s32.totalorder %s68, %s71
      %p77 = scmp.eq.s32.totalorder %s9, 0
      %p78 = por %p76, %p77
      %p79 = scmp.ne.s32.totalorder %s68, %s71
      %p80 = scmp.eq.s32.totalorder %s14, 2
      %p81 = por %p79, %p80
      %p82 = scmp.ne.s32.totalorder %s71, %s72
      %p83 = scmp.eq.s32.totalorder %s14, 0
      %p84 = por %p82, %p83
      %p85 = scmp.ne.s32.totalorder %s71, %s72
      %p86 = scmp.eq.s32.totalorder %s15, 2
      %p87 = por %p85, %p86
      %p89 = scmp.ne.s32.totalorder %s72, %s88
      %p90 = scmp.eq.s32.totalorder %s15, 0
      %p91 = por %p89, %p90
      %s92 = ssub.s32 %s16, %s35
      %p93 = scmp.eq.s32.totalorder %s92, 0
      %s95 = sadd.s32 %s94, 1
      %s96 = scalar_select %p93, %s94, %s95
      %p99 = pneg %p93
      %p100 = scmp.eq.s32.totalorder %s9, 2
      %p101 = por %p99, %p100
      %p102 = scmp.ne.s32.totalorder %s94, %s97
      %p103 = scmp.eq.s32.totalorder %s9, 0
      %p104 = por %p102, %p103
      %p105 = scmp.ne.s32.totalorder %s94, %s97
      %p106 = scmp.eq.s32.totalorder %s14, 2
      %p107 = por %p105, %p106
      %p108 = scmp.ne.s32.totalorder %s97, %s98
      %p109 = scmp.eq.s32.totalorder %s14, 0
      %p110 = por %p108, %p109
      %p111 = scmp.ne.s32.totalorder %s97, %s98
      %p112 = scmp.eq.s32.totalorder %s15, 2
      %p113 = por %p111, %p112
      %p115 = scmp.ne.s32.totalorder %s98, %s114
      %p116 = scmp.eq.s32.totalorder %s15, 0
      %p117 = por %p115, %p116
      %s118 = ssub.s32 %s17, %s31
      %s119 = ssub.s32 %s16, %s35
      %s120 = sor.u32 %s118, %s119
      %p121 = scmp.eq.s32.totalorder %s120, 0
      %s123 = sadd.s32 %s122, 1
      %s124 = scalar_select %p121, %s122, %s123
      %p127 = pneg %p121
      %p128 = scmp.eq.s32.totalorder %s9, 2
      %p129 = por %p127, %p128
      %p130 = scmp.ne.s32.totalorder %s122, %s125
      %p131 = scmp.eq.s32.totalorder %s9, 0
      %p132 = por %p130, %p131
      %p133 = scmp.ne.s32.totalorder %s122, %s125
      %p134 = scmp.eq.s32.totalorder %s14, 2
      %p135 = por %p133, %p134
      %p136 = scmp.ne.s32.totalorder %s125, %s126
      %p137 = scmp.eq.s32.totalorder %s14, 0
      %p138 = por %p136, %p137
      %p139 = scmp.ne.s32.totalorder %s125, %s126
      %p140 = scmp.eq.s32.totalorder %s15, 2
      %p141 = por %p139, %p140
      %p143 = scmp.ne.s32.totalorder %s126, %s142
      %p144 = scmp.eq.s32.totalorder %s15, 0
      %p145 = por %p143, %p144
      %p146 = scmp.le.s32.totalorder 1, %s9
      %p147 = scmp.lt.s32.totalorder %s9, 4
      %p148 = pnand %p146, %p147
      %p149 = pneg %p148
      // Predicated region
      $region9: #{_lambda_.10} parent=5 // pred_check
        _
      $region10: #{_lambda_.10} parent=5 // pred_check_branch
        %151 = sbr.rel (%p148) target = $region12
      $region11: #{_lambda_.10} parent=5 // pred_region
        %s152 = ssub.s32 %s9, 1
        // Predicated region
        $region13: #{_lambda_.10} parent=11 // pred_check
          %p153 = pneg %p56
        $region14: #{_lambda_.10} parent=11 // pred_check_branch
          %155 = sbr.rel (%p153) target = $region16
        $region15: #{_lambda_.10} parent=11 // pred_region
          %s156 = smul.u32 4, %s20
          %s157 = smul.u32 14, %s21
          %p158 = scmp.lt.s32.totalorder %s156, 3
          %s159 = scalar_select %p158, %s156, 3
          %p160 = scmp.lt.s32.totalorder %s157, 13
          %s161 = scalar_select %p160, %s157, 13
          %s162 = smul.addr %s159, 14
          %s163 = sadd.s32 %s161, %s162
          %s164 = smul.addr %s163, 4
          %s165 = scalar_lea.vmem %s0, %s164
          %s166 = smul.u32 4, %s20
          %s167 = smul.u32 14, %s21
        $region16: #{_lambda_.10} parent=11 // pred_fallthru
          _
      $region12: #{_lambda_.10} parent=5 // pred_fallthru
        _
      %p168 = scmp.lt.s32.totalorder %s9, 3
      // Predicated region
      $region17: #{_lambda_.10} parent=5 // pred_check
        %p169 = pneg %p168
      $region18: #{_lambda_.10} parent=5 // pred_check_branch
        %171 = sbr.rel (%p169) target = $region20
      $region19: #{_lambda_.10} parent=5 // pred_region
        // Predicated region
        $region21: #{_lambda_.10} parent=19 // pred_check
          %p172 = pneg %p78
        $region22: #{_lambda_.10} parent=19 // pred_check_branch
          %174 = sbr.rel (%p172) target = $region24
        $region23: #{_lambda_.10} parent=19 // pred_region
          %s175 = sand.u32 %s68, 1
          %s176 = sand.u32 %s68, 1
          %s177 = smul.addr %s176, 864
          %s178 = scalar_lea.vmem [#allocation3], %s177
          %s179 = smul.u32 216, %s18
          %s180 = smul.addr %s179, 3
          %s181 = sadd.s32 %s16, %s180
          %s182 = smul.addr %s181, 4
          %s183 = scalar_lea.vmem %s1, %s182
          // Predicated region
          $region25: #{_lambda_.10} parent=23 // pred_check
            _
          $region26: #{_lambda_.10} parent=23 // pred_check_branch
            %185 = sbr.rel (0) target = $region28
          $region27: #{_lambda_.10} parent=23 // pred_region
            // Predicated region
            $region29: #{_lambda_.10} parent=27 // pred_check
              _
            $region30: #{_lambda_.10} parent=27 // pred_check_branch
              %187 = sbr.rel target = $region32
            $region31: #{_lambda_.10} parent=27 // pred_region
              // Predicated region
              $region44: #{_lambda_.10} parent=31 // pred_check
                _
              $region45: #{_lambda_.10} parent=31 // pred_check_branch
                %633 = sbr.rel (0) target = $region47
              $region46: #{_lambda_.10} parent=31 // pred_region
                loop: start=0, step=1, limit=1
                $region48: #{_lambda_.10} parent=46 // loop_pre_header
                  _
                $region49: #{_lambda_.10} parent=46 // loop_header
                  %s635 = sphi 0, %s639
                  %p636 = scmp.ge.s32.totalorder %s635, 1
                  %s640 = sphi %s183, %s183
                  %s641 = sphi %s178, %s178
                $region50: #{_lambda_.10} parent=46 // loop_header_branch
                  %638 = sbr.rel (%p636) target = $region54
                $region51: #{_lambda_.10} parent=46 // loop_body
                  _
                $region52: #{_lambda_.10} parent=46 // loop_footer
                  %s639 = sadd.s32 1, %s635
                $region53: #{_lambda_.10} parent=46 // loop_footer_branch
                  %634 = sbr.rel target = $region49
                $region54: #{_lambda_.10} parent=46 // loop_exit
                  _
                %s643 = ssub.s32 16, 1
                loop: start=0, step=1, limit=1
                $region55: #{_lambda_.10} parent=46 // loop_pre_header
                  _
                $region56: #{_lambda_.10} parent=46 // loop_header
                  %s645 = sphi 0, %s649
                  %p646 = scmp.ge.s32.totalorder %s645, 1
                  %s650 = sphi %s183, %s183
                  %s651 = sphi %s178, %s178
                $region57: #{_lambda_.10} parent=46 // loop_header_branch
                  %648 = sbr.rel (%p646) target = $region61
                $region58: #{_lambda_.10} parent=46 // loop_body
                  %v652 = vld [vmem:[%s650] sm:%s643]
                  %653 = vst [vmem:[%s651] sm:%s643] %v652
                  %v654 = vld [vmem:[%s650 + $0xc] sm:%s643]
                  %655 = vst [vmem:[%s651 + $0x4] sm:%s643] %v654
                  %v656 = vld [vmem:[%s650 + $0x18] sm:%s643]
                  %657 = vst [vmem:[%s651 + $0x8] sm:%s643] %v656
                  %v658 = vld [vmem:[%s650 + $0x24] sm:%s643]
                  %659 = vst [vmem:[%s651 + $0xc] sm:%s643] %v658
                  %v660 = vld [vmem:[%s650 + $0x30] sm:%s643]
                  %661 = vst [vmem:[%s651 + $0x10] sm:%s643] %v660
                  %v662 = vld [vmem:[%s650 + $0x3c] sm:%s643]
                  %663 = vst [vmem:[%s651 + $0x14] sm:%s643] %v662
                  %v664 = vld [vmem:[%s650 + $0x48] sm:%s643]
                  %665 = vst [vmem:[%s651 + $0x18] sm:%s643] %v664
                  %v666 = vld [vmem:[%s650 + $0x54] sm:%s643]
                  %667 = vst [vmem:[%s651 + $0x1c] sm:%s643] %v666
                  %v668 = vld [vmem:[%s650 + $0x60] sm:%s643]
                  %669 = vst [vmem:[%s651 + $0x20] sm:%s643] %v668
                  %v670 = vld [vmem:[%s650 + $0x6c] sm:%s643]
                  %671 = vst [vmem:[%s651 + $0x24] sm:%s643] %v670
                  %v672 = vld [vmem:[%s650 + $0x78] sm:%s643]
                  %673 = vst [vmem:[%s651 + $0x28] sm:%s643] %v672
                  %v674 = vld [vmem:[%s650 + $0x84] sm:%s643]
                  %675 = vst [vmem:[%s651 + $0x2c] sm:%s643] %v674
                  %v676 = vld [vmem:[%s650 + $0x90] sm:%s643]
                  %677 = vst [vmem:[%s651 + $0x30] sm:%s643] %v676
                  %v678 = vld [vmem:[%s650 + $0x9c] sm:%s643]
                  %679 = vst [vmem:[%s651 + $0x34] sm:%s643] %v678
                  %v680 = vld [vmem:[%s650 + $0xa8] sm:%s643]
                  %681 = vst [vmem:[%s651 + $0x38] sm:%s643] %v680
                  %v682 = vld [vmem:[%s650 + $0xb4] sm:%s643]
                  %683 = vst [vmem:[%s651 + $0x3c] sm:%s643] %v682
                  %v684 = vld [vmem:[%s650 + $0xc0] sm:%s643]
                  %685 = vst [vmem:[%s651 + $0x40] sm:%s643] %v684
                  %v686 = vld [vmem:[%s650 + $0xcc] sm:%s643]
                  %687 = vst [vmem:[%s651 + $0x44] sm:%s643] %v686
                  %v688 = vld [vmem:[%s650 + $0xd8] sm:%s643]
                  %689 = vst [vmem:[%s651 + $0x48] sm:%s643] %v688
                  %v690 = vld [vmem:[%s650 + $0xe4] sm:%s643]
                  %691 = vst [vmem:[%s651 + $0x4c] sm:%s643] %v690
                  %v692 = vld [vmem:[%s650 + $0xf0] sm:%s643]
                  %693 = vst [vmem:[%s651 + $0x50] sm:%s643] %v692
                  %v694 = vld [vmem:[%s650 + $0xfc] sm:%s643]
                  %695 = vst [vmem:[%s651 + $0x54] sm:%s643] %v694
                  %v696 = vld [vmem:[%s650 + $0x108] sm:%s643]
                  %697 = vst [vmem:[%s651 + $0x58] sm:%s643] %v696
                  %v698 = vld [vmem:[%s650 + $0x114] sm:%s643]
                  %699 = vst [vmem:[%s651 + $0x5c] sm:%s643] %v698
                  %v700 = vld [vmem:[%s650 + $0x120] sm:%s643]
                  %701 = vst [vmem:[%s651 + $0x60] sm:%s643] %v700
                  %v702 = vld [vmem:[%s650 + $0x12c] sm:%s643]
                  %703 = vst [vmem:[%s651 + $0x64] sm:%s643] %v702
                  %v704 = vld [vmem:[%s650 + $0x138] sm:%s643]
                  %705 = vst [vmem:[%s651 + $0x68] sm:%s643] %v704
                  %v706 = vld [vmem:[%s650 + $0x144] sm:%s643]
                  %707 = vst [vmem:[%s651 + $0x6c] sm:%s643] %v706
                  %v708 = vld [vmem:[%s650 + $0x150] sm:%s643]
                  %709 = vst [vmem:[%s651 + $0x70] sm:%s643] %v708
                  %v710 = vld [vmem:[%s650 + $0x15c] sm:%s643]
                  %711 = vst [vmem:[%s651 + $0x74] sm:%s643] %v710
                  %v712 = vld [vmem:[%s650 + $0x168] sm:%s643]
                  %713 = vst [vmem:[%s651 + $0x78] sm:%s643] %v712
                  %v714 = vld [vmem:[%s650 + $0x174] sm:%s643]
                  %715 = vst [vmem:[%s651 + $0x7c] sm:%s643] %v714
                  %v716 = vld [vmem:[%s650 + $0x180] sm:%s643]
                  %717 = vst [vmem:[%s651 + $0x80] sm:%s643] %v716
                  %v718 = vld [vmem:[%s650 + $0x18c] sm:%s643]
                  %719 = vst [vmem:[%s651 + $0x84] sm:%s643] %v718
                  %v720 = vld [vmem:[%s650 + $0x198] sm:%s643]
                  %721 = vst [vmem:[%s651 + $0x88] sm:%s643] %v720
                  %v722 = vld [vmem:[%s650 + $0x1a4] sm:%s643]
                  %723 = vst [vmem:[%s651 + $0x8c] sm:%s643] %v722
                  %v724 = vld [vmem:[%s650 + $0x1b0] sm:%s643]
                  %725 = vst [vmem:[%s651 + $0x90] sm:%s643] %v724
                  %v726 = vld [vmem:[%s650 + $0x1bc] sm:%s643]
                  %727 = vst [vmem:[%s651 + $0x94] sm:%s643] %v726
                  %v728 = vld [vmem:[%s650 + $0x1c8] sm:%s643]
                  %729 = vst [vmem:[%s651 + $0x98] sm:%s643] %v728
                  %v730 = vld [vmem:[%s650 + $0x1d4] sm:%s643]
                  %731 = vst [vmem:[%s651 + $0x9c] sm:%s643] %v730
                  %v732 = vld [vmem:[%s650 + $0x1e0] sm:%s643]
                  %733 = vst [vmem:[%s651 + $0xa0] sm:%s643] %v732
                  %v734 = vld [vmem:[%s650 + $0x1ec] sm:%s643]
                  %735 = vst [vmem:[%s651 + $0xa4] sm:%s643] %v734
                  %v736 = vld [vmem:[%s650 + $0x1f8] sm:%s643]
                  %737 = vst [vmem:[%s651 + $0xa8] sm:%s643] %v736
                  %v738 = vld [vmem:[%s650 + $0x204] sm:%s643]
                  %739 = vst [vmem:[%s651 + $0xac] sm:%s643] %v738
                  %v740 = vld [vmem:[%s650 + $0x210] sm:%s643]
                  %741 = vst [vmem:[%s651 + $0xb0] sm:%s643] %v740
                  %v742 = vld [vmem:[%s650 + $0x21c] sm:%s643]
                  %743 = vst [vmem:[%s651 + $0xb4] sm:%s643] %v742
                  %v744 = vld [vmem:[%s650 + $0x228] sm:%s643]
                  %745 = vst [vmem:[%s651 + $0xb8] sm:%s643] %v744
                  %v746 = vld [vmem:[%s650 + $0x234] sm:%s643]
                  %747 = vst [vmem:[%s651 + $0xbc] sm:%s643] %v746
                  %v748 = vld [vmem:[%s650 + $0x240] sm:%s643]
                  %749 = vst [vmem:[%s651 + $0xc0] sm:%s643] %v748
                  %v750 = vld [vmem:[%s650 + $0x24c] sm:%s643]
                  %751 = vst [vmem:[%s651 + $0xc4] sm:%s643] %v750
                  %v752 = vld [vmem:[%s650 + $0x258] sm:%s643]
                  %753 = vst [vmem:[%s651 + $0xc8] sm:%s643] %v752
                  %v754 = vld [vmem:[%s650 + $0x264] sm:%s643]
                  %755 = vst [vmem:[%s651 + $0xcc] sm:%s643] %v754
                  %v756 = vld [vmem:[%s650 + $0x270] sm:%s643]
                  %757 = vst [vmem:[%s651 + $0xd0] sm:%s643] %v756
                  %v758 = vld [vmem:[%s650 + $0x27c] sm:%s643]
                  %759 = vst [vmem:[%s651 + $0xd4] sm:%s643] %v758
                  %v760 = vld [vmem:[%s650 + $0x288] sm:%s643]
                  %761 = vst [vmem:[%s651 + $0xd8] sm:%s643] %v760
                  %v762 = vld [vmem:[%s650 + $0x294] sm:%s643]
                  %763 = vst [vmem:[%s651 + $0xdc] sm:%s643] %v762
                  %v764 = vld [vmem:[%s650 + $0x2a0] sm:%s643]
                  %765 = vst [vmem:[%s651 + $0xe0] sm:%s643] %v764
                  %v766 = vld [vmem:[%s650 + $0x2ac] sm:%s643]
                  %767 = vst [vmem:[%s651 + $0xe4] sm:%s643] %v766
                  %v768 = vld [vmem:[%s650 + $0x2b8] sm:%s643]
                  %769 = vst [vmem:[%s651 + $0xe8] sm:%s643] %v768
                  %v770 = vld [vmem:[%s650 + $0x2c4] sm:%s643]
                  %771 = vst [vmem:[%s651 + $0xec] sm:%s643] %v770
                  %v772 = vld [vmem:[%s650 + $0x2d0] sm:%s643]
                  %773 = vst [vmem:[%s651 + $0xf0] sm:%s643] %v772
                  %v774 = vld [vmem:[%s650 + $0x2dc] sm:%s643]
                  %775 = vst [vmem:[%s651 + $0xf4] sm:%s643] %v774
                  %v776 = vld [vmem:[%s650 + $0x2e8] sm:%s643]
                  %777 = vst [vmem:[%s651 + $0xf8] sm:%s643] %v776
                  %v778 = vld [vmem:[%s650 + $0x2f4] sm:%s643]
                  %779 = vst [vmem:[%s651 + $0xfc] sm:%s643] %v778
                  %v780 = vld [vmem:[%s650 + $0x300] sm:%s643]
                  %781 = vst [vmem:[%s651 + $0x100] sm:%s643] %v780
                  %v782 = vld [vmem:[%s650 + $0x30c] sm:%s643]
                  %783 = vst [vmem:[%s651 + $0x104] sm:%s643] %v782
                  %v784 = vld [vmem:[%s650 + $0x318] sm:%s643]
                  %785 = vst [vmem:[%s651 + $0x108] sm:%s643] %v784
                  %v786 = vld [vmem:[%s650 + $0x324] sm:%s643]
                  %787 = vst [vmem:[%s651 + $0x10c] sm:%s643] %v786
                  %v788 = vld [vmem:[%s650 + $0x330] sm:%s643]
                  %789 = vst [vmem:[%s651 + $0x110] sm:%s643] %v788
                  %v790 = vld [vmem:[%s650 + $0x33c] sm:%s643]
                  %791 = vst [vmem:[%s651 + $0x114] sm:%s643] %v790
                  %v792 = vld [vmem:[%s650 + $0x348] sm:%s643]
                  %793 = vst [vmem:[%s651 + $0x118] sm:%s643] %v792
                  %v794 = vld [vmem:[%s650 + $0x354] sm:%s643]
                  %795 = vst [vmem:[%s651 + $0x11c] sm:%s643] %v794
                  %v796 = vld [vmem:[%s650 + $0x360] sm:%s643]
                  %797 = vst [vmem:[%s651 + $0x120] sm:%s643] %v796
                  %v798 = vld [vmem:[%s650 + $0x36c] sm:%s643]
                  %799 = vst [vmem:[%s651 + $0x124] sm:%s643] %v798
                  %v800 = vld [vmem:[%s650 + $0x378] sm:%s643]
                  %801 = vst [vmem:[%s651 + $0x128] sm:%s643] %v800
                  %v802 = vld [vmem:[%s650 + $0x384] sm:%s643]
                  %803 = vst [vmem:[%s651 + $0x12c] sm:%s643] %v802
                  %v804 = vld [vmem:[%s650 + $0x390] sm:%s643]
                  %805 = vst [vmem:[%s651 + $0x130] sm:%s643] %v804
                  %v806 = vld [vmem:[%s650 + $0x39c] sm:%s643]
                  %807 = vst [vmem:[%s651 + $0x134] sm:%s643] %v806
                  %v808 = vld [vmem:[%s650 + $0x3a8] sm:%s643]
                  %809 = vst [vmem:[%s651 + $0x138] sm:%s643] %v808
                  %v810 = vld [vmem:[%s650 + $0x3b4] sm:%s643]
                  %811 = vst [vmem:[%s651 + $0x13c] sm:%s643] %v810
                  %v812 = vld [vmem:[%s650 + $0x3c0] sm:%s643]
                  %813 = vst [vmem:[%s651 + $0x140] sm:%s643] %v812
                  %v814 = vld [vmem:[%s650 + $0x3cc] sm:%s643]
                  %815 = vst [vmem:[%s651 + $0x144] sm:%s643] %v814
                  %v816 = vld [vmem:[%s650 + $0x3d8] sm:%s643]
                  %817 = vst [vmem:[%s651 + $0x148] sm:%s643] %v816
                  %v818 = vld [vmem:[%s650 + $0x3e4] sm:%s643]
                  %819 = vst [vmem:[%s651 + $0x14c] sm:%s643] %v818
                  %v820 = vld [vmem:[%s650 + $0x3f0] sm:%s643]
                  %821 = vst [vmem:[%s651 + $0x150] sm:%s643] %v820
                  %v822 = vld [vmem:[%s650 + $0x3fc] sm:%s643]
                  %823 = vst [vmem:[%s651 + $0x154] sm:%s643] %v822
                  %v824 = vld [vmem:[%s650 + $0x408] sm:%s643]
                  %825 = vst [vmem:[%s651 + $0x158] sm:%s643] %v824
                  %v826 = vld [vmem:[%s650 + $0x414] sm:%s643]
                  %827 = vst [vmem:[%s651 + $0x15c] sm:%s643] %v826
                  %v828 = vld [vmem:[%s650 + $0x420] sm:%s643]
                  %829 = vst [vmem:[%s651 + $0x160] sm:%s643] %v828
                  %v830 = vld [vmem:[%s650 + $0x42c] sm:%s643]
                  %831 = vst [vmem:[%s651 + $0x164] sm:%s643] %v830
                  %v832 = vld [vmem:[%s650 + $0x438] sm:%s643]
                  %833 = vst [vmem:[%s651 + $0x168] sm:%s643] %v832
                  %v834 = vld [vmem:[%s650 + $0x444] sm:%s643]
                  %835 = vst [vmem:[%s651 + $0x16c] sm:%s643] %v834
                  %v836 = vld [vmem:[%s650 + $0x450] sm:%s643]
                  %837 = vst [vmem:[%s651 + $0x170] sm:%s643] %v836
                  %v838 = vld [vmem:[%s650 + $0x45c] sm:%s643]
                  %839 = vst [vmem:[%s651 + $0x174] sm:%s643] %v838
                  %v840 = vld [vmem:[%s650 + $0x468] sm:%s643]
                  %841 = vst [vmem:[%s651 + $0x178] sm:%s643] %v840
                  %v842 = vld [vmem:[%s650 + $0x474] sm:%s643]
                  %843 = vst [vmem:[%s651 + $0x17c] sm:%s643] %v842
                  %v844 = vld [vmem:[%s650 + $0x480] sm:%s643]
                  %845 = vst [vmem:[%s651 + $0x180] sm:%s643] %v844
                  %v846 = vld [vmem:[%s650 + $0x48c] sm:%s643]
                  %847 = vst [vmem:[%s651 + $0x184] sm:%s643] %v846
                  %v848 = vld [vmem:[%s650 + $0x498] sm:%s643]
                  %849 = vst [vmem:[%s651 + $0x188] sm:%s643] %v848
                  %v850 = vld [vmem:[%s650 + $0x4a4] sm:%s643]
                  %851 = vst [vmem:[%s651 + $0x18c] sm:%s643] %v850
                  %v852 = vld [vmem:[%s650 + $0x4b0] sm:%s643]
                  %853 = vst [vmem:[%s651 + $0x190] sm:%s643] %v852
                  %v854 = vld [vmem:[%s650 + $0x4bc] sm:%s643]
                  %855 = vst [vmem:[%s651 + $0x194] sm:%s643] %v854
                  %v856 = vld [vmem:[%s650 + $0x4c8] sm:%s643]
                  %857 = vst [vmem:[%s651 + $0x198] sm:%s643] %v856
                  %v858 = vld [vmem:[%s650 + $0x4d4] sm:%s643]
                  %859 = vst [vmem:[%s651 + $0x19c] sm:%s643] %v858
                  %v860 = vld [vmem:[%s650 + $0x4e0] sm:%s643]
                  %861 = vst [vmem:[%s651 + $0x1a0] sm:%s643] %v860
                  %v862 = vld [vmem:[%s650 + $0x4ec] sm:%s643]
                  %863 = vst [vmem:[%s651 + $0x1a4] sm:%s643] %v862
                  %v864 = vld [vmem:[%s650 + $0x4f8] sm:%s643]
                  %865 = vst [vmem:[%s651 + $0x1a8] sm:%s643] %v864
                  %v866 = vld [vmem:[%s650 + $0x504] sm:%s643]
                  %867 = vst [vmem:[%s651 + $0x1ac] sm:%s643] %v866
                  %v868 = vld [vmem:[%s650 + $0x510] sm:%s643]
                  %869 = vst [vmem:[%s651 + $0x1b0] sm:%s643] %v868
                  %v870 = vld [vmem:[%s650 + $0x51c] sm:%s643]
                  %871 = vst [vmem:[%s651 + $0x1b4] sm:%s643] %v870
                  %v872 = vld [vmem:[%s650 + $0x528] sm:%s643]
                  %873 = vst [vmem:[%s651 + $0x1b8] sm:%s643] %v872
                  %v874 = vld [vmem:[%s650 + $0x534] sm:%s643]
                  %875 = vst [vmem:[%s651 + $0x1bc] sm:%s643] %v874
                  %v876 = vld [vmem:[%s650 + $0x540] sm:%s643]
                  %877 = vst [vmem:[%s651 + $0x1c0] sm:%s643] %v876
                  %v878 = vld [vmem:[%s650 + $0x54c] sm:%s643]
                  %879 = vst [vmem:[%s651 + $0x1c4] sm:%s643] %v878
                  %v880 = vld [vmem:[%s650 + $0x558] sm:%s643]
                  %881 = vst [vmem:[%s651 + $0x1c8] sm:%s643] %v880
                  %v882 = vld [vmem:[%s650 + $0x564] sm:%s643]
                  %883 = vst [vmem:[%s651 + $0x1cc] sm:%s643] %v882
                  %v884 = vld [vmem:[%s650 + $0x570] sm:%s643]
                  %885 = vst [vmem:[%s651 + $0x1d0] sm:%s643] %v884
                  %v886 = vld [vmem:[%s650 + $0x57c] sm:%s643]
                  %887 = vst [vmem:[%s651 + $0x1d4] sm:%s643] %v886
                  %v888 = vld [vmem:[%s650 + $0x588] sm:%s643]
                  %889 = vst [vmem:[%s651 + $0x1d8] sm:%s643] %v888
                  %v890 = vld [vmem:[%s650 + $0x594] sm:%s643]
                  %891 = vst [vmem:[%s651 + $0x1dc] sm:%s643] %v890
                  %v892 = vld [vmem:[%s650 + $0x5a0] sm:%s643]
                  %893 = vst [vmem:[%s651 + $0x1e0] sm:%s643] %v892
                  %v894 = vld [vmem:[%s650 + $0x5ac] sm:%s643]
                  %895 = vst [vmem:[%s651 + $0x1e4] sm:%s643] %v894
                  %v896 = vld [vmem:[%s650 + $0x5b8] sm:%s643]
                  %897 = vst [vmem:[%s651 + $0x1e8] sm:%s643] %v896
                  %v898 = vld [vmem:[%s650 + $0x5c4] sm:%s643]
                  %899 = vst [vmem:[%s651 + $0x1ec] sm:%s643] %v898
                  %v900 = vld [vmem:[%s650 + $0x5d0] sm:%s643]
                  %901 = vst [vmem:[%s651 + $0x1f0] sm:%s643] %v900
                  %v902 = vld [vmem:[%s650 + $0x5dc] sm:%s643]
                  %903 = vst [vmem:[%s651 + $0x1f4] sm:%s643] %v902
                  %v904 = vld [vmem:[%s650 + $0x5e8] sm:%s643]
                  %905 = vst [vmem:[%s651 + $0x1f8] sm:%s643] %v904
                  %v906 = vld [vmem:[%s650 + $0x5f4] sm:%s643]
                  %907 = vst [vmem:[%s651 + $0x1fc] sm:%s643] %v906
                  %v908 = vld [vmem:[%s650 + $0x600] sm:%s643]
                  %909 = vst [vmem:[%s651 + $0x200] sm:%s643] %v908
                  %v910 = vld [vmem:[%s650 + $0x60c] sm:%s643]
                  %911 = vst [vmem:[%s651 + $0x204] sm:%s643] %v910
                  %v912 = vld [vmem:[%s650 + $0x618] sm:%s643]
                  %913 = vst [vmem:[%s651 + $0x208] sm:%s643] %v912
                  %v914 = vld [vmem:[%s650 + $0x624] sm:%s643]
                  %915 = vst [vmem:[%s651 + $0x20c] sm:%s643] %v914
                  %v916 = vld [vmem:[%s650 + $0x630] sm:%s643]
                  %917 = vst [vmem:[%s651 + $0x210] sm:%s643] %v916
                  %v918 = vld [vmem:[%s650 + $0x63c] sm:%s643]
                  %919 = vst [vmem:[%s651 + $0x214] sm:%s643] %v918
                  %v920 = vld [vmem:[%s650 + $0x648] sm:%s643]
                  %921 = vst [vmem:[%s651 + $0x218] sm:%s643] %v920
                  %v922 = vld [vmem:[%s650 + $0x654] sm:%s643]
                  %923 = vst [vmem:[%s651 + $0x21c] sm:%s643] %v922
                  %v924 = vld [vmem:[%s650 + $0x660] sm:%s643]
                  %925 = vst [vmem:[%s651 + $0x220] sm:%s643] %v924
                  %v926 = vld [vmem:[%s650 + $0x66c] sm:%s643]
                  %927 = vst [vmem:[%s651 + $0x224] sm:%s643] %v926
                  %v928 = vld [vmem:[%s650 + $0x678] sm:%s643]
                  %929 = vst [vmem:[%s651 + $0x228] sm:%s643] %v928
                  %v930 = vld [vmem:[%s650 + $0x684] sm:%s643]
                  %931 = vst [vmem:[%s651 + $0x22c] sm:%s643] %v930
                  %v932 = vld [vmem:[%s650 + $0x690] sm:%s643]
                  %933 = vst [vmem:[%s651 + $0x230] sm:%s643] %v932
                  %v934 = vld [vmem:[%s650 + $0x69c] sm:%s643]
                  %935 = vst [vmem:[%s651 + $0x234] sm:%s643] %v934
                  %v936 = vld [vmem:[%s650 + $0x6a8] sm:%s643]
                  %937 = vst [vmem:[%s651 + $0x238] sm:%s643] %v936
                  %v938 = vld [vmem:[%s650 + $0x6b4] sm:%s643]
                  %939 = vst [vmem:[%s651 + $0x23c] sm:%s643] %v938
                  %v940 = vld [vmem:[%s650 + $0x6c0] sm:%s643]
                  %941 = vst [vmem:[%s651 + $0x240] sm:%s643] %v940
                  %v942 = vld [vmem:[%s650 + $0x6cc] sm:%s643]
                  %943 = vst [vmem:[%s651 + $0x244] sm:%s643] %v942
                  %v944 = vld [vmem:[%s650 + $0x6d8] sm:%s643]
                  %945 = vst [vmem:[%s651 + $0x248] sm:%s643] %v944
                  %v946 = vld [vmem:[%s650 + $0x6e4] sm:%s643]
                  %947 = vst [vmem:[%s651 + $0x24c] sm:%s643] %v946
                  %v948 = vld [vmem:[%s650 + $0x6f0] sm:%s643]
                  %949 = vst [vmem:[%s651 + $0x250] sm:%s643] %v948
                  %v950 = vld [vmem:[%s650 + $0x6fc] sm:%s643]
                  %951 = vst [vmem:[%s651 + $0x254] sm:%s643] %v950
                  %v952 = vld [vmem:[%s650 + $0x708] sm:%s643]
                  %953 = vst [vmem:[%s651 + $0x258] sm:%s643] %v952
                  %v954 = vld [vmem:[%s650 + $0x714] sm:%s643]
                  %955 = vst [vmem:[%s651 + $0x25c] sm:%s643] %v954
                  %v956 = vld [vmem:[%s650 + $0x720] sm:%s643]
                  %957 = vst [vmem:[%s651 + $0x260] sm:%s643] %v956
                  %v958 = vld [vmem:[%s650 + $0x72c] sm:%s643]
                  %959 = vst [vmem:[%s651 + $0x264] sm:%s643] %v958
                  %v960 = vld [vmem:[%s650 + $0x738] sm:%s643]
                  %961 = vst [vmem:[%s651 + $0x268] sm:%s643] %v960
                  %v962 = vld [vmem:[%s650 + $0x744] sm:%s643]
                  %963 = vst [vmem:[%s651 + $0x26c] sm:%s643] %v962
                  %v964 = vld [vmem:[%s650 + $0x750] sm:%s643]
                  %965 = vst [vmem:[%s651 + $0x270] sm:%s643] %v964
                  %v966 = vld [vmem:[%s650 + $0x75c] sm:%s643]
                  %967 = vst [vmem:[%s651 + $0x274] sm:%s643] %v966
                  %v968 = vld [vmem:[%s650 + $0x768] sm:%s643]
                  %969 = vst [vmem:[%s651 + $0x278] sm:%s643] %v968
                  %v970 = vld [vmem:[%s650 + $0x774] sm:%s643]
                  %971 = vst [vmem:[%s651 + $0x27c] sm:%s643] %v970
                  %v972 = vld [vmem:[%s650 + $0x780] sm:%s643]
                  %973 = vst [vmem:[%s651 + $0x280] sm:%s643] %v972
                  %v974 = vld [vmem:[%s650 + $0x78c] sm:%s643]
                  %975 = vst [vmem:[%s651 + $0x284] sm:%s643] %v974
                  %v976 = vld [vmem:[%s650 + $0x798] sm:%s643]
                  %977 = vst [vmem:[%s651 + $0x288] sm:%s643] %v976
                  %v978 = vld [vmem:[%s650 + $0x7a4] sm:%s643]
                  %979 = vst [vmem:[%s651 + $0x28c] sm:%s643] %v978
                  %v980 = vld [vmem:[%s650 + $0x7b0] sm:%s643]
                  %981 = vst [vmem:[%s651 + $0x290] sm:%s643] %v980
                  %v982 = vld [vmem:[%s650 + $0x7bc] sm:%s643]
                  %983 = vst [vmem:[%s651 + $0x294] sm:%s643] %v982
                  %v984 = vld [vmem:[%s650 + $0x7c8] sm:%s643]
                  %985 = vst [vmem:[%s651 + $0x298] sm:%s643] %v984
                  %v986 = vld [vmem:[%s650 + $0x7d4] sm:%s643]
                  %987 = vst [vmem:[%s651 + $0x29c] sm:%s643] %v986
                  %v988 = vld [vmem:[%s650 + $0x7e0] sm:%s643]
                  %989 = vst [vmem:[%s651 + $0x2a0] sm:%s643] %v988
                  %v990 = vld [vmem:[%s650 + $0x7ec] sm:%s643]
                  %991 = vst [vmem:[%s651 + $0x2a4] sm:%s643] %v990
                  %v992 = vld [vmem:[%s650 + $0x7f8] sm:%s643]
                  %993 = vst [vmem:[%s651 + $0x2a8] sm:%s643] %v992
                  %v994 = vld [vmem:[%s650 + $0x804] sm:%s643]
                  %995 = vst [vmem:[%s651 + $0x2ac] sm:%s643] %v994
                  %v996 = vld [vmem:[%s650 + $0x810] sm:%s643]
                  %997 = vst [vmem:[%s651 + $0x2b0] sm:%s643] %v996
                  %v998 = vld [vmem:[%s650 + $0x81c] sm:%s643]
                  %999 = vst [vmem:[%s651 + $0x2b4] sm:%s643] %v998
                  %v1000 = vld [vmem:[%s650 + $0x828] sm:%s643]
                  %1001 = vst [vmem:[%s651 + $0x2b8] sm:%s643] %v1000
                  %v1002 = vld [vmem:[%s650 + $0x834] sm:%s643]
                  %1003 = vst [vmem:[%s651 + $0x2bc] sm:%s643] %v1002
                  %v1004 = vld [vmem:[%s650 + $0x840] sm:%s643]
                  %1005 = vst [vmem:[%s651 + $0x2c0] sm:%s643] %v1004
                  %v1006 = vld [vmem:[%s650 + $0x84c] sm:%s643]
                  %1007 = vst [vmem:[%s651 + $0x2c4] sm:%s643] %v1006
                  %v1008 = vld [vmem:[%s650 + $0x858] sm:%s643]
                  %1009 = vst [vmem:[%s651 + $0x2c8] sm:%s643] %v1008
                  %v1010 = vld [vmem:[%s650 + $0x864] sm:%s643]
                  %1011 = vst [vmem:[%s651 + $0x2cc] sm:%s643] %v1010
                  %v1012 = vld [vmem:[%s650 + $0x870] sm:%s643]
                  %1013 = vst [vmem:[%s651 + $0x2d0] sm:%s643] %v1012
                  %v1014 = vld [vmem:[%s650 + $0x87c] sm:%s643]
                  %1015 = vst [vmem:[%s651 + $0x2d4] sm:%s643] %v1014
                  %v1016 = vld [vmem:[%s650 + $0x888] sm:%s643]
                  %1017 = vst [vmem:[%s651 + $0x2d8] sm:%s643] %v1016
                  %v1018 = vld [vmem:[%s650 + $0x894] sm:%s643]
                  %1019 = vst [vmem:[%s651 + $0x2dc] sm:%s643] %v1018
                  %v1020 = vld [vmem:[%s650 + $0x8a0] sm:%s643]
                  %1021 = vst [vmem:[%s651 + $0x2e0] sm:%s643] %v1020
                  %v1022 = vld [vmem:[%s650 + $0x8ac] sm:%s643]
                  %1023 = vst [vmem:[%s651 + $0x2e4] sm:%s643] %v1022
                  %v1024 = vld [vmem:[%s650 + $0x8b8] sm:%s643]
                  %1025 = vst [vmem:[%s651 + $0x2e8] sm:%s643] %v1024
                  %v1026 = vld [vmem:[%s650 + $0x8c4] sm:%s643]
                  %1027 = vst [vmem:[%s651 + $0x2ec] sm:%s643] %v1026
                  %v1028 = vld [vmem:[%s650 + $0x8d0] sm:%s643]
                  %1029 = vst [vmem:[%s651 + $0x2f0] sm:%s643] %v1028
                  %v1030 = vld [vmem:[%s650 + $0x8dc] sm:%s643]
                  %1031 = vst [vmem:[%s651 + $0x2f4] sm:%s643] %v1030
                  %v1032 = vld [vmem:[%s650 + $0x8e8] sm:%s643]
                  %1033 = vst [vmem:[%s651 + $0x2f8] sm:%s643] %v1032
                  %v1034 = vld [vmem:[%s650 + $0x8f4] sm:%s643]
                  %1035 = vst [vmem:[%s651 + $0x2fc] sm:%s643] %v1034
                  %v1036 = vld [vmem:[%s650 + $0x900] sm:%s643]
                  %1037 = vst [vmem:[%s651 + $0x300] sm:%s643] %v1036
                  %v1038 = vld [vmem:[%s650 + $0x90c] sm:%s643]
                  %1039 = vst [vmem:[%s651 + $0x304] sm:%s643] %v1038
                  %v1040 = vld [vmem:[%s650 + $0x918] sm:%s643]
                  %1041 = vst [vmem:[%s651 + $0x308] sm:%s643] %v1040
                  %v1042 = vld [vmem:[%s650 + $0x924] sm:%s643]
                  %1043 = vst [vmem:[%s651 + $0x30c] sm:%s643] %v1042
                  %v1044 = vld [vmem:[%s650 + $0x930] sm:%s643]
                  %1045 = vst [vmem:[%s651 + $0x310] sm:%s643] %v1044
                  %v1046 = vld [vmem:[%s650 + $0x93c] sm:%s643]
                  %1047 = vst [vmem:[%s651 + $0x314] sm:%s643] %v1046
                  %v1048 = vld [vmem:[%s650 + $0x948] sm:%s643]
                  %1049 = vst [vmem:[%s651 + $0x318] sm:%s643] %v1048
                  %v1050 = vld [vmem:[%s650 + $0x954] sm:%s643]
                  %1051 = vst [vmem:[%s651 + $0x31c] sm:%s643] %v1050
                  %v1052 = vld [vmem:[%s650 + $0x960] sm:%s643]
                  %1053 = vst [vmem:[%s651 + $0x320] sm:%s643] %v1052
                  %v1054 = vld [vmem:[%s650 + $0x96c] sm:%s643]
                  %1055 = vst [vmem:[%s651 + $0x324] sm:%s643] %v1054
                  %v1056 = vld [vmem:[%s650 + $0x978] sm:%s643]
                  %1057 = vst [vmem:[%s651 + $0x328] sm:%s643] %v1056
                  %v1058 = vld [vmem:[%s650 + $0x984] sm:%s643]
                  %1059 = vst [vmem:[%s651 + $0x32c] sm:%s643] %v1058
                  %v1060 = vld [vmem:[%s650 + $0x990] sm:%s643]
                  %1061 = vst [vmem:[%s651 + $0x330] sm:%s643] %v1060
                  %v1062 = vld [vmem:[%s650 + $0x99c] sm:%s643]
                  %1063 = vst [vmem:[%s651 + $0x334] sm:%s643] %v1062
                  %v1064 = vld [vmem:[%s650 + $0x9a8] sm:%s643]
                  %1065 = vst [vmem:[%s651 + $0x338] sm:%s643] %v1064
                  %v1066 = vld [vmem:[%s650 + $0x9b4] sm:%s643]
                  %1067 = vst [vmem:[%s651 + $0x33c] sm:%s643] %v1066
                  %v1068 = vld [vmem:[%s650 + $0x9c0] sm:%s643]
                  %1069 = vst [vmem:[%s651 + $0x340] sm:%s643] %v1068
                  %v1070 = vld [vmem:[%s650 + $0x9cc] sm:%s643]
                  %1071 = vst [vmem:[%s651 + $0x344] sm:%s643] %v1070
                  %v1072 = vld [vmem:[%s650 + $0x9d8] sm:%s643]
                  %1073 = vst [vmem:[%s651 + $0x348] sm:%s643] %v1072
                  %v1074 = vld [vmem:[%s650 + $0x9e4] sm:%s643]
                  %1075 = vst [vmem:[%s651 + $0x34c] sm:%s643] %v1074
                  %v1076 = vld [vmem:[%s650 + $0x9f0] sm:%s643]
                  %1077 = vst [vmem:[%s651 + $0x350] sm:%s643] %v1076
                  %v1078 = vld [vmem:[%s650 + $0x9fc] sm:%s643]
                  %1079 = vst [vmem:[%s651 + $0x354] sm:%s643] %v1078
                  %v1080 = vld [vmem:[%s650 + $0xa08] sm:%s643]
                  %1081 = vst [vmem:[%s651 + $0x358] sm:%s643] %v1080
                  %v1082 = vld [vmem:[%s650 + $0xa14] sm:%s643]
                  %1083 = vst [vmem:[%s651 + $0x35c] sm:%s643] %v1082
                $region59: #{_lambda_.10} parent=46 // loop_footer
                  %s649 = sadd.s32 1, %s645
                $region60: #{_lambda_.10} parent=46 // loop_footer_branch
                  %644 = sbr.rel target = $region56
                $region61: #{_lambda_.10} parent=46 // loop_exit
                  _
              $region47: #{_lambda_.10} parent=31 // pred_fallthru
                _
            $region32: #{_lambda_.10} parent=27 // pred_fallthru
              _
            // Predicated region
            $region33: #{_lambda_.10} parent=27 // pred_check
              _
            $region34: #{_lambda_.10} parent=27 // pred_check_branch
              %189 = sbr.rel (0) target = $region36
            $region35: #{_lambda_.10} parent=27 // pred_region
              %s191 = ssub.s32 16, 1
              loop: start=0, step=1, limit=1
              $region37: #{_lambda_.10} parent=35 // loop_pre_header
                _
              $region38: #{_lambda_.10} parent=35 // loop_header
                %s193 = sphi 0, %s197
                %p194 = scmp.ge.s32.totalorder %s193, 1
                %s198 = sphi %s183, %s183
                %s199 = sphi %s178, %s178
              $region39: #{_lambda_.10} parent=35 // loop_header_branch
                %196 = sbr.rel (%p194) target = $region43
              $region40: #{_lambda_.10} parent=35 // loop_body
                %v200 = vld [vmem:[%s198] sm:%s191]
                %201 = vst [vmem:[%s199] sm:%s191] %v200
                %v202 = vld [vmem:[%s198 + $0xc] sm:%s191]
                %203 = vst [vmem:[%s199 + $0x4] sm:%s191] %v202
                %v204 = vld [vmem:[%s198 + $0x18] sm:%s191]
                %205 = vst [vmem:[%s199 + $0x8] sm:%s191] %v204
                %v206 = vld [vmem:[%s198 + $0x24] sm:%s191]
                %207 = vst [vmem:[%s199 + $0xc] sm:%s191] %v206
                %v208 = vld [vmem:[%s198 + $0x30] sm:%s191]
                %209 = vst [vmem:[%s199 + $0x10] sm:%s191] %v208
                %v210 = vld [vmem:[%s198 + $0x3c] sm:%s191]
                %211 = vst [vmem:[%s199 + $0x14] sm:%s191] %v210
                %v212 = vld [vmem:[%s198 + $0x48] sm:%s191]
                %213 = vst [vmem:[%s199 + $0x18] sm:%s191] %v212
                %v214 = vld [vmem:[%s198 + $0x54] sm:%s191]
                %215 = vst [vmem:[%s199 + $0x1c] sm:%s191] %v214
                %v216 = vld [vmem:[%s198 + $0x60] sm:%s191]
                %217 = vst [vmem:[%s199 + $0x20] sm:%s191] %v216
                %v218 = vld [vmem:[%s198 + $0x6c] sm:%s191]
                %219 = vst [vmem:[%s199 + $0x24] sm:%s191] %v218
                %v220 = vld [vmem:[%s198 + $0x78] sm:%s191]
                %221 = vst [vmem:[%s199 + $0x28] sm:%s191] %v220
                %v222 = vld [vmem:[%s198 + $0x84] sm:%s191]
                %223 = vst [vmem:[%s199 + $0x2c] sm:%s191] %v222
                %v224 = vld [vmem:[%s198 + $0x90] sm:%s191]
                %225 = vst [vmem:[%s199 + $0x30] sm:%s191] %v224
                %v226 = vld [vmem:[%s198 + $0x9c] sm:%s191]
                %227 = vst [vmem:[%s199 + $0x34] sm:%s191] %v226
                %v228 = vld [vmem:[%s198 + $0xa8] sm:%s191]
                %229 = vst [vmem:[%s199 + $0x38] sm:%s191] %v228
                %v230 = vld [vmem:[%s198 + $0xb4] sm:%s191]
                %231 = vst [vmem:[%s199 + $0x3c] sm:%s191] %v230
                %v232 = vld [vmem:[%s198 + $0xc0] sm:%s191]
                %233 = vst [vmem:[%s199 + $0x40] sm:%s191] %v232
                %v234 = vld [vmem:[%s198 + $0xcc] sm:%s191]
                %235 = vst [vmem:[%s199 + $0x44] sm:%s191] %v234
                %v236 = vld [vmem:[%s198 + $0xd8] sm:%s191]
                %237 = vst [vmem:[%s199 + $0x48] sm:%s191] %v236
                %v238 = vld [vmem:[%s198 + $0xe4] sm:%s191]
                %239 = vst [vmem:[%s199 + $0x4c] sm:%s191] %v238
                %v240 = vld [vmem:[%s198 + $0xf0] sm:%s191]
                %241 = vst [vmem:[%s199 + $0x50] sm:%s191] %v240
                %v242 = vld [vmem:[%s198 + $0xfc] sm:%s191]
                %243 = vst [vmem:[%s199 + $0x54] sm:%s191] %v242
                %v244 = vld [vmem:[%s198 + $0x108] sm:%s191]
                %245 = vst [vmem:[%s199 + $0x58] sm:%s191] %v244
                %v246 = vld [vmem:[%s198 + $0x114] sm:%s191]
                %247 = vst [vmem:[%s199 + $0x5c] sm:%s191] %v246
                %v248 = vld [vmem:[%s198 + $0x120] sm:%s191]
                %249 = vst [vmem:[%s199 + $0x60] sm:%s191] %v248
                %v250 = vld [vmem:[%s198 + $0x12c] sm:%s191]
                %251 = vst [vmem:[%s199 + $0x64] sm:%s191] %v250
                %v252 = vld [vmem:[%s198 + $0x138] sm:%s191]
                %253 = vst [vmem:[%s199 + $0x68] sm:%s191] %v252
                %v254 = vld [vmem:[%s198 + $0x144] sm:%s191]
                %255 = vst [vmem:[%s199 + $0x6c] sm:%s191] %v254
                %v256 = vld [vmem:[%s198 + $0x150] sm:%s191]
                %257 = vst [vmem:[%s199 + $0x70] sm:%s191] %v256
                %v258 = vld [vmem:[%s198 + $0x15c] sm:%s191]
                %259 = vst [vmem:[%s199 + $0x74] sm:%s191] %v258
                %v260 = vld [vmem:[%s198 + $0x168] sm:%s191]
                %261 = vst [vmem:[%s199 + $0x78] sm:%s191] %v260
                %v262 = vld [vmem:[%s198 + $0x174] sm:%s191]
                %263 = vst [vmem:[%s199 + $0x7c] sm:%s191] %v262
                %v264 = vld [vmem:[%s198 + $0x180] sm:%s191]
                %265 = vst [vmem:[%s199 + $0x80] sm:%s191] %v264
                %v266 = vld [vmem:[%s198 + $0x18c] sm:%s191]
                %267 = vst [vmem:[%s199 + $0x84] sm:%s191] %v266
                %v268 = vld [vmem:[%s198 + $0x198] sm:%s191]
                %269 = vst [vmem:[%s199 + $0x88] sm:%s191] %v268
                %v270 = vld [vmem:[%s198 + $0x1a4] sm:%s191]
                %271 = vst [vmem:[%s199 + $0x8c] sm:%s191] %v270
                %v272 = vld [vmem:[%s198 + $0x1b0] sm:%s191]
                %273 = vst [vmem:[%s199 + $0x90] sm:%s191] %v272
                %v274 = vld [vmem:[%s198 + $0x1bc] sm:%s191]
                %275 = vst [vmem:[%s199 + $0x94] sm:%s191] %v274
                %v276 = vld [vmem:[%s198 + $0x1c8] sm:%s191]
                %277 = vst [vmem:[%s199 + $0x98] sm:%s191] %v276
                %v278 = vld [vmem:[%s198 + $0x1d4] sm:%s191]
                %279 = vst [vmem:[%s199 + $0x9c] sm:%s191] %v278
                %v280 = vld [vmem:[%s198 + $0x1e0] sm:%s191]
                %281 = vst [vmem:[%s199 + $0xa0] sm:%s191] %v280
                %v282 = vld [vmem:[%s198 + $0x1ec] sm:%s191]
                %283 = vst [vmem:[%s199 + $0xa4] sm:%s191] %v282
                %v284 = vld [vmem:[%s198 + $0x1f8] sm:%s191]
                %285 = vst [vmem:[%s199 + $0xa8] sm:%s191] %v284
                %v286 = vld [vmem:[%s198 + $0x204] sm:%s191]
                %287 = vst [vmem:[%s199 + $0xac] sm:%s191] %v286
                %v288 = vld [vmem:[%s198 + $0x210] sm:%s191]
                %289 = vst [vmem:[%s199 + $0xb0] sm:%s191] %v288
                %v290 = vld [vmem:[%s198 + $0x21c] sm:%s191]
                %291 = vst [vmem:[%s199 + $0xb4] sm:%s191] %v290
                %v292 = vld [vmem:[%s198 + $0x228] sm:%s191]
                %293 = vst [vmem:[%s199 + $0xb8] sm:%s191] %v292
                %v294 = vld [vmem:[%s198 + $0x234] sm:%s191]
                %295 = vst [vmem:[%s199 + $0xbc] sm:%s191] %v294
                %v296 = vld [vmem:[%s198 + $0x240] sm:%s191]
                %297 = vst [vmem:[%s199 + $0xc0] sm:%s191] %v296
                %v298 = vld [vmem:[%s198 + $0x24c] sm:%s191]
                %299 = vst [vmem:[%s199 + $0xc4] sm:%s191] %v298
                %v300 = vld [vmem:[%s198 + $0x258] sm:%s191]
                %301 = vst [vmem:[%s199 + $0xc8] sm:%s191] %v300
                %v302 = vld [vmem:[%s198 + $0x264] sm:%s191]
                %303 = vst [vmem:[%s199 + $0xcc] sm:%s191] %v302
                %v304 = vld [vmem:[%s198 + $0x270] sm:%s191]
                %305 = vst [vmem:[%s199 + $0xd0] sm:%s191] %v304
                %v306 = vld [vmem:[%s198 + $0x27c] sm:%s191]
                %307 = vst [vmem:[%s199 + $0xd4] sm:%s191] %v306
                %v308 = vld [vmem:[%s198 + $0x288] sm:%s191]
                %309 = vst [vmem:[%s199 + $0xd8] sm:%s191] %v308
                %v310 = vld [vmem:[%s198 + $0x294] sm:%s191]
                %311 = vst [vmem:[%s199 + $0xdc] sm:%s191] %v310
                %v312 = vld [vmem:[%s198 + $0x2a0] sm:%s191]
                %313 = vst [vmem:[%s199 + $0xe0] sm:%s191] %v312
                %v314 = vld [vmem:[%s198 + $0x2ac] sm:%s191]
                %315 = vst [vmem:[%s199 + $0xe4] sm:%s191] %v314
                %v316 = vld [vmem:[%s198 + $0x2b8] sm:%s191]
                %317 = vst [vmem:[%s199 + $0xe8] sm:%s191] %v316
                %v318 = vld [vmem:[%s198 + $0x2c4] sm:%s191]
                %319 = vst [vmem:[%s199 + $0xec] sm:%s191] %v318
                %v320 = vld [vmem:[%s198 + $0x2d0] sm:%s191]
                %321 = vst [vmem:[%s199 + $0xf0] sm:%s191] %v320
                %v322 = vld [vmem:[%s198 + $0x2dc] sm:%s191]
                %323 = vst [vmem:[%s199 + $0xf4] sm:%s191] %v322
                %v324 = vld [vmem:[%s198 + $0x2e8] sm:%s191]
                %325 = vst [vmem:[%s199 + $0xf8] sm:%s191] %v324
                %v326 = vld [vmem:[%s198 + $0x2f4] sm:%s191]
                %327 = vst [vmem:[%s199 + $0xfc] sm:%s191] %v326
                %v328 = vld [vmem:[%s198 + $0x300] sm:%s191]
                %329 = vst [vmem:[%s199 + $0x100] sm:%s191] %v328
                %v330 = vld [vmem:[%s198 + $0x30c] sm:%s191]
                %331 = vst [vmem:[%s199 + $0x104] sm:%s191] %v330
                %v332 = vld [vmem:[%s198 + $0x318] sm:%s191]
                %333 = vst [vmem:[%s199 + $0x108] sm:%s191] %v332
                %v334 = vld [vmem:[%s198 + $0x324] sm:%s191]
                %335 = vst [vmem:[%s199 + $0x10c] sm:%s191] %v334
                %v336 = vld [vmem:[%s198 + $0x330] sm:%s191]
                %337 = vst [vmem:[%s199 + $0x110] sm:%s191] %v336
                %v338 = vld [vmem:[%s198 + $0x33c] sm:%s191]
                %339 = vst [vmem:[%s199 + $0x114] sm:%s191] %v338
                %v340 = vld [vmem:[%s198 + $0x348] sm:%s191]
                %341 = vst [vmem:[%s199 + $0x118] sm:%s191] %v340
                %v342 = vld [vmem:[%s198 + $0x354] sm:%s191]
                %343 = vst [vmem:[%s199 + $0x11c] sm:%s191] %v342
                %v344 = vld [vmem:[%s198 + $0x360] sm:%s191]
                %345 = vst [vmem:[%s199 + $0x120] sm:%s191] %v344
                %v346 = vld [vmem:[%s198 + $0x36c] sm:%s191]
                %347 = vst [vmem:[%s199 + $0x124] sm:%s191] %v346
                %v348 = vld [vmem:[%s198 + $0x378] sm:%s191]
                %349 = vst [vmem:[%s199 + $0x128] sm:%s191] %v348
                %v350 = vld [vmem:[%s198 + $0x384] sm:%s191]
                %351 = vst [vmem:[%s199 + $0x12c] sm:%s191] %v350
                %v352 = vld [vmem:[%s198 + $0x390] sm:%s191]
                %353 = vst [vmem:[%s199 + $0x130] sm:%s191] %v352
                %v354 = vld [vmem:[%s198 + $0x39c] sm:%s191]
                %355 = vst [vmem:[%s199 + $0x134] sm:%s191] %v354
                %v356 = vld [vmem:[%s198 + $0x3a8] sm:%s191]
                %357 = vst [vmem:[%s199 + $0x138] sm:%s191] %v356
                %v358 = vld [vmem:[%s198 + $0x3b4] sm:%s191]
                %359 = vst [vmem:[%s199 + $0x13c] sm:%s191] %v358
                %v360 = vld [vmem:[%s198 + $0x3c0] sm:%s191]
                %361 = vst [vmem:[%s199 + $0x140] sm:%s191] %v360
                %v362 = vld [vmem:[%s198 + $0x3cc] sm:%s191]
                %363 = vst [vmem:[%s199 + $0x144] sm:%s191] %v362
                %v364 = vld [vmem:[%s198 + $0x3d8] sm:%s191]
                %365 = vst [vmem:[%s199 + $0x148] sm:%s191] %v364
                %v366 = vld [vmem:[%s198 + $0x3e4] sm:%s191]
                %367 = vst [vmem:[%s199 + $0x14c] sm:%s191] %v366
                %v368 = vld [vmem:[%s198 + $0x3f0] sm:%s191]
                %369 = vst [vmem:[%s199 + $0x150] sm:%s191] %v368
                %v370 = vld [vmem:[%s198 + $0x3fc] sm:%s191]
                %371 = vst [vmem:[%s199 + $0x154] sm:%s191] %v370
                %v372 = vld [vmem:[%s198 + $0x408] sm:%s191]
                %373 = vst [vmem:[%s199 + $0x158] sm:%s191] %v372
                %v374 = vld [vmem:[%s198 + $0x414] sm:%s191]
                %375 = vst [vmem:[%s199 + $0x15c] sm:%s191] %v374
                %v376 = vld [vmem:[%s198 + $0x420] sm:%s191]
                %377 = vst [vmem:[%s199 + $0x160] sm:%s191] %v376
                %v378 = vld [vmem:[%s198 + $0x42c] sm:%s191]
                %379 = vst [vmem:[%s199 + $0x164] sm:%s191] %v378
                %v380 = vld [vmem:[%s198 + $0x438] sm:%s191]
                %381 = vst [vmem:[%s199 + $0x168] sm:%s191] %v380
                %v382 = vld [vmem:[%s198 + $0x444] sm:%s191]
                %383 = vst [vmem:[%s199 + $0x16c] sm:%s191] %v382
                %v384 = vld [vmem:[%s198 + $0x450] sm:%s191]
                %385 = vst [vmem:[%s199 + $0x170] sm:%s191] %v384
                %v386 = vld [vmem:[%s198 + $0x45c] sm:%s191]
                %387 = vst [vmem:[%s199 + $0x174] sm:%s191] %v386
                %v388 = vld [vmem:[%s198 + $0x468] sm:%s191]
                %389 = vst [vmem:[%s199 + $0x178] sm:%s191] %v388
                %v390 = vld [vmem:[%s198 + $0x474] sm:%s191]
                %391 = vst [vmem:[%s199 + $0x17c] sm:%s191] %v390
                %v392 = vld [vmem:[%s198 + $0x480] sm:%s191]
                %393 = vst [vmem:[%s199 + $0x180] sm:%s191] %v392
                %v394 = vld [vmem:[%s198 + $0x48c] sm:%s191]
                %395 = vst [vmem:[%s199 + $0x184] sm:%s191] %v394
                %v396 = vld [vmem:[%s198 + $0x498] sm:%s191]
                %397 = vst [vmem:[%s199 + $0x188] sm:%s191] %v396
                %v398 = vld [vmem:[%s198 + $0x4a4] sm:%s191]
                %399 = vst [vmem:[%s199 + $0x18c] sm:%s191] %v398
                %v400 = vld [vmem:[%s198 + $0x4b0] sm:%s191]
                %401 = vst [vmem:[%s199 + $0x190] sm:%s191] %v400
                %v402 = vld [vmem:[%s198 + $0x4bc] sm:%s191]
                %403 = vst [vmem:[%s199 + $0x194] sm:%s191] %v402
                %v404 = vld [vmem:[%s198 + $0x4c8] sm:%s191]
                %405 = vst [vmem:[%s199 + $0x198] sm:%s191] %v404
                %v406 = vld [vmem:[%s198 + $0x4d4] sm:%s191]
                %407 = vst [vmem:[%s199 + $0x19c] sm:%s191] %v406
                %v408 = vld [vmem:[%s198 + $0x4e0] sm:%s191]
                %409 = vst [vmem:[%s199 + $0x1a0] sm:%s191] %v408
                %v410 = vld [vmem:[%s198 + $0x4ec] sm:%s191]
                %411 = vst [vmem:[%s199 + $0x1a4] sm:%s191] %v410
                %v412 = vld [vmem:[%s198 + $0x4f8] sm:%s191]
                %413 = vst [vmem:[%s199 + $0x1a8] sm:%s191] %v412
                %v414 = vld [vmem:[%s198 + $0x504] sm:%s191]
                %415 = vst [vmem:[%s199 + $0x1ac] sm:%s191] %v414
                %v416 = vld [vmem:[%s198 + $0x510] sm:%s191]
                %417 = vst [vmem:[%s199 + $0x1b0] sm:%s191] %v416
                %v418 = vld [vmem:[%s198 + $0x51c] sm:%s191]
                %419 = vst [vmem:[%s199 + $0x1b4] sm:%s191] %v418
                %v420 = vld [vmem:[%s198 + $0x528] sm:%s191]
                %421 = vst [vmem:[%s199 + $0x1b8] sm:%s191] %v420
                %v422 = vld [vmem:[%s198 + $0x534] sm:%s191]
                %423 = vst [vmem:[%s199 + $0x1bc] sm:%s191] %v422
                %v424 = vld [vmem:[%s198 + $0x540] sm:%s191]
                %425 = vst [vmem:[%s199 + $0x1c0] sm:%s191] %v424
                %v426 = vld [vmem:[%s198 + $0x54c] sm:%s191]
                %427 = vst [vmem:[%s199 + $0x1c4] sm:%s191] %v426
                %v428 = vld [vmem:[%s198 + $0x558] sm:%s191]
                %429 = vst [vmem:[%s199 + $0x1c8] sm:%s191] %v428
                %v430 = vld [vmem:[%s198 + $0x564] sm:%s191]
                %431 = vst [vmem:[%s199 + $0x1cc] sm:%s191] %v430
                %v432 = vld [vmem:[%s198 + $0x570] sm:%s191]
                %433 = vst [vmem:[%s199 + $0x1d0] sm:%s191] %v432
                %v434 = vld [vmem:[%s198 + $0x57c] sm:%s191]
                %435 = vst [vmem:[%s199 + $0x1d4] sm:%s191] %v434
                %v436 = vld [vmem:[%s198 + $0x588] sm:%s191]
                %437 = vst [vmem:[%s199 + $0x1d8] sm:%s191] %v436
                %v438 = vld [vmem:[%s198 + $0x594] sm:%s191]
                %439 = vst [vmem:[%s199 + $0x1dc] sm:%s191] %v438
                %v440 = vld [vmem:[%s198 + $0x5a0] sm:%s191]
                %441 = vst [vmem:[%s199 + $0x1e0] sm:%s191] %v440
                %v442 = vld [vmem:[%s198 + $0x5ac] sm:%s191]
                %443 = vst [vmem:[%s199 + $0x1e4] sm:%s191] %v442
                %v444 = vld [vmem:[%s198 + $0x5b8] sm:%s191]
                %445 = vst [vmem:[%s199 + $0x1e8] sm:%s191] %v444
                %v446 = vld [vmem:[%s198 + $0x5c4] sm:%s191]
                %447 = vst [vmem:[%s199 + $0x1ec] sm:%s191] %v446
                %v448 = vld [vmem:[%s198 + $0x5d0] sm:%s191]
                %449 = vst [vmem:[%s199 + $0x1f0] sm:%s191] %v448
                %v450 = vld [vmem:[%s198 + $0x5dc] sm:%s191]
                %451 = vst [vmem:[%s199 + $0x1f4] sm:%s191] %v450
                %v452 = vld [vmem:[%s198 + $0x5e8] sm:%s191]
                %453 = vst [vmem:[%s199 + $0x1f8] sm:%s191] %v452
                %v454 = vld [vmem:[%s198 + $0x5f4] sm:%s191]
                %455 = vst [vmem:[%s199 + $0x1fc] sm:%s191] %v454
                %v456 = vld [vmem:[%s198 + $0x600] sm:%s191]
                %457 = vst [vmem:[%s199 + $0x200] sm:%s191] %v456
                %v458 = vld [vmem:[%s198 + $0x60c] sm:%s191]
                %459 = vst [vmem:[%s199 + $0x204] sm:%s191] %v458
                %v460 = vld [vmem:[%s198 + $0x618] sm:%s191]
                %461 = vst [vmem:[%s199 + $0x208] sm:%s191] %v460
                %v462 = vld [vmem:[%s198 + $0x624] sm:%s191]
                %463 = vst [vmem:[%s199 + $0x20c] sm:%s191] %v462
                %v464 = vld [vmem:[%s198 + $0x630] sm:%s191]
                %465 = vst [vmem:[%s199 + $0x210] sm:%s191] %v464
                %v466 = vld [vmem:[%s198 + $0x63c] sm:%s191]
                %467 = vst [vmem:[%s199 + $0x214] sm:%s191] %v466
                %v468 = vld [vmem:[%s198 + $0x648] sm:%s191]
                %469 = vst [vmem:[%s199 + $0x218] sm:%s191] %v468
                %v470 = vld [vmem:[%s198 + $0x654] sm:%s191]
                %471 = vst [vmem:[%s199 + $0x21c] sm:%s191] %v470
                %v472 = vld [vmem:[%s198 + $0x660] sm:%s191]
                %473 = vst [vmem:[%s199 + $0x220] sm:%s191] %v472
                %v474 = vld [vmem:[%s198 + $0x66c] sm:%s191]
                %475 = vst [vmem:[%s199 + $0x224] sm:%s191] %v474
                %v476 = vld [vmem:[%s198 + $0x678] sm:%s191]
                %477 = vst [vmem:[%s199 + $0x228] sm:%s191] %v476
                %v478 = vld [vmem:[%s198 + $0x684] sm:%s191]
                %479 = vst [vmem:[%s199 + $0x22c] sm:%s191] %v478
                %v480 = vld [vmem:[%s198 + $0x690] sm:%s191]
                %481 = vst [vmem:[%s199 + $0x230] sm:%s191] %v480
                %v482 = vld [vmem:[%s198 + $0x69c] sm:%s191]
                %483 = vst [vmem:[%s199 + $0x234] sm:%s191] %v482
                %v484 = vld [vmem:[%s198 + $0x6a8] sm:%s191]
                %485 = vst [vmem:[%s199 + $0x238] sm:%s191] %v484
                %v486 = vld [vmem:[%s198 + $0x6b4] sm:%s191]
                %487 = vst [vmem:[%s199 + $0x23c] sm:%s191] %v486
                %v488 = vld [vmem:[%s198 + $0x6c0] sm:%s191]
                %489 = vst [vmem:[%s199 + $0x240] sm:%s191] %v488
                %v490 = vld [vmem:[%s198 + $0x6cc] sm:%s191]
                %491 = vst [vmem:[%s199 + $0x244] sm:%s191] %v490
                %v492 = vld [vmem:[%s198 + $0x6d8] sm:%s191]
                %493 = vst [vmem:[%s199 + $0x248] sm:%s191] %v492
                %v494 = vld [vmem:[%s198 + $0x6e4] sm:%s191]
                %495 = vst [vmem:[%s199 + $0x24c] sm:%s191] %v494
                %v496 = vld [vmem:[%s198 + $0x6f0] sm:%s191]
                %497 = vst [vmem:[%s199 + $0x250] sm:%s191] %v496
                %v498 = vld [vmem:[%s198 + $0x6fc] sm:%s191]
                %499 = vst [vmem:[%s199 + $0x254] sm:%s191] %v498
                %v500 = vld [vmem:[%s198 + $0x708] sm:%s191]
                %501 = vst [vmem:[%s199 + $0x258] sm:%s191] %v500
                %v502 = vld [vmem:[%s198 + $0x714] sm:%s191]
                %503 = vst [vmem:[%s199 + $0x25c] sm:%s191] %v502
                %v504 = vld [vmem:[%s198 + $0x720] sm:%s191]
                %505 = vst [vmem:[%s199 + $0x260] sm:%s191] %v504
                %v506 = vld [vmem:[%s198 + $0x72c] sm:%s191]
                %507 = vst [vmem:[%s199 + $0x264] sm:%s191] %v506
                %v508 = vld [vmem:[%s198 + $0x738] sm:%s191]
                %509 = vst [vmem:[%s199 + $0x268] sm:%s191] %v508
                %v510 = vld [vmem:[%s198 + $0x744] sm:%s191]
                %511 = vst [vmem:[%s199 + $0x26c] sm:%s191] %v510
                %v512 = vld [vmem:[%s198 + $0x750] sm:%s191]
                %513 = vst [vmem:[%s199 + $0x270] sm:%s191] %v512
                %v514 = vld [vmem:[%s198 + $0x75c] sm:%s191]
                %515 = vst [vmem:[%s199 + $0x274] sm:%s191] %v514
                %v516 = vld [vmem:[%s198 + $0x768] sm:%s191]
                %517 = vst [vmem:[%s199 + $0x278] sm:%s191] %v516
                %v518 = vld [vmem:[%s198 + $0x774] sm:%s191]
                %519 = vst [vmem:[%s199 + $0x27c] sm:%s191] %v518
                %v520 = vld [vmem:[%s198 + $0x780] sm:%s191]
                %521 = vst [vmem:[%s199 + $0x280] sm:%s191] %v520
                %v522 = vld [vmem:[%s198 + $0x78c] sm:%s191]
                %523 = vst [vmem:[%s199 + $0x284] sm:%s191] %v522
                %v524 = vld [vmem:[%s198 + $0x798] sm:%s191]
                %525 = vst [vmem:[%s199 + $0x288] sm:%s191] %v524
                %v526 = vld [vmem:[%s198 + $0x7a4] sm:%s191]
                %527 = vst [vmem:[%s199 + $0x28c] sm:%s191] %v526
                %v528 = vld [vmem:[%s198 + $0x7b0] sm:%s191]
                %529 = vst [vmem:[%s199 + $0x290] sm:%s191] %v528
                %v530 = vld [vmem:[%s198 + $0x7bc] sm:%s191]
                %531 = vst [vmem:[%s199 + $0x294] sm:%s191] %v530
                %v532 = vld [vmem:[%s198 + $0x7c8] sm:%s191]
                %533 = vst [vmem:[%s199 + $0x298] sm:%s191] %v532
                %v534 = vld [vmem:[%s198 + $0x7d4] sm:%s191]
                %535 = vst [vmem:[%s199 + $0x29c] sm:%s191] %v534
                %v536 = vld [vmem:[%s198 + $0x7e0] sm:%s191]
                %537 = vst [vmem:[%s199 + $0x2a0] sm:%s191] %v536
                %v538 = vld [vmem:[%s198 + $0x7ec] sm:%s191]
                %539 = vst [vmem:[%s199 + $0x2a4] sm:%s191] %v538
                %v540 = vld [vmem:[%s198 + $0x7f8] sm:%s191]
                %541 = vst [vmem:[%s199 + $0x2a8] sm:%s191] %v540
                %v542 = vld [vmem:[%s198 + $0x804] sm:%s191]
                %543 = vst [vmem:[%s199 + $0x2ac] sm:%s191] %v542
                %v544 = vld [vmem:[%s198 + $0x810] sm:%s191]
                %545 = vst [vmem:[%s199 + $0x2b0] sm:%s191] %v544
                %v546 = vld [vmem:[%s198 + $0x81c] sm:%s191]
                %547 = vst [vmem:[%s199 + $0x2b4] sm:%s191] %v546
                %v548 = vld [vmem:[%s198 + $0x828] sm:%s191]
                %549 = vst [vmem:[%s199 + $0x2b8] sm:%s191] %v548
                %v550 = vld [vmem:[%s198 + $0x834] sm:%s191]
                %551 = vst [vmem:[%s199 + $0x2bc] sm:%s191] %v550
                %v552 = vld [vmem:[%s198 + $0x840] sm:%s191]
                %553 = vst [vmem:[%s199 + $0x2c0] sm:%s191] %v552
                %v554 = vld [vmem:[%s198 + $0x84c] sm:%s191]
                %555 = vst [vmem:[%s199 + $0x2c4] sm:%s191] %v554
                %v556 = vld [vmem:[%s198 + $0x858] sm:%s191]
                %557 = vst [vmem:[%s199 + $0x2c8] sm:%s191] %v556
                %v558 = vld [vmem:[%s198 + $0x864] sm:%s191]
                %559 = vst [vmem:[%s199 + $0x2cc] sm:%s191] %v558
                %v560 = vld [vmem:[%s198 + $0x870] sm:%s191]
                %561 = vst [vmem:[%s199 + $0x2d0] sm:%s191] %v560
                %v562 = vld [vmem:[%s198 + $0x87c] sm:%s191]
                %563 = vst [vmem:[%s199 + $0x2d4] sm:%s191] %v562
                %v564 = vld [vmem:[%s198 + $0x888] sm:%s191]
                %565 = vst [vmem:[%s199 + $0x2d8] sm:%s191] %v564
                %v566 = vld [vmem:[%s198 + $0x894] sm:%s191]
                %567 = vst [vmem:[%s199 + $0x2dc] sm:%s191] %v566
                %v568 = vld [vmem:[%s198 + $0x8a0] sm:%s191]
                %569 = vst [vmem:[%s199 + $0x2e0] sm:%s191] %v568
                %v570 = vld [vmem:[%s198 + $0x8ac] sm:%s191]
                %571 = vst [vmem:[%s199 + $0x2e4] sm:%s191] %v570
                %v572 = vld [vmem:[%s198 + $0x8b8] sm:%s191]
                %573 = vst [vmem:[%s199 + $0x2e8] sm:%s191] %v572
                %v574 = vld [vmem:[%s198 + $0x8c4] sm:%s191]
                %575 = vst [vmem:[%s199 + $0x2ec] sm:%s191] %v574
                %v576 = vld [vmem:[%s198 + $0x8d0] sm:%s191]
                %577 = vst [vmem:[%s199 + $0x2f0] sm:%s191] %v576
                %v578 = vld [vmem:[%s198 + $0x8dc] sm:%s191]
                %579 = vst [vmem:[%s199 + $0x2f4] sm:%s191] %v578
                %v580 = vld [vmem:[%s198 + $0x8e8] sm:%s191]
                %581 = vst [vmem:[%s199 + $0x2f8] sm:%s191] %v580
                %v582 = vld [vmem:[%s198 + $0x8f4] sm:%s191]
                %583 = vst [vmem:[%s199 + $0x2fc] sm:%s191] %v582
                %v584 = vld [vmem:[%s198 + $0x900] sm:%s191]
                %585 = vst [vmem:[%s199 + $0x300] sm:%s191] %v584
                %v586 = vld [vmem:[%s198 + $0x90c] sm:%s191]
                %587 = vst [vmem:[%s199 + $0x304] sm:%s191] %v586
                %v588 = vld [vmem:[%s198 + $0x918] sm:%s191]
                %589 = vst [vmem:[%s199 + $0x308] sm:%s191] %v588
                %v590 = vld [vmem:[%s198 + $0x924] sm:%s191]
                %591 = vst [vmem:[%s199 + $0x30c] sm:%s191] %v590
                %v592 = vld [vmem:[%s198 + $0x930] sm:%s191]
                %593 = vst [vmem:[%s199 + $0x310] sm:%s191] %v592
                %v594 = vld [vmem:[%s198 + $0x93c] sm:%s191]
                %595 = vst [vmem:[%s199 + $0x314] sm:%s191] %v594
                %v596 = vld [vmem:[%s198 + $0x948] sm:%s191]
                %597 = vst [vmem:[%s199 + $0x318] sm:%s191] %v596
                %v598 = vld [vmem:[%s198 + $0x954] sm:%s191]
                %599 = vst [vmem:[%s199 + $0x31c] sm:%s191] %v598
                %v600 = vld [vmem:[%s198 + $0x960] sm:%s191]
                %601 = vst [vmem:[%s199 + $0x320] sm:%s191] %v600
                %v602 = vld [vmem:[%s198 + $0x96c] sm:%s191]
                %603 = vst [vmem:[%s199 + $0x324] sm:%s191] %v602
                %v604 = vld [vmem:[%s198 + $0x978] sm:%s191]
                %605 = vst [vmem:[%s199 + $0x328] sm:%s191] %v604
                %v606 = vld [vmem:[%s198 + $0x984] sm:%s191]
                %607 = vst [vmem:[%s199 + $0x32c] sm:%s191] %v606
                %v608 = vld [vmem:[%s198 + $0x990] sm:%s191]
                %609 = vst [vmem:[%s199 + $0x330] sm:%s191] %v608
                %v610 = vld [vmem:[%s198 + $0x99c] sm:%s191]
                %611 = vst [vmem:[%s199 + $0x334] sm:%s191] %v610
                %v612 = vld [vmem:[%s198 + $0x9a8] sm:%s191]
                %613 = vst [vmem:[%s199 + $0x338] sm:%s191] %v612
                %v614 = vld [vmem:[%s198 + $0x9b4] sm:%s191]
                %615 = vst [vmem:[%s199 + $0x33c] sm:%s191] %v614
                %v616 = vld [vmem:[%s198 + $0x9c0] sm:%s191]
                %617 = vst [vmem:[%s199 + $0x340] sm:%s191] %v616
                %v618 = vld [vmem:[%s198 + $0x9cc] sm:%s191]
                %619 = vst [vmem:[%s199 + $0x344] sm:%s191] %v618
                %v620 = vld [vmem:[%s198 + $0x9d8] sm:%s191]
                %621 = vst [vmem:[%s199 + $0x348] sm:%s191] %v620
                %v622 = vld [vmem:[%s198 + $0x9e4] sm:%s191]
                %623 = vst [vmem:[%s199 + $0x34c] sm:%s191] %v622
                %v624 = vld [vmem:[%s198 + $0x9f0] sm:%s191]
                %625 = vst [vmem:[%s199 + $0x350] sm:%s191] %v624
                %v626 = vld [vmem:[%s198 + $0x9fc] sm:%s191]
                %627 = vst [vmem:[%s199 + $0x354] sm:%s191] %v626
                %v628 = vld [vmem:[%s198 + $0xa08] sm:%s191]
                %629 = vst [vmem:[%s199 + $0x358] sm:%s191] %v628
                %v630 = vld [vmem:[%s198 + $0xa14] sm:%s191]
                %631 = vst [vmem:[%s199 + $0x35c] sm:%s191] %v630
              $region41: #{_lambda_.10} parent=35 // loop_footer
                %s197 = sadd.s32 1, %s193
              $region42: #{_lambda_.10} parent=35 // loop_footer_branch
                %192 = sbr.rel target = $region38
              $region43: #{_lambda_.10} parent=35 // loop_exit
                _
            $region36: #{_lambda_.10} parent=27 // pred_fallthru
              _
          $region28: #{_lambda_.10} parent=23 // pred_fallthru
            _
          %1084 = vnop
        $region24: #{_lambda_.10} parent=19 // pred_fallthru
          _
        // Predicated region
        $region62: #{_lambda_.10} parent=19 // pred_check
          %p1085 = pneg %p104
        $region63: #{_lambda_.10} parent=19 // pred_check_branch
          %1087 = sbr.rel (%p1085) target = $region65
        $region64: #{_lambda_.10} parent=19 // pred_region
          %p1088 = scmp.lt.s32.totalorder %s16, 2
          %s1089 = scalar_select %p1088, %s16, 2
          %s1090 = scalar_lea.vmem %s2, %s1089
        $region65: #{_lambda_.10} parent=19 // pred_fallthru
          _
      $region20: #{_lambda_.10} parent=5 // pred_fallthru
        _
      %p1091 = scmp.le.s32.totalorder 1, %s9
      %p1092 = scmp.lt.s32.totalorder %s9, 4
      %p1093 = pnand %p1091, %p1092
      %p1094 = pneg %p1093
      // Predicated region
      $region66: #{_lambda_.10} parent=5 // pred_check
        _
      $region67: #{_lambda_.10} parent=5 // pred_check_branch
        %1096 = sbr.rel (%p1093) target = $region69
      $region68: #{_lambda_.10} parent=5 // pred_region
        %s1097 = ssub.s32 %s9, 1
        %s1098 = sand.u32 %s71, 1
        %s1099 = sand.u32 %s71, 1
        %s1100 = smul.addr %s1099, 864
        %s1101 = scalar_lea.vmem [#allocation3], %s1100
        // Predicated region
        $region70: #{_lambda_.10} parent=68 // pred_check
          %p1102 = pneg %p84
        $region71: #{_lambda_.10} parent=68 // pred_check_branch
          %1104 = sbr.rel (%p1102) target = $region73
        $region72: #{_lambda_.10} parent=68 // pred_region
          _
        $region73: #{_lambda_.10} parent=68 // pred_fallthru
          _
        %s1105 = smul.u32 4, %s20
        %s1106 = smul.u32 14, %s21
        %p1107 = scmp.lt.s32.totalorder %s1105, 3
        %s1108 = scalar_select %p1107, %s1105, 3
        %p1109 = scmp.lt.s32.totalorder %s1106, 13
        %s1110 = scalar_select %p1109, %s1106, 13
        %s1111 = smul.addr %s1108, 14
        %s1112 = sadd.s32 %s1110, %s1111
        %s1113 = smul.addr %s1112, 4
        %s1114 = scalar_lea.vmem %s0, %s1113
        %p1115 = pneg %p56
        %p1116 = pneg %p53
        %s1117 = sand.u32 %s71, 1
        %s1118 = sand.u32 %s71, 1
        %s1119 = smul.addr %s1118, 864
        %s1120 = scalar_lea.vmem [#allocation3], %s1119
        %p1121 = pneg %p84
        %p1122 = pneg %p81
        %p1123 = scmp.lt.s32.totalorder %s19, 2
        %s1124 = scalar_select %p1123, %s19, 2
        %s1125 = scalar_lea.vmem %s2, %s1124
        %p1126 = pneg %p110
        %p1127 = pneg %p107
        %p1128 = pneg %p138
        %p1129 = pneg %p135
        %s1130 = sand.u32 %s125, 1
        %s1131 = sand.u32 %s125, 1
        %s1132 = smul.addr %s1131, 16
        %s1133 = scalar_lea.vmem [#allocation4], %s1132
        %s1134 = smul.u32 4, %s20
        %s1135 = smul.u32 14, %s21
        %p1136 = scmp.lt.s32.totalorder %s1134, 3
        %s1137 = scalar_select %p1136, %s1134, 3
        %p1138 = scmp.lt.s32.totalorder %s1135, 13
        %s1139 = scalar_select %p1138, %s1135, 13
        %s1140 = smul.addr %s1137, 14
        %s1141 = sadd.s32 %s1139, %s1140
        %s1142 = smul.addr %s1141, 4
        %s1143 = scalar_lea.vmem %s0, %s1142
        %s1144 = smul.u32 4, %s20
        %s1145 = smul.u32 14, %s21
        %s1146 = smul.u32 216, %s21
        %p1147 = scmp.lt.s32.totalorder %s19, 2
        %s1148 = scalar_select %p1147, %s19, 2
        %s1149 = scalar_lea.vmem %s2, %s1148
        %s1150 = smul.u32 4, %s20
        %p1152 = scmp.eq.s32.totalorder %s21, 0
        // Predicated region
        $region74: #{_lambda_.10} parent=68 // pred_check
          %p1153 = pneg %p1152
        $region75: #{_lambda_.10} parent=68 // pred_check_branch
          %1155 = sbr.rel (%p1153) target = $region77
        $region76: #{_lambda_.10} parent=68 // pred_region
          %v1156 = vld [vmem:[%s1149] sm:$0x1]
          %v1158 = vlaneseq
          %v1159 = vshrl.u32 %v1158, 7
          %v1160 = vsub.s32 0, %v1159
          %v1161 = vrot.slane %v1156, %v1160
          %1163 = vst [vmem:[#allocation2] sm:$0xff] %v1161
          %1164 = vst [vmem:[#allocation2 + $0x8] sm:$0xff] %v1161
          %1165 = vst [vmem:[#allocation2 + $0x10] sm:$0xff] %v1161
          %1166 = vst [vmem:[#allocation2 + $0x18] sm:$0xff] %v1161
        $region77: #{_lambda_.10} parent=68 // pred_fallthru
          _
        %v1167 = vld [vmem:[#allocation2] sm:$0xff]
        %v1168 = vld [vmem:[#allocation2 + $0x8] sm:$0xff]
        %v1169 = vld [vmem:[#allocation2 + $0x10] sm:$0xff]
        %v1170 = vld [vmem:[#allocation2 + $0x18] sm:$0xff]
        %v1171 = vld [vmem:[%s1143] sm:$0xff]
        %v1172 = vld [vmem:[%s1143 + $0x8] sm:$0xff]
        %v1173 = vld [vmem:[%s1143 + $0x10] sm:$0xff]
        %v1174 = vld [vmem:[%s1143 + $0x18] sm:$0xff]
        %v1175 = vld [vmem:[%s1143 + $0x20] sm:$0xff]
        %v1176 = vld [vmem:[%s1143 + $0x28] sm:$0xff]
        %v1177 = vld [vmem:[%s1143 + $0x30] sm:$0xff]
        %v1178 = vld [vmem:[%s1143 + $0x38] sm:$0xff]
        %v1179 = vld [vmem:[%s1143 + $0x40] sm:$0xff]
        %v1180 = vld [vmem:[%s1143 + $0x48] sm:$0xff]
        %v1181 = vld [vmem:[%s1143 + $0x50] sm:$0xff]
        %v1182 = vld [vmem:[%s1143 + $0x58] sm:$0xff]
        %v1183 = vld [vmem:[%s1143 + $0x60] sm:$0xff]
        %v1184 = vld [vmem:[%s1143 + $0x68] sm:$0xff]
        %v1185 = vld [vmem:[%s1143 + $0x70] sm:$0xff]
        %v1186 = vld [vmem:[%s1143 + $0x78] sm:$0xff]
        %v1187 = vld [vmem:[%s1143 + $0x80] sm:$0xff]
        %v1188 = vld [vmem:[%s1143 + $0x88] sm:$0xff]
        %v1189 = vld [vmem:[%s1143 + $0x90] sm:$0xff]
        %v1190 = vld [vmem:[%s1143 + $0x98] sm:$0xff]
        %v1191 = vld [vmem:[%s1143 + $0xa0] sm:$0xff]
        %v1192 = vld [vmem:[%s1143 + $0xa8] sm:$0xff]
        %v1193 = vld [vmem:[%s1143 + $0xb0] sm:$0xff]
        %v1194 = vld [vmem:[%s1143 + $0xb8] sm:$0xff]
        %v1195 = vld [vmem:[%s1143 + $0xc0] sm:$0xff]
        %v1196 = vld [vmem:[%s1143 + $0xc8] sm:$0xff]
        %v1197 = vld [vmem:[%s1143 + $0xd0] sm:$0xff]
        %v1198 = vld [vmem:[%s1143 + $0xd8] sm:$0xff]
        %v1199 = vld [vmem:[%s1101] sm:$0xf]
        %v1200 = vld [vmem:[%s1101 + $0x4] sm:$0xf]
        %v1201 = vld [vmem:[%s1101 + $0x8] sm:$0xf]
        %v1202 = vld [vmem:[%s1101 + $0xc] sm:$0xf]
        %v1203 = vld [vmem:[%s1101 + $0x10] sm:$0xf]
        %v1204 = vld [vmem:[%s1101 + $0x14] sm:$0xf]
        %v1205 = vld [vmem:[%s1101 + $0x18] sm:$0xf]
        %v1206 = vld [vmem:[%s1101 + $0x1c] sm:$0xf]
        %v1207 = vld [vmem:[%s1101 + $0x20] sm:$0xf]
        %v1208 = vld [vmem:[%s1101 + $0x24] sm:$0xf]
        %v1209 = vld [vmem:[%s1101 + $0x28] sm:$0xf]
        %v1210 = vld [vmem:[%s1101 + $0x2c] sm:$0xf]
        %v1211 = vld [vmem:[%s1101 + $0x30] sm:$0xf]
        %v1212 = vld [vmem:[%s1101 + $0x34] sm:$0xf]
        %v1213 = vld [vmem:[%s1101 + $0x38] sm:$0xf]
        %v1214 = vld [vmem:[%s1101 + $0x3c] sm:$0xf]
        %v1215 = vld [vmem:[%s1101 + $0x40] sm:$0xf]
        %v1216 = vld [vmem:[%s1101 + $0x44] sm:$0xf]
        %v1217 = vld [vmem:[%s1101 + $0x48] sm:$0xf]
        %v1218 = vld [vmem:[%s1101 + $0x4c] sm:$0xf]
        %v1219 = vld [vmem:[%s1101 + $0x50] sm:$0xf]
        %v1220 = vld [vmem:[%s1101 + $0x54] sm:$0xf]
        %v1221 = vld [vmem:[%s1101 + $0x58] sm:$0xf]
        %v1222 = vld [vmem:[%s1101 + $0x5c] sm:$0xf]
        %v1223 = vld [vmem:[%s1101 + $0x60] sm:$0xf]
        %v1224 = vld [vmem:[%s1101 + $0x64] sm:$0xf]
        %v1225 = vld [vmem:[%s1101 + $0x68] sm:$0xf]
        %v1226 = vld [vmem:[%s1101 + $0x6c] sm:$0xf]
        %v1227 = vld [vmem:[%s1101 + $0x70] sm:$0xf]
        %v1228 = vld [vmem:[%s1101 + $0x74] sm:$0xf]
        %v1229 = vld [vmem:[%s1101 + $0x78] sm:$0xf]
        %v1230 = vld [vmem:[%s1101 + $0x7c] sm:$0xf]
        %v1231 = vld [vmem:[%s1101 + $0x80] sm:$0xf]
        %v1232 = vld [vmem:[%s1101 + $0x84] sm:$0xf]
        %v1233 = vld [vmem:[%s1101 + $0x88] sm:$0xf]
        %v1234 = vld [vmem:[%s1101 + $0x8c] sm:$0xf]
        %v1235 = vld [vmem:[%s1101 + $0x90] sm:$0xf]
        %v1236 = vld [vmem:[%s1101 + $0x94] sm:$0xf]
        %v1237 = vld [vmem:[%s1101 + $0x98] sm:$0xf]
        %v1238 = vld [vmem:[%s1101 + $0x9c] sm:$0xf]
        %v1239 = vld [vmem:[%s1101 + $0xa0] sm:$0xf]
        %v1240 = vld [vmem:[%s1101 + $0xa4] sm:$0xf]
        %v1241 = vld [vmem:[%s1101 + $0xa8] sm:$0xf]
        %v1242 = vld [vmem:[%s1101 + $0xac] sm:$0xf]
        %v1243 = vld [vmem:[%s1101 + $0xb0] sm:$0xf]
        %v1244 = vld [vmem:[%s1101 + $0xb4] sm:$0xf]
        %v1245 = vld [vmem:[%s1101 + $0xb8] sm:$0xf]
        %v1246 = vld [vmem:[%s1101 + $0xbc] sm:$0xf]
        %v1247 = vld [vmem:[%s1101 + $0xc0] sm:$0xf]
        %v1248 = vld [vmem:[%s1101 + $0xc4] sm:$0xf]
        %v1249 = vld [vmem:[%s1101 + $0xc8] sm:$0xf]
        %v1250 = vld [vmem:[%s1101 + $0xcc] sm:$0xf]
        %v1251 = vld [vmem:[%s1101 + $0xd0] sm:$0xf]
        %v1252 = vld [vmem:[%s1101 + $0xd4] sm:$0xf]
        %v1253 = vld [vmem:[%s1101 + $0xd8] sm:$0xf]
        %v1254 = vld [vmem:[%s1101 + $0xdc] sm:$0xf]
        %v1255 = vld [vmem:[%s1101 + $0xe0] sm:$0xf]
        %v1256 = vld [vmem:[%s1101 + $0xe4] sm:$0xf]
        %v1257 = vld [vmem:[%s1101 + $0xe8] sm:$0xf]
        %v1258 = vld [vmem:[%s1101 + $0xec] sm:$0xf]
        %v1259 = vld [vmem:[%s1101 + $0xf0] sm:$0xf]
        %v1260 = vld [vmem:[%s1101 + $0xf4] sm:$0xf]
        %v1261 = vld [vmem:[%s1101 + $0xf8] sm:$0xf]
        %v1262 = vld [vmem:[%s1101 + $0xfc] sm:$0xf]
        %v1263 = vld [vmem:[%s1101 + $0x100] sm:$0xf]
        %v1264 = vld [vmem:[%s1101 + $0x104] sm:$0xf]
        %v1265 = vld [vmem:[%s1101 + $0x108] sm:$0xf]
        %v1266 = vld [vmem:[%s1101 + $0x10c] sm:$0xf]
        %v1267 = vld [vmem:[%s1101 + $0x110] sm:$0xf]
        %v1268 = vld [vmem:[%s1101 + $0x114] sm:$0xf]
        %v1269 = vld [vmem:[%s1101 + $0x118] sm:$0xf]
        %v1270 = vld [vmem:[%s1101 + $0x11c] sm:$0xf]
        %v1271 = vld [vmem:[%s1101 + $0x120] sm:$0xf]
        %v1272 = vld [vmem:[%s1101 + $0x124] sm:$0xf]
        %v1273 = vld [vmem:[%s1101 + $0x128] sm:$0xf]
        %v1274 = vld [vmem:[%s1101 + $0x12c] sm:$0xf]
        %v1275 = vld [vmem:[%s1101 + $0x130] sm:$0xf]
        %v1276 = vld [vmem:[%s1101 + $0x134] sm:$0xf]
        %v1277 = vld [vmem:[%s1101 + $0x138] sm:$0xf]
        %v1278 = vld [vmem:[%s1101 + $0x13c] sm:$0xf]
        %v1279 = vld [vmem:[%s1101 + $0x140] sm:$0xf]
        %v1280 = vld [vmem:[%s1101 + $0x144] sm:$0xf]
        %v1281 = vld [vmem:[%s1101 + $0x148] sm:$0xf]
        %v1282 = vld [vmem:[%s1101 + $0x14c] sm:$0xf]
        %v1283 = vld [vmem:[%s1101 + $0x150] sm:$0xf]
        %v1284 = vld [vmem:[%s1101 + $0x154] sm:$0xf]
        %v1285 = vld [vmem:[%s1101 + $0x158] sm:$0xf]
        %v1286 = vld [vmem:[%s1101 + $0x15c] sm:$0xf]
        %v1287 = vld [vmem:[%s1101 + $0x160] sm:$0xf]
        %v1288 = vld [vmem:[%s1101 + $0x164] sm:$0xf]
        %v1289 = vld [vmem:[%s1101 + $0x168] sm:$0xf]
        %v1290 = vld [vmem:[%s1101 + $0x16c] sm:$0xf]
        %v1291 = vld [vmem:[%s1101 + $0x170] sm:$0xf]
        %v1292 = vld [vmem:[%s1101 + $0x174] sm:$0xf]
        %v1293 = vld [vmem:[%s1101 + $0x178] sm:$0xf]
        %v1294 = vld [vmem:[%s1101 + $0x17c] sm:$0xf]
        %v1295 = vld [vmem:[%s1101 + $0x180] sm:$0xf]
        %v1296 = vld [vmem:[%s1101 + $0x184] sm:$0xf]
        %v1297 = vld [vmem:[%s1101 + $0x188] sm:$0xf]
        %v1298 = vld [vmem:[%s1101 + $0x18c] sm:$0xf]
        %v1299 = vld [vmem:[%s1101 + $0x190] sm:$0xf]
        %v1300 = vld [vmem:[%s1101 + $0x194] sm:$0xf]
        %v1301 = vld [vmem:[%s1101 + $0x198] sm:$0xf]
        %v1302 = vld [vmem:[%s1101 + $0x19c] sm:$0xf]
        %v1303 = vld [vmem:[%s1101 + $0x1a0] sm:$0xf]
        %v1304 = vld [vmem:[%s1101 + $0x1a4] sm:$0xf]
        %v1305 = vld [vmem:[%s1101 + $0x1a8] sm:$0xf]
        %v1306 = vld [vmem:[%s1101 + $0x1ac] sm:$0xf]
        %v1307 = vld [vmem:[%s1101 + $0x1b0] sm:$0xf]
        %v1308 = vld [vmem:[%s1101 + $0x1b4] sm:$0xf]
        %v1309 = vld [vmem:[%s1101 + $0x1b8] sm:$0xf]
        %v1310 = vld [vmem:[%s1101 + $0x1bc] sm:$0xf]
        %v1311 = vld [vmem:[%s1101 + $0x1c0] sm:$0xf]
        %v1312 = vld [vmem:[%s1101 + $0x1c4] sm:$0xf]
        %v1313 = vld [vmem:[%s1101 + $0x1c8] sm:$0xf]
        %v1314 = vld [vmem:[%s1101 + $0x1cc] sm:$0xf]
        %v1315 = vld [vmem:[%s1101 + $0x1d0] sm:$0xf]
        %v1316 = vld [vmem:[%s1101 + $0x1d4] sm:$0xf]
        %v1317 = vld [vmem:[%s1101 + $0x1d8] sm:$0xf]
        %v1318 = vld [vmem:[%s1101 + $0x1dc] sm:$0xf]
        %v1319 = vld [vmem:[%s1101 + $0x1e0] sm:$0xf]
        %v1320 = vld [vmem:[%s1101 + $0x1e4] sm:$0xf]
        %v1321 = vld [vmem:[%s1101 + $0x1e8] sm:$0xf]
        %v1322 = vld [vmem:[%s1101 + $0x1ec] sm:$0xf]
        %v1323 = vld [vmem:[%s1101 + $0x1f0] sm:$0xf]
        %v1324 = vld [vmem:[%s1101 + $0x1f4] sm:$0xf]
        %v1325 = vld [vmem:[%s1101 + $0x1f8] sm:$0xf]
        %v1326 = vld [vmem:[%s1101 + $0x1fc] sm:$0xf]
        %v1327 = vld [vmem:[%s1101 + $0x200] sm:$0xf]
        %v1328 = vld [vmem:[%s1101 + $0x204] sm:$0xf]
        %v1329 = vld [vmem:[%s1101 + $0x208] sm:$0xf]
        %v1330 = vld [vmem:[%s1101 + $0x20c] sm:$0xf]
        %v1331 = vld [vmem:[%s1101 + $0x210] sm:$0xf]
        %v1332 = vld [vmem:[%s1101 + $0x214] sm:$0xf]
        %v1333 = vld [vmem:[%s1101 + $0x218] sm:$0xf]
        %v1334 = vld [vmem:[%s1101 + $0x21c] sm:$0xf]
        %v1335 = vld [vmem:[%s1101 + $0x220] sm:$0xf]
        %v1336 = vld [vmem:[%s1101 + $0x224] sm:$0xf]
        %v1337 = vld [vmem:[%s1101 + $0x228] sm:$0xf]
        %v1338 = vld [vmem:[%s1101 + $0x22c] sm:$0xf]
        %v1339 = vld [vmem:[%s1101 + $0x230] sm:$0xf]
        %v1340 = vld [vmem:[%s1101 + $0x234] sm:$0xf]
        %v1341 = vld [vmem:[%s1101 + $0x238] sm:$0xf]
        %v1342 = vld [vmem:[%s1101 + $0x23c] sm:$0xf]
        %v1343 = vld [vmem:[%s1101 + $0x240] sm:$0xf]
        %v1344 = vld [vmem:[%s1101 + $0x244] sm:$0xf]
        %v1345 = vld [vmem:[%s1101 + $0x248] sm:$0xf]
        %v1346 = vld [vmem:[%s1101 + $0x24c] sm:$0xf]
        %v1347 = vld [vmem:[%s1101 + $0x250] sm:$0xf]
        %v1348 = vld [vmem:[%s1101 + $0x254] sm:$0xf]
        %v1349 = vld [vmem:[%s1101 + $0x258] sm:$0xf]
        %v1350 = vld [vmem:[%s1101 + $0x25c] sm:$0xf]
        %v1351 = vld [vmem:[%s1101 + $0x260] sm:$0xf]
        %v1352 = vld [vmem:[%s1101 + $0x264] sm:$0xf]
        %v1353 = vld [vmem:[%s1101 + $0x268] sm:$0xf]
        %v1354 = vld [vmem:[%s1101 + $0x26c] sm:$0xf]
        %v1355 = vld [vmem:[%s1101 + $0x270] sm:$0xf]
        %v1356 = vld [vmem:[%s1101 + $0x274] sm:$0xf]
        %v1357 = vld [vmem:[%s1101 + $0x278] sm:$0xf]
        %v1358 = vld [vmem:[%s1101 + $0x27c] sm:$0xf]
        %v1359 = vld [vmem:[%s1101 + $0x280] sm:$0xf]
        %v1360 = vld [vmem:[%s1101 + $0x284] sm:$0xf]
        %v1361 = vld [vmem:[%s1101 + $0x288] sm:$0xf]
        %v1362 = vld [vmem:[%s1101 + $0x28c] sm:$0xf]
        %v1363 = vld [vmem:[%s1101 + $0x290] sm:$0xf]
        %v1364 = vld [vmem:[%s1101 + $0x294] sm:$0xf]
        %v1365 = vld [vmem:[%s1101 + $0x298] sm:$0xf]
        %v1366 = vld [vmem:[%s1101 + $0x29c] sm:$0xf]
        %v1367 = vld [vmem:[%s1101 + $0x2a0] sm:$0xf]
        %v1368 = vld [vmem:[%s1101 + $0x2a4] sm:$0xf]
        %v1369 = vld [vmem:[%s1101 + $0x2a8] sm:$0xf]
        %v1370 = vld [vmem:[%s1101 + $0x2ac] sm:$0xf]
        %v1371 = vld [vmem:[%s1101 + $0x2b0] sm:$0xf]
        %v1372 = vld [vmem:[%s1101 + $0x2b4] sm:$0xf]
        %v1373 = vld [vmem:[%s1101 + $0x2b8] sm:$0xf]
        %v1374 = vld [vmem:[%s1101 + $0x2bc] sm:$0xf]
        %v1375 = vld [vmem:[%s1101 + $0x2c0] sm:$0xf]
        %v1376 = vld [vmem:[%s1101 + $0x2c4] sm:$0xf]
        %v1377 = vld [vmem:[%s1101 + $0x2c8] sm:$0xf]
        %v1378 = vld [vmem:[%s1101 + $0x2cc] sm:$0xf]
        %v1379 = vld [vmem:[%s1101 + $0x2d0] sm:$0xf]
        %v1380 = vld [vmem:[%s1101 + $0x2d4] sm:$0xf]
        %v1381 = vld [vmem:[%s1101 + $0x2d8] sm:$0xf]
        %v1382 = vld [vmem:[%s1101 + $0x2dc] sm:$0xf]
        %v1383 = vld [vmem:[%s1101 + $0x2e0] sm:$0xf]
        %v1384 = vld [vmem:[%s1101 + $0x2e4] sm:$0xf]
        %v1385 = vld [vmem:[%s1101 + $0x2e8] sm:$0xf]
        %v1386 = vld [vmem:[%s1101 + $0x2ec] sm:$0xf]
        %v1387 = vld [vmem:[%s1101 + $0x2f0] sm:$0xf]
        %v1388 = vld [vmem:[%s1101 + $0x2f4] sm:$0xf]
        %v1389 = vld [vmem:[%s1101 + $0x2f8] sm:$0xf]
        %v1390 = vld [vmem:[%s1101 + $0x2fc] sm:$0xf]
        %v1391 = vld [vmem:[%s1101 + $0x300] sm:$0xf]
        %v1392 = vld [vmem:[%s1101 + $0x304] sm:$0xf]
        %v1393 = vld [vmem:[%s1101 + $0x308] sm:$0xf]
        %v1394 = vld [vmem:[%s1101 + $0x30c] sm:$0xf]
        %v1395 = vld [vmem:[%s1101 + $0x310] sm:$0xf]
        %v1396 = vld [vmem:[%s1101 + $0x314] sm:$0xf]
        %v1397 = vld [vmem:[%s1101 + $0x318] sm:$0xf]
        %v1398 = vld [vmem:[%s1101 + $0x31c] sm:$0xf]
        %v1399 = vld [vmem:[%s1101 + $0x320] sm:$0xf]
        %v1400 = vld [vmem:[%s1101 + $0x324] sm:$0xf]
        %v1401 = vld [vmem:[%s1101 + $0x328] sm:$0xf]
        %v1402 = vld [vmem:[%s1101 + $0x32c] sm:$0xf]
        %v1403 = vld [vmem:[%s1101 + $0x330] sm:$0xf]
        %v1404 = vld [vmem:[%s1101 + $0x334] sm:$0xf]
        %v1405 = vld [vmem:[%s1101 + $0x338] sm:$0xf]
        %v1406 = vld [vmem:[%s1101 + $0x33c] sm:$0xf]
        %v1407 = vld [vmem:[%s1101 + $0x340] sm:$0xf]
        %v1408 = vld [vmem:[%s1101 + $0x344] sm:$0xf]
        %v1409 = vld [vmem:[%s1101 + $0x348] sm:$0xf]
        %v1410 = vld [vmem:[%s1101 + $0x34c] sm:$0xf]
        %v1411 = vld [vmem:[%s1101 + $0x350] sm:$0xf]
        %v1412 = vld [vmem:[%s1101 + $0x354] sm:$0xf]
        %v1413 = vld [vmem:[%s1101 + $0x358] sm:$0xf]
        %v1414 = vld [vmem:[%s1101 + $0x35c] sm:$0xf]
        %v1443 = vunpack.c.l.b16 %v1171
        %v1444 = vunpack.c.h.b16 %v1171
        %v1445 = vunpack.c.l.b16 %v1172
        %v1446 = vunpack.c.h.b16 %v1172
        %v1447 = vunpack.c.l.b16 %v1173
        %v1448 = vunpack.c.h.b16 %v1173
        %v1449 = vunpack.c.l.b16 %v1174
        %v1450 = vunpack.c.h.b16 %v1174
        %v1451 = vunpack.c.l.b16 %v1175
        %v1452 = vunpack.c.h.b16 %v1175
        %v1453 = vunpack.c.l.b16 %v1176
        %v1454 = vunpack.c.h.b16 %v1176
        %v1455 = vunpack.c.l.b16 %v1177
        %v1456 = vunpack.c.h.b16 %v1177
        %v1457 = vunpack.c.l.b16 %v1178
        %v1458 = vunpack.c.h.b16 %v1178
        %v1459 = vunpack.c.l.b16 %v1179
        %v1460 = vunpack.c.h.b16 %v1179
        %v1461 = vunpack.c.l.b16 %v1180
        %v1462 = vunpack.c.h.b16 %v1180
        %v1463 = vunpack.c.l.b16 %v1181
        %v1464 = vunpack.c.h.b16 %v1181
        %v1465 = vunpack.c.l.b16 %v1182
        %v1466 = vunpack.c.h.b16 %v1182
        %v1467 = vunpack.c.l.b16 %v1183
        %v1468 = vunpack.c.h.b16 %v1183
        %v1469 = vunpack.c.l.b16 %v1184
        %v1470 = vunpack.c.h.b16 %v1184
        %v1471 = vunpack.c.l.b16 %v1185
        %v1472 = vunpack.c.h.b16 %v1185
        %v1473 = vunpack.c.l.b16 %v1186
        %v1474 = vunpack.c.h.b16 %v1186
        %v1475 = vunpack.c.l.b16 %v1187
        %v1476 = vunpack.c.h.b16 %v1187
        %v1477 = vunpack.c.l.b16 %v1188
        %v1478 = vunpack.c.h.b16 %v1188
        %v1479 = vunpack.c.l.b16 %v1189
        %v1480 = vunpack.c.h.b16 %v1189
        %v1481 = vunpack.c.l.b16 %v1190
        %v1482 = vunpack.c.h.b16 %v1190
        %v1483 = vunpack.c.l.b16 %v1191
        %v1484 = vunpack.c.h.b16 %v1191
        %v1485 = vunpack.c.l.b16 %v1192
        %v1486 = vunpack.c.h.b16 %v1192
        %v1487 = vunpack.c.l.b16 %v1193
        %v1488 = vunpack.c.h.b16 %v1193
        %v1489 = vunpack.c.l.b16 %v1194
        %v1490 = vunpack.c.h.b16 %v1194
        %v1491 = vunpack.c.l.b16 %v1195
        %v1492 = vunpack.c.h.b16 %v1195
        %v1493 = vunpack.c.l.b16 %v1196
        %v1494 = vunpack.c.h.b16 %v1196
        %v1495 = vunpack.c.l.b16 %v1197
        %v1496 = vunpack.c.h.b16 %v1197
        %v1497 = vunpack.c.l.b16 %v1198
        %v1498 = vunpack.c.h.b16 %v1198
        %v1499 = vpack.c.b16 %v1457, %v1443
        %v1500 = vpack.c.b16 %v1458, %v1444
        %v1501 = vpack.c.b16 %v1459, %v1445
        %v1502 = vpack.c.b16 %v1460, %v1446
        %v1503 = vpack.c.b16 %v1461, %v1447
        %v1504 = vpack.c.b16 %v1462, %v1448
        %v1505 = vpack.c.b16 %v1463, %v1449
        %v1506 = vpack.c.b16 %v1464, %v1450
        %v1507 = vpack.c.b16 %v1465, %v1451
        %v1508 = vpack.c.b16 %v1466, %v1452
        %v1509 = vpack.c.b16 %v1467, %v1453
        %v1510 = vpack.c.b16 %v1468, %v1454
        %v1511 = vpack.c.b16 %v1469, %v1455
        %v1512 = vpack.c.b16 %v1470, %v1456
        %v1513 = vpack.c.b16 %v1485, %v1471
        %v1514 = vpack.c.b16 %v1486, %v1472
        %v1515 = vpack.c.b16 %v1487, %v1473
        %v1516 = vpack.c.b16 %v1488, %v1474
        %v1517 = vpack.c.b16 %v1489, %v1475
        %v1518 = vpack.c.b16 %v1490, %v1476
        %v1519 = vpack.c.b16 %v1491, %v1477
        %v1520 = vpack.c.b16 %v1492, %v1478
        %v1521 = vpack.c.b16 %v1493, %v1479
        %v1522 = vpack.c.b16 %v1494, %v1480
        %v1523 = vpack.c.b16 %v1495, %v1481
        %v1524 = vpack.c.b16 %v1496, %v1482
        %v1525 = vpack.c.b16 %v1497, %v1483
        %v1526 = vpack.c.b16 %v1498, %v1484
        %v1769 = vunpack.c.l.b16 %v1199
        %v1770 = vunpack.c.l.b16 %v1200
        %v1771 = vunpack.c.l.b16 %v1201
        %v1772 = vunpack.c.l.b16 %v1202
        %v1773 = vunpack.c.l.b16 %v1203
        %v1774 = vunpack.c.l.b16 %v1204
        %v1775 = vunpack.c.l.b16 %v1205
        %v1776 = vunpack.c.l.b16 %v1206
        %v1777 = vunpack.c.l.b16 %v1207
        %v1778 = vunpack.c.l.b16 %v1208
        %v1779 = vunpack.c.l.b16 %v1209
        %v1780 = vunpack.c.l.b16 %v1210
        %v1781 = vunpack.c.l.b16 %v1211
        %v1782 = vunpack.c.l.b16 %v1212
        %v1783 = vunpack.c.l.b16 %v1213
        %v1784 = vunpack.c.l.b16 %v1214
        %v1785 = vunpack.c.l.b16 %v1215
        %v1786 = vunpack.c.l.b16 %v1216
        %v1787 = vunpack.c.l.b16 %v1217
        %v1788 = vunpack.c.l.b16 %v1218
        %v1789 = vunpack.c.l.b16 %v1219
        %v1790 = vunpack.c.l.b16 %v1220
        %v1791 = vunpack.c.l.b16 %v1221
        %v1792 = vunpack.c.l.b16 %v1222
        %v1793 = vunpack.c.l.b16 %v1223
        %v1794 = vunpack.c.l.b16 %v1224
        %v1795 = vunpack.c.l.b16 %v1225
        %v1796 = vunpack.c.l.b16 %v1226
        %v1797 = vunpack.c.l.b16 %v1227
        %v1798 = vunpack.c.l.b16 %v1228
        %v1799 = vunpack.c.l.b16 %v1229
        %v1800 = vunpack.c.l.b16 %v1230
        %v1801 = vunpack.c.l.b16 %v1231
        %v1802 = vunpack.c.l.b16 %v1232
        %v1803 = vunpack.c.l.b16 %v1233
        %v1804 = vunpack.c.l.b16 %v1234
        %v1805 = vunpack.c.l.b16 %v1235
        %v1806 = vunpack.c.l.b16 %v1236
        %v1807 = vunpack.c.l.b16 %v1237
        %v1808 = vunpack.c.l.b16 %v1238
        %v1809 = vunpack.c.l.b16 %v1239
        %v1810 = vunpack.c.l.b16 %v1240
        %v1811 = vunpack.c.l.b16 %v1241
        %v1812 = vunpack.c.l.b16 %v1242
        %v1813 = vunpack.c.l.b16 %v1243
        %v1814 = vunpack.c.l.b16 %v1244
        %v1815 = vunpack.c.l.b16 %v1245
        %v1816 = vunpack.c.l.b16 %v1246
        %v1817 = vunpack.c.l.b16 %v1247
        %v1818 = vunpack.c.l.b16 %v1248
        %v1819 = vunpack.c.l.b16 %v1249
        %v1820 = vunpack.c.l.b16 %v1250
        %v1821 = vunpack.c.l.b16 %v1251
        %v1822 = vunpack.c.l.b16 %v1252
        %v1823 = vunpack.c.l.b16 %v1253
        %v1824 = vunpack.c.l.b16 %v1254
        %v1825 = vunpack.c.l.b16 %v1255
        %v1826 = vunpack.c.l.b16 %v1256
        %v1827 = vunpack.c.l.b16 %v1257
        %v1828 = vunpack.c.l.b16 %v1258
        %v1829 = vunpack.c.l.b16 %v1259
        %v1830 = vunpack.c.l.b16 %v1260
        %v1831 = vunpack.c.l.b16 %v1261
        %v1832 = vunpack.c.l.b16 %v1262
        %v1833 = vunpack.c.l.b16 %v1263
        %v1834 = vunpack.c.l.b16 %v1264
        %v1835 = vunpack.c.l.b16 %v1265
        %v1836 = vunpack.c.l.b16 %v1266
        %v1837 = vunpack.c.l.b16 %v1267
        %v1838 = vunpack.c.l.b16 %v1268
        %v1839 = vunpack.c.l.b16 %v1269
        %v1840 = vunpack.c.l.b16 %v1270
        %v1841 = vunpack.c.l.b16 %v1271
        %v1842 = vunpack.c.l.b16 %v1272
        %v1843 = vunpack.c.l.b16 %v1273
        %v1844 = vunpack.c.l.b16 %v1274
        %v1845 = vunpack.c.l.b16 %v1275
        %v1846 = vunpack.c.l.b16 %v1276
        %v1847 = vunpack.c.l.b16 %v1277
        %v1848 = vunpack.c.l.b16 %v1278
        %v1849 = vunpack.c.l.b16 %v1279
        %v1850 = vunpack.c.l.b16 %v1280
        %v1851 = vunpack.c.l.b16 %v1281
        %v1852 = vunpack.c.l.b16 %v1282
        %v1853 = vunpack.c.l.b16 %v1283
        %v1854 = vunpack.c.l.b16 %v1284
        %v1855 = vunpack.c.l.b16 %v1285
        %v1856 = vunpack.c.l.b16 %v1286
        %v1857 = vunpack.c.l.b16 %v1287
        %v1858 = vunpack.c.l.b16 %v1288
        %v1859 = vunpack.c.l.b16 %v1289
        %v1860 = vunpack.c.l.b16 %v1290
        %v1861 = vunpack.c.l.b16 %v1291
        %v1862 = vunpack.c.l.b16 %v1292
        %v1863 = vunpack.c.l.b16 %v1293
        %v1864 = vunpack.c.l.b16 %v1294
        %v1865 = vunpack.c.l.b16 %v1295
        %v1866 = vunpack.c.l.b16 %v1296
        %v1867 = vunpack.c.l.b16 %v1297
        %v1868 = vunpack.c.l.b16 %v1298
        %v1869 = vunpack.c.l.b16 %v1299
        %v1870 = vunpack.c.l.b16 %v1300
        %v1871 = vunpack.c.l.b16 %v1301
        %v1872 = vunpack.c.l.b16 %v1302
        %v1873 = vunpack.c.l.b16 %v1303
        %v1874 = vunpack.c.l.b16 %v1304
        %v1875 = vunpack.c.l.b16 %v1305
        %v1876 = vunpack.c.l.b16 %v1306
        %v1877 = vunpack.c.l.b16 %v1307
        %v1878 = vunpack.c.l.b16 %v1308
        %v1879 = vunpack.c.l.b16 %v1309
        %v1880 = vunpack.c.l.b16 %v1310
        %v1881 = vunpack.c.l.b16 %v1311
        %v1882 = vunpack.c.l.b16 %v1312
        %v1883 = vunpack.c.l.b16 %v1313
        %v1884 = vunpack.c.l.b16 %v1314
        %v1885 = vunpack.c.l.b16 %v1315
        %v1886 = vunpack.c.l.b16 %v1316
        %v1887 = vunpack.c.l.b16 %v1317
        %v1888 = vunpack.c.l.b16 %v1318
        %v1889 = vunpack.c.l.b16 %v1319
        %v1890 = vunpack.c.l.b16 %v1320
        %v1891 = vunpack.c.l.b16 %v1321
        %v1892 = vunpack.c.l.b16 %v1322
        %v1893 = vunpack.c.l.b16 %v1323
        %v1894 = vunpack.c.l.b16 %v1324
        %v1895 = vunpack.c.l.b16 %v1325
        %v1896 = vunpack.c.l.b16 %v1326
        %v1897 = vunpack.c.l.b16 %v1327
        %v1898 = vunpack.c.l.b16 %v1328
        %v1899 = vunpack.c.l.b16 %v1329
        %v1900 = vunpack.c.l.b16 %v1330
        %v1901 = vunpack.c.l.b16 %v1331
        %v1902 = vunpack.c.l.b16 %v1332
        %v1903 = vunpack.c.l.b16 %v1333
        %v1904 = vunpack.c.l.b16 %v1334
        %v1905 = vunpack.c.l.b16 %v1335
        %v1906 = vunpack.c.l.b16 %v1336
        %v1907 = vunpack.c.l.b16 %v1337
        %v1908 = vunpack.c.l.b16 %v1338
        %v1909 = vunpack.c.l.b16 %v1339
        %v1910 = vunpack.c.l.b16 %v1340
        %v1911 = vunpack.c.l.b16 %v1341
        %v1912 = vunpack.c.l.b16 %v1342
        %v1913 = vunpack.c.l.b16 %v1343
        %v1914 = vunpack.c.l.b16 %v1344
        %v1915 = vunpack.c.l.b16 %v1345
        %v1916 = vunpack.c.l.b16 %v1346
        %v1917 = vunpack.c.l.b16 %v1347
        %v1918 = vunpack.c.l.b16 %v1348
        %v1919 = vunpack.c.l.b16 %v1349
        %v1920 = vunpack.c.l.b16 %v1350
        %v1921 = vunpack.c.l.b16 %v1351
        %v1922 = vunpack.c.l.b16 %v1352
        %v1923 = vunpack.c.l.b16 %v1353
        %v1924 = vunpack.c.l.b16 %v1354
        %v1925 = vunpack.c.l.b16 %v1355
        %v1926 = vunpack.c.l.b16 %v1356
        %v1927 = vunpack.c.l.b16 %v1357
        %v1928 = vunpack.c.l.b16 %v1358
        %v1929 = vunpack.c.l.b16 %v1359
        %v1930 = vunpack.c.l.b16 %v1360
        %v1931 = vunpack.c.l.b16 %v1361
        %v1932 = vunpack.c.l.b16 %v1362
        %v1933 = vunpack.c.l.b16 %v1363
        %v1934 = vunpack.c.l.b16 %v1364
        %v1935 = vunpack.c.l.b16 %v1365
        %v1936 = vunpack.c.l.b16 %v1366
        %v1937 = vunpack.c.l.b16 %v1367
        %v1938 = vunpack.c.l.b16 %v1368
        %v1939 = vunpack.c.l.b16 %v1369
        %v1940 = vunpack.c.l.b16 %v1370
        %v1941 = vunpack.c.l.b16 %v1371
        %v1942 = vunpack.c.l.b16 %v1372
        %v1943 = vunpack.c.l.b16 %v1373
        %v1944 = vunpack.c.l.b16 %v1374
        %v1945 = vunpack.c.l.b16 %v1375
        %v1946 = vunpack.c.l.b16 %v1376
        %v1947 = vunpack.c.l.b16 %v1377
        %v1948 = vunpack.c.l.b16 %v1378
        %v1949 = vunpack.c.l.b16 %v1379
        %v1950 = vunpack.c.l.b16 %v1380
        %v1951 = vunpack.c.l.b16 %v1381
        %v1952 = vunpack.c.l.b16 %v1382
        %v1953 = vunpack.c.l.b16 %v1383
        %v1954 = vunpack.c.l.b16 %v1384
        %v1955 = vunpack.c.l.b16 %v1385
        %v1956 = vunpack.c.l.b16 %v1386
        %v1957 = vunpack.c.l.b16 %v1387
        %v1958 = vunpack.c.l.b16 %v1388
        %v1959 = vunpack.c.l.b16 %v1389
        %v1960 = vunpack.c.l.b16 %v1390
        %v1961 = vunpack.c.l.b16 %v1391
        %v1962 = vunpack.c.l.b16 %v1392
        %v1963 = vunpack.c.l.b16 %v1393
        %v1964 = vunpack.c.l.b16 %v1394
        %v1965 = vunpack.c.l.b16 %v1395
        %v1966 = vunpack.c.l.b16 %v1396
        %v1967 = vunpack.c.l.b16 %v1397
        %v1968 = vunpack.c.l.b16 %v1398
        %v1969 = vunpack.c.l.b16 %v1399
        %v1970 = vunpack.c.l.b16 %v1400
        %v1971 = vunpack.c.l.b16 %v1401
        %v1972 = vunpack.c.l.b16 %v1402
        %v1973 = vunpack.c.l.b16 %v1403
        %v1974 = vunpack.c.l.b16 %v1404
        %v1975 = vunpack.c.l.b16 %v1405
        %v1976 = vunpack.c.l.b16 %v1406
        %v1977 = vunpack.c.l.b16 %v1407
        %v1978 = vunpack.c.l.b16 %v1408
        %v1979 = vunpack.c.l.b16 %v1409
        %v1980 = vunpack.c.l.b16 %v1410
        %v1981 = vunpack.c.l.b16 %v1411
        %v1982 = vunpack.c.l.b16 %v1412
        %v1983 = vunpack.c.l.b16 %v1413
        %v1984 = vunpack.c.l.b16 %v1414
        %v1985 = vpack.c.b16 %v1770, %v1769
        %v1986 = vpack.c.b16 %v1772, %v1771
        %v1987 = vpack.c.b16 %v1774, %v1773
        %v1988 = vpack.c.b16 %v1776, %v1775
        %v1989 = vpack.c.b16 %v1778, %v1777
        %v1990 = vpack.c.b16 %v1780, %v1779
        %v1991 = vpack.c.b16 %v1782, %v1781
        %v1992 = vpack.c.b16 %v1784, %v1783
        %v1993 = vpack.c.b16 %v1786, %v1785
        %v1994 = vpack.c.b16 %v1788, %v1787
        %v1995 = vpack.c.b16 %v1790, %v1789
        %v1996 = vpack.c.b16 %v1792, %v1791
        %v1997 = vpack.c.b16 %v1794, %v1793
        %v1998 = vpack.c.b16 %v1796, %v1795
        %v1999 = vpack.c.b16 %v1798, %v1797
        %v2000 = vpack.c.b16 %v1800, %v1799
        %v2001 = vpack.c.b16 %v1802, %v1801
        %v2002 = vpack.c.b16 %v1804, %v1803
        %v2003 = vpack.c.b16 %v1806, %v1805
        %v2004 = vpack.c.b16 %v1808, %v1807
        %v2005 = vpack.c.b16 %v1810, %v1809
        %v2006 = vpack.c.b16 %v1812, %v1811
        %v2007 = vpack.c.b16 %v1814, %v1813
        %v2008 = vpack.c.b16 %v1816, %v1815
        %v2009 = vpack.c.b16 %v1818, %v1817
        %v2010 = vpack.c.b16 %v1820, %v1819
        %v2011 = vpack.c.b16 %v1822, %v1821
        %v2012 = vpack.c.b16 %v1824, %v1823
        %v2013 = vpack.c.b16 %v1826, %v1825
        %v2014 = vpack.c.b16 %v1828, %v1827
        %v2015 = vpack.c.b16 %v1830, %v1829
        %v2016 = vpack.c.b16 %v1832, %v1831
        %v2017 = vpack.c.b16 %v1834, %v1833
        %v2018 = vpack.c.b16 %v1836, %v1835
        %v2019 = vpack.c.b16 %v1838, %v1837
        %v2020 = vpack.c.b16 %v1840, %v1839
        %v2021 = vpack.c.b16 %v1842, %v1841
        %v2022 = vpack.c.b16 %v1844, %v1843
        %v2023 = vpack.c.b16 %v1846, %v1845
        %v2024 = vpack.c.b16 %v1848, %v1847
        %v2025 = vpack.c.b16 %v1850, %v1849
        %v2026 = vpack.c.b16 %v1852, %v1851
        %v2027 = vpack.c.b16 %v1854, %v1853
        %v2028 = vpack.c.b16 %v1856, %v1855
        %v2029 = vpack.c.b16 %v1858, %v1857
        %v2030 = vpack.c.b16 %v1860, %v1859
        %v2031 = vpack.c.b16 %v1862, %v1861
        %v2032 = vpack.c.b16 %v1864, %v1863
        %v2033 = vpack.c.b16 %v1866, %v1865
        %v2034 = vpack.c.b16 %v1868, %v1867
        %v2035 = vpack.c.b16 %v1870, %v1869
        %v2036 = vpack.c.b16 %v1872, %v1871
        %v2037 = vpack.c.b16 %v1874, %v1873
        %v2038 = vpack.c.b16 %v1876, %v1875
        %v2039 = vpack.c.b16 %v1878, %v1877
        %v2040 = vpack.c.b16 %v1880, %v1879
        %v2041 = vpack.c.b16 %v1882, %v1881
        %v2042 = vpack.c.b16 %v1884, %v1883
        %v2043 = vpack.c.b16 %v1886, %v1885
        %v2044 = vpack.c.b16 %v1888, %v1887
        %v2045 = vpack.c.b16 %v1890, %v1889
        %v2046 = vpack.c.b16 %v1892, %v1891
        %v2047 = vpack.c.b16 %v1894, %v1893
        %v2048 = vpack.c.b16 %v1896, %v1895
        %v2049 = vpack.c.b16 %v1898, %v1897
        %v2050 = vpack.c.b16 %v1900, %v1899
        %v2051 = vpack.c.b16 %v1902, %v1901
        %v2052 = vpack.c.b16 %v1904, %v1903
        %v2053 = vpack.c.b16 %v1906, %v1905
        %v2054 = vpack.c.b16 %v1908, %v1907
        %v2055 = vpack.c.b16 %v1910, %v1909
        %v2056 = vpack.c.b16 %v1912, %v1911
        %v2057 = vpack.c.b16 %v1914, %v1913
        %v2058 = vpack.c.b16 %v1916, %v1915
        %v2059 = vpack.c.b16 %v1918, %v1917
        %v2060 = vpack.c.b16 %v1920, %v1919
        %v2061 = vpack.c.b16 %v1922, %v1921
        %v2062 = vpack.c.b16 %v1924, %v1923
        %v2063 = vpack.c.b16 %v1926, %v1925
        %v2064 = vpack.c.b16 %v1928, %v1927
        %v2065 = vpack.c.b16 %v1930, %v1929
        %v2066 = vpack.c.b16 %v1932, %v1931
        %v2067 = vpack.c.b16 %v1934, %v1933
        %v2068 = vpack.c.b16 %v1936, %v1935
        %v2069 = vpack.c.b16 %v1938, %v1937
        %v2070 = vpack.c.b16 %v1940, %v1939
        %v2071 = vpack.c.b16 %v1942, %v1941
        %v2072 = vpack.c.b16 %v1944, %v1943
        %v2073 = vpack.c.b16 %v1946, %v1945
        %v2074 = vpack.c.b16 %v1948, %v1947
        %v2075 = vpack.c.b16 %v1950, %v1949
        %v2076 = vpack.c.b16 %v1952, %v1951
        %v2077 = vpack.c.b16 %v1954, %v1953
        %v2078 = vpack.c.b16 %v1956, %v1955
        %v2079 = vpack.c.b16 %v1958, %v1957
        %v2080 = vpack.c.b16 %v1960, %v1959
        %v2081 = vpack.c.b16 %v1962, %v1961
        %v2082 = vpack.c.b16 %v1964, %v1963
        %v2083 = vpack.c.b16 %v1966, %v1965
        %v2084 = vpack.c.b16 %v1968, %v1967
        %v2085 = vpack.c.b16 %v1970, %v1969
        %v2086 = vpack.c.b16 %v1972, %v1971
        %v2087 = vpack.c.b16 %v1974, %v1973
        %v2088 = vpack.c.b16 %v1976, %v1975
        %v2089 = vpack.c.b16 %v1978, %v1977
        %v2090 = vpack.c.b16 %v1980, %v1979
        %v2091 = vpack.c.b16 %v1982, %v1981
        %v2092 = vpack.c.b16 %v1984, %v1983
        %vm2201 = vcmask 523264
        %v2203 = vsel %vm2201, %v1512, 0
        %v2206 = vsel %vm2201, %v1526, 0
        %2208 = vmatprep.subr.bf16.mxu0 0
        %2209 = vmatpush1.bf16.msra.mxu0 %v1992
        %2210 = vmatprep.subr.bf16.mxu0 0
        %2211 = vmatpush1.bf16.msra.mxu0 %v1991
        %2212 = vmatprep.subr.bf16.mxu0 0
        %2213 = vmatpush1.bf16.msra.mxu0 %v1990
        %2214 = vmatprep.subr.bf16.mxu0 0
        %2215 = vmatpush1.bf16.msra.mxu0 %v1989
        %2216 = vmatprep.subr.bf16.mxu0 0
        %2217 = vmatpush1.bf16.msra.mxu0 %v1988
        %2218 = vmatprep.subr.bf16.mxu0 0
        %2219 = vmatpush1.bf16.msra.mxu0 %v1987
        %2220 = vmatprep.subr.bf16.mxu0 0
        %2221 = vmatpush1.bf16.msra.mxu0 %v1986
        %2222 = vmatprep.subr.bf16.mxu0 0
        %2223 = vmatpush1.bf16.msra.mxu0 %v1985
        %2224 = vmatprep.subr.bf16.mxu0 0
        %2225 = vmatpush2.bf16.msra.mxu0 %v2000
        %2226 = vmatprep.subr.bf16.mxu0 0
        %2227 = vmatpush2.bf16.msra.mxu0 %v1999
        %2228 = vmatprep.subr.bf16.mxu0 0
        %2229 = vmatpush2.bf16.msra.mxu0 %v1998
        %2230 = vmatprep.subr.bf16.mxu0 0
        %2231 = vmatpush2.bf16.msra.mxu0 %v1997
        %2232 = vmatprep.subr.bf16.mxu0 0
        %2233 = vmatpush2.bf16.msra.mxu0 %v1996
        %2234 = vmatprep.subr.bf16.mxu0 0
        %2235 = vmatpush2.bf16.msra.mxu0 %v1995
        %2236 = vmatprep.subr.bf16.mxu0 0
        %2237 = vmatpush2.bf16.msra.mxu0 %v1994
        %2238 = vmatprep.subr.bf16.mxu0 0
        %2239 = vmatpush2.bf16.msra.mxu0 %v1993
        %2240 = vmatprep.mubr.bf16.mxu0 %v1500
        %2241 = vmatmul.mubr.bf16.gmra.mxu0 %v1499
        %v2242 = vpop.f32.mrf.mxu0
        %v2243 = vadd.f32 0.0, %v2242
        %v2244 = vpop.f32.mrf.mxu0
        %v2245 = vpop.f32.mrf.mxu0
        %v2246 = vadd.f32 0.0, %v2245
        %v2247 = vpop.f32.mrf.mxu0
        %2248 = vmatprep.mubr.bf16.mxu0 %v1514
        %2249 = vmatmul.mubr.bf16.gmra.mxu0 %v1513
        %v2250 = vpop.f32.mrf.mxu0
        %v2251 = vadd.f32 0.0, %v2250
        %v2252 = vpop.f32.mrf.mxu0
        %v2253 = vpop.f32.mrf.mxu0
        %v2254 = vadd.f32 0.0, %v2253
        %v2255 = vpop.f32.mrf.mxu0
        %2256 = vdwg.mxu0
        %2257 = vmatprep.subr.bf16.mxu0 0
        %2258 = vmatpush1.bf16.msra.mxu0 %v2008
        %2259 = vmatprep.subr.bf16.mxu0 0
        %2260 = vmatpush1.bf16.msra.mxu0 %v2007
        %2261 = vmatprep.subr.bf16.mxu0 0
        %2262 = vmatpush1.bf16.msra.mxu0 %v2006
        %2263 = vmatprep.subr.bf16.mxu0 0
        %2264 = vmatpush1.bf16.msra.mxu0 %v2005
        %2265 = vmatprep.subr.bf16.mxu0 0
        %2266 = vmatpush1.bf16.msra.mxu0 %v2004
        %2267 = vmatprep.subr.bf16.mxu0 0
        %2268 = vmatpush1.bf16.msra.mxu0 %v2003
        %2269 = vmatprep.subr.bf16.mxu0 0
        %2270 = vmatpush1.bf16.msra.mxu0 %v2002
        %2271 = vmatprep.subr.bf16.mxu0 0
        %2272 = vmatpush1.bf16.msra.mxu0 %v2001
        %2273 = vmatprep.subr.bf16.mxu0 0
        %2274 = vmatpush2.bf16.msra.mxu0 %v2016
        %2275 = vmatprep.subr.bf16.mxu0 0
        %2276 = vmatpush2.bf16.msra.mxu0 %v2015
        %2277 = vmatprep.subr.bf16.mxu0 0
        %2278 = vmatpush2.bf16.msra.mxu0 %v2014
        %2279 = vmatprep.subr.bf16.mxu0 0
        %2280 = vmatpush2.bf16.msra.mxu0 %v2013
        %2281 = vmatprep.subr.bf16.mxu0 0
        %2282 = vmatpush2.bf16.msra.mxu0 %v2012
        %2283 = vmatprep.subr.bf16.mxu0 0
        %2284 = vmatpush2.bf16.msra.mxu0 %v2011
        %2285 = vmatprep.subr.bf16.mxu0 0
        %2286 = vmatpush2.bf16.msra.mxu0 %v2010
        %2287 = vmatprep.subr.bf16.mxu0 0
        %2288 = vmatpush2.bf16.msra.mxu0 %v2009
        %2289 = vmatprep.mubr.bf16.mxu0 %v1502
        %2290 = vmatmul.mubr.bf16.gmra.mxu0 %v1501
        %v2291 = vpop.f32.mrf.mxu0
        %v2292 = vadd.f32 %v2243, %v2291
        %v2293 = vpop.f32.mrf.mxu0
        %v2294 = vpop.f32.mrf.mxu0
        %v2295 = vadd.f32 %v2246, %v2294
        %v2296 = vpop.f32.mrf.mxu0
        %2297 = vmatprep.mubr.bf16.mxu0 %v1516
        %2298 = vmatmul.mubr.bf16.gmra.mxu0 %v1515
        %v2299 = vpop.f32.mrf.mxu0
        %v2300 = vadd.f32 %v2251, %v2299
        %v2301 = vpop.f32.mrf.mxu0
        %v2302 = vpop.f32.mrf.mxu0
        %v2303 = vadd.f32 %v2254, %v2302
        %v2304 = vpop.f32.mrf.mxu0
        %2305 = vdwg.mxu0
        %2306 = vmatprep.subr.bf16.mxu0 0
        %2307 = vmatpush1.bf16.msra.mxu0 %v2024
        %2308 = vmatprep.subr.bf16.mxu0 0
        %2309 = vmatpush1.bf16.msra.mxu0 %v2023
        %2310 = vmatprep.subr.bf16.mxu0 0
        %2311 = vmatpush1.bf16.msra.mxu0 %v2022
        %2312 = vmatprep.subr.bf16.mxu0 0
        %2313 = vmatpush1.bf16.msra.mxu0 %v2021
        %2314 = vmatprep.subr.bf16.mxu0 0
        %2315 = vmatpush1.bf16.msra.mxu0 %v2020
        %2316 = vmatprep.subr.bf16.mxu0 0
        %2317 = vmatpush1.bf16.msra.mxu0 %v2019
        %2318 = vmatprep.subr.bf16.mxu0 0
        %2319 = vmatpush1.bf16.msra.mxu0 %v2018
        %2320 = vmatprep.subr.bf16.mxu0 0
        %2321 = vmatpush1.bf16.msra.mxu0 %v2017
        %2322 = vmatprep.subr.bf16.mxu0 0
        %2323 = vmatpush2.bf16.msra.mxu0 %v2032
        %2324 = vmatprep.subr.bf16.mxu0 0
        %2325 = vmatpush2.bf16.msra.mxu0 %v2031
        %2326 = vmatprep.subr.bf16.mxu0 0
        %2327 = vmatpush2.bf16.msra.mxu0 %v2030
        %2328 = vmatprep.subr.bf16.mxu0 0
        %2329 = vmatpush2.bf16.msra.mxu0 %v2029
        %2330 = vmatprep.subr.bf16.mxu0 0
        %2331 = vmatpush2.bf16.msra.mxu0 %v2028
        %2332 = vmatprep.subr.bf16.mxu0 0
        %2333 = vmatpush2.bf16.msra.mxu0 %v2027
        %2334 = vmatprep.subr.bf16.mxu0 0
        %2335 = vmatpush2.bf16.msra.mxu0 %v2026
        %2336 = vmatprep.subr.bf16.mxu0 0
        %2337 = vmatpush2.bf16.msra.mxu0 %v2025
        %2338 = vmatprep.mubr.bf16.mxu0 %v1504
        %2339 = vmatmul.mubr.bf16.gmra.mxu0 %v1503
        %v2340 = vpop.f32.mrf.mxu0
        %v2341 = vadd.f32 %v2292, %v2340
        %v2342 = vpop.f32.mrf.mxu0
        %v2343 = vpop.f32.mrf.mxu0
        %v2344 = vadd.f32 %v2295, %v2343
        %v2345 = vpop.f32.mrf.mxu0
        %2346 = vmatprep.mubr.bf16.mxu0 %v1518
        %2347 = vmatmul.mubr.bf16.gmra.mxu0 %v1517
        %v2348 = vpop.f32.mrf.mxu0
        %v2349 = vadd.f32 %v2300, %v2348
        %v2350 = vpop.f32.mrf.mxu0
        %v2351 = vpop.f32.mrf.mxu0
        %v2352 = vadd.f32 %v2303, %v2351
        %v2353 = vpop.f32.mrf.mxu0
        %2354 = vdwg.mxu0
        %2355 = vmatprep.subr.bf16.mxu0 0
        %2356 = vmatpush1.bf16.msra.mxu0 %v2040
        %2357 = vmatprep.subr.bf16.mxu0 0
        %2358 = vmatpush1.bf16.msra.mxu0 %v2039
        %2359 = vmatprep.subr.bf16.mxu0 0
        %2360 = vmatpush1.bf16.msra.mxu0 %v2038
        %2361 = vmatprep.subr.bf16.mxu0 0
        %2362 = vmatpush1.bf16.msra.mxu0 %v2037
        %2363 = vmatprep.subr.bf16.mxu0 0
        %2364 = vmatpush1.bf16.msra.mxu0 %v2036
        %2365 = vmatprep.subr.bf16.mxu0 0
        %2366 = vmatpush1.bf16.msra.mxu0 %v2035
        %2367 = vmatprep.subr.bf16.mxu0 0
        %2368 = vmatpush1.bf16.msra.mxu0 %v2034
        %2369 = vmatprep.subr.bf16.mxu0 0
        %2370 = vmatpush1.bf16.msra.mxu0 %v2033
        %2371 = vmatprep.subr.bf16.mxu0 0
        %2372 = vmatpush2.bf16.msra.mxu0 %v2048
        %2373 = vmatprep.subr.bf16.mxu0 0
        %2374 = vmatpush2.bf16.msra.mxu0 %v2047
        %2375 = vmatprep.subr.bf16.mxu0 0
        %2376 = vmatpush2.bf16.msra.mxu0 %v2046
        %2377 = vmatprep.subr.bf16.mxu0 0
        %2378 = vmatpush2.bf16.msra.mxu0 %v2045
        %2379 = vmatprep.subr.bf16.mxu0 0
        %2380 = vmatpush2.bf16.msra.mxu0 %v2044
        %2381 = vmatprep.subr.bf16.mxu0 0
        %2382 = vmatpush2.bf16.msra.mxu0 %v2043
        %2383 = vmatprep.subr.bf16.mxu0 0
        %2384 = vmatpush2.bf16.msra.mxu0 %v2042
        %2385 = vmatprep.subr.bf16.mxu0 0
        %2386 = vmatpush2.bf16.msra.mxu0 %v2041
        %2387 = vmatprep.mubr.bf16.mxu0 %v1506
        %2388 = vmatmul.mubr.bf16.gmra.mxu0 %v1505
        %v2389 = vpop.f32.mrf.mxu0
        %v2390 = vadd.f32 %v2341, %v2389
        %v2391 = vpop.f32.mrf.mxu0
        %v2392 = vpop.f32.mrf.mxu0
        %v2393 = vadd.f32 %v2344, %v2392
        %v2394 = vpop.f32.mrf.mxu0
        %2395 = vmatprep.mubr.bf16.mxu0 %v1520
        %2396 = vmatmul.mubr.bf16.gmra.mxu0 %v1519
        %v2397 = vpop.f32.mrf.mxu0
        %v2398 = vadd.f32 %v2349, %v2397
        %v2399 = vpop.f32.mrf.mxu0
        %v2400 = vpop.f32.mrf.mxu0
        %v2401 = vadd.f32 %v2352, %v2400
        %v2402 = vpop.f32.mrf.mxu0
        %2403 = vdwg.mxu0
        %2404 = vmatprep.subr.bf16.mxu0 0
        %2405 = vmatpush1.bf16.msra.mxu0 %v2056
        %2406 = vmatprep.subr.bf16.mxu0 0
        %2407 = vmatpush1.bf16.msra.mxu0 %v2055
        %2408 = vmatprep.subr.bf16.mxu0 0
        %2409 = vmatpush1.bf16.msra.mxu0 %v2054
        %2410 = vmatprep.subr.bf16.mxu0 0
        %2411 = vmatpush1.bf16.msra.mxu0 %v2053
        %2412 = vmatprep.subr.bf16.mxu0 0
        %2413 = vmatpush1.bf16.msra.mxu0 %v2052
        %2414 = vmatprep.subr.bf16.mxu0 0
        %2415 = vmatpush1.bf16.msra.mxu0 %v2051
        %2416 = vmatprep.subr.bf16.mxu0 0
        %2417 = vmatpush1.bf16.msra.mxu0 %v2050
        %2418 = vmatprep.subr.bf16.mxu0 0
        %2419 = vmatpush1.bf16.msra.mxu0 %v2049
        %2420 = vmatprep.subr.bf16.mxu0 0
        %2421 = vmatpush2.bf16.msra.mxu0 %v2064
        %2422 = vmatprep.subr.bf16.mxu0 0
        %2423 = vmatpush2.bf16.msra.mxu0 %v2063
        %2424 = vmatprep.subr.bf16.mxu0 0
        %2425 = vmatpush2.bf16.msra.mxu0 %v2062
        %2426 = vmatprep.subr.bf16.mxu0 0
        %2427 = vmatpush2.bf16.msra.mxu0 %v2061
        %2428 = vmatprep.subr.bf16.mxu0 0
        %2429 = vmatpush2.bf16.msra.mxu0 %v2060
        %2430 = vmatprep.subr.bf16.mxu0 0
        %2431 = vmatpush2.bf16.msra.mxu0 %v2059
        %2432 = vmatprep.subr.bf16.mxu0 0
        %2433 = vmatpush2.bf16.msra.mxu0 %v2058
        %2434 = vmatprep.subr.bf16.mxu0 0
        %2435 = vmatpush2.bf16.msra.mxu0 %v2057
        %2436 = vmatprep.mubr.bf16.mxu0 %v1508
        %2437 = vmatmul.mubr.bf16.gmra.mxu0 %v1507
        %v2438 = vpop.f32.mrf.mxu0
        %v2439 = vadd.f32 %v2390, %v2438
        %v2440 = vpop.f32.mrf.mxu0
        %v2441 = vpop.f32.mrf.mxu0
        %v2442 = vadd.f32 %v2393, %v2441
        %v2443 = vpop.f32.mrf.mxu0
        %2444 = vmatprep.mubr.bf16.mxu0 %v1522
        %2445 = vmatmul.mubr.bf16.gmra.mxu0 %v1521
        %v2446 = vpop.f32.mrf.mxu0
        %v2447 = vadd.f32 %v2398, %v2446
        %v2448 = vpop.f32.mrf.mxu0
        %v2449 = vpop.f32.mrf.mxu0
        %v2450 = vadd.f32 %v2401, %v2449
        %v2451 = vpop.f32.mrf.mxu0
        %2452 = vdwg.mxu0
        %2453 = vmatprep.subr.bf16.mxu0 0
        %2454 = vmatpush1.bf16.msra.mxu0 %v2072
        %2455 = vmatprep.subr.bf16.mxu0 0
        %2456 = vmatpush1.bf16.msra.mxu0 %v2071
        %2457 = vmatprep.subr.bf16.mxu0 0
        %2458 = vmatpush1.bf16.msra.mxu0 %v2070
        %2459 = vmatprep.subr.bf16.mxu0 0
        %2460 = vmatpush1.bf16.msra.mxu0 %v2069
        %2461 = vmatprep.subr.bf16.mxu0 0
        %2462 = vmatpush1.bf16.msra.mxu0 %v2068
        %2463 = vmatprep.subr.bf16.mxu0 0
        %2464 = vmatpush1.bf16.msra.mxu0 %v2067
        %2465 = vmatprep.subr.bf16.mxu0 0
        %2466 = vmatpush1.bf16.msra.mxu0 %v2066
        %2467 = vmatprep.subr.bf16.mxu0 0
        %2468 = vmatpush1.bf16.msra.mxu0 %v2065
        %2469 = vmatprep.subr.bf16.mxu0 0
        %2470 = vmatpush2.bf16.msra.mxu0 %v2080
        %2471 = vmatprep.subr.bf16.mxu0 0
        %2472 = vmatpush2.bf16.msra.mxu0 %v2079
        %2473 = vmatprep.subr.bf16.mxu0 0
        %2474 = vmatpush2.bf16.msra.mxu0 %v2078
        %2475 = vmatprep.subr.bf16.mxu0 0
        %2476 = vmatpush2.bf16.msra.mxu0 %v2077
        %2477 = vmatprep.subr.bf16.mxu0 0
        %2478 = vmatpush2.bf16.msra.mxu0 %v2076
        %2479 = vmatprep.subr.bf16.mxu0 0
        %2480 = vmatpush2.bf16.msra.mxu0 %v2075
        %2481 = vmatprep.subr.bf16.mxu0 0
        %2482 = vmatpush2.bf16.msra.mxu0 %v2074
        %2483 = vmatprep.subr.bf16.mxu0 0
        %2484 = vmatpush2.bf16.msra.mxu0 %v2073
        %2485 = vmatprep.mubr.bf16.mxu0 %v1510
        %2486 = vmatmul.mubr.bf16.gmra.mxu0 %v1509
        %v2487 = vpop.f32.mrf.mxu0
        %v2488 = vadd.f32 %v2439, %v2487
        %v2489 = vpop.f32.mrf.mxu0
        %v2490 = vpop.f32.mrf.mxu0
        %v2491 = vadd.f32 %v2442, %v2490
        %v2492 = vpop.f32.mrf.mxu0
        %2493 = vmatprep.mubr.bf16.mxu0 %v1524
        %2494 = vmatmul.mubr.bf16.gmra.mxu0 %v1523
        %v2495 = vpop.f32.mrf.mxu0
        %v2496 = vadd.f32 %v2447, %v2495
        %v2497 = vpop.f32.mrf.mxu0
        %v2498 = vpop.f32.mrf.mxu0
        %v2499 = vadd.f32 %v2450, %v2498
        %v2500 = vpop.f32.mrf.mxu0
        %2501 = vdwg.mxu0
        %2502 = vmatprep.subr.bf16.mxu0 0
        %2503 = vmatpush1.bf16.msra.mxu0 %v2088
        %2504 = vmatprep.subr.bf16.mxu0 0
        %2505 = vmatpush1.bf16.msra.mxu0 %v2087
        %2506 = vmatprep.subr.bf16.mxu0 0
        %2507 = vmatpush1.bf16.msra.mxu0 %v2086
        %2508 = vmatprep.subr.bf16.mxu0 0
        %2509 = vmatpush1.bf16.msra.mxu0 %v2085
        %2510 = vmatprep.subr.bf16.mxu0 0
        %2511 = vmatpush1.bf16.msra.mxu0 %v2084
        %2512 = vmatprep.subr.bf16.mxu0 0
        %2513 = vmatpush1.bf16.msra.mxu0 %v2083
        %2514 = vmatprep.subr.bf16.mxu0 0
        %2515 = vmatpush1.bf16.msra.mxu0 %v2082
        %2516 = vmatprep.subr.bf16.mxu0 0
        %2517 = vmatpush1.bf16.msra.mxu0 %v2081
        %2518 = vmatprep.subr.bf16.mxu0 0
        %2519 = vmatpush2.bf16.msra.mxu0 0
        %2520 = vmatprep.subr.bf16.mxu0 0
        %2521 = vmatpush2.bf16.msra.mxu0 0
        %2522 = vmatprep.subr.bf16.mxu0 0
        %2523 = vmatpush2.bf16.msra.mxu0 0
        %2524 = vmatprep.subr.bf16.mxu0 0
        %2525 = vmatpush2.bf16.msra.mxu0 0
        %2526 = vmatprep.subr.bf16.mxu0 0
        %2527 = vmatpush2.bf16.msra.mxu0 %v2092
        %2528 = vmatprep.subr.bf16.mxu0 0
        %2529 = vmatpush2.bf16.msra.mxu0 %v2091
        %2530 = vmatprep.subr.bf16.mxu0 0
        %2531 = vmatpush2.bf16.msra.mxu0 %v2090
        %2532 = vmatprep.subr.bf16.mxu0 0
        %2533 = vmatpush2.bf16.msra.mxu0 %v2089
        %2534 = vmatprep.mubr.bf16.mxu0 %v2203
        %2535 = vmatmul.mubr.bf16.gmra.mxu0 %v1511
        %v2536 = vpop.f32.mrf.mxu0
        %v2537 = vadd.f32 %v2488, %v2536
        %v2538 = vpop.f32.mrf.mxu0
        %v2539 = vpop.f32.mrf.mxu0
        %v2540 = vadd.f32 %v2491, %v2539
        %v2541 = vpop.f32.mrf.mxu0
        %2542 = vmatprep.mubr.bf16.mxu0 %v2206
        %2543 = vmatmul.mubr.bf16.gmra.mxu0 %v1525
        %v2544 = vpop.f32.mrf.mxu0
        %v2545 = vadd.f32 %v2496, %v2544
        %v2546 = vpop.f32.mrf.mxu0
        %v2547 = vpop.f32.mrf.mxu0
        %v2548 = vadd.f32 %v2499, %v2547
        %v2549 = vpop.f32.mrf.mxu0
        %2550 = vdwg.mxu0
        %v2551 = vadd.f32 %v1167, %v2537
        %v2552 = vadd.f32 %v1168, %v2540
        %v2553 = vadd.f32 %v1169, %v2545
        %v2554 = vadd.f32 %v1170, %v2548
        %2555 = vst [vmem:[#allocation2] sm:$0xff] %v2551
        %2556 = vst [vmem:[#allocation2 + $0x8] sm:$0xff] %v2552
        %2557 = vst [vmem:[#allocation2 + $0x10] sm:$0xff] %v2553
        %2558 = vst [vmem:[#allocation2 + $0x18] sm:$0xff] %v2554
        // Predicated region
        $region78: #{_lambda_.10} parent=68 // pred_check
          %p2559 = pneg %p1152
        $region79: #{_lambda_.10} parent=68 // pred_check_branch
          %2561 = sbr.rel (%p2559) target = $region81
        $region80: #{_lambda_.10} parent=68 // pred_region
          %v2562 = vld [vmem:[#allocation2] sm:$0xff]
          %v2563 = vld [vmem:[#allocation2 + $0x8] sm:$0xff]
          %v2564 = vld [vmem:[#allocation2 + $0x10] sm:$0xff]
          %v2565 = vld [vmem:[#allocation2 + $0x18] sm:$0xff]
          %v2566 = vmax.f32 %v2562, 0.0
          %v2567 = vmax.f32 %v2563, 0.0
          %v2568 = vmax.f32 %v2564, 0.0
          %v2569 = vmax.f32 %v2565, 0.0
          %v2570 = vpack.c.bf16 %v2567, %v2566
          %v2571 = vpack.c.bf16 %v2569, %v2568
          %v2574 = vunpack.c.l.b16 %v2570
          %v2575 = vunpack.c.h.b16 %v2570
          %v2576 = vunpack.c.l.b16 %v2571
          %v2577 = vunpack.c.h.b16 %v2571
          %v2578 = vpack.c.b16 %v2574, %v2574
          %v2579 = vpack.c.b16 %v2575, %v2575
          %v2580 = vpack.c.b16 %v2576, %v2576
          %v2581 = vpack.c.b16 %v2577, %v2577
          %2586 = vst [vmem:[%s1133] sm:$0xf] %v2578
          %2587 = vst [vmem:[%s1133 + $0x4] sm:$0xf] %v2579
          %2588 = vst [vmem:[%s1133 + $0x8] sm:$0xf] %v2580
          %2589 = vst [vmem:[%s1133 + $0xc] sm:$0xf] %v2581
        $region81: #{_lambda_.10} parent=68 // pred_fallthru
          _
        %s2590 = sand.u32 %s125, 1
        %s2591 = sand.u32 %s125, 1
        %s2592 = smul.addr %s2591, 16
        %s2593 = scalar_lea.vmem [#allocation4], %s2592
        // Predicated region
        $region82: #{_lambda_.10} parent=68 // pred_check
          %p2594 = pneg %p135
        $region83: #{_lambda_.10} parent=68 // pred_check_branch
          %2596 = sbr.rel (%p2594) target = $region85
        $region84: #{_lambda_.10} parent=68 // pred_region
          %s2597 = smul.u32 4, %s20
          %s2598 = smul.addr %s2597, 3
          %s2599 = sadd.s32 %s19, %s2598
          %s2600 = smul.addr %s2599, 4
          %s2601 = scalar_lea.vmem %s3, %s2600
          // Predicated region
          $region86: #{_lambda_.10} parent=84 // pred_check
            _
          $region87: #{_lambda_.10} parent=84 // pred_check_branch
            %2603 = sbr.rel (0) target = $region89
          $region88: #{_lambda_.10} parent=84 // pred_region
            // Predicated region
            $region90: #{_lambda_.10} parent=88 // pred_check
              _
            $region91: #{_lambda_.10} parent=88 // pred_check_branch
              %2605 = sbr.rel target = $region93
            $region92: #{_lambda_.10} parent=88 // pred_region
              // Predicated region
              $region105: #{_lambda_.10} parent=92 // pred_check
                _
              $region106: #{_lambda_.10} parent=92 // pred_check_branch
                %2627 = sbr.rel (0) target = $region108
              $region107: #{_lambda_.10} parent=92 // pred_region
                loop: start=0, step=1, limit=1
                $region109: #{_lambda_.10} parent=107 // loop_pre_header
                  _
                $region110: #{_lambda_.10} parent=107 // loop_header
                  %s2629 = sphi 0, %s2633
                  %p2630 = scmp.ge.s32.totalorder %s2629, 1
                  %s2634 = sphi %s2593, %s2593
                  %s2635 = sphi %s2601, %s2601
                $region111: #{_lambda_.10} parent=107 // loop_header_branch
                  %2632 = sbr.rel (%p2630) target = $region115
                $region112: #{_lambda_.10} parent=107 // loop_body
                  _
                $region113: #{_lambda_.10} parent=107 // loop_footer
                  %s2633 = sadd.s32 1, %s2629
                $region114: #{_lambda_.10} parent=107 // loop_footer_branch
                  %2628 = sbr.rel target = $region110
                $region115: #{_lambda_.10} parent=107 // loop_exit
                  _
                %s2637 = ssub.s32 16, 1
                loop: start=0, step=1, limit=1
                $region116: #{_lambda_.10} parent=107 // loop_pre_header
                  _
                $region117: #{_lambda_.10} parent=107 // loop_header
                  %s2639 = sphi 0, %s2643
                  %p2640 = scmp.ge.s32.totalorder %s2639, 1
                  %s2644 = sphi %s2593, %s2593
                  %s2645 = sphi %s2601, %s2601
                $region118: #{_lambda_.10} parent=107 // loop_header_branch
                  %2642 = sbr.rel (%p2640) target = $region122
                $region119: #{_lambda_.10} parent=107 // loop_body
                  %v2646 = vld [vmem:[%s2644] sm:%s2637]
                  %2647 = vst [vmem:[%s2645] sm:%s2637] %v2646
                  %v2648 = vld [vmem:[%s2644 + $0x4] sm:%s2637]
                  %2649 = vst [vmem:[%s2645 + $0xc] sm:%s2637] %v2648
                  %v2650 = vld [vmem:[%s2644 + $0x8] sm:%s2637]
                  %2651 = vst [vmem:[%s2645 + $0x18] sm:%s2637] %v2650
                  %v2652 = vld [vmem:[%s2644 + $0xc] sm:%s2637]
                  %2653 = vst [vmem:[%s2645 + $0x24] sm:%s2637] %v2652
                $region120: #{_lambda_.10} parent=107 // loop_footer
                  %s2643 = sadd.s32 1, %s2639
                $region121: #{_lambda_.10} parent=107 // loop_footer_branch
                  %2638 = sbr.rel target = $region117
                $region122: #{_lambda_.10} parent=107 // loop_exit
                  _
              $region108: #{_lambda_.10} parent=92 // pred_fallthru
                _
            $region93: #{_lambda_.10} parent=88 // pred_fallthru
              _
            // Predicated region
            $region94: #{_lambda_.10} parent=88 // pred_check
              _
            $region95: #{_lambda_.10} parent=88 // pred_check_branch
              %2607 = sbr.rel (0) target = $region97
            $region96: #{_lambda_.10} parent=88 // pred_region
              %s2609 = ssub.s32 16, 1
              loop: start=0, step=1, limit=1
              $region98: #{_lambda_.10} parent=96 // loop_pre_header
                _
              $region99: #{_lambda_.10} parent=96 // loop_header
                %s2611 = sphi 0, %s2615
                %p2612 = scmp.ge.s32.totalorder %s2611, 1
                %s2616 = sphi %s2593, %s2593
                %s2617 = sphi %s2601, %s2601
              $region100: #{_lambda_.10} parent=96 // loop_header_branch
                %2614 = sbr.rel (%p2612) target = $region104
              $region101: #{_lambda_.10} parent=96 // loop_body
                %v2618 = vld [vmem:[%s2616] sm:%s2609]
                %2619 = vst [vmem:[%s2617] sm:%s2609] %v2618
                %v2620 = vld [vmem:[%s2616 + $0x4] sm:%s2609]
                %2621 = vst [vmem:[%s2617 + $0xc] sm:%s2609] %v2620
                %v2622 = vld [vmem:[%s2616 + $0x8] sm:%s2609]
                %2623 = vst [vmem:[%s2617 + $0x18] sm:%s2609] %v2622
                %v2624 = vld [vmem:[%s2616 + $0xc] sm:%s2609]
                %2625 = vst [vmem:[%s2617 + $0x24] sm:%s2609] %v2624
              $region102: #{_lambda_.10} parent=96 // loop_footer
                %s2615 = sadd.s32 1, %s2611
              $region103: #{_lambda_.10} parent=96 // loop_footer_branch
                %2610 = sbr.rel target = $region99
              $region104: #{_lambda_.10} parent=96 // loop_exit
                _
            $region97: #{_lambda_.10} parent=88 // pred_fallthru
              _
          $region89: #{_lambda_.10} parent=84 // pred_fallthru
            _
          %2654 = vnop
        $region85: #{_lambda_.10} parent=68 // pred_fallthru
          _
      $region69: #{_lambda_.10} parent=5 // pred_fallthru
        _
      %p2655 = scmp.le.s32.totalorder 2, %s9
      // Predicated region
      $region123: #{_lambda_.10} parent=5 // pred_check
        %p2656 = pneg %p2655
      $region124: #{_lambda_.10} parent=5 // pred_check_branch
        %2658 = sbr.rel (%p2656) target = $region126
      $region125: #{_lambda_.10} parent=5 // pred_region
        %s2659 = ssub.s32 %s9, 2
        // Predicated region
        $region127: #{_lambda_.10} parent=125 // pred_check
          %p2660 = pneg %p141
        $region128: #{_lambda_.10} parent=125 // pred_check_branch
          %2662 = sbr.rel (%p2660) target = $region130
        $region129: #{_lambda_.10} parent=125 // pred_region
          %s2663 = sand.u32 %s126, 1
          %s2664 = sand.u32 %s126, 1
          %s2665 = smul.addr %s2664, 16
          %s2666 = scalar_lea.vmem [#allocation4], %s2665
        $region130: #{_lambda_.10} parent=125 // pred_fallthru
          _
      $region126: #{_lambda_.10} parent=5 // pred_fallthru
        _
    $region6: #{_lambda_.10} parent=1 // loop_footer
      %s13 = sadd.s32 1, %s9
    $region7: #{_lambda_.10} parent=1 // loop_footer_branch
      %8 = sbr.rel target = $region3
    $region8: #{_lambda_.10} parent=1 // loop_exit
      _

</llo_original>
